<compile_context>
chip_gen: v7x
topology: tpu7x:2x2x1
jax: 0.10.0
libtpu: 0.0.40
codegen_flags: <defaults>
</compile_context>

<pallas_src>
import math
import functools

import jax
import jax.numpy as jnp
from jax.experimental import pallas as pl
from jax.experimental.pallas import tpu as pltpu

LN_EPS = 1e-5   # PyTorch LayerNorm default eps
BN_EPS = 1e-5   # PyTorch BatchNorm1d default eps


def _layernorm(x, g, b):
    m = jnp.mean(x, axis=-1, keepdims=True)
    v = jnp.mean(jnp.square(x - m), axis=-1, keepdims=True)
    return (x - m) * jax.lax.rsqrt(v + LN_EPS) * g + b


# --------------------------------------------------------------------------------------
# Single fused kernel: embedding -> encoder layers -> en_ln -> heads -> sigmoid
# --------------------------------------------------------------------------------------
def fused_forward_kernel(
        # embedding / pre-norm
        seg_ref, emb_w_ref, emb_b_ref, pos_ref, pre_g_ref, pre_b_ref,
        # per-layer weights, stacked on a leading layer axis
        wqkv_ref, bqkv_ref, wo_ref, bo_ref, ln1_g_ref, ln1_b_ref,
        ff_w1_ref, ff_b1_ref, ff_w2_ref, ff_b2_ref, ln2_g_ref, ln2_b_ref,
        # en_ln + heads
        en_g_ref, en_b_ref, dec_w_ref, dec_b_ref,
        det_g_ref, det_b_ref, det_w_ref, det_bb_ref,
        # output
        o_ref,
        *, num_layers, nhead, batch, nseg):
    D = emb_w_ref.shape[1]
    dh = D // nhead
    scale = 1.0 / math.sqrt(dh)

    # --- FP_embedding + enc_pos_embedding + pre_norm (batch folded into rows) ---
    x = jnp.dot(seg_ref[...], emb_w_ref[...], preferred_element_type=jnp.float32)
    x = x + emb_b_ref[...] + pos_ref[...]                           # (B*N, D)
    x = _layernorm(x, pre_g_ref[...], pre_b_ref[...])

    # --- encoder layers (static Python loop, weights indexed statically) ---
    for l in range(num_layers):
        # fused QKV projection: one (B*N, D) x (D, 3D) matmul
        qkv = jnp.dot(x, wqkv_ref[l], preferred_element_type=jnp.float32) + bqkv_ref[l]
        # fold attention scale into Q once (cheaper than scaling each (B,N,N) score)
        q3 = (qkv[:, 0 * D:1 * D] * scale).reshape(batch, nseg, D)
        k3 = qkv[:, 1 * D:2 * D].reshape(batch, nseg, D)
        v3 = qkv[:, 2 * D:3 * D].reshape(batch, nseg, D)

        # multi-head self-attention, batched over the batch dim via 3-D einsum
        ctx_heads = []
        for h in range(nhead):                                      # static head loop
            sl = slice(h * dh, (h + 1) * dh)
            qh, kh, vh = q3[..., sl], k3[..., sl], v3[..., sl]
            s = jnp.einsum("bqd,bkd->bqk", qh, kh,
                           preferred_element_type=jnp.float32)      # (B, N, N)
            s = s - jnp.max(s, axis=-1, keepdims=True)
            p = jnp.exp(s)
            p = p * pl.reciprocal(jnp.sum(p, axis=-1, keepdims=True), approx=True)
            ctx_heads.append(jnp.einsum("bqk,bkd->bqd", p, vh,
                                        preferred_element_type=jnp.float32))
        ctx = jnp.concatenate(ctx_heads, axis=-1).reshape(batch * nseg, D)

        # single output projection over all heads
        attn = jnp.dot(ctx, wo_ref[l], preferred_element_type=jnp.float32) + bo_ref[l]

        x = _layernorm(x + attn, ln1_g_ref[l], ln1_b_ref[l])        # norm1 (post-norm)
        hdn = jnp.maximum(
            jnp.dot(x, ff_w1_ref[l], preferred_element_type=jnp.float32) + ff_b1_ref[l],
            0.0)
        ff = jnp.dot(hdn, ff_w2_ref[l], preferred_element_type=jnp.float32) + ff_b2_ref[l]
        # norm2 with eval-mode BatchNorm1d folded into the LN affine (host-side fold)
        x = _layernorm(x + ff, ln2_g_ref[l], ln2_b_ref[l])

    # --- en_ln + heads: Linear(D->1) -> Flatten(-2) -> LayerNorm(N) -> Linear(N->1) ---
    x = _layernorm(x, en_g_ref[...], en_b_ref[...])                 # (B*N, D)
    x3 = x.reshape(batch, nseg, D)
    y = jnp.sum(x3 * dec_w_ref[...], axis=-1) + dec_b_ref[...]      # (B, N)
    y = _layernorm(y, det_g_ref[...], det_b_ref[...])               # LayerNorm(N)
    z = jnp.sum(y * det_w_ref[...], axis=-1, keepdims=True) + det_bb_ref[...]   # (B, 1)
    o_ref[...] = 1.0 / (1.0 + jnp.exp(-z))                          # process_feature_data


# --------------------------------------------------------------------------------------
# Wrapper
# --------------------------------------------------------------------------------------
def msencoder_forward(params, fft_feature, *, seq_length, seg_len, nhead):
    assert fft_feature.ndim == 2, "src: Expected (batch_size, seq_length)"
    B = fft_feature.shape[0]
    N = seq_length // seg_len
    D = params["emb_w"].shape[1]
    layers = params["layers"]
    L = len(layers)

    # get_src_data + segmentation glue (token-major (B*N, seg_len))
    src = fft_feature[:, :seq_length].astype(jnp.float32)
    seg = src.reshape(B * N, seg_len)

    # positional embedding tiled to batch-folded rows (row b*N + n -> pos[n])
    pos_bn = jnp.tile(params["pos"], (B, 1))

    # stack per-layer weights on a leading layer axis; fuse Wq/Wk/Wv -> (D, 3D)
    stk = lambda name: jnp.stack([lp[name] for lp in layers], axis=0)
    wqkv = jnp.stack([jnp.concatenate([lp["wq"], lp["wk"], lp["wv"]], axis=1)
                      for lp in layers], axis=0)                    # (L, D, 3D)
    bqkv = jnp.stack([jnp.concatenate([lp["bq"], lp["bk"], lp["bv"]], axis=1)
                      for lp in layers], axis=0)                    # (L, 1, 3D)

    # fold eval-mode BatchNorm1d (per-channel scale/bias) into the LayerNorm-2 affine:
    #   BN(LN2(u)) = norm(u) * (g2*s) + (b2*s + c)
    ln2_g_f = jnp.stack([lp["ln2_g"] * lp["bn_scale"] for lp in layers], axis=0)
    ln2_b_f = jnp.stack([lp["ln2_b"] * lp["bn_scale"] + lp["bn_bias"]
                         for lp in layers], axis=0)

    args = [seg, params["emb_w"], params["emb_b"], pos_bn,
            params["pre_ln_g"], params["pre_ln_b"],
            wqkv, bqkv, stk("wo"), stk("bo"), stk("ln1_g"), stk("ln1_b"),
            stk("ff_w1"), stk("ff_b1"), stk("ff_w2"), stk("ff_b2"),
            ln2_g_f, ln2_b_f,
            params["en_ln_g"], params["en_ln_b"], params["dec_w"], params["dec_b"],
            params["det_ln_g"], params["det_ln_b"], params["det_w"], params["det_b"]]

    kernel = functools.partial(fused_forward_kernel, num_layers=L, nhead=nhead,
                               batch=B, nseg=N)
    vmem = pl.BlockSpec(memory_space=pltpu.MemorySpace.VMEM)   # whole array in VMEM
    return pl.pallas_call(
        kernel,
        out_shape=jax.ShapeDtypeStruct((B, 1), jnp.float32),
        in_specs=[vmem] * len(args),
        out_specs=vmem,
    )(*args)


# --------------------------------------------------------------------------------------
# Deterministic parameter construction (synthetic, no checkpoint)
# --------------------------------------------------------------------------------------
def init_params(key, *, seq_length, seg_len, d_model, num_layers, nclass):
    assert nclass == 1, "heads Sequential (Flatten + LayerNorm(N)) only type-checks for nclass == 1"
    N = seq_length // seg_len
    ffd = d_model * 4

    counter = [0]

    def nrm(shape, scale=0.05):
        counter[0] += 1
        k = jax.random.fold_in(key, counter[0])
        return (scale * jax.random.normal(k, shape)).astype(jnp.float32)

    ones = lambda s: jnp.ones(s, jnp.float32)
    zeros = lambda s: jnp.zeros(s, jnp.float32)

    params = {
        "emb_w": nrm((seg_len, d_model)),           # FP_embedding Linear (in x out layout)
        "emb_b": nrm((1, d_model)),
        "pos": nrm((N, d_model)),                   # enc_pos_embedding
        "pre_ln_g": ones((1, d_model)), "pre_ln_b": zeros((1, d_model)),
        "en_ln_g": ones((1, d_model)), "en_ln_b": zeros((1, d_model)),
        "dec_w": nrm((1, d_model)),                 # decoder_header weight (out=1, in=D)
        "dec_b": zeros((1, 1)),
        "det_ln_g": ones((1, N)), "det_ln_b": zeros((1, N)),
        "det_w": nrm((1, N)),                       # detection_header weight (out=1, in=N)
        "det_b": zeros((1, 1)),
        "layers": [],
    }
    bn_scale = 1.0 / math.sqrt(1.0 + BN_EPS)        # eval BN with init running stats (mu=0, var=1)
    for _ in range(num_layers):
        params["layers"].append({
            "wq": nrm((d_model, d_model)), "bq": nrm((1, d_model)),
            "wk": nrm((d_model, d_model)), "bk": nrm((1, d_model)),
            "wv": nrm((d_model, d_model)), "bv": nrm((1, d_model)),
            "wo": nrm((d_model, d_model)), "bo": nrm((1, d_model)),
            "ln1_g": ones((1, d_model)), "ln1_b": zeros((1, d_model)),
            "ff_w1": nrm((d_model, ffd)), "ff_b1": nrm((1, ffd)),
            "ff_w2": nrm((ffd, d_model)), "ff_b2": nrm((1, d_model)),
            "ln2_g": ones((1, d_model)), "ln2_b": zeros((1, d_model)),
            "bn_scale": jnp.full((1, d_model), bn_scale, jnp.float32),
            "bn_bias": zeros((1, d_model)),
        })
    return params


# --------------------------------------------------------------------------------------
# Pure-JAX reference (same math, no Pallas, no folds) for a correctness sanity check
# --------------------------------------------------------------------------------------
def reference_forward(params, fft_feature, *, seq_length, seg_len, nhead):
    B = fft_feature.shape[0]
    N = seq_length // seg_len
    x = fft_feature[:, :seq_length].astype(jnp.float32).reshape(B, N, seg_len)
    x = x @ params["emb_w"] + params["emb_b"] + params["pos"]
    x = _layernorm(x, params["pre_ln_g"], params["pre_ln_b"])
    D = x.shape[-1]
    dh = D // nhead
    for lp in params["layers"]:
        q = x @ lp["wq"] + lp["bq"]
        k = x @ lp["wk"] + lp["bk"]
        v = x @ lp["wv"] + lp["bv"]
        qh = q.reshape(B, N, nhead, dh).transpose(0, 2, 1, 3)
        kh = k.reshape(B, N, nhead, dh).transpose(0, 2, 1, 3)
        vh = v.reshape(B, N, nhead, dh).transpose(0, 2, 1, 3)
        s = jnp.einsum("bhnd,bhmd->bhnm", qh, kh) / math.sqrt(dh)
        p = jax.nn.softmax(s, axis=-1)
        ctx = jnp.einsum("bhnm,bhmd->bhnd", p, vh).transpose(0, 2, 1, 3).reshape(B, N, D)
        attn = ctx @ lp["wo"] + lp["bo"]
        x = _layernorm(x + attn, lp["ln1_g"], lp["ln1_b"])
        ff = jnp.maximum(x @ lp["ff_w1"] + lp["ff_b1"], 0.0) @ lp["ff_w2"] + lp["ff_b2"]
        x = _layernorm(x + ff, lp["ln2_g"], lp["ln2_b"])
        x = x * lp["bn_scale"] + lp["bn_bias"]
    x = _layernorm(x, params["en_ln_g"], params["en_ln_b"])
    y = jnp.sum(x * params["dec_w"], axis=-1) + params["dec_b"][0, 0]
    y = _layernorm(y, params["det_ln_g"], params["det_ln_b"])
    z = jnp.sum(y * params["det_w"], axis=-1, keepdims=True) + params["det_b"][0, 0]
    return jax.nn.sigmoid(z)


if __name__ == "__main__":
    # args: d_model=32, num_layers=2, nclass=1, dropout=0.1 (identity in eval),
    #       mask_freq(seq_length)=128, seg_len=16  =>  N = 8 segments, nhead = 8
    B = 2
    seq_length = 128
    seg_len = 16
    d_model = 32
    num_layers = 2
    nhead = 8
    nclass = 1

    key = jax.random.PRNGKey(0)
    k_data, k_params = jax.random.split(key)
    params = init_params(k_params, seq_length=seq_length, seg_len=seg_len,
                         d_model=d_model, num_layers=num_layers, nclass=nclass)

    # data['batch_x_maskedfft'] : (B, S) with S >= seq_length (get_src_data slices it)
    fft_feature = jax.random.normal(k_data, (B, seq_length + 16), dtype=jnp.float32)

    out = msencoder_forward(params, fft_feature, seq_length=seq_length,
                            seg_len=seg_len, nhead=nhead)
    out = jax.block_until_ready(out)

    ref = reference_forward(params, fft_feature, seq_length=seq_length,
                            seg_len=seg_len, nhead=nhead)

    assert out.shape == (B, nclass), out.shape
    assert bool(jnp.all(jnp.isfinite(out)))
    max_diff = float(jnp.max(jnp.abs(out - ref)))
    assert max_diff < 1e-2, f"mismatch vs reference: {max_diff}"
    print("KERNEL_OK")
</pallas_src>

<mosaic_0001>
module attributes {stable_mosaic.version = 11 : i64} {
  func.func @fused_forward_kernel(%arg0: memref<16x16xf32, #tpu.memory_space<vmem>>, %arg1: memref<16x32xf32, #tpu.memory_space<vmem>>, %arg2: memref<1x32xf32, #tpu.memory_space<vmem>>, %arg3: memref<16x32xf32, #tpu.memory_space<vmem>>, %arg4: memref<1x32xf32, #tpu.memory_space<vmem>>, %arg5: memref<1x32xf32, #tpu.memory_space<vmem>>, %arg6: memref<2x32x96xf32, #tpu.memory_space<vmem>>, %arg7: memref<2x1x96xf32, #tpu.memory_space<vmem>>, %arg8: memref<2x32x32xf32, #tpu.memory_space<vmem>>, %arg9: memref<2x1x32xf32, #tpu.memory_space<vmem>>, %arg10: memref<2x1x32xf32, #tpu.memory_space<vmem>>, %arg11: memref<2x1x32xf32, #tpu.memory_space<vmem>>, %arg12: memref<2x32x128xf32, #tpu.memory_space<vmem>>, %arg13: memref<2x1x128xf32, #tpu.memory_space<vmem>>, %arg14: memref<2x128x32xf32, #tpu.memory_space<vmem>>, %arg15: memref<2x1x32xf32, #tpu.memory_space<vmem>>, %arg16: memref<2x1x32xf32, #tpu.memory_space<vmem>>, %arg17: memref<2x1x32xf32, #tpu.memory_space<vmem>>, %arg18: memref<1x32xf32, #tpu.memory_space<vmem>>, %arg19: memref<1x32xf32, #tpu.memory_space<vmem>>, %arg20: memref<1x32xf32, #tpu.memory_space<vmem>>, %arg21: memref<1x1xf32, #tpu.memory_space<vmem>>, %arg22: memref<1x8xf32, #tpu.memory_space<vmem>>, %arg23: memref<1x8xf32, #tpu.memory_space<vmem>>, %arg24: memref<1x8xf32, #tpu.memory_space<vmem>>, %arg25: memref<1x1xf32, #tpu.memory_space<vmem>>, %arg26: memref<2x1xf32, #tpu.memory_space<vmem>>) attributes {dimension_semantics = [], scalar_prefetch = 0 : i64, scratch_operands = 0 : i64, tpu.core_type = #tpu.core_type<tc>} {
    %c0 = arith.constant 0 : index
    %c0_0 = arith.constant 0 : index
    %0 = vector.load %arg0[%c0, %c0_0] : memref<16x16xf32, #tpu.memory_space<vmem>>, vector<16x16xf32>
    %c0_1 = arith.constant 0 : index
    %c0_2 = arith.constant 0 : index
    %1 = vector.load %arg1[%c0_1, %c0_2] : memref<16x32xf32, #tpu.memory_space<vmem>>, vector<16x32xf32>
    %cst = arith.constant dense<0.000000e+00> : vector<16x32xf32>
    %2 = tpu.matmul %0, %1, %cst {dimension_numbers = #tpu.dot_dimension_numbers<[1], [0], [0], [1], [0, 0, 1, 1], [], []>} : vector<16x16xf32>, vector<16x32xf32>, vector<16x32xf32> -> vector<16x32xf32>
    %c0_3 = arith.constant 0 : index
    %c0_4 = arith.constant 0 : index
    %3 = vector.load %arg2[%c0_3, %c0_4] : memref<1x32xf32, #tpu.memory_space<vmem>>, vector<1x32xf32>
    %4 = vector.broadcast %3 : vector<1x32xf32> to vector<16x32xf32>
    %5 = arith.addf %2, %4 : vector<16x32xf32>
    %c0_5 = arith.constant 0 : index
    %c0_6 = arith.constant 0 : index
    %6 = vector.load %arg3[%c0_5, %c0_6] : memref<16x32xf32, #tpu.memory_space<vmem>>, vector<16x32xf32>
    %7 = arith.addf %5, %6 : vector<16x32xf32>
    %c0_7 = arith.constant 0 : index
    %c0_8 = arith.constant 0 : index
    %8 = vector.load %arg4[%c0_7, %c0_8] : memref<1x32xf32, #tpu.memory_space<vmem>>, vector<1x32xf32>
    %c0_9 = arith.constant 0 : index
    %c0_10 = arith.constant 0 : index
    %9 = vector.load %arg5[%c0_9, %c0_10] : memref<1x32xf32, #tpu.memory_space<vmem>>, vector<1x32xf32>
    %cst_11 = arith.constant dense<0.000000e+00> : vector<16xf32>
    %10 = vector.multi_reduction <add>, %7, %cst_11 [1] : vector<16x32xf32> to vector<16xf32>
    %11 = vector.shape_cast %10 : vector<16xf32> to vector<16x1xf32>
    %cst_12 = arith.constant 3.200000e+01 : f32
    %12 = vector.broadcast %cst_12 : f32 to vector<16x1xf32>
    %13 = arith.divf %11, %12 : vector<16x1xf32>
    %14 = vector.broadcast %13 : vector<16x1xf32> to vector<16x32xf32>
    %15 = arith.subf %7, %14 : vector<16x32xf32>
    %16 = arith.mulf %15, %15 : vector<16x32xf32>
    %cst_13 = arith.constant dense<0.000000e+00> : vector<16xf32>
    %17 = vector.multi_reduction <add>, %16, %cst_13 [1] : vector<16x32xf32> to vector<16xf32>
    %18 = vector.shape_cast %17 : vector<16xf32> to vector<16x1xf32>
    %cst_14 = arith.constant 3.200000e+01 : f32
    %19 = vector.broadcast %cst_14 : f32 to vector<16x1xf32>
    %20 = arith.divf %18, %19 : vector<16x1xf32>
    %21 = vector.broadcast %13 : vector<16x1xf32> to vector<16x32xf32>
    %22 = arith.subf %7, %21 : vector<16x32xf32>
    %cst_15 = arith.constant 9.99999974E-6 : f32
    %23 = vector.broadcast %cst_15 : f32 to vector<16x1xf32>
    %24 = arith.addf %20, %23 : vector<16x1xf32>
    %25 = math.rsqrt %24 : vector<16x1xf32>
    %26 = vector.broadcast %25 : vector<16x1xf32> to vector<16x32xf32>
    %27 = arith.mulf %22, %26 : vector<16x32xf32>
    %28 = vector.broadcast %8 : vector<1x32xf32> to vector<16x32xf32>
    %29 = arith.mulf %27, %28 : vector<16x32xf32>
    %30 = vector.broadcast %9 : vector<1x32xf32> to vector<16x32xf32>
    %31 = arith.addf %29, %30 : vector<16x32xf32>
    %c0_16 = arith.constant 0 : index
    %c0_17 = arith.constant 0 : index
    %c0_18 = arith.constant 0 : index
    %32 = vector.load %arg6[%c0_16, %c0_17, %c0_18] : memref<2x32x96xf32, #tpu.memory_space<vmem>>, vector<1x32x96xf32>
    %33 = vector.shape_cast %32 : vector<1x32x96xf32> to vector<32x96xf32>
    %cst_19 = arith.constant dense<0.000000e+00> : vector<16x96xf32>
    %34 = tpu.matmul %31, %33, %cst_19 {dimension_numbers = #tpu.dot_dimension_numbers<[1], [0], [0], [1], [0, 0, 1, 1], [], []>} : vector<16x32xf32>, vector<32x96xf32>, vector<16x96xf32> -> vector<16x96xf32>
    %c0_20 = arith.constant 0 : index
    %c0_21 = arith.constant 0 : index
    %c0_22 = arith.constant 0 : index
    %35 = vector.load %arg7[%c0_20, %c0_21, %c0_22] : memref<2x1x96xf32, #tpu.memory_space<vmem>>, vector<1x1x96xf32>
    %36 = vector.shape_cast %35 : vector<1x1x96xf32> to vector<1x96xf32>
    %37 = vector.broadcast %36 : vector<1x96xf32> to vector<16x96xf32>
    %38 = arith.addf %34, %37 : vector<16x96xf32>
    %39 = vector.extract_strided_slice %38 {offsets = [0, 0], sizes = [16, 32], strides = [1, 1]} : vector<16x96xf32> to vector<16x32xf32>
    %cst_23 = arith.constant 5.000000e-01 : f32
    %40 = vector.broadcast %cst_23 : f32 to vector<16x32xf32>
    %41 = arith.mulf %39, %40 : vector<16x32xf32>
    %42 = vector.shape_cast %41 : vector<16x32xf32> to vector<2x8x32xf32>
    %43 = vector.extract_strided_slice %38 {offsets = [0, 32], sizes = [16, 32], strides = [1, 1]} : vector<16x96xf32> to vector<16x32xf32>
    %44 = vector.shape_cast %43 : vector<16x32xf32> to vector<2x8x32xf32>
    %45 = vector.extract_strided_slice %38 {offsets = [0, 64], sizes = [16, 32], strides = [1, 1]} : vector<16x96xf32> to vector<16x32xf32>
    %46 = vector.shape_cast %45 : vector<16x32xf32> to vector<2x8x32xf32>
    %47 = vector.extract_strided_slice %42 {offsets = [0, 0, 0], sizes = [2, 8, 4], strides = [1, 1, 1]} : vector<2x8x32xf32> to vector<2x8x4xf32>
    %48 = vector.extract_strided_slice %44 {offsets = [0, 0, 0], sizes = [2, 8, 4], strides = [1, 1, 1]} : vector<2x8x32xf32> to vector<2x8x4xf32>
    %49 = vector.extract_strided_slice %46 {offsets = [0, 0, 0], sizes = [2, 8, 4], strides = [1, 1, 1]} : vector<2x8x32xf32> to vector<2x8x4xf32>
    "tpu.trace_start"() <{level = 10 : i32, message = "bqd,bkd->bqk"}> : () -> ()
    %cst_24 = arith.constant dense<0.000000e+00> : vector<2x8x8xf32>
    %50 = tpu.matmul %47, %48, %cst_24 {dimension_numbers = #tpu.dot_dimension_numbers<[2], [2], [1], [1], [0, 0, 0, 1, 1, 1], [0], [0]>} : vector<2x8x4xf32>, vector<2x8x4xf32>, vector<2x8x8xf32> -> vector<2x8x8xf32>
    "tpu.trace_stop"() : () -> ()
    %cst_25 = arith.constant dense<0xFF800000> : vector<2x8xf32>
    %51 = vector.multi_reduction <maximumf>, %50, %cst_25 [2] : vector<2x8x8xf32> to vector<2x8xf32>
    %52 = vector.shape_cast %51 : vector<2x8xf32> to vector<2x8x1xf32>
    %53 = vector.broadcast %52 : vector<2x8x1xf32> to vector<2x8x8xf32>
    %54 = arith.subf %50, %53 : vector<2x8x8xf32>
    %55 = math.exp %54 : vector<2x8x8xf32>
    %cst_26 = arith.constant dense<0.000000e+00> : vector<2x8xf32>
    %56 = vector.multi_reduction <add>, %55, %cst_26 [2] : vector<2x8x8xf32> to vector<2x8xf32>
    %57 = vector.shape_cast %56 : vector<2x8xf32> to vector<2x8x1xf32>
    %58 = tpu.reciprocal %57 {approx = true} : vector<2x8x1xf32> -> vector<2x8x1xf32>
    %59 = vector.broadcast %58 : vector<2x8x1xf32> to vector<2x8x8xf32>
    %60 = arith.mulf %55, %59 : vector<2x8x8xf32>
    "tpu.trace_start"() <{level = 10 : i32, message = "bqk,bkd->bqd"}> : () -> ()
    %cst_27 = arith.constant dense<0.000000e+00> : vector<2x8x4xf32>
    %61 = tpu.matmul %60, %49, %cst_27 {dimension_numbers = #tpu.dot_dimension_numbers<[2], [1], [1], [2], [0, 0, 0, 1, 1, 2], [0], [0]>} : vector<2x8x8xf32>, vector<2x8x4xf32>, vector<2x8x4xf32> -> vector<2x8x4xf32>
    "tpu.trace_stop"() : () -> ()
    %62 = vector.extract_strided_slice %42 {offsets = [0, 0, 4], sizes = [2, 8, 4], strides = [1, 1, 1]} : vector<2x8x32xf32> to vector<2x8x4xf32>
    %63 = vector.extract_strided_slice %44 {offsets = [0, 0, 4], sizes = [2, 8, 4], strides = [1, 1, 1]} : vector<2x8x32xf32> to vector<2x8x4xf32>
    %64 = vector.extract_strided_slice %46 {offsets = [0, 0, 4], sizes = [2, 8, 4], strides = [1, 1, 1]} : vector<2x8x32xf32> to vector<2x8x4xf32>
    "tpu.trace_start"() <{level = 10 : i32, message = "bqd,bkd->bqk"}> : () -> ()
    %cst_28 = arith.constant dense<0.000000e+00> : vector<2x8x8xf32>
    %65 = tpu.matmul %62, %63, %cst_28 {dimension_numbers = #tpu.dot_dimension_numbers<[2], [2], [1], [1], [0, 0, 0, 1, 1, 1], [0], [0]>} : vector<2x8x4xf32>, vector<2x8x4xf32>, vector<2x8x8xf32> -> vector<2x8x8xf32>
    "tpu.trace_stop"() : () -> ()
    %cst_29 = arith.constant dense<0xFF800000> : vector<2x8xf32>
    %66 = vector.multi_reduction <maximumf>, %65, %cst_29 [2] : vector<2x8x8xf32> to vector<2x8xf32>
    %67 = vector.shape_cast %66 : vector<2x8xf32> to vector<2x8x1xf32>
    %68 = vector.broadcast %67 : vector<2x8x1xf32> to vector<2x8x8xf32>
    %69 = arith.subf %65, %68 : vector<2x8x8xf32>
    %70 = math.exp %69 : vector<2x8x8xf32>
    %cst_30 = arith.constant dense<0.000000e+00> : vector<2x8xf32>
    %71 = vector.multi_reduction <add>, %70, %cst_30 [2] : vector<2x8x8xf32> to vector<2x8xf32>
    %72 = vector.shape_cast %71 : vector<2x8xf32> to vector<2x8x1xf32>
    %73 = tpu.reciprocal %72 {approx = true} : vector<2x8x1xf32> -> vector<2x8x1xf32>
    %74 = vector.broadcast %73 : vector<2x8x1xf32> to vector<2x8x8xf32>
    %75 = arith.mulf %70, %74 : vector<2x8x8xf32>
    "tpu.trace_start"() <{level = 10 : i32, message = "bqk,bkd->bqd"}> : () -> ()
    %cst_31 = arith.constant dense<0.000000e+00> : vector<2x8x4xf32>
    %76 = tpu.matmul %75, %64, %cst_31 {dimension_numbers = #tpu.dot_dimension_numbers<[2], [1], [1], [2], [0, 0, 0, 1, 1, 2], [0], [0]>} : vector<2x8x8xf32>, vector<2x8x4xf32>, vector<2x8x4xf32> -> vector<2x8x4xf32>
    "tpu.trace_stop"() : () -> ()
    %77 = vector.extract_strided_slice %42 {offsets = [0, 0, 8], sizes = [2, 8, 4], strides = [1, 1, 1]} : vector<2x8x32xf32> to vector<2x8x4xf32>
    %78 = vector.extract_strided_slice %44 {offsets = [0, 0, 8], sizes = [2, 8, 4], strides = [1, 1, 1]} : vector<2x8x32xf32> to vector<2x8x4xf32>
    %79 = vector.extract_strided_slice %46 {offsets = [0, 0, 8], sizes = [2, 8, 4], strides = [1, 1, 1]} : vector<2x8x32xf32> to vector<2x8x4xf32>
    "tpu.trace_start"() <{level = 10 : i32, message = "bqd,bkd->bqk"}> : () -> ()
    %cst_32 = arith.constant dense<0.000000e+00> : vector<2x8x8xf32>
    %80 = tpu.matmul %77, %78, %cst_32 {dimension_numbers = #tpu.dot_dimension_numbers<[2], [2], [1], [1], [0, 0, 0, 1, 1, 1], [0], [0]>} : vector<2x8x4xf32>, vector<2x8x4xf32>, vector<2x8x8xf32> -> vector<2x8x8xf32>
    "tpu.trace_stop"() : () -> ()
    %cst_33 = arith.constant dense<0xFF800000> : vector<2x8xf32>
    %81 = vector.multi_reduction <maximumf>, %80, %cst_33 [2] : vector<2x8x8xf32> to vector<2x8xf32>
    %82 = vector.shape_cast %81 : vector<2x8xf32> to vector<2x8x1xf32>
    %83 = vector.broadcast %82 : vector<2x8x1xf32> to vector<2x8x8xf32>
    %84 = arith.subf %80, %83 : vector<2x8x8xf32>
    %85 = math.exp %84 : vector<2x8x8xf32>
    %cst_34 = arith.constant dense<0.000000e+00> : vector<2x8xf32>
    %86 = vector.multi_reduction <add>, %85, %cst_34 [2] : vector<2x8x8xf32> to vector<2x8xf32>
    %87 = vector.shape_cast %86 : vector<2x8xf32> to vector<2x8x1xf32>
    %88 = tpu.reciprocal %87 {approx = true} : vector<2x8x1xf32> -> vector<2x8x1xf32>
    %89 = vector.broadcast %88 : vector<2x8x1xf32> to vector<2x8x8xf32>
    %90 = arith.mulf %85, %89 : vector<2x8x8xf32>
    "tpu.trace_start"() <{level = 10 : i32, message = "bqk,bkd->bqd"}> : () -> ()
    %cst_35 = arith.constant dense<0.000000e+00> : vector<2x8x4xf32>
    %91 = tpu.matmul %90, %79, %cst_35 {dimension_numbers = #tpu.dot_dimension_numbers<[2], [1], [1], [2], [0, 0, 0, 1, 1, 2], [0], [0]>} : vector<2x8x8xf32>, vector<2x8x4xf32>, vector<2x8x4xf32> -> vector<2x8x4xf32>
    "tpu.trace_stop"() : () -> ()
    %92 = vector.extract_strided_slice %42 {offsets = [0, 0, 12], sizes = [2, 8, 4], strides = [1, 1, 1]} : vector<2x8x32xf32> to vector<2x8x4xf32>
    %93 = vector.extract_strided_slice %44 {offsets = [0, 0, 12], sizes = [2, 8, 4], strides = [1, 1, 1]} : vector<2x8x32xf32> to vector<2x8x4xf32>
    %94 = vector.extract_strided_slice %46 {offsets = [0, 0, 12], sizes = [2, 8, 4], strides = [1, 1, 1]} : vector<2x8x32xf32> to vector<2x8x4xf32>
    "tpu.trace_start"() <{level = 10 : i32, message = "bqd,bkd->bqk"}> : () -> ()
    %cst_36 = arith.constant dense<0.000000e+00> : vector<2x8x8xf32>
    %95 = tpu.matmul %92, %93, %cst_36 {dimension_numbers = #tpu.dot_dimension_numbers<[2], [2], [1], [1], [0, 0, 0, 1, 1, 1], [0], [0]>} : vector<2x8x4xf32>, vector<2x8x4xf32>, vector<2x8x8xf32> -> vector<2x8x8xf32>
    "tpu.trace_stop"() : () -> ()
    %cst_37 = arith.constant dense<0xFF800000> : vector<2x8xf32>
    %96 = vector.multi_reduction <maximumf>, %95, %cst_37 [2] : vector<2x8x8xf32> to vector<2x8xf32>
    %97 = vector.shape_cast %96 : vector<2x8xf32> to vector<2x8x1xf32>
    %98 = vector.broadcast %97 : vector<2x8x1xf32> to vector<2x8x8xf32>
    %99 = arith.subf %95, %98 : vector<2x8x8xf32>
    %100 = math.exp %99 : vector<2x8x8xf32>
    %cst_38 = arith.constant dense<0.000000e+00> : vector<2x8xf32>
    %101 = vector.multi_reduction <add>, %100, %cst_38 [2] : vector<2x8x8xf32> to vector<2x8xf32>
    %102 = vector.shape_cast %101 : vector<2x8xf32> to vector<2x8x1xf32>
    %103 = tpu.reciprocal %102 {approx = true} : vector<2x8x1xf32> -> vector<2x8x1xf32>
    %104 = vector.broadcast %103 : vector<2x8x1xf32> to vector<2x8x8xf32>
    %105 = arith.mulf %100, %104 : vector<2x8x8xf32>
    "tpu.trace_start"() <{level = 10 : i32, message = "bqk,bkd->bqd"}> : () -> ()
    %cst_39 = arith.constant dense<0.000000e+00> : vector<2x8x4xf32>
    %106 = tpu.matmul %105, %94, %cst_39 {dimension_numbers = #tpu.dot_dimension_numbers<[2], [1], [1], [2], [0, 0, 0, 1, 1, 2], [0], [0]>} : vector<2x8x8xf32>, vector<2x8x4xf32>, vector<2x8x4xf32> -> vector<2x8x4xf32>
    "tpu.trace_stop"() : () -> ()
    %107 = vector.extract_strided_slice %42 {offsets = [0, 0, 16], sizes = [2, 8, 4], strides = [1, 1, 1]} : vector<2x8x32xf32> to vector<2x8x4xf32>
    %108 = vector.extract_strided_slice %44 {offsets = [0, 0, 16], sizes = [2, 8, 4], strides = [1, 1, 1]} : vector<2x8x32xf32> to vector<2x8x4xf32>
    %109 = vector.extract_strided_slice %46 {offsets = [0, 0, 16], sizes = [2, 8, 4], strides = [1, 1, 1]} : vector<2x8x32xf32> to vector<2x8x4xf32>
    "tpu.trace_start"() <{level = 10 : i32, message = "bqd,bkd->bqk"}> : () -> ()
    %cst_40 = arith.constant dense<0.000000e+00> : vector<2x8x8xf32>
    %110 = tpu.matmul %107, %108, %cst_40 {dimension_numbers = #tpu.dot_dimension_numbers<[2], [2], [1], [1], [0, 0, 0, 1, 1, 1], [0], [0]>} : vector<2x8x4xf32>, vector<2x8x4xf32>, vector<2x8x8xf32> -> vector<2x8x8xf32>
    "tpu.trace_stop"() : () -> ()
    %cst_41 = arith.constant dense<0xFF800000> : vector<2x8xf32>
    %111 = vector.multi_reduction <maximumf>, %110, %cst_41 [2] : vector<2x8x8xf32> to vector<2x8xf32>
    %112 = vector.shape_cast %111 : vector<2x8xf32> to vector<2x8x1xf32>
    %113 = vector.broadcast %112 : vector<2x8x1xf32> to vector<2x8x8xf32>
    %114 = arith.subf %110, %113 : vector<2x8x8xf32>
    %115 = math.exp %114 : vector<2x8x8xf32>
    %cst_42 = arith.constant dense<0.000000e+00> : vector<2x8xf32>
    %116 = vector.multi_reduction <add>, %115, %cst_42 [2] : vector<2x8x8xf32> to vector<2x8xf32>
    %117 = vector.shape_cast %116 : vector<2x8xf32> to vector<2x8x1xf32>
    %118 = tpu.reciprocal %117 {approx = true} : vector<2x8x1xf32> -> vector<2x8x1xf32>
    %119 = vector.broadcast %118 : vector<2x8x1xf32> to vector<2x8x8xf32>
    %120 = arith.mulf %115, %119 : vector<2x8x8xf32>
    "tpu.trace_start"() <{level = 10 : i32, message = "bqk,bkd->bqd"}> : () -> ()
    %cst_43 = arith.constant dense<0.000000e+00> : vector<2x8x4xf32>
    %121 = tpu.matmul %120, %109, %cst_43 {dimension_numbers = #tpu.dot_dimension_numbers<[2], [1], [1], [2], [0, 0, 0, 1, 1, 2], [0], [0]>} : vector<2x8x8xf32>, vector<2x8x4xf32>, vector<2x8x4xf32> -> vector<2x8x4xf32>
    "tpu.trace_stop"() : () -> ()
    %122 = vector.extract_strided_slice %42 {offsets = [0, 0, 20], sizes = [2, 8, 4], strides = [1, 1, 1]} : vector<2x8x32xf32> to vector<2x8x4xf32>
    %123 = vector.extract_strided_slice %44 {offsets = [0, 0, 20], sizes = [2, 8, 4], strides = [1, 1, 1]} : vector<2x8x32xf32> to vector<2x8x4xf32>
    %124 = vector.extract_strided_slice %46 {offsets = [0, 0, 20], sizes = [2, 8, 4], strides = [1, 1, 1]} : vector<2x8x32xf32> to vector<2x8x4xf32>
    "tpu.trace_start"() <{level = 10 : i32, message = "bqd,bkd->bqk"}> : () -> ()
    %cst_44 = arith.constant dense<0.000000e+00> : vector<2x8x8xf32>
    %125 = tpu.matmul %122, %123, %cst_44 {dimension_numbers = #tpu.dot_dimension_numbers<[2], [2], [1], [1], [0, 0, 0, 1, 1, 1], [0], [0]>} : vector<2x8x4xf32>, vector<2x8x4xf32>, vector<2x8x8xf32> -> vector<2x8x8xf32>
    "tpu.trace_stop"() : () -> ()
    %cst_45 = arith.constant dense<0xFF800000> : vector<2x8xf32>
    %126 = vector.multi_reduction <maximumf>, %125, %cst_45 [2] : vector<2x8x8xf32> to vector<2x8xf32>
    %127 = vector.shape_cast %126 : vector<2x8xf32> to vector<2x8x1xf32>
    %128 = vector.broadcast %127 : vector<2x8x1xf32> to vector<2x8x8xf32>
    %129 = arith.subf %125, %128 : vector<2x8x8xf32>
    %130 = math.exp %129 : vector<2x8x8xf32>
    %cst_46 = arith.constant dense<0.000000e+00> : vector<2x8xf32>
    %131 = vector.multi_reduction <add>, %130, %cst_46 [2] : vector<2x8x8xf32> to vector<2x8xf32>
    %132 = vector.shape_cast %131 : vector<2x8xf32> to vector<2x8x1xf32>
    %133 = tpu.reciprocal %132 {approx = true} : vector<2x8x1xf32> -> vector<2x8x1xf32>
    %134 = vector.broadcast %133 : vector<2x8x1xf32> to vector<2x8x8xf32>
    %135 = arith.mulf %130, %134 : vector<2x8x8xf32>
    "tpu.trace_start"() <{level = 10 : i32, message = "bqk,bkd->bqd"}> : () -> ()
    %cst_47 = arith.constant dense<0.000000e+00> : vector<2x8x4xf32>
    %136 = tpu.matmul %135, %124, %cst_47 {dimension_numbers = #tpu.dot_dimension_numbers<[2], [1], [1], [2], [0, 0, 0, 1, 1, 2], [0], [0]>} : vector<2x8x8xf32>, vector<2x8x4xf32>, vector<2x8x4xf32> -> vector<2x8x4xf32>
    "tpu.trace_stop"() : () -> ()
    %137 = vector.extract_strided_slice %42 {offsets = [0, 0, 24], sizes = [2, 8, 4], strides = [1, 1, 1]} : vector<2x8x32xf32> to vector<2x8x4xf32>
    %138 = vector.extract_strided_slice %44 {offsets = [0, 0, 24], sizes = [2, 8, 4], strides = [1, 1, 1]} : vector<2x8x32xf32> to vector<2x8x4xf32>
    %139 = vector.extract_strided_slice %46 {offsets = [0, 0, 24], sizes = [2, 8, 4], strides = [1, 1, 1]} : vector<2x8x32xf32> to vector<2x8x4xf32>
    "tpu.trace_start"() <{level = 10 : i32, message = "bqd,bkd->bqk"}> : () -> ()
    %cst_48 = arith.constant dense<0.000000e+00> : vector<2x8x8xf32>
    %140 = tpu.matmul %137, %138, %cst_48 {dimension_numbers = #tpu.dot_dimension_numbers<[2], [2], [1], [1], [0, 0, 0, 1, 1, 1], [0], [0]>} : vector<2x8x4xf32>, vector<2x8x4xf32>, vector<2x8x8xf32> -> vector<2x8x8xf32>
    "tpu.trace_stop"() : () -> ()
    %cst_49 = arith.constant dense<0xFF800000> : vector<2x8xf32>
    %141 = vector.multi_reduction <maximumf>, %140, %cst_49 [2] : vector<2x8x8xf32> to vector<2x8xf32>
    %142 = vector.shape_cast %141 : vector<2x8xf32> to vector<2x8x1xf32>
    %143 = vector.broadcast %142 : vector<2x8x1xf32> to vector<2x8x8xf32>
    %144 = arith.subf %140, %143 : vector<2x8x8xf32>
    %145 = math.exp %144 : vector<2x8x8xf32>
    %cst_50 = arith.constant dense<0.000000e+00> : vector<2x8xf32>
    %146 = vector.multi_reduction <add>, %145, %cst_50 [2] : vector<2x8x8xf32> to vector<2x8xf32>
    %147 = vector.shape_cast %146 : vector<2x8xf32> to vector<2x8x1xf32>
    %148 = tpu.reciprocal %147 {approx = true} : vector<2x8x1xf32> -> vector<2x8x1xf32>
    %149 = vector.broadcast %148 : vector<2x8x1xf32> to vector<2x8x8xf32>
    %150 = arith.mulf %145, %149 : vector<2x8x8xf32>
    "tpu.trace_start"() <{level = 10 : i32, message = "bqk,bkd->bqd"}> : () -> ()
    %cst_51 = arith.constant dense<0.000000e+00> : vector<2x8x4xf32>
    %151 = tpu.matmul %150, %139, %cst_51 {dimension_numbers = #tpu.dot_dimension_numbers<[2], [1], [1], [2], [0, 0, 0, 1, 1, 2], [0], [0]>} : vector<2x8x8xf32>, vector<2x8x4xf32>, vector<2x8x4xf32> -> vector<2x8x4xf32>
    "tpu.trace_stop"() : () -> ()
    %152 = vector.extract_strided_slice %42 {offsets = [0, 0, 28], sizes = [2, 8, 4], strides = [1, 1, 1]} : vector<2x8x32xf32> to vector<2x8x4xf32>
    %153 = vector.extract_strided_slice %44 {offsets = [0, 0, 28], sizes = [2, 8, 4], strides = [1, 1, 1]} : vector<2x8x32xf32> to vector<2x8x4xf32>
    %154 = vector.extract_strided_slice %46 {offsets = [0, 0, 28], sizes = [2, 8, 4], strides = [1, 1, 1]} : vector<2x8x32xf32> to vector<2x8x4xf32>
    "tpu.trace_start"() <{level = 10 : i32, message = "bqd,bkd->bqk"}> : () -> ()
    %cst_52 = arith.constant dense<0.000000e+00> : vector<2x8x8xf32>
    %155 = tpu.matmul %152, %153, %cst_52 {dimension_numbers = #tpu.dot_dimension_numbers<[2], [2], [1], [1], [0, 0, 0, 1, 1, 1], [0], [0]>} : vector<2x8x4xf32>, vector<2x8x4xf32>, vector<2x8x8xf32> -> vector<2x8x8xf32>
    "tpu.trace_stop"() : () -> ()
    %cst_53 = arith.constant dense<0xFF800000> : vector<2x8xf32>
    %156 = vector.multi_reduction <maximumf>, %155, %cst_53 [2] : vector<2x8x8xf32> to vector<2x8xf32>
    %157 = vector.shape_cast %156 : vector<2x8xf32> to vector<2x8x1xf32>
    %158 = vector.broadcast %157 : vector<2x8x1xf32> to vector<2x8x8xf32>
    %159 = arith.subf %155, %158 : vector<2x8x8xf32>
    %160 = math.exp %159 : vector<2x8x8xf32>
    %cst_54 = arith.constant dense<0.000000e+00> : vector<2x8xf32>
    %161 = vector.multi_reduction <add>, %160, %cst_54 [2] : vector<2x8x8xf32> to vector<2x8xf32>
    %162 = vector.shape_cast %161 : vector<2x8xf32> to vector<2x8x1xf32>
    %163 = tpu.reciprocal %162 {approx = true} : vector<2x8x1xf32> -> vector<2x8x1xf32>
    %164 = vector.broadcast %163 : vector<2x8x1xf32> to vector<2x8x8xf32>
    %165 = arith.mulf %160, %164 : vector<2x8x8xf32>
    "tpu.trace_start"() <{level = 10 : i32, message = "bqk,bkd->bqd"}> : () -> ()
    %cst_55 = arith.constant dense<0.000000e+00> : vector<2x8x4xf32>
    %166 = tpu.matmul %165, %154, %cst_55 {dimension_numbers = #tpu.dot_dimension_numbers<[2], [1], [1], [2], [0, 0, 0, 1, 1, 2], [0], [0]>} : vector<2x8x8xf32>, vector<2x8x4xf32>, vector<2x8x4xf32> -> vector<2x8x4xf32>
    "tpu.trace_stop"() : () -> ()
    %167 = tpu.concatenate %61, %76, %91, %106, %121, %136, %151, %166 in 2 : vector<2x8x4xf32>, vector<2x8x4xf32>, vector<2x8x4xf32>, vector<2x8x4xf32>, vector<2x8x4xf32>, vector<2x8x4xf32>, vector<2x8x4xf32>, vector<2x8x4xf32> -> vector<2x8x32xf32>
    %168 = vector.shape_cast %167 : vector<2x8x32xf32> to vector<16x32xf32>
    %c0_56 = arith.constant 0 : index
    %c0_57 = arith.constant 0 : index
    %c0_58 = arith.constant 0 : index
    %169 = vector.load %arg8[%c0_56, %c0_57, %c0_58] : memref<2x32x32xf32, #tpu.memory_space<vmem>>, vector<1x32x32xf32>
    %170 = vector.shape_cast %169 : vector<1x32x32xf32> to vector<32x32xf32>
    %cst_59 = arith.constant dense<0.000000e+00> : vector<16x32xf32>
    %171 = tpu.matmul %168, %170, %cst_59 {dimension_numbers = #tpu.dot_dimension_numbers<[1], [0], [0], [1], [0, 0, 1, 1], [], []>} : vector<16x32xf32>, vector<32x32xf32>, vector<16x32xf32> -> vector<16x32xf32>
    %c0_60 = arith.constant 0 : index
    %c0_61 = arith.constant 0 : index
    %c0_62 = arith.constant 0 : index
    %172 = vector.load %arg9[%c0_60, %c0_61, %c0_62] : memref<2x1x32xf32, #tpu.memory_space<vmem>>, vector<1x1x32xf32>
    %173 = vector.shape_cast %172 : vector<1x1x32xf32> to vector<1x32xf32>
    %174 = vector.broadcast %173 : vector<1x32xf32> to vector<16x32xf32>
    %175 = arith.addf %171, %174 : vector<16x32xf32>
    %176 = arith.addf %31, %175 : vector<16x32xf32>
    %c0_63 = arith.constant 0 : index
    %c0_64 = arith.constant 0 : index
    %c0_65 = arith.constant 0 : index
    %177 = vector.load %arg10[%c0_63, %c0_64, %c0_65] : memref<2x1x32xf32, #tpu.memory_space<vmem>>, vector<1x1x32xf32>
    %178 = vector.shape_cast %177 : vector<1x1x32xf32> to vector<1x32xf32>
    %c0_66 = arith.constant 0 : index
    %c0_67 = arith.constant 0 : index
    %c0_68 = arith.constant 0 : index
    %179 = vector.load %arg11[%c0_66, %c0_67, %c0_68] : memref<2x1x32xf32, #tpu.memory_space<vmem>>, vector<1x1x32xf32>
    %180 = vector.shape_cast %179 : vector<1x1x32xf32> to vector<1x32xf32>
    %cst_69 = arith.constant dense<0.000000e+00> : vector<16xf32>
    %181 = vector.multi_reduction <add>, %176, %cst_69 [1] : vector<16x32xf32> to vector<16xf32>
    %182 = vector.shape_cast %181 : vector<16xf32> to vector<16x1xf32>
    %cst_70 = arith.constant 3.200000e+01 : f32
    %183 = vector.broadcast %cst_70 : f32 to vector<16x1xf32>
    %184 = arith.divf %182, %183 : vector<16x1xf32>
    %185 = vector.broadcast %184 : vector<16x1xf32> to vector<16x32xf32>
    %186 = arith.subf %176, %185 : vector<16x32xf32>
    %187 = arith.mulf %186, %186 : vector<16x32xf32>
    %cst_71 = arith.constant dense<0.000000e+00> : vector<16xf32>
    %188 = vector.multi_reduction <add>, %187, %cst_71 [1] : vector<16x32xf32> to vector<16xf32>
    %189 = vector.shape_cast %188 : vector<16xf32> to vector<16x1xf32>
    %cst_72 = arith.constant 3.200000e+01 : f32
    %190 = vector.broadcast %cst_72 : f32 to vector<16x1xf32>
    %191 = arith.divf %189, %190 : vector<16x1xf32>
    %192 = vector.broadcast %184 : vector<16x1xf32> to vector<16x32xf32>
    %193 = arith.subf %176, %192 : vector<16x32xf32>
    %cst_73 = arith.constant 9.99999974E-6 : f32
    %194 = vector.broadcast %cst_73 : f32 to vector<16x1xf32>
    %195 = arith.addf %191, %194 : vector<16x1xf32>
    %196 = math.rsqrt %195 : vector<16x1xf32>
    %197 = vector.broadcast %196 : vector<16x1xf32> to vector<16x32xf32>
    %198 = arith.mulf %193, %197 : vector<16x32xf32>
    %199 = vector.broadcast %178 : vector<1x32xf32> to vector<16x32xf32>
    %200 = arith.mulf %198, %199 : vector<16x32xf32>
    %201 = vector.broadcast %180 : vector<1x32xf32> to vector<16x32xf32>
    %202 = arith.addf %200, %201 : vector<16x32xf32>
    %c0_74 = arith.constant 0 : index
    %c0_75 = arith.constant 0 : index
    %c0_76 = arith.constant 0 : index
    %203 = vector.load %arg12[%c0_74, %c0_75, %c0_76] : memref<2x32x128xf32, #tpu.memory_space<vmem>>, vector<1x32x128xf32>
    %204 = vector.shape_cast %203 : vector<1x32x128xf32> to vector<32x128xf32>
    %cst_77 = arith.constant dense<0.000000e+00> : vector<16x128xf32>
    %205 = tpu.matmul %202, %204, %cst_77 {dimension_numbers = #tpu.dot_dimension_numbers<[1], [0], [0], [1], [0, 0, 1, 1], [], []>} : vector<16x32xf32>, vector<32x128xf32>, vector<16x128xf32> -> vector<16x128xf32>
    %c0_78 = arith.constant 0 : index
    %c0_79 = arith.constant 0 : index
    %c0_80 = arith.constant 0 : index
    %206 = vector.load %arg13[%c0_78, %c0_79, %c0_80] : memref<2x1x128xf32, #tpu.memory_space<vmem>>, vector<1x1x128xf32>
    %207 = vector.shape_cast %206 : vector<1x1x128xf32> to vector<1x128xf32>
    %208 = vector.broadcast %207 : vector<1x128xf32> to vector<16x128xf32>
    %209 = arith.addf %205, %208 : vector<16x128xf32>
    %cst_81 = arith.constant 0.000000e+00 : f32
    %210 = vector.broadcast %cst_81 : f32 to vector<16x128xf32>
    %211 = arith.maximumf %209, %210 : vector<16x128xf32>
    %c0_82 = arith.constant 0 : index
    %c0_83 = arith.constant 0 : index
    %c0_84 = arith.constant 0 : index
    %212 = vector.load %arg14[%c0_82, %c0_83, %c0_84] : memref<2x128x32xf32, #tpu.memory_space<vmem>>, vector<1x128x32xf32>
    %213 = vector.shape_cast %212 : vector<1x128x32xf32> to vector<128x32xf32>
    %cst_85 = arith.constant dense<0.000000e+00> : vector<16x32xf32>
    %214 = tpu.matmul %211, %213, %cst_85 {dimension_numbers = #tpu.dot_dimension_numbers<[1], [0], [0], [1], [0, 0, 1, 1], [], []>} : vector<16x128xf32>, vector<128x32xf32>, vector<16x32xf32> -> vector<16x32xf32>
    %c0_86 = arith.constant 0 : index
    %c0_87 = arith.constant 0 : index
    %c0_88 = arith.constant 0 : index
    %215 = vector.load %arg15[%c0_86, %c0_87, %c0_88] : memref<2x1x32xf32, #tpu.memory_space<vmem>>, vector<1x1x32xf32>
    %216 = vector.shape_cast %215 : vector<1x1x32xf32> to vector<1x32xf32>
    %217 = vector.broadcast %216 : vector<1x32xf32> to vector<16x32xf32>
    %218 = arith.addf %214, %217 : vector<16x32xf32>
    %219 = arith.addf %202, %218 : vector<16x32xf32>
    %c0_89 = arith.constant 0 : index
    %c0_90 = arith.constant 0 : index
    %c0_91 = arith.constant 0 : index
    %220 = vector.load %arg16[%c0_89, %c0_90, %c0_91] : memref<2x1x32xf32, #tpu.memory_space<vmem>>, vector<1x1x32xf32>
    %221 = vector.shape_cast %220 : vector<1x1x32xf32> to vector<1x32xf32>
    %c0_92 = arith.constant 0 : index
    %c0_93 = arith.constant 0 : index
    %c0_94 = arith.constant 0 : index
    %222 = vector.load %arg17[%c0_92, %c0_93, %c0_94] : memref<2x1x32xf32, #tpu.memory_space<vmem>>, vector<1x1x32xf32>
    %223 = vector.shape_cast %222 : vector<1x1x32xf32> to vector<1x32xf32>
    %cst_95 = arith.constant dense<0.000000e+00> : vector<16xf32>
    %224 = vector.multi_reduction <add>, %219, %cst_95 [1] : vector<16x32xf32> to vector<16xf32>
    %225 = vector.shape_cast %224 : vector<16xf32> to vector<16x1xf32>
    %cst_96 = arith.constant 3.200000e+01 : f32
    %226 = vector.broadcast %cst_96 : f32 to vector<16x1xf32>
    %227 = arith.divf %225, %226 : vector<16x1xf32>
    %228 = vector.broadcast %227 : vector<16x1xf32> to vector<16x32xf32>
    %229 = arith.subf %219, %228 : vector<16x32xf32>
    %230 = arith.mulf %229, %229 : vector<16x32xf32>
    %cst_97 = arith.constant dense<0.000000e+00> : vector<16xf32>
    %231 = vector.multi_reduction <add>, %230, %cst_97 [1] : vector<16x32xf32> to vector<16xf32>
    %232 = vector.shape_cast %231 : vector<16xf32> to vector<16x1xf32>
    %cst_98 = arith.constant 3.200000e+01 : f32
    %233 = vector.broadcast %cst_98 : f32 to vector<16x1xf32>
    %234 = arith.divf %232, %233 : vector<16x1xf32>
    %235 = vector.broadcast %227 : vector<16x1xf32> to vector<16x32xf32>
    %236 = arith.subf %219, %235 : vector<16x32xf32>
    %cst_99 = arith.constant 9.99999974E-6 : f32
    %237 = vector.broadcast %cst_99 : f32 to vector<16x1xf32>
    %238 = arith.addf %234, %237 : vector<16x1xf32>
    %239 = math.rsqrt %238 : vector<16x1xf32>
    %240 = vector.broadcast %239 : vector<16x1xf32> to vector<16x32xf32>
    %241 = arith.mulf %236, %240 : vector<16x32xf32>
    %242 = vector.broadcast %221 : vector<1x32xf32> to vector<16x32xf32>
    %243 = arith.mulf %241, %242 : vector<16x32xf32>
    %244 = vector.broadcast %223 : vector<1x32xf32> to vector<16x32xf32>
    %245 = arith.addf %243, %244 : vector<16x32xf32>
    %c1 = arith.constant 1 : index
    %c0_100 = arith.constant 0 : index
    %c0_101 = arith.constant 0 : index
    %246 = vector.load %arg6[%c1, %c0_100, %c0_101] : memref<2x32x96xf32, #tpu.memory_space<vmem>>, vector<1x32x96xf32>
    %247 = vector.shape_cast %246 : vector<1x32x96xf32> to vector<32x96xf32>
    %cst_102 = arith.constant dense<0.000000e+00> : vector<16x96xf32>
    %248 = tpu.matmul %245, %247, %cst_102 {dimension_numbers = #tpu.dot_dimension_numbers<[1], [0], [0], [1], [0, 0, 1, 1], [], []>} : vector<16x32xf32>, vector<32x96xf32>, vector<16x96xf32> -> vector<16x96xf32>
    %c1_103 = arith.constant 1 : index
    %c0_104 = arith.constant 0 : index
    %c0_105 = arith.constant 0 : index
    %249 = vector.load %arg7[%c1_103, %c0_104, %c0_105] : memref<2x1x96xf32, #tpu.memory_space<vmem>>, vector<1x1x96xf32>
    %250 = vector.shape_cast %249 : vector<1x1x96xf32> to vector<1x96xf32>
    %251 = vector.broadcast %250 : vector<1x96xf32> to vector<16x96xf32>
    %252 = arith.addf %248, %251 : vector<16x96xf32>
    %253 = vector.extract_strided_slice %252 {offsets = [0, 0], sizes = [16, 32], strides = [1, 1]} : vector<16x96xf32> to vector<16x32xf32>
    %cst_106 = arith.constant 5.000000e-01 : f32
    %254 = vector.broadcast %cst_106 : f32 to vector<16x32xf32>
    %255 = arith.mulf %253, %254 : vector<16x32xf32>
    %256 = vector.shape_cast %255 : vector<16x32xf32> to vector<2x8x32xf32>
    %257 = vector.extract_strided_slice %252 {offsets = [0, 32], sizes = [16, 32], strides = [1, 1]} : vector<16x96xf32> to vector<16x32xf32>
    %258 = vector.shape_cast %257 : vector<16x32xf32> to vector<2x8x32xf32>
    %259 = vector.extract_strided_slice %252 {offsets = [0, 64], sizes = [16, 32], strides = [1, 1]} : vector<16x96xf32> to vector<16x32xf32>
    %260 = vector.shape_cast %259 : vector<16x32xf32> to vector<2x8x32xf32>
    %261 = vector.extract_strided_slice %256 {offsets = [0, 0, 0], sizes = [2, 8, 4], strides = [1, 1, 1]} : vector<2x8x32xf32> to vector<2x8x4xf32>
    %262 = vector.extract_strided_slice %258 {offsets = [0, 0, 0], sizes = [2, 8, 4], strides = [1, 1, 1]} : vector<2x8x32xf32> to vector<2x8x4xf32>
    %263 = vector.extract_strided_slice %260 {offsets = [0, 0, 0], sizes = [2, 8, 4], strides = [1, 1, 1]} : vector<2x8x32xf32> to vector<2x8x4xf32>
    "tpu.trace_start"() <{level = 10 : i32, message = "bqd,bkd->bqk"}> : () -> ()
    %cst_107 = arith.constant dense<0.000000e+00> : vector<2x8x8xf32>
    %264 = tpu.matmul %261, %262, %cst_107 {dimension_numbers = #tpu.dot_dimension_numbers<[2], [2], [1], [1], [0, 0, 0, 1, 1, 1], [0], [0]>} : vector<2x8x4xf32>, vector<2x8x4xf32>, vector<2x8x8xf32> -> vector<2x8x8xf32>
    "tpu.trace_stop"() : () -> ()
    %cst_108 = arith.constant dense<0xFF800000> : vector<2x8xf32>
    %265 = vector.multi_reduction <maximumf>, %264, %cst_108 [2] : vector<2x8x8xf32> to vector<2x8xf32>
    %266 = vector.shape_cast %265 : vector<2x8xf32> to vector<2x8x1xf32>
    %267 = vector.broadcast %266 : vector<2x8x1xf32> to vector<2x8x8xf32>
    %268 = arith.subf %264, %267 : vector<2x8x8xf32>
    %269 = math.exp %268 : vector<2x8x8xf32>
    %cst_109 = arith.constant dense<0.000000e+00> : vector<2x8xf32>
    %270 = vector.multi_reduction <add>, %269, %cst_109 [2] : vector<2x8x8xf32> to vector<2x8xf32>
    %271 = vector.shape_cast %270 : vector<2x8xf32> to vector<2x8x1xf32>
    %272 = tpu.reciprocal %271 {approx = true} : vector<2x8x1xf32> -> vector<2x8x1xf32>
    %273 = vector.broadcast %272 : vector<2x8x1xf32> to vector<2x8x8xf32>
    %274 = arith.mulf %269, %273 : vector<2x8x8xf32>
    "tpu.trace_start"() <{level = 10 : i32, message = "bqk,bkd->bqd"}> : () -> ()
    %cst_110 = arith.constant dense<0.000000e+00> : vector<2x8x4xf32>
    %275 = tpu.matmul %274, %263, %cst_110 {dimension_numbers = #tpu.dot_dimension_numbers<[2], [1], [1], [2], [0, 0, 0, 1, 1, 2], [0], [0]>} : vector<2x8x8xf32>, vector<2x8x4xf32>, vector<2x8x4xf32> -> vector<2x8x4xf32>
    "tpu.trace_stop"() : () -> ()
    %276 = vector.extract_strided_slice %256 {offsets = [0, 0, 4], sizes = [2, 8, 4], strides = [1, 1, 1]} : vector<2x8x32xf32> to vector<2x8x4xf32>
    %277 = vector.extract_strided_slice %258 {offsets = [0, 0, 4], sizes = [2, 8, 4], strides = [1, 1, 1]} : vector<2x8x32xf32> to vector<2x8x4xf32>
    %278 = vector.extract_strided_slice %260 {offsets = [0, 0, 4], sizes = [2, 8, 4], strides = [1, 1, 1]} : vector<2x8x32xf32> to vector<2x8x4xf32>
    "tpu.trace_start"() <{level = 10 : i32, message = "bqd,bkd->bqk"}> : () -> ()
    %cst_111 = arith.constant dense<0.000000e+00> : vector<2x8x8xf32>
    %279 = tpu.matmul %276, %277, %cst_111 {dimension_numbers = #tpu.dot_dimension_numbers<[2], [2], [1], [1], [0, 0, 0, 1, 1, 1], [0], [0]>} : vector<2x8x4xf32>, vector<2x8x4xf32>, vector<2x8x8xf32> -> vector<2x8x8xf32>
    "tpu.trace_stop"() : () -> ()
    %cst_112 = arith.constant dense<0xFF800000> : vector<2x8xf32>
    %280 = vector.multi_reduction <maximumf>, %279, %cst_112 [2] : vector<2x8x8xf32> to vector<2x8xf32>
    %281 = vector.shape_cast %280 : vector<2x8xf32> to vector<2x8x1xf32>
    %282 = vector.broadcast %281 : vector<2x8x1xf32> to vector<2x8x8xf32>
    %283 = arith.subf %279, %282 : vector<2x8x8xf32>
    %284 = math.exp %283 : vector<2x8x8xf32>
    %cst_113 = arith.constant dense<0.000000e+00> : vector<2x8xf32>
    %285 = vector.multi_reduction <add>, %284, %cst_113 [2] : vector<2x8x8xf32> to vector<2x8xf32>
    %286 = vector.shape_cast %285 : vector<2x8xf32> to vector<2x8x1xf32>
    %287 = tpu.reciprocal %286 {approx = true} : vector<2x8x1xf32> -> vector<2x8x1xf32>
    %288 = vector.broadcast %287 : vector<2x8x1xf32> to vector<2x8x8xf32>
    %289 = arith.mulf %284, %288 : vector<2x8x8xf32>
    "tpu.trace_start"() <{level = 10 : i32, message = "bqk,bkd->bqd"}> : () -> ()
    %cst_114 = arith.constant dense<0.000000e+00> : vector<2x8x4xf32>
    %290 = tpu.matmul %289, %278, %cst_114 {dimension_numbers = #tpu.dot_dimension_numbers<[2], [1], [1], [2], [0, 0, 0, 1, 1, 2], [0], [0]>} : vector<2x8x8xf32>, vector<2x8x4xf32>, vector<2x8x4xf32> -> vector<2x8x4xf32>
    "tpu.trace_stop"() : () -> ()
    %291 = vector.extract_strided_slice %256 {offsets = [0, 0, 8], sizes = [2, 8, 4], strides = [1, 1, 1]} : vector<2x8x32xf32> to vector<2x8x4xf32>
    %292 = vector.extract_strided_slice %258 {offsets = [0, 0, 8], sizes = [2, 8, 4], strides = [1, 1, 1]} : vector<2x8x32xf32> to vector<2x8x4xf32>
    %293 = vector.extract_strided_slice %260 {offsets = [0, 0, 8], sizes = [2, 8, 4], strides = [1, 1, 1]} : vector<2x8x32xf32> to vector<2x8x4xf32>
    "tpu.trace_start"() <{level = 10 : i32, message = "bqd,bkd->bqk"}> : () -> ()
    %cst_115 = arith.constant dense<0.000000e+00> : vector<2x8x8xf32>
    %294 = tpu.matmul %291, %292, %cst_115 {dimension_numbers = #tpu.dot_dimension_numbers<[2], [2], [1], [1], [0, 0, 0, 1, 1, 1], [0], [0]>} : vector<2x8x4xf32>, vector<2x8x4xf32>, vector<2x8x8xf32> -> vector<2x8x8xf32>
    "tpu.trace_stop"() : () -> ()
    %cst_116 = arith.constant dense<0xFF800000> : vector<2x8xf32>
    %295 = vector.multi_reduction <maximumf>, %294, %cst_116 [2] : vector<2x8x8xf32> to vector<2x8xf32>
    %296 = vector.shape_cast %295 : vector<2x8xf32> to vector<2x8x1xf32>
    %297 = vector.broadcast %296 : vector<2x8x1xf32> to vector<2x8x8xf32>
    %298 = arith.subf %294, %297 : vector<2x8x8xf32>
    %299 = math.exp %298 : vector<2x8x8xf32>
    %cst_117 = arith.constant dense<0.000000e+00> : vector<2x8xf32>
    %300 = vector.multi_reduction <add>, %299, %cst_117 [2] : vector<2x8x8xf32> to vector<2x8xf32>
    %301 = vector.shape_cast %300 : vector<2x8xf32> to vector<2x8x1xf32>
    %302 = tpu.reciprocal %301 {approx = true} : vector<2x8x1xf32> -> vector<2x8x1xf32>
    %303 = vector.broadcast %302 : vector<2x8x1xf32> to vector<2x8x8xf32>
    %304 = arith.mulf %299, %303 : vector<2x8x8xf32>
    "tpu.trace_start"() <{level = 10 : i32, message = "bqk,bkd->bqd"}> : () -> ()
    %cst_118 = arith.constant dense<0.000000e+00> : vector<2x8x4xf32>
    %305 = tpu.matmul %304, %293, %cst_118 {dimension_numbers = #tpu.dot_dimension_numbers<[2], [1], [1], [2], [0, 0, 0, 1, 1, 2], [0], [0]>} : vector<2x8x8xf32>, vector<2x8x4xf32>, vector<2x8x4xf32> -> vector<2x8x4xf32>
    "tpu.trace_stop"() : () -> ()
    %306 = vector.extract_strided_slice %256 {offsets = [0, 0, 12], sizes = [2, 8, 4], strides = [1, 1, 1]} : vector<2x8x32xf32> to vector<2x8x4xf32>
    %307 = vector.extract_strided_slice %258 {offsets = [0, 0, 12], sizes = [2, 8, 4], strides = [1, 1, 1]} : vector<2x8x32xf32> to vector<2x8x4xf32>
    %308 = vector.extract_strided_slice %260 {offsets = [0, 0, 12], sizes = [2, 8, 4], strides = [1, 1, 1]} : vector<2x8x32xf32> to vector<2x8x4xf32>
    "tpu.trace_start"() <{level = 10 : i32, message = "bqd,bkd->bqk"}> : () -> ()
    %cst_119 = arith.constant dense<0.000000e+00> : vector<2x8x8xf32>
    %309 = tpu.matmul %306, %307, %cst_119 {dimension_numbers = #tpu.dot_dimension_numbers<[2], [2], [1], [1], [0, 0, 0, 1, 1, 1], [0], [0]>} : vector<2x8x4xf32>, vector<2x8x4xf32>, vector<2x8x8xf32> -> vector<2x8x8xf32>
    "tpu.trace_stop"() : () -> ()
    %cst_120 = arith.constant dense<0xFF800000> : vector<2x8xf32>
    %310 = vector.multi_reduction <maximumf>, %309, %cst_120 [2] : vector<2x8x8xf32> to vector<2x8xf32>
    %311 = vector.shape_cast %310 : vector<2x8xf32> to vector<2x8x1xf32>
    %312 = vector.broadcast %311 : vector<2x8x1xf32> to vector<2x8x8xf32>
    %313 = arith.subf %309, %312 : vector<2x8x8xf32>
    %314 = math.exp %313 : vector<2x8x8xf32>
    %cst_121 = arith.constant dense<0.000000e+00> : vector<2x8xf32>
    %315 = vector.multi_reduction <add>, %314, %cst_121 [2] : vector<2x8x8xf32> to vector<2x8xf32>
    %316 = vector.shape_cast %315 : vector<2x8xf32> to vector<2x8x1xf32>
    %317 = tpu.reciprocal %316 {approx = true} : vector<2x8x1xf32> -> vector<2x8x1xf32>
    %318 = vector.broadcast %317 : vector<2x8x1xf32> to vector<2x8x8xf32>
    %319 = arith.mulf %314, %318 : vector<2x8x8xf32>
    "tpu.trace_start"() <{level = 10 : i32, message = "bqk,bkd->bqd"}> : () -> ()
    %cst_122 = arith.constant dense<0.000000e+00> : vector<2x8x4xf32>
    %320 = tpu.matmul %319, %308, %cst_122 {dimension_numbers = #tpu.dot_dimension_numbers<[2], [1], [1], [2], [0, 0, 0, 1, 1, 2], [0], [0]>} : vector<2x8x8xf32>, vector<2x8x4xf32>, vector<2x8x4xf32> -> vector<2x8x4xf32>
    "tpu.trace_stop"() : () -> ()
    %321 = vector.extract_strided_slice %256 {offsets = [0, 0, 16], sizes = [2, 8, 4], strides = [1, 1, 1]} : vector<2x8x32xf32> to vector<2x8x4xf32>
    %322 = vector.extract_strided_slice %258 {offsets = [0, 0, 16], sizes = [2, 8, 4], strides = [1, 1, 1]} : vector<2x8x32xf32> to vector<2x8x4xf32>
    %323 = vector.extract_strided_slice %260 {offsets = [0, 0, 16], sizes = [2, 8, 4], strides = [1, 1, 1]} : vector<2x8x32xf32> to vector<2x8x4xf32>
    "tpu.trace_start"() <{level = 10 : i32, message = "bqd,bkd->bqk"}> : () -> ()
    %cst_123 = arith.constant dense<0.000000e+00> : vector<2x8x8xf32>
    %324 = tpu.matmul %321, %322, %cst_123 {dimension_numbers = #tpu.dot_dimension_numbers<[2], [2], [1], [1], [0, 0, 0, 1, 1, 1], [0], [0]>} : vector<2x8x4xf32>, vector<2x8x4xf32>, vector<2x8x8xf32> -> vector<2x8x8xf32>
    "tpu.trace_stop"() : () -> ()
    %cst_124 = arith.constant dense<0xFF800000> : vector<2x8xf32>
    %325 = vector.multi_reduction <maximumf>, %324, %cst_124 [2] : vector<2x8x8xf32> to vector<2x8xf32>
    %326 = vector.shape_cast %325 : vector<2x8xf32> to vector<2x8x1xf32>
    %327 = vector.broadcast %326 : vector<2x8x1xf32> to vector<2x8x8xf32>
    %328 = arith.subf %324, %327 : vector<2x8x8xf32>
    %329 = math.exp %328 : vector<2x8x8xf32>
    %cst_125 = arith.constant dense<0.000000e+00> : vector<2x8xf32>
    %330 = vector.multi_reduction <add>, %329, %cst_125 [2] : vector<2x8x8xf32> to vector<2x8xf32>
    %331 = vector.shape_cast %330 : vector<2x8xf32> to vector<2x8x1xf32>
    %332 = tpu.reciprocal %331 {approx = true} : vector<2x8x1xf32> -> vector<2x8x1xf32>
    %333 = vector.broadcast %332 : vector<2x8x1xf32> to vector<2x8x8xf32>
    %334 = arith.mulf %329, %333 : vector<2x8x8xf32>
    "tpu.trace_start"() <{level = 10 : i32, message = "bqk,bkd->bqd"}> : () -> ()
    %cst_126 = arith.constant dense<0.000000e+00> : vector<2x8x4xf32>
    %335 = tpu.matmul %334, %323, %cst_126 {dimension_numbers = #tpu.dot_dimension_numbers<[2], [1], [1], [2], [0, 0, 0, 1, 1, 2], [0], [0]>} : vector<2x8x8xf32>, vector<2x8x4xf32>, vector<2x8x4xf32> -> vector<2x8x4xf32>
    "tpu.trace_stop"() : () -> ()
    %336 = vector.extract_strided_slice %256 {offsets = [0, 0, 20], sizes = [2, 8, 4], strides = [1, 1, 1]} : vector<2x8x32xf32> to vector<2x8x4xf32>
    %337 = vector.extract_strided_slice %258 {offsets = [0, 0, 20], sizes = [2, 8, 4], strides = [1, 1, 1]} : vector<2x8x32xf32> to vector<2x8x4xf32>
    %338 = vector.extract_strided_slice %260 {offsets = [0, 0, 20], sizes = [2, 8, 4], strides = [1, 1, 1]} : vector<2x8x32xf32> to vector<2x8x4xf32>
    "tpu.trace_start"() <{level = 10 : i32, message = "bqd,bkd->bqk"}> : () -> ()
    %cst_127 = arith.constant dense<0.000000e+00> : vector<2x8x8xf32>
    %339 = tpu.matmul %336, %337, %cst_127 {dimension_numbers = #tpu.dot_dimension_numbers<[2], [2], [1], [1], [0, 0, 0, 1, 1, 1], [0], [0]>} : vector<2x8x4xf32>, vector<2x8x4xf32>, vector<2x8x8xf32> -> vector<2x8x8xf32>
    "tpu.trace_stop"() : () -> ()
    %cst_128 = arith.constant dense<0xFF800000> : vector<2x8xf32>
    %340 = vector.multi_reduction <maximumf>, %339, %cst_128 [2] : vector<2x8x8xf32> to vector<2x8xf32>
    %341 = vector.shape_cast %340 : vector<2x8xf32> to vector<2x8x1xf32>
    %342 = vector.broadcast %341 : vector<2x8x1xf32> to vector<2x8x8xf32>
    %343 = arith.subf %339, %342 : vector<2x8x8xf32>
    %344 = math.exp %343 : vector<2x8x8xf32>
    %cst_129 = arith.constant dense<0.000000e+00> : vector<2x8xf32>
    %345 = vector.multi_reduction <add>, %344, %cst_129 [2] : vector<2x8x8xf32> to vector<2x8xf32>
    %346 = vector.shape_cast %345 : vector<2x8xf32> to vector<2x8x1xf32>
    %347 = tpu.reciprocal %346 {approx = true} : vector<2x8x1xf32> -> vector<2x8x1xf32>
    %348 = vector.broadcast %347 : vector<2x8x1xf32> to vector<2x8x8xf32>
    %349 = arith.mulf %344, %348 : vector<2x8x8xf32>
    "tpu.trace_start"() <{level = 10 : i32, message = "bqk,bkd->bqd"}> : () -> ()
    %cst_130 = arith.constant dense<0.000000e+00> : vector<2x8x4xf32>
    %350 = tpu.matmul %349, %338, %cst_130 {dimension_numbers = #tpu.dot_dimension_numbers<[2], [1], [1], [2], [0, 0, 0, 1, 1, 2], [0], [0]>} : vector<2x8x8xf32>, vector<2x8x4xf32>, vector<2x8x4xf32> -> vector<2x8x4xf32>
    "tpu.trace_stop"() : () -> ()
    %351 = vector.extract_strided_slice %256 {offsets = [0, 0, 24], sizes = [2, 8, 4], strides = [1, 1, 1]} : vector<2x8x32xf32> to vector<2x8x4xf32>
    %352 = vector.extract_strided_slice %258 {offsets = [0, 0, 24], sizes = [2, 8, 4], strides = [1, 1, 1]} : vector<2x8x32xf32> to vector<2x8x4xf32>
    %353 = vector.extract_strided_slice %260 {offsets = [0, 0, 24], sizes = [2, 8, 4], strides = [1, 1, 1]} : vector<2x8x32xf32> to vector<2x8x4xf32>
    "tpu.trace_start"() <{level = 10 : i32, message = "bqd,bkd->bqk"}> : () -> ()
    %cst_131 = arith.constant dense<0.000000e+00> : vector<2x8x8xf32>
    %354 = tpu.matmul %351, %352, %cst_131 {dimension_numbers = #tpu.dot_dimension_numbers<[2], [2], [1], [1], [0, 0, 0, 1, 1, 1], [0], [0]>} : vector<2x8x4xf32>, vector<2x8x4xf32>, vector<2x8x8xf32> -> vector<2x8x8xf32>
    "tpu.trace_stop"() : () -> ()
    %cst_132 = arith.constant dense<0xFF800000> : vector<2x8xf32>
    %355 = vector.multi_reduction <maximumf>, %354, %cst_132 [2] : vector<2x8x8xf32> to vector<2x8xf32>
    %356 = vector.shape_cast %355 : vector<2x8xf32> to vector<2x8x1xf32>
    %357 = vector.broadcast %356 : vector<2x8x1xf32> to vector<2x8x8xf32>
    %358 = arith.subf %354, %357 : vector<2x8x8xf32>
    %359 = math.exp %358 : vector<2x8x8xf32>
    %cst_133 = arith.constant dense<0.000000e+00> : vector<2x8xf32>
    %360 = vector.multi_reduction <add>, %359, %cst_133 [2] : vector<2x8x8xf32> to vector<2x8xf32>
    %361 = vector.shape_cast %360 : vector<2x8xf32> to vector<2x8x1xf32>
    %362 = tpu.reciprocal %361 {approx = true} : vector<2x8x1xf32> -> vector<2x8x1xf32>
    %363 = vector.broadcast %362 : vector<2x8x1xf32> to vector<2x8x8xf32>
    %364 = arith.mulf %359, %363 : vector<2x8x8xf32>
    "tpu.trace_start"() <{level = 10 : i32, message = "bqk,bkd->bqd"}> : () -> ()
    %cst_134 = arith.constant dense<0.000000e+00> : vector<2x8x4xf32>
    %365 = tpu.matmul %364, %353, %cst_134 {dimension_numbers = #tpu.dot_dimension_numbers<[2], [1], [1], [2], [0, 0, 0, 1, 1, 2], [0], [0]>} : vector<2x8x8xf32>, vector<2x8x4xf32>, vector<2x8x4xf32> -> vector<2x8x4xf32>
    "tpu.trace_stop"() : () -> ()
    %366 = vector.extract_strided_slice %256 {offsets = [0, 0, 28], sizes = [2, 8, 4], strides = [1, 1, 1]} : vector<2x8x32xf32> to vector<2x8x4xf32>
    %367 = vector.extract_strided_slice %258 {offsets = [0, 0, 28], sizes = [2, 8, 4], strides = [1, 1, 1]} : vector<2x8x32xf32> to vector<2x8x4xf32>
    %368 = vector.extract_strided_slice %260 {offsets = [0, 0, 28], sizes = [2, 8, 4], strides = [1, 1, 1]} : vector<2x8x32xf32> to vector<2x8x4xf32>
    "tpu.trace_start"() <{level = 10 : i32, message = "bqd,bkd->bqk"}> : () -> ()
    %cst_135 = arith.constant dense<0.000000e+00> : vector<2x8x8xf32>
    %369 = tpu.matmul %366, %367, %cst_135 {dimension_numbers = #tpu.dot_dimension_numbers<[2], [2], [1], [1], [0, 0, 0, 1, 1, 1], [0], [0]>} : vector<2x8x4xf32>, vector<2x8x4xf32>, vector<2x8x8xf32> -> vector<2x8x8xf32>
    "tpu.trace_stop"() : () -> ()
    %cst_136 = arith.constant dense<0xFF800000> : vector<2x8xf32>
    %370 = vector.multi_reduction <maximumf>, %369, %cst_136 [2] : vector<2x8x8xf32> to vector<2x8xf32>
    %371 = vector.shape_cast %370 : vector<2x8xf32> to vector<2x8x1xf32>
    %372 = vector.broadcast %371 : vector<2x8x1xf32> to vector<2x8x8xf32>
    %373 = arith.subf %369, %372 : vector<2x8x8xf32>
    %374 = math.exp %373 : vector<2x8x8xf32>
    %cst_137 = arith.constant dense<0.000000e+00> : vector<2x8xf32>
    %375 = vector.multi_reduction <add>, %374, %cst_137 [2] : vector<2x8x8xf32> to vector<2x8xf32>
    %376 = vector.shape_cast %375 : vector<2x8xf32> to vector<2x8x1xf32>
    %377 = tpu.reciprocal %376 {approx = true} : vector<2x8x1xf32> -> vector<2x8x1xf32>
    %378 = vector.broadcast %377 : vector<2x8x1xf32> to vector<2x8x8xf32>
    %379 = arith.mulf %374, %378 : vector<2x8x8xf32>
    "tpu.trace_start"() <{level = 10 : i32, message = "bqk,bkd->bqd"}> : () -> ()
    %cst_138 = arith.constant dense<0.000000e+00> : vector<2x8x4xf32>
    %380 = tpu.matmul %379, %368, %cst_138 {dimension_numbers = #tpu.dot_dimension_numbers<[2], [1], [1], [2], [0, 0, 0, 1, 1, 2], [0], [0]>} : vector<2x8x8xf32>, vector<2x8x4xf32>, vector<2x8x4xf32> -> vector<2x8x4xf32>
    "tpu.trace_stop"() : () -> ()
    %381 = tpu.concatenate %275, %290, %305, %320, %335, %350, %365, %380 in 2 : vector<2x8x4xf32>, vector<2x8x4xf32>, vector<2x8x4xf32>, vector<2x8x4xf32>, vector<2x8x4xf32>, vector<2x8x4xf32>, vector<2x8x4xf32>, vector<2x8x4xf32> -> vector<2x8x32xf32>
    %382 = vector.shape_cast %381 : vector<2x8x32xf32> to vector<16x32xf32>
    %c1_139 = arith.constant 1 : index
    %c0_140 = arith.constant 0 : index
    %c0_141 = arith.constant 0 : index
    %383 = vector.load %arg8[%c1_139, %c0_140, %c0_141] : memref<2x32x32xf32, #tpu.memory_space<vmem>>, vector<1x32x32xf32>
    %384 = vector.shape_cast %383 : vector<1x32x32xf32> to vector<32x32xf32>
    %cst_142 = arith.constant dense<0.000000e+00> : vector<16x32xf32>
    %385 = tpu.matmul %382, %384, %cst_142 {dimension_numbers = #tpu.dot_dimension_numbers<[1], [0], [0], [1], [0, 0, 1, 1], [], []>} : vector<16x32xf32>, vector<32x32xf32>, vector<16x32xf32> -> vector<16x32xf32>
    %c1_143 = arith.constant 1 : index
    %c0_144 = arith.constant 0 : index
    %c0_145 = arith.constant 0 : index
    %386 = vector.load %arg9[%c1_143, %c0_144, %c0_145] : memref<2x1x32xf32, #tpu.memory_space<vmem>>, vector<1x1x32xf32>
    %387 = vector.shape_cast %386 : vector<1x1x32xf32> to vector<1x32xf32>
    %388 = vector.broadcast %387 : vector<1x32xf32> to vector<16x32xf32>
    %389 = arith.addf %385, %388 : vector<16x32xf32>
    %390 = arith.addf %245, %389 : vector<16x32xf32>
    %c1_146 = arith.constant 1 : index
    %c0_147 = arith.constant 0 : index
    %c0_148 = arith.constant 0 : index
    %391 = vector.load %arg10[%c1_146, %c0_147, %c0_148] : memref<2x1x32xf32, #tpu.memory_space<vmem>>, vector<1x1x32xf32>
    %392 = vector.shape_cast %391 : vector<1x1x32xf32> to vector<1x32xf32>
    %c1_149 = arith.constant 1 : index
    %c0_150 = arith.constant 0 : index
    %c0_151 = arith.constant 0 : index
    %393 = vector.load %arg11[%c1_149, %c0_150, %c0_151] : memref<2x1x32xf32, #tpu.memory_space<vmem>>, vector<1x1x32xf32>
    %394 = vector.shape_cast %393 : vector<1x1x32xf32> to vector<1x32xf32>
    %cst_152 = arith.constant dense<0.000000e+00> : vector<16xf32>
    %395 = vector.multi_reduction <add>, %390, %cst_152 [1] : vector<16x32xf32> to vector<16xf32>
    %396 = vector.shape_cast %395 : vector<16xf32> to vector<16x1xf32>
    %cst_153 = arith.constant 3.200000e+01 : f32
    %397 = vector.broadcast %cst_153 : f32 to vector<16x1xf32>
    %398 = arith.divf %396, %397 : vector<16x1xf32>
    %399 = vector.broadcast %398 : vector<16x1xf32> to vector<16x32xf32>
    %400 = arith.subf %390, %399 : vector<16x32xf32>
    %401 = arith.mulf %400, %400 : vector<16x32xf32>
    %cst_154 = arith.constant dense<0.000000e+00> : vector<16xf32>
    %402 = vector.multi_reduction <add>, %401, %cst_154 [1] : vector<16x32xf32> to vector<16xf32>
    %403 = vector.shape_cast %402 : vector<16xf32> to vector<16x1xf32>
    %cst_155 = arith.constant 3.200000e+01 : f32
    %404 = vector.broadcast %cst_155 : f32 to vector<16x1xf32>
    %405 = arith.divf %403, %404 : vector<16x1xf32>
    %406 = vector.broadcast %398 : vector<16x1xf32> to vector<16x32xf32>
    %407 = arith.subf %390, %406 : vector<16x32xf32>
    %cst_156 = arith.constant 9.99999974E-6 : f32
    %408 = vector.broadcast %cst_156 : f32 to vector<16x1xf32>
    %409 = arith.addf %405, %408 : vector<16x1xf32>
    %410 = math.rsqrt %409 : vector<16x1xf32>
    %411 = vector.broadcast %410 : vector<16x1xf32> to vector<16x32xf32>
    %412 = arith.mulf %407, %411 : vector<16x32xf32>
    %413 = vector.broadcast %392 : vector<1x32xf32> to vector<16x32xf32>
    %414 = arith.mulf %412, %413 : vector<16x32xf32>
    %415 = vector.broadcast %394 : vector<1x32xf32> to vector<16x32xf32>
    %416 = arith.addf %414, %415 : vector<16x32xf32>
    %c1_157 = arith.constant 1 : index
    %c0_158 = arith.constant 0 : index
    %c0_159 = arith.constant 0 : index
    %417 = vector.load %arg12[%c1_157, %c0_158, %c0_159] : memref<2x32x128xf32, #tpu.memory_space<vmem>>, vector<1x32x128xf32>
    %418 = vector.shape_cast %417 : vector<1x32x128xf32> to vector<32x128xf32>
    %cst_160 = arith.constant dense<0.000000e+00> : vector<16x128xf32>
    %419 = tpu.matmul %416, %418, %cst_160 {dimension_numbers = #tpu.dot_dimension_numbers<[1], [0], [0], [1], [0, 0, 1, 1], [], []>} : vector<16x32xf32>, vector<32x128xf32>, vector<16x128xf32> -> vector<16x128xf32>
    %c1_161 = arith.constant 1 : index
    %c0_162 = arith.constant 0 : index
    %c0_163 = arith.constant 0 : index
    %420 = vector.load %arg13[%c1_161, %c0_162, %c0_163] : memref<2x1x128xf32, #tpu.memory_space<vmem>>, vector<1x1x128xf32>
    %421 = vector.shape_cast %420 : vector<1x1x128xf32> to vector<1x128xf32>
    %422 = vector.broadcast %421 : vector<1x128xf32> to vector<16x128xf32>
    %423 = arith.addf %419, %422 : vector<16x128xf32>
    %cst_164 = arith.constant 0.000000e+00 : f32
    %424 = vector.broadcast %cst_164 : f32 to vector<16x128xf32>
    %425 = arith.maximumf %423, %424 : vector<16x128xf32>
    %c1_165 = arith.constant 1 : index
    %c0_166 = arith.constant 0 : index
    %c0_167 = arith.constant 0 : index
    %426 = vector.load %arg14[%c1_165, %c0_166, %c0_167] : memref<2x128x32xf32, #tpu.memory_space<vmem>>, vector<1x128x32xf32>
    %427 = vector.shape_cast %426 : vector<1x128x32xf32> to vector<128x32xf32>
    %cst_168 = arith.constant dense<0.000000e+00> : vector<16x32xf32>
    %428 = tpu.matmul %425, %427, %cst_168 {dimension_numbers = #tpu.dot_dimension_numbers<[1], [0], [0], [1], [0, 0, 1, 1], [], []>} : vector<16x128xf32>, vector<128x32xf32>, vector<16x32xf32> -> vector<16x32xf32>
    %c1_169 = arith.constant 1 : index
    %c0_170 = arith.constant 0 : index
    %c0_171 = arith.constant 0 : index
    %429 = vector.load %arg15[%c1_169, %c0_170, %c0_171] : memref<2x1x32xf32, #tpu.memory_space<vmem>>, vector<1x1x32xf32>
    %430 = vector.shape_cast %429 : vector<1x1x32xf32> to vector<1x32xf32>
    %431 = vector.broadcast %430 : vector<1x32xf32> to vector<16x32xf32>
    %432 = arith.addf %428, %431 : vector<16x32xf32>
    %433 = arith.addf %416, %432 : vector<16x32xf32>
    %c1_172 = arith.constant 1 : index
    %c0_173 = arith.constant 0 : index
    %c0_174 = arith.constant 0 : index
    %434 = vector.load %arg16[%c1_172, %c0_173, %c0_174] : memref<2x1x32xf32, #tpu.memory_space<vmem>>, vector<1x1x32xf32>
    %435 = vector.shape_cast %434 : vector<1x1x32xf32> to vector<1x32xf32>
    %c1_175 = arith.constant 1 : index
    %c0_176 = arith.constant 0 : index
    %c0_177 = arith.constant 0 : index
    %436 = vector.load %arg17[%c1_175, %c0_176, %c0_177] : memref<2x1x32xf32, #tpu.memory_space<vmem>>, vector<1x1x32xf32>
    %437 = vector.shape_cast %436 : vector<1x1x32xf32> to vector<1x32xf32>
    %cst_178 = arith.constant dense<0.000000e+00> : vector<16xf32>
    %438 = vector.multi_reduction <add>, %433, %cst_178 [1] : vector<16x32xf32> to vector<16xf32>
    %439 = vector.shape_cast %438 : vector<16xf32> to vector<16x1xf32>
    %cst_179 = arith.constant 3.200000e+01 : f32
    %440 = vector.broadcast %cst_179 : f32 to vector<16x1xf32>
    %441 = arith.divf %439, %440 : vector<16x1xf32>
    %442 = vector.broadcast %441 : vector<16x1xf32> to vector<16x32xf32>
    %443 = arith.subf %433, %442 : vector<16x32xf32>
    %444 = arith.mulf %443, %443 : vector<16x32xf32>
    %cst_180 = arith.constant dense<0.000000e+00> : vector<16xf32>
    %445 = vector.multi_reduction <add>, %444, %cst_180 [1] : vector<16x32xf32> to vector<16xf32>
    %446 = vector.shape_cast %445 : vector<16xf32> to vector<16x1xf32>
    %cst_181 = arith.constant 3.200000e+01 : f32
    %447 = vector.broadcast %cst_181 : f32 to vector<16x1xf32>
    %448 = arith.divf %446, %447 : vector<16x1xf32>
    %449 = vector.broadcast %441 : vector<16x1xf32> to vector<16x32xf32>
    %450 = arith.subf %433, %449 : vector<16x32xf32>
    %cst_182 = arith.constant 9.99999974E-6 : f32
    %451 = vector.broadcast %cst_182 : f32 to vector<16x1xf32>
    %452 = arith.addf %448, %451 : vector<16x1xf32>
    %453 = math.rsqrt %452 : vector<16x1xf32>
    %454 = vector.broadcast %453 : vector<16x1xf32> to vector<16x32xf32>
    %455 = arith.mulf %450, %454 : vector<16x32xf32>
    %456 = vector.broadcast %435 : vector<1x32xf32> to vector<16x32xf32>
    %457 = arith.mulf %455, %456 : vector<16x32xf32>
    %458 = vector.broadcast %437 : vector<1x32xf32> to vector<16x32xf32>
    %459 = arith.addf %457, %458 : vector<16x32xf32>
    %c0_183 = arith.constant 0 : index
    %c0_184 = arith.constant 0 : index
    %460 = vector.load %arg18[%c0_183, %c0_184] : memref<1x32xf32, #tpu.memory_space<vmem>>, vector<1x32xf32>
    %c0_185 = arith.constant 0 : index
    %c0_186 = arith.constant 0 : index
    %461 = vector.load %arg19[%c0_185, %c0_186] : memref<1x32xf32, #tpu.memory_space<vmem>>, vector<1x32xf32>
    %cst_187 = arith.constant dense<0.000000e+00> : vector<16xf32>
    %462 = vector.multi_reduction <add>, %459, %cst_187 [1] : vector<16x32xf32> to vector<16xf32>
    %463 = vector.shape_cast %462 : vector<16xf32> to vector<16x1xf32>
    %cst_188 = arith.constant 3.200000e+01 : f32
    %464 = vector.broadcast %cst_188 : f32 to vector<16x1xf32>
    %465 = arith.divf %463, %464 : vector<16x1xf32>
    %466 = vector.broadcast %465 : vector<16x1xf32> to vector<16x32xf32>
    %467 = arith.subf %459, %466 : vector<16x32xf32>
    %468 = arith.mulf %467, %467 : vector<16x32xf32>
    %cst_189 = arith.constant dense<0.000000e+00> : vector<16xf32>
    %469 = vector.multi_reduction <add>, %468, %cst_189 [1] : vector<16x32xf32> to vector<16xf32>
    %470 = vector.shape_cast %469 : vector<16xf32> to vector<16x1xf32>
    %cst_190 = arith.constant 3.200000e+01 : f32
    %471 = vector.broadcast %cst_190 : f32 to vector<16x1xf32>
    %472 = arith.divf %470, %471 : vector<16x1xf32>
    %473 = vector.broadcast %465 : vector<16x1xf32> to vector<16x32xf32>
    %474 = arith.subf %459, %473 : vector<16x32xf32>
    %cst_191 = arith.constant 9.99999974E-6 : f32
    %475 = vector.broadcast %cst_191 : f32 to vector<16x1xf32>
    %476 = arith.addf %472, %475 : vector<16x1xf32>
    %477 = math.rsqrt %476 : vector<16x1xf32>
    %478 = vector.broadcast %477 : vector<16x1xf32> to vector<16x32xf32>
    %479 = arith.mulf %474, %478 : vector<16x32xf32>
    %480 = vector.broadcast %460 : vector<1x32xf32> to vector<16x32xf32>
    %481 = arith.mulf %479, %480 : vector<16x32xf32>
    %482 = vector.broadcast %461 : vector<1x32xf32> to vector<16x32xf32>
    %483 = arith.addf %481, %482 : vector<16x32xf32>
    %484 = vector.shape_cast %483 : vector<16x32xf32> to vector<2x8x32xf32>
    %c0_192 = arith.constant 0 : index
    %c0_193 = arith.constant 0 : index
    %485 = vector.load %arg20[%c0_192, %c0_193] : memref<1x32xf32, #tpu.memory_space<vmem>>, vector<1x32xf32>
    %486 = vector.shape_cast %485 : vector<1x32xf32> to vector<1x1x32xf32>
    %487 = vector.broadcast %486 : vector<1x1x32xf32> to vector<2x8x32xf32>
    %488 = arith.mulf %484, %487 : vector<2x8x32xf32>
    %cst_194 = arith.constant dense<0.000000e+00> : vector<2x8xf32>
    %489 = vector.multi_reduction <add>, %488, %cst_194 [2] : vector<2x8x32xf32> to vector<2x8xf32>
    %c0_195 = arith.constant 0 : index
    %c0_196 = arith.constant 0 : index
    %490 = vector.load %arg21[%c0_195, %c0_196] : memref<1x1xf32, #tpu.memory_space<vmem>>, vector<1x1xf32>
    %491 = vector.broadcast %490 : vector<1x1xf32> to vector<2x8xf32>
    %492 = arith.addf %489, %491 : vector<2x8xf32>
    %c0_197 = arith.constant 0 : index
    %c0_198 = arith.constant 0 : index
    %493 = vector.load %arg22[%c0_197, %c0_198] : memref<1x8xf32, #tpu.memory_space<vmem>>, vector<1x8xf32>
    %c0_199 = arith.constant 0 : index
    %c0_200 = arith.constant 0 : index
    %494 = vector.load %arg23[%c0_199, %c0_200] : memref<1x8xf32, #tpu.memory_space<vmem>>, vector<1x8xf32>
    %cst_201 = arith.constant dense<0.000000e+00> : vector<2xf32>
    %495 = vector.multi_reduction <add>, %492, %cst_201 [1] : vector<2x8xf32> to vector<2xf32>
    %496 = vector.shape_cast %495 : vector<2xf32> to vector<2x1xf32>
    %cst_202 = arith.constant 8.000000e+00 : f32
    %497 = vector.broadcast %cst_202 : f32 to vector<2x1xf32>
    %498 = arith.divf %496, %497 : vector<2x1xf32>
    %499 = vector.broadcast %498 : vector<2x1xf32> to vector<2x8xf32>
    %500 = arith.subf %492, %499 : vector<2x8xf32>
    %501 = arith.mulf %500, %500 : vector<2x8xf32>
    %cst_203 = arith.constant dense<0.000000e+00> : vector<2xf32>
    %502 = vector.multi_reduction <add>, %501, %cst_203 [1] : vector<2x8xf32> to vector<2xf32>
    %503 = vector.shape_cast %502 : vector<2xf32> to vector<2x1xf32>
    %cst_204 = arith.constant 8.000000e+00 : f32
    %504 = vector.broadcast %cst_204 : f32 to vector<2x1xf32>
    %505 = arith.divf %503, %504 : vector<2x1xf32>
    %506 = vector.broadcast %498 : vector<2x1xf32> to vector<2x8xf32>
    %507 = arith.subf %492, %506 : vector<2x8xf32>
    %cst_205 = arith.constant 9.99999974E-6 : f32
    %508 = vector.broadcast %cst_205 : f32 to vector<2x1xf32>
    %509 = arith.addf %505, %508 : vector<2x1xf32>
    %510 = math.rsqrt %509 : vector<2x1xf32>
    %511 = vector.broadcast %510 : vector<2x1xf32> to vector<2x8xf32>
    %512 = arith.mulf %507, %511 : vector<2x8xf32>
    %513 = vector.broadcast %493 : vector<1x8xf32> to vector<2x8xf32>
    %514 = arith.mulf %512, %513 : vector<2x8xf32>
    %515 = vector.broadcast %494 : vector<1x8xf32> to vector<2x8xf32>
    %516 = arith.addf %514, %515 : vector<2x8xf32>
    %c0_206 = arith.constant 0 : index
    %c0_207 = arith.constant 0 : index
    %517 = vector.load %arg24[%c0_206, %c0_207] : memref<1x8xf32, #tpu.memory_space<vmem>>, vector<1x8xf32>
    %518 = vector.broadcast %517 : vector<1x8xf32> to vector<2x8xf32>
    %519 = arith.mulf %516, %518 : vector<2x8xf32>
    %cst_208 = arith.constant dense<0.000000e+00> : vector<2xf32>
    %520 = vector.multi_reduction <add>, %519, %cst_208 [1] : vector<2x8xf32> to vector<2xf32>
    %521 = vector.shape_cast %520 : vector<2xf32> to vector<2x1xf32>
    %c0_209 = arith.constant 0 : index
    %c0_210 = arith.constant 0 : index
    %522 = vector.load %arg25[%c0_209, %c0_210] : memref<1x1xf32, #tpu.memory_space<vmem>>, vector<1x1xf32>
    %523 = vector.broadcast %522 : vector<1x1xf32> to vector<2x1xf32>
    %524 = arith.addf %521, %523 : vector<2x1xf32>
    %cst_211 = arith.constant 0.000000e+00 : f32
    %525 = vector.broadcast %cst_211 : f32 to vector<2x1xf32>
    %526 = arith.subf %525, %524 : vector<2x1xf32>
    %527 = math.exp %526 : vector<2x1xf32>
    %cst_212 = arith.constant 1.000000e+00 : f32
    %528 = vector.broadcast %cst_212 : f32 to vector<2x1xf32>
    %529 = arith.addf %528, %527 : vector<2x1xf32>
    %cst_213 = arith.constant 1.000000e+00 : f32
    %530 = vector.broadcast %cst_213 : f32 to vector<2x1xf32>
    %531 = arith.divf %530, %529 : vector<2x1xf32>
    %c0_214 = arith.constant 0 : index
    %c0_215 = arith.constant 0 : index
    %532 = vector.load %arg26[%c0_214, %c0_215] : memref<2x1xf32, #tpu.memory_space<vmem>>, vector<2x1xf32>
    tpu.vector_store %arg26[%c0_214, %c0_215], %531 {strides = array<i32>} : memref<2x1xf32, #tpu.memory_space<vmem>>, vector<2x1xf32>,
    return
  }
}

</mosaic_0001>

<llo_original>
// kernel: tpu_custom_call.1
$region0: #{tpu_custom_call.1}
  #allocation0 [shape = 'u32[]', space=smem, size = 0x4, offset = 0x4, fixed_abs, tag = 'smem constant byte address 0x4 - core index']
  #allocation1 [shape = 'u32[144,128]{1,0:T(1,128)}', space=vmem, size = 0x12000, scoped, tag = 'internal scratch']
  #allocation2 [shape = 'f32[1,1]{1,0:T(1,128)S(1)}', space=vmem, size = 0x200, scoped, tag = 'scoped memory for tpu_custom_call.1']
  #allocation3 [shape = 'f32[1,1]{1,0:T(1,128)S(1)}', space=vmem, size = 0x200, scoped, tag = 'scoped memory for tpu_custom_call.1']
  %s0 = inlined_call_operand.vmem [shape: f32[16,16], index: 0, kind: input, shape index: {}]
  %s1 = inlined_call_operand.vmem [shape: f32[16,32], index: 1, kind: input, shape index: {}]
  %s2 = inlined_call_operand.vmem [shape: f32[1,32], index: 2, kind: input, shape index: {}]
  %s3 = inlined_call_operand.vmem [shape: f32[16,32], index: 3, kind: input, shape index: {}]
  %s4 = inlined_call_operand.vmem [shape: f32[1,32], index: 4, kind: input, shape index: {}]
  %s5 = inlined_call_operand.vmem [shape: f32[1,32], index: 5, kind: input, shape index: {}]
  %s6 = inlined_call_operand.vmem [shape: f32[2,32,96], index: 6, kind: input, shape index: {}]
  %s7 = inlined_call_operand.vmem [shape: f32[2,1,96], index: 7, kind: input, shape index: {}]
  %s8 = inlined_call_operand.vmem [shape: f32[2,32,32], index: 8, kind: input, shape index: {}]
  %s9 = inlined_call_operand.vmem [shape: f32[2,1,32], index: 9, kind: input, shape index: {}]
  %s10 = inlined_call_operand.vmem [shape: f32[2,1,32], index: 10, kind: input, shape index: {}]
  %s11 = inlined_call_operand.vmem [shape: f32[2,1,32], index: 11, kind: input, shape index: {}]
  %s12 = inlined_call_operand.vmem [shape: f32[2,32,128], index: 12, kind: input, shape index: {}]
  %s13 = inlined_call_operand.vmem [shape: f32[2,1,128], index: 13, kind: input, shape index: {}]
  %s14 = inlined_call_operand.vmem [shape: f32[2,128,32], index: 14, kind: input, shape index: {}]
  %s15 = inlined_call_operand.vmem [shape: f32[2,1,32], index: 15, kind: input, shape index: {}]
  %s16 = inlined_call_operand.vmem [shape: f32[2,1,32], index: 16, kind: input, shape index: {}]
  %s17 = inlined_call_operand.vmem [shape: f32[2,1,32], index: 17, kind: input, shape index: {}]
  %s18 = inlined_call_operand.vmem [shape: f32[1,32], index: 18, kind: input, shape index: {}]
  %s19 = inlined_call_operand.vmem [shape: f32[1,32], index: 19, kind: input, shape index: {}]
  %s20 = inlined_call_operand.vmem [shape: f32[1,32], index: 20, kind: input, shape index: {}]
  %s21 = inlined_call_operand.<no memory space> [shape: f32[1,1], index: 21, kind: input, shape index: {}]
  %s22 = inlined_call_operand.vmem [shape: f32[1,8], index: 22, kind: input, shape index: {}]
  %s23 = inlined_call_operand.vmem [shape: f32[1,8], index: 23, kind: input, shape index: {}]
  %s24 = inlined_call_operand.vmem [shape: f32[1,8], index: 24, kind: input, shape index: {}]
  %s25 = inlined_call_operand.<no memory space> [shape: f32[1,1], index: 25, kind: input, shape index: {}]
  %s26 = inlined_call_operand.vmem [shape: f32[2,1], index: 26, kind: output, shape index: {}]
  %s27 = sld [smem:[#allocation0]]
  $region114: #{tpu_custom_call.1} parent=0
    _
  %s29 = ssub.s32 1, %s27
  %s30 = scalar_select 0, %s29, %s27
  %v31 = vstv %s21
  %32 = vst [vmem:[#allocation2] sm:$0x1] %v31
  %v33 = vstv %s25
  %34 = vst [vmem:[#allocation3] sm:$0x1] %v33
  // Predicated region
  $region2: #{tpu_custom_call.1} parent=0 // pred_check
    _
  $region3: #{tpu_custom_call.1} parent=0 // pred_check_branch
    %36 = sbr.rel (0) target = $region5
  $region4: #{tpu_custom_call.1} parent=0 // pred_region
    _
  $region5: #{tpu_custom_call.1} parent=0 // pred_fallthru
    _
  // Predicated region
  $region6: #{tpu_custom_call.1} parent=0 // pred_check
    _
  $region7: #{tpu_custom_call.1} parent=0 // pred_check_branch
    %38 = sbr.rel (0) target = $region9
  $region8: #{tpu_custom_call.1} parent=0 // pred_region
    _
  $region9: #{tpu_custom_call.1} parent=0 // pred_fallthru
    _
  // Predicated region
  $region10: #{tpu_custom_call.1} parent=0 // pred_check
    _
  $region11: #{tpu_custom_call.1} parent=0 // pred_check_branch
    %40 = sbr.rel (0) target = $region13
  $region12: #{tpu_custom_call.1} parent=0 // pred_region
    _
  $region13: #{tpu_custom_call.1} parent=0 // pred_fallthru
    _
  // Predicated region
  $region14: #{tpu_custom_call.1} parent=0 // pred_check
    _
  $region15: #{tpu_custom_call.1} parent=0 // pred_check_branch
    %42 = sbr.rel (0) target = $region17
  $region16: #{tpu_custom_call.1} parent=0 // pred_region
    _
  $region17: #{tpu_custom_call.1} parent=0 // pred_fallthru
    _
  // Predicated region
  $region18: #{tpu_custom_call.1} parent=0 // pred_check
    _
  $region19: #{tpu_custom_call.1} parent=0 // pred_check_branch
    %44 = sbr.rel (0) target = $region21
  $region20: #{tpu_custom_call.1} parent=0 // pred_region
    _
  $region21: #{tpu_custom_call.1} parent=0 // pred_fallthru
    _
  // Predicated region
  $region22: #{tpu_custom_call.1} parent=0 // pred_check
    _
  $region23: #{tpu_custom_call.1} parent=0 // pred_check_branch
    %46 = sbr.rel (0) target = $region25
  $region24: #{tpu_custom_call.1} parent=0 // pred_region
    _
  $region25: #{tpu_custom_call.1} parent=0 // pred_fallthru
    _
  // Predicated region
  $region26: #{tpu_custom_call.1} parent=0 // pred_check
    _
  $region27: #{tpu_custom_call.1} parent=0 // pred_check_branch
    %48 = sbr.rel (0) target = $region29
  $region28: #{tpu_custom_call.1} parent=0 // pred_region
    _
  $region29: #{tpu_custom_call.1} parent=0 // pred_fallthru
    _
  // Predicated region
  $region30: #{tpu_custom_call.1} parent=0 // pred_check
    _
  $region31: #{tpu_custom_call.1} parent=0 // pred_check_branch
    %50 = sbr.rel (0) target = $region33
  $region32: #{tpu_custom_call.1} parent=0 // pred_region
    _
  $region33: #{tpu_custom_call.1} parent=0 // pred_fallthru
    _
  // Predicated region
  $region34: #{tpu_custom_call.1} parent=0 // pred_check
    _
  $region35: #{tpu_custom_call.1} parent=0 // pred_check_branch
    %52 = sbr.rel (0) target = $region37
  $region36: #{tpu_custom_call.1} parent=0 // pred_region
    _
  $region37: #{tpu_custom_call.1} parent=0 // pred_fallthru
    _
  // Predicated region
  $region38: #{tpu_custom_call.1} parent=0 // pred_check
    _
  $region39: #{tpu_custom_call.1} parent=0 // pred_check_branch
    %54 = sbr.rel (0) target = $region41
  $region40: #{tpu_custom_call.1} parent=0 // pred_region
    _
  $region41: #{tpu_custom_call.1} parent=0 // pred_fallthru
    _
  // Predicated region
  $region42: #{tpu_custom_call.1} parent=0 // pred_check
    _
  $region43: #{tpu_custom_call.1} parent=0 // pred_check_branch
    %56 = sbr.rel (0) target = $region45
  $region44: #{tpu_custom_call.1} parent=0 // pred_region
    _
  $region45: #{tpu_custom_call.1} parent=0 // pred_fallthru
    _
  // Predicated region
  $region46: #{tpu_custom_call.1} parent=0 // pred_check
    _
  $region47: #{tpu_custom_call.1} parent=0 // pred_check_branch
    %58 = sbr.rel (0) target = $region49
  $region48: #{tpu_custom_call.1} parent=0 // pred_region
    _
  $region49: #{tpu_custom_call.1} parent=0 // pred_fallthru
    _
  // Predicated region
  $region50: #{tpu_custom_call.1} parent=0 // pred_check
    _
  $region51: #{tpu_custom_call.1} parent=0 // pred_check_branch
    %60 = sbr.rel (0) target = $region53
  $region52: #{tpu_custom_call.1} parent=0 // pred_region
    _
  $region53: #{tpu_custom_call.1} parent=0 // pred_fallthru
    _
  // Predicated region
  $region54: #{tpu_custom_call.1} parent=0 // pred_check
    _
  $region55: #{tpu_custom_call.1} parent=0 // pred_check_branch
    %62 = sbr.rel (0) target = $region57
  $region56: #{tpu_custom_call.1} parent=0 // pred_region
    _
  $region57: #{tpu_custom_call.1} parent=0 // pred_fallthru
    _
  // Predicated region
  $region58: #{tpu_custom_call.1} parent=0 // pred_check
    _
  $region59: #{tpu_custom_call.1} parent=0 // pred_check_branch
    %64 = sbr.rel (0) target = $region61
  $region60: #{tpu_custom_call.1} parent=0 // pred_region
    _
  $region61: #{tpu_custom_call.1} parent=0 // pred_fallthru
    _
  // Predicated region
  $region62: #{tpu_custom_call.1} parent=0 // pred_check
    _
  $region63: #{tpu_custom_call.1} parent=0 // pred_check_branch
    %66 = sbr.rel (0) target = $region65
  $region64: #{tpu_custom_call.1} parent=0 // pred_region
    _
  $region65: #{tpu_custom_call.1} parent=0 // pred_fallthru
    _
  // Predicated region
  $region66: #{tpu_custom_call.1} parent=0 // pred_check
    _
  $region67: #{tpu_custom_call.1} parent=0 // pred_check_branch
    %68 = sbr.rel (0) target = $region69
  $region68: #{tpu_custom_call.1} parent=0 // pred_region
    _
  $region69: #{tpu_custom_call.1} parent=0 // pred_fallthru
    _
  // Predicated region
  $region70: #{tpu_custom_call.1} parent=0 // pred_check
    _
  $region71: #{tpu_custom_call.1} parent=0 // pred_check_branch
    %70 = sbr.rel (0) target = $region73
  $region72: #{tpu_custom_call.1} parent=0 // pred_region
    _
  $region73: #{tpu_custom_call.1} parent=0 // pred_fallthru
    _
  // Predicated region
  $region74: #{tpu_custom_call.1} parent=0 // pred_check
    _
  $region75: #{tpu_custom_call.1} parent=0 // pred_check_branch
    %72 = sbr.rel (0) target = $region77
  $region76: #{tpu_custom_call.1} parent=0 // pred_region
    _
  $region77: #{tpu_custom_call.1} parent=0 // pred_fallthru
    _
  // Predicated region
  $region78: #{tpu_custom_call.1} parent=0 // pred_check
    _
  $region79: #{tpu_custom_call.1} parent=0 // pred_check_branch
    %74 = sbr.rel (0) target = $region81
  $region80: #{tpu_custom_call.1} parent=0 // pred_region
    _
  $region81: #{tpu_custom_call.1} parent=0 // pred_fallthru
    _
  // Predicated region
  $region82: #{tpu_custom_call.1} parent=0 // pred_check
    _
  $region83: #{tpu_custom_call.1} parent=0 // pred_check_branch
    %76 = sbr.rel (0) target = $region85
  $region84: #{tpu_custom_call.1} parent=0 // pred_region
    _
  $region85: #{tpu_custom_call.1} parent=0 // pred_fallthru
    _
  // Predicated region
  $region86: #{tpu_custom_call.1} parent=0 // pred_check
    _
  $region87: #{tpu_custom_call.1} parent=0 // pred_check_branch
    %78 = sbr.rel (0) target = $region89
  $region88: #{tpu_custom_call.1} parent=0 // pred_region
    _
  $region89: #{tpu_custom_call.1} parent=0 // pred_fallthru
    _
  // Predicated region
  $region90: #{tpu_custom_call.1} parent=0 // pred_check
    _
  $region91: #{tpu_custom_call.1} parent=0 // pred_check_branch
    %80 = sbr.rel (0) target = $region93
  $region92: #{tpu_custom_call.1} parent=0 // pred_region
    _
  $region93: #{tpu_custom_call.1} parent=0 // pred_fallthru
    _
  // Predicated region
  $region94: #{tpu_custom_call.1} parent=0 // pred_check
    _
  $region95: #{tpu_custom_call.1} parent=0 // pred_check_branch
    %82 = sbr.rel (0) target = $region97
  $region96: #{tpu_custom_call.1} parent=0 // pred_region
    _
  $region97: #{tpu_custom_call.1} parent=0 // pred_fallthru
    _
  // Predicated region
  $region98: #{tpu_custom_call.1} parent=0 // pred_check
    _
  $region99: #{tpu_custom_call.1} parent=0 // pred_check_branch
    %84 = sbr.rel (0) target = $region101
  $region100: #{tpu_custom_call.1} parent=0 // pred_region
    _
  $region101: #{tpu_custom_call.1} parent=0 // pred_fallthru
    _
  // Predicated region
  $region102: #{tpu_custom_call.1} parent=0 // pred_check
    _
  $region103: #{tpu_custom_call.1} parent=0 // pred_check_branch
    %86 = sbr.rel (0) target = $region105
  $region104: #{tpu_custom_call.1} parent=0 // pred_region
    _
  $region105: #{tpu_custom_call.1} parent=0 // pred_fallthru
    _
  %v87 = vld [vmem:[%s0] sm:$0xff]
  %v88 = vld [vmem:[%s0 + $0x8] sm:$0xff]
  %v89 = vld [vmem:[%s1] sm:$0xff]
  %v90 = vld [vmem:[%s1 + $0x8] sm:$0xff]
  %v91 = vld [vmem:[%s2] sm:$0x1]
  %v93 = vlaneseq
  %v94 = vshrl.u32 %v93, 7
  %v95 = vsub.s32 0, %v94
  %v96 = vrot.slane %v91, %v95
  %vm98 = vcmask 130048
  %v100 = vsel %vm98, %v87, 0
  %v103 = vsel %vm98, %v88, 0
  %105 = vmatprep.subr.mxu0 0.0
  %106 = vmatpush1.msra.mxu0 %v89
  %107 = vmatprep.subr.mxu0 0.0
  %108 = vmatpush1.msra.mxu0 %v90
  %109 = vmatprep.subr.mxu0 0.0
  %110 = vmatpush1.msra.mxu0 0.0
  %111 = vmatprep.subr.mxu0 0.0
  %112 = vmatpush1.msra.mxu0 0.0
  %113 = vmatprep.subr.mxu0 0.0
  %114 = vmatpush1.msra.mxu0 0.0
  %115 = vmatprep.subr.mxu0 0.0
  %116 = vmatpush1.msra.mxu0 0.0
  %117 = vmatprep.subr.mxu0 0.0
  %118 = vmatpush1.msra.mxu0 0.0
  %119 = vmatprep.subr.mxu0 0.0
  %120 = vmatpush1.msra.mxu0 0.0
  %121 = vmatprep.subr.mxu0 0.0
  %122 = vmatpush1.msra.mxu0 0.0
  %123 = vmatprep.subr.mxu0 0.0
  %124 = vmatpush1.msra.mxu0 0.0
  %125 = vmatprep.subr.mxu0 0.0
  %126 = vmatpush1.msra.mxu0 0.0
  %127 = vmatprep.subr.mxu0 0.0
  %128 = vmatpush1.msra.mxu0 0.0
  %129 = vmatprep.subr.mxu0 0.0
  %130 = vmatpush1.msra.mxu0 0.0
  %131 = vmatprep.subr.mxu0 0.0
  %132 = vmatpush1.msra.mxu0 0.0
  %133 = vmatprep.subr.mxu0 0.0
  %134 = vmatpush1.msra.mxu0 0.0
  %135 = vmatprep.subr.mxu0 0.0
  %136 = vmatpush1.msra.mxu0 0.0
  %137 = vmatprep.subr.mxu0 0.0
  %138 = vmatpush1.msra.mxu0 0.0
  %139 = vmatprep.subr.mxu0 0.0
  %140 = vmatpush1.msra.mxu0 0.0
  %141 = vmatprep.subr.mxu0 0.0
  %142 = vmatpush1.msra.mxu0 0.0
  %143 = vmatprep.subr.mxu0 0.0
  %144 = vmatpush1.msra.mxu0 0.0
  %145 = vmatprep.subr.mxu0 0.0
  %146 = vmatpush1.msra.mxu0 0.0
  %147 = vmatprep.subr.mxu0 0.0
  %148 = vmatpush1.msra.mxu0 0.0
  %149 = vmatprep.subr.mxu0 0.0
  %150 = vmatpush1.msra.mxu0 0.0
  %151 = vmatprep.subr.mxu0 0.0
  %152 = vmatpush1.msra.mxu0 0.0
  %153 = vmatprep.subr.mxu0 0.0
  %154 = vmatpush1.msra.mxu0 0.0
  %155 = vmatprep.subr.mxu0 0.0
  %156 = vmatpush1.msra.mxu0 0.0
  %157 = vmatprep.subr.mxu0 0.0
  %158 = vmatpush1.msra.mxu0 0.0
  %159 = vmatprep.subr.mxu0 0.0
  %160 = vmatpush1.msra.mxu0 0.0
  %161 = vmatprep.subr.mxu0 0.0
  %162 = vmatpush1.msra.mxu0 0.0
  %163 = vmatprep.subr.mxu0 0.0
  %164 = vmatpush1.msra.mxu0 0.0
  %165 = vmatprep.subr.mxu0 0.0
  %166 = vmatpush1.msra.mxu0 0.0
  %167 = vmatprep.subr.mxu0 0.0
  %168 = vmatpush1.msra.mxu0 0.0
  %169 = vmatprep.mubr.f32.mxu0 0.0
  %170 = vmatmul.mubr.f32.gmra.mrb[0].mxu0 %v100
  %v171 = vpop.f32.mrb[0].mxu0
  %v172 = vadd.f32 %v96, %v171
  %v173 = vpop.f32.mrb[0].mxu0
  %174 = vmatprep.mubr.f32.mxu0 0.0
  %175 = vmatmul.mubr.f32.gmra.mrb[0].mxu0 %v103
  %v176 = vpop.f32.mrb[0].mxu0
  %v177 = vadd.f32 %v96, %v176
  %v178 = vpop.f32.mrb[0].mxu0
  %179 = vdwg.mxu0
  %v180 = vld [vmem:[%s3] sm:$0xff]
  %v181 = vld [vmem:[%s3 + $0x8] sm:$0xff]
  %v182 = vadd.f32 %v172, %v180
  %v183 = vadd.f32 %v177, %v181
  %v184 = vld [vmem:[%s4] sm:$0x1]
  %v185 = vld [vmem:[%s5] sm:$0x1]
  %vm186 = vcmask 261120
  %v187 = vsel %vm186, %v182, 0.0
  %188 = vadd.xlane.f32.xlu0 %v187
  %v189 = vpop.xlane.xlu0 %188
  %v190 = vsel %vm186, %v183, 0.0
  %191 = vadd.xlane.f32.xlu0 %v190
  %v192 = vpop.xlane.xlu0 %191
  %v193 = vrcp.pop 32.0
  %v194 = vmul.f32 %v189, %v193
  %v195 = vmul.f32 %v192, %v193
  %v196 = vsub.f32 %v182, %v194
  %v197 = vsub.f32 %v183, %v195
  %v198 = vmul.f32 %v196, %v196
  %v199 = vmul.f32 %v197, %v197
  %v200 = vsel %vm186, %v198, 0.0
  %201 = vadd.xlane.f32.xlu0 %v200
  %v202 = vpop.xlane.xlu0 %201
  %v203 = vsel %vm186, %v199, 0.0
  %204 = vadd.xlane.f32.xlu0 %v203
  %v205 = vpop.xlane.xlu0 %204
  %v206 = vmul.f32 %v202, %v193
  %v207 = vmul.f32 %v205, %v193
  %v208 = vadd.f32 %v206, 1e-05
  %v209 = vadd.f32 %v207, 1e-05
  %v210 = vrsqrt.pop %v208
  %v211 = vrsqrt.pop %v209
  %v212 = vmul.f32 %v196, %v210
  %v213 = vmul.f32 %v197, %v211
  %v215 = vlaneseq
  %v216 = vshrl.u32 %v215, 7
  %v217 = vsub.s32 0, %v216
  %v218 = vrot.slane %v184, %v217
  %v220 = vmul.f32 %v212, %v218
  %v221 = vmul.f32 %v213, %v218
  %v223 = vlaneseq
  %v224 = vshrl.u32 %v223, 7
  %v225 = vsub.s32 0, %v224
  %v226 = vrot.slane %v185, %v225
  %v228 = vadd.f32 %v220, %v226
  %v229 = vadd.f32 %v221, %v226
  %v230 = vld [vmem:[%s6] sm:$0xff]
  %v231 = vld [vmem:[%s6 + $0x8] sm:$0xff]
  %v232 = vld [vmem:[%s6 + $0x10] sm:$0xff]
  %v233 = vld [vmem:[%s6 + $0x18] sm:$0xff]
  %v234 = vld [vmem:[%s7] sm:$0x1]
  %v236 = vlaneseq
  %v237 = vshrl.u32 %v236, 7
  %v238 = vsub.s32 0, %v237
  %v239 = vrot.slane %v234, %v238
  %v242 = vsel %vm186, %v228, 0
  %v245 = vsel %vm186, %v229, 0
  %247 = vmatprep.subr.mxu0 0.0
  %248 = vmatpush1.msra.mxu0 %v230
  %249 = vmatprep.subr.mxu0 0.0
  %250 = vmatpush1.msra.mxu0 %v231
  %251 = vmatprep.subr.mxu0 0.0
  %252 = vmatpush1.msra.mxu0 %v232
  %253 = vmatprep.subr.mxu0 0.0
  %254 = vmatpush1.msra.mxu0 %v233
  %255 = vmatprep.subr.mxu0 0.0
  %256 = vmatpush1.msra.mxu0 0.0
  %257 = vmatprep.subr.mxu0 0.0
  %258 = vmatpush1.msra.mxu0 0.0
  %259 = vmatprep.subr.mxu0 0.0
  %260 = vmatpush1.msra.mxu0 0.0
  %261 = vmatprep.subr.mxu0 0.0
  %262 = vmatpush1.msra.mxu0 0.0
  %263 = vmatprep.subr.mxu0 0.0
  %264 = vmatpush1.msra.mxu0 0.0
  %265 = vmatprep.subr.mxu0 0.0
  %266 = vmatpush1.msra.mxu0 0.0
  %267 = vmatprep.subr.mxu0 0.0
  %268 = vmatpush1.msra.mxu0 0.0
  %269 = vmatprep.subr.mxu0 0.0
  %270 = vmatpush1.msra.mxu0 0.0
  %271 = vmatprep.subr.mxu0 0.0
  %272 = vmatpush1.msra.mxu0 0.0
  %273 = vmatprep.subr.mxu0 0.0
  %274 = vmatpush1.msra.mxu0 0.0
  %275 = vmatprep.subr.mxu0 0.0
  %276 = vmatpush1.msra.mxu0 0.0
  %277 = vmatprep.subr.mxu0 0.0
  %278 = vmatpush1.msra.mxu0 0.0
  %279 = vmatprep.subr.mxu0 0.0
  %280 = vmatpush1.msra.mxu0 0.0
  %281 = vmatprep.subr.mxu0 0.0
  %282 = vmatpush1.msra.mxu0 0.0
  %283 = vmatprep.subr.mxu0 0.0
  %284 = vmatpush1.msra.mxu0 0.0
  %285 = vmatprep.subr.mxu0 0.0
  %286 = vmatpush1.msra.mxu0 0.0
  %287 = vmatprep.subr.mxu0 0.0
  %288 = vmatpush1.msra.mxu0 0.0
  %289 = vmatprep.subr.mxu0 0.0
  %290 = vmatpush1.msra.mxu0 0.0
  %291 = vmatprep.subr.mxu0 0.0
  %292 = vmatpush1.msra.mxu0 0.0
  %293 = vmatprep.subr.mxu0 0.0
  %294 = vmatpush1.msra.mxu0 0.0
  %295 = vmatprep.subr.mxu0 0.0
  %296 = vmatpush1.msra.mxu0 0.0
  %297 = vmatprep.subr.mxu0 0.0
  %298 = vmatpush1.msra.mxu0 0.0
  %299 = vmatprep.subr.mxu0 0.0
  %300 = vmatpush1.msra.mxu0 0.0
  %301 = vmatprep.subr.mxu0 0.0
  %302 = vmatpush1.msra.mxu0 0.0
  %303 = vmatprep.subr.mxu0 0.0
  %304 = vmatpush1.msra.mxu0 0.0
  %305 = vmatprep.subr.mxu0 0.0
  %306 = vmatpush1.msra.mxu0 0.0
  %307 = vmatprep.subr.mxu0 0.0
  %308 = vmatpush1.msra.mxu0 0.0
  %309 = vmatprep.subr.mxu0 0.0
  %310 = vmatpush1.msra.mxu0 0.0
  %311 = vmatprep.mubr.f32.mxu0 0.0
  %312 = vmatmul.mubr.f32.gmra.mrb[0].mxu0 %v242
  %v313 = vpop.f32.mrb[0].mxu0
  %v314 = vadd.f32 %v239, %v313
  %v315 = vpop.f32.mrb[0].mxu0
  %316 = vmatprep.mubr.f32.mxu0 0.0
  %317 = vmatmul.mubr.f32.gmra.mrb[0].mxu0 %v245
  %v318 = vpop.f32.mrb[0].mxu0
  %v319 = vadd.f32 %v239, %v318
  %v320 = vpop.f32.mrb[0].mxu0
  %321 = vdwg.mxu0
  %v322 = vmul.f32 %v314, 0.5
  %v323 = vmul.f32 %v319, 0.5
  %325 = vrot.lane.b32.xlu0 %v314, 96
  %v326 = vpop.permute.xlu0 %325
  %vm327 = vcmask 31744
  %v329 = vsel %vm327, %v322, 0
  %v331 = vsel %vm327, %v326, 0
  %333 = vmatprep.subr.mxu0 0.0
  %334 = vmatpush1.xpose.msra.mxu0 %v331
  %335 = vmatprep.subr.mxu0 0.0
  %336 = vmatpush1.xpose.msra.mxu0 0.0
  %337 = vmatprep.subr.mxu0 0.0
  %338 = vmatpush1.xpose.msra.mxu0 0.0
  %339 = vmatprep.subr.mxu0 0.0
  %340 = vmatpush1.xpose.msra.mxu0 0.0
  %341 = vmatprep.subr.mxu0 0.0
  %342 = vmatpush1.xpose.msra.mxu0 0.0
  %343 = vmatprep.subr.mxu0 0.0
  %344 = vmatpush1.xpose.msra.mxu0 0.0
  %345 = vmatprep.subr.mxu0 0.0
  %346 = vmatpush1.xpose.msra.mxu0 0.0
  %347 = vmatprep.subr.mxu0 0.0
  %348 = vmatpush1.xpose.msra.mxu0 0.0
  %349 = vmatprep.subr.mxu0 0.0
  %350 = vmatpush1.xpose.msra.mxu0 0.0
  %351 = vmatprep.subr.mxu0 0.0
  %352 = vmatpush1.xpose.msra.mxu0 0.0
  %353 = vmatprep.subr.mxu0 0.0
  %354 = vmatpush1.xpose.msra.mxu0 0.0
  %355 = vmatprep.subr.mxu0 0.0
  %356 = vmatpush1.xpose.msra.mxu0 0.0
  %357 = vmatprep.subr.mxu0 0.0
  %358 = vmatpush1.xpose.msra.mxu0 0.0
  %359 = vmatprep.subr.mxu0 0.0
  %360 = vmatpush1.xpose.msra.mxu0 0.0
  %361 = vmatprep.subr.mxu0 0.0
  %362 = vmatpush1.xpose.msra.mxu0 0.0
  %363 = vmatprep.subr.mxu0 0.0
  %364 = vmatpush1.xpose.msra.mxu0 0.0
  %365 = vmatprep.subr.mxu0 0.0
  %366 = vmatpush1.xpose.msra.mxu0 0.0
  %367 = vmatprep.subr.mxu0 0.0
  %368 = vmatpush1.xpose.msra.mxu0 0.0
  %369 = vmatprep.subr.mxu0 0.0
  %370 = vmatpush1.xpose.msra.mxu0 0.0
  %371 = vmatprep.subr.mxu0 0.0
  %372 = vmatpush1.xpose.msra.mxu0 0.0
  %373 = vmatprep.subr.mxu0 0.0
  %374 = vmatpush1.xpose.msra.mxu0 0.0
  %375 = vmatprep.subr.mxu0 0.0
  %376 = vmatpush1.xpose.msra.mxu0 0.0
  %377 = vmatprep.subr.mxu0 0.0
  %378 = vmatpush1.xpose.msra.mxu0 0.0
  %379 = vmatprep.subr.mxu0 0.0
  %380 = vmatpush1.xpose.msra.mxu0 0.0
  %381 = vmatprep.subr.mxu0 0.0
  %382 = vmatpush1.xpose.msra.mxu0 0.0
  %383 = vmatprep.subr.mxu0 0.0
  %384 = vmatpush1.xpose.msra.mxu0 0.0
  %385 = vmatprep.subr.mxu0 0.0
  %386 = vmatpush1.xpose.msra.mxu0 0.0
  %387 = vmatprep.subr.mxu0 0.0
  %388 = vmatpush1.xpose.msra.mxu0 0.0
  %389 = vmatprep.subr.mxu0 0.0
  %390 = vmatpush1.xpose.msra.mxu0 0.0
  %391 = vmatprep.subr.mxu0 0.0
  %392 = vmatpush1.xpose.msra.mxu0 0.0
  %393 = vmatprep.subr.mxu0 0.0
  %394 = vmatpush1.xpose.msra.mxu0 0.0
  %395 = vmatprep.subr.mxu0 0.0
  %396 = vmatpush1.xpose.msra.mxu0 0.0
  %397 = vmatprep.mubr.f32.mxu0 0.0
  %398 = vmatmul.mubr.f32.gmra.mrb[0].mxu0 %v329
  %v399 = vpop.f32.mrb[0].mxu0
  %v400 = vadd.f32 0.0, %v399
  %v401 = vpop.f32.mrb[0].mxu0
  %402 = vdwg.mxu0
  %404 = vrot.lane.b32.xlu0 %v319, 96
  %v405 = vpop.permute.xlu0 %404
  %v407 = vsel %vm327, %v323, 0
  %v409 = vsel %vm327, %v405, 0
  %411 = vmatprep.subr.mxu0 0.0
  %412 = vmatpush1.xpose.msra.mxu0 %v409
  %413 = vmatprep.subr.mxu0 0.0
  %414 = vmatpush1.xpose.msra.mxu0 0.0
  %415 = vmatprep.subr.mxu0 0.0
  %416 = vmatpush1.xpose.msra.mxu0 0.0
  %417 = vmatprep.subr.mxu0 0.0
  %418 = vmatpush1.xpose.msra.mxu0 0.0
  %419 = vmatprep.subr.mxu0 0.0
  %420 = vmatpush1.xpose.msra.mxu0 0.0
  %421 = vmatprep.subr.mxu0 0.0
  %422 = vmatpush1.xpose.msra.mxu0 0.0
  %423 = vmatprep.subr.mxu0 0.0
  %424 = vmatpush1.xpose.msra.mxu0 0.0
  %425 = vmatprep.subr.mxu0 0.0
  %426 = vmatpush1.xpose.msra.mxu0 0.0
  %427 = vmatprep.subr.mxu0 0.0
  %428 = vmatpush1.xpose.msra.mxu0 0.0
  %429 = vmatprep.subr.mxu0 0.0
  %430 = vmatpush1.xpose.msra.mxu0 0.0
  %431 = vmatprep.subr.mxu0 0.0
  %432 = vmatpush1.xpose.msra.mxu0 0.0
  %433 = vmatprep.subr.mxu0 0.0
  %434 = vmatpush1.xpose.msra.mxu0 0.0
  %435 = vmatprep.subr.mxu0 0.0
  %436 = vmatpush1.xpose.msra.mxu0 0.0
  %437 = vmatprep.subr.mxu0 0.0
  %438 = vmatpush1.xpose.msra.mxu0 0.0
  %439 = vmatprep.subr.mxu0 0.0
  %440 = vmatpush1.xpose.msra.mxu0 0.0
  %441 = vmatprep.subr.mxu0 0.0
  %442 = vmatpush1.xpose.msra.mxu0 0.0
  %443 = vmatprep.subr.mxu0 0.0
  %444 = vmatpush1.xpose.msra.mxu0 0.0
  %445 = vmatprep.subr.mxu0 0.0
  %446 = vmatpush1.xpose.msra.mxu0 0.0
  %447 = vmatprep.subr.mxu0 0.0
  %448 = vmatpush1.xpose.msra.mxu0 0.0
  %449 = vmatprep.subr.mxu0 0.0
  %450 = vmatpush1.xpose.msra.mxu0 0.0
  %451 = vmatprep.subr.mxu0 0.0
  %452 = vmatpush1.xpose.msra.mxu0 0.0
  %453 = vmatprep.subr.mxu0 0.0
  %454 = vmatpush1.xpose.msra.mxu0 0.0
  %455 = vmatprep.subr.mxu0 0.0
  %456 = vmatpush1.xpose.msra.mxu0 0.0
  %457 = vmatprep.subr.mxu0 0.0
  %458 = vmatpush1.xpose.msra.mxu0 0.0
  %459 = vmatprep.subr.mxu0 0.0
  %460 = vmatpush1.xpose.msra.mxu0 0.0
  %461 = vmatprep.subr.mxu0 0.0
  %462 = vmatpush1.xpose.msra.mxu0 0.0
  %463 = vmatprep.subr.mxu0 0.0
  %464 = vmatpush1.xpose.msra.mxu0 0.0
  %465 = vmatprep.subr.mxu0 0.0
  %466 = vmatpush1.xpose.msra.mxu0 0.0
  %467 = vmatprep.subr.mxu0 0.0
  %468 = vmatpush1.xpose.msra.mxu0 0.0
  %469 = vmatprep.subr.mxu0 0.0
  %470 = vmatpush1.xpose.msra.mxu0 0.0
  %471 = vmatprep.subr.mxu0 0.0
  %472 = vmatpush1.xpose.msra.mxu0 0.0
  %473 = vmatprep.subr.mxu0 0.0
  %474 = vmatpush1.xpose.msra.mxu0 0.0
  %475 = vmatprep.mubr.f32.mxu0 0.0
  %476 = vmatmul.mubr.f32.gmra.mrb[0].mxu0 %v407
  %v477 = vpop.f32.mrb[0].mxu0
  %v478 = vadd.f32 0.0, %v477
  %v479 = vpop.f32.mrb[0].mxu0
  %480 = vdwg.mxu0
  %vm481 = vcmask 64512
  %v482 = vsel %vm481, %v400, -inf
  %483 = vmax.xlane.f32.xlu0 %v482
  %v484 = vpop.xlane.xlu0 %483
  %v485 = vsel %vm481, %v478, -inf
  %486 = vmax.xlane.f32.xlu0 %v485
  %v487 = vpop.xlane.xlu0 %486
  %v488 = vsub.f32 %v400, %v484
  %v489 = vsub.f32 %v478, %v487
  %v490 = vmul.f32 %v488, 1.442695
  %v491 = vpow.pop %v490
  %v492 = vmul.f32 %v489, 1.442695
  %v493 = vpow.pop %v492
  %v494 = vsel %vm481, %v491, 0.0
  %495 = vadd.xlane.f32.xlu0 %v494
  %v496 = vpop.xlane.xlu0 %495
  %v497 = vsel %vm481, %v493, 0.0
  %498 = vadd.xlane.f32.xlu0 %v497
  %v499 = vpop.xlane.xlu0 %498
  %v500 = vrcp.pop %v496
  %v501 = vrcp.pop %v499
  %v502 = vmul.f32 %v491, %v500
  %v503 = vmul.f32 %v493, %v501
  %504 = vrot.lane.b32.xlu0 %v314, 64
  %v505 = vpop.permute.xlu0 %504
  %v508 = vsel %vm481, %v502, 0
  %510 = vmatprep.subr.mxu0 0.0
  %511 = vmatpush1.msra.mxu0 %v505
  %512 = vmatprep.subr.mxu0 0.0
  %513 = vmatpush1.msra.mxu0 0.0
  %514 = vmatprep.subr.mxu0 0.0
  %515 = vmatpush1.msra.mxu0 0.0
  %516 = vmatprep.subr.mxu0 0.0
  %517 = vmatpush1.msra.mxu0 0.0
  %518 = vmatprep.subr.mxu0 0.0
  %519 = vmatpush1.msra.mxu0 0.0
  %520 = vmatprep.subr.mxu0 0.0
  %521 = vmatpush1.msra.mxu0 0.0
  %522 = vmatprep.subr.mxu0 0.0
  %523 = vmatpush1.msra.mxu0 0.0
  %524 = vmatprep.subr.mxu0 0.0
  %525 = vmatpush1.msra.mxu0 0.0
  %526 = vmatprep.subr.mxu0 0.0
  %527 = vmatpush1.msra.mxu0 0.0
  %528 = vmatprep.subr.mxu0 0.0
  %529 = vmatpush1.msra.mxu0 0.0
  %530 = vmatprep.subr.mxu0 0.0
  %531 = vmatpush1.msra.mxu0 0.0
  %532 = vmatprep.subr.mxu0 0.0
  %533 = vmatpush1.msra.mxu0 0.0
  %534 = vmatprep.subr.mxu0 0.0
  %535 = vmatpush1.msra.mxu0 0.0
  %536 = vmatprep.subr.mxu0 0.0
  %537 = vmatpush1.msra.mxu0 0.0
  %538 = vmatprep.subr.mxu0 0.0
  %539 = vmatpush1.msra.mxu0 0.0
  %540 = vmatprep.subr.mxu0 0.0
  %541 = vmatpush1.msra.mxu0 0.0
  %542 = vmatprep.subr.mxu0 0.0
  %543 = vmatpush1.msra.mxu0 0.0
  %544 = vmatprep.subr.mxu0 0.0
  %545 = vmatpush1.msra.mxu0 0.0
  %546 = vmatprep.subr.mxu0 0.0
  %547 = vmatpush1.msra.mxu0 0.0
  %548 = vmatprep.subr.mxu0 0.0
  %549 = vmatpush1.msra.mxu0 0.0
  %550 = vmatprep.subr.mxu0 0.0
  %551 = vmatpush1.msra.mxu0 0.0
  %552 = vmatprep.subr.mxu0 0.0
  %553 = vmatpush1.msra.mxu0 0.0
  %554 = vmatprep.subr.mxu0 0.0
  %555 = vmatpush1.msra.mxu0 0.0
  %556 = vmatprep.subr.mxu0 0.0
  %557 = vmatpush1.msra.mxu0 0.0
  %558 = vmatprep.subr.mxu0 0.0
  %559 = vmatpush1.msra.mxu0 0.0
  %560 = vmatprep.subr.mxu0 0.0
  %561 = vmatpush1.msra.mxu0 0.0
  %562 = vmatprep.subr.mxu0 0.0
  %563 = vmatpush1.msra.mxu0 0.0
  %564 = vmatprep.subr.mxu0 0.0
  %565 = vmatpush1.msra.mxu0 0.0
  %566 = vmatprep.subr.mxu0 0.0
  %567 = vmatpush1.msra.mxu0 0.0
  %568 = vmatprep.subr.mxu0 0.0
  %569 = vmatpush1.msra.mxu0 0.0
  %570 = vmatprep.subr.mxu0 0.0
  %571 = vmatpush1.msra.mxu0 0.0
  %572 = vmatprep.subr.mxu0 0.0
  %573 = vmatpush1.msra.mxu0 0.0
  %574 = vmatprep.mubr.f32.mxu0 0.0
  %575 = vmatmul.mubr.f32.gmra.mrb[0].mxu0 %v508
  %v576 = vpop.f32.mrb[0].mxu0
  %v577 = vadd.f32 0.0, %v576
  %v578 = vpop.f32.mrb[0].mxu0
  %579 = vdwg.mxu0
  %580 = vrot.lane.b32.xlu0 %v319, 64
  %v581 = vpop.permute.xlu0 %580
  %v584 = vsel %vm481, %v503, 0
  %586 = vmatprep.subr.mxu0 0.0
  %587 = vmatpush1.msra.mxu0 %v581
  %588 = vmatprep.subr.mxu0 0.0
  %589 = vmatpush1.msra.mxu0 0.0
  %590 = vmatprep.subr.mxu0 0.0
  %591 = vmatpush1.msra.mxu0 0.0
  %592 = vmatprep.subr.mxu0 0.0
  %593 = vmatpush1.msra.mxu0 0.0
  %594 = vmatprep.subr.mxu0 0.0
  %595 = vmatpush1.msra.mxu0 0.0
  %596 = vmatprep.subr.mxu0 0.0
  %597 = vmatpush1.msra.mxu0 0.0
  %598 = vmatprep.subr.mxu0 0.0
  %599 = vmatpush1.msra.mxu0 0.0
  %600 = vmatprep.subr.mxu0 0.0
  %601 = vmatpush1.msra.mxu0 0.0
  %602 = vmatprep.subr.mxu0 0.0
  %603 = vmatpush1.msra.mxu0 0.0
  %604 = vmatprep.subr.mxu0 0.0
  %605 = vmatpush1.msra.mxu0 0.0
  %606 = vmatprep.subr.mxu0 0.0
  %607 = vmatpush1.msra.mxu0 0.0
  %608 = vmatprep.subr.mxu0 0.0
  %609 = vmatpush1.msra.mxu0 0.0
  %610 = vmatprep.subr.mxu0 0.0
  %611 = vmatpush1.msra.mxu0 0.0
  %612 = vmatprep.subr.mxu0 0.0
  %613 = vmatpush1.msra.mxu0 0.0
  %614 = vmatprep.subr.mxu0 0.0
  %615 = vmatpush1.msra.mxu0 0.0
  %616 = vmatprep.subr.mxu0 0.0
  %617 = vmatpush1.msra.mxu0 0.0
  %618 = vmatprep.subr.mxu0 0.0
  %619 = vmatpush1.msra.mxu0 0.0
  %620 = vmatprep.subr.mxu0 0.0
  %621 = vmatpush1.msra.mxu0 0.0
  %622 = vmatprep.subr.mxu0 0.0
  %623 = vmatpush1.msra.mxu0 0.0
  %624 = vmatprep.subr.mxu0 0.0
  %625 = vmatpush1.msra.mxu0 0.0
  %626 = vmatprep.subr.mxu0 0.0
  %627 = vmatpush1.msra.mxu0 0.0
  %628 = vmatprep.subr.mxu0 0.0
  %629 = vmatpush1.msra.mxu0 0.0
  %630 = vmatprep.subr.mxu0 0.0
  %631 = vmatpush1.msra.mxu0 0.0
  %632 = vmatprep.subr.mxu0 0.0
  %633 = vmatpush1.msra.mxu0 0.0
  %634 = vmatprep.subr.mxu0 0.0
  %635 = vmatpush1.msra.mxu0 0.0
  %636 = vmatprep.subr.mxu0 0.0
  %637 = vmatpush1.msra.mxu0 0.0
  %638 = vmatprep.subr.mxu0 0.0
  %639 = vmatpush1.msra.mxu0 0.0
  %640 = vmatprep.subr.mxu0 0.0
  %641 = vmatpush1.msra.mxu0 0.0
  %642 = vmatprep.subr.mxu0 0.0
  %643 = vmatpush1.msra.mxu0 0.0
  %644 = vmatprep.subr.mxu0 0.0
  %645 = vmatpush1.msra.mxu0 0.0
  %646 = vmatprep.subr.mxu0 0.0
  %647 = vmatpush1.msra.mxu0 0.0
  %648 = vmatprep.subr.mxu0 0.0
  %649 = vmatpush1.msra.mxu0 0.0
  %650 = vmatprep.mubr.f32.mxu0 0.0
  %651 = vmatmul.mubr.f32.gmra.mrb[0].mxu0 %v584
  %v652 = vpop.f32.mrb[0].mxu0
  %v653 = vadd.f32 0.0, %v652
  %v654 = vpop.f32.mrb[0].mxu0
  %655 = vdwg.mxu0
  %656 = vrot.lane.b32.xlu0 %v322, 124
  %v657 = vpop.permute.xlu0 %656
  %658 = vrot.lane.b32.xlu0 %v314, 92
  %v659 = vpop.permute.xlu0 %658
  %v660 = vsel %vm327, %v657, 0
  %v662 = vsel %vm327, %v659, 0
  %664 = vmatprep.subr.mxu0 0.0
  %665 = vmatpush1.xpose.msra.mxu0 %v662
  %666 = vmatprep.subr.mxu0 0.0
  %667 = vmatpush1.xpose.msra.mxu0 0.0
  %668 = vmatprep.subr.mxu0 0.0
  %669 = vmatpush1.xpose.msra.mxu0 0.0
  %670 = vmatprep.subr.mxu0 0.0
  %671 = vmatpush1.xpose.msra.mxu0 0.0
  %672 = vmatprep.subr.mxu0 0.0
  %673 = vmatpush1.xpose.msra.mxu0 0.0
  %674 = vmatprep.subr.mxu0 0.0
  %675 = vmatpush1.xpose.msra.mxu0 0.0
  %676 = vmatprep.subr.mxu0 0.0
  %677 = vmatpush1.xpose.msra.mxu0 0.0
  %678 = vmatprep.subr.mxu0 0.0
  %679 = vmatpush1.xpose.msra.mxu0 0.0
  %680 = vmatprep.subr.mxu0 0.0
  %681 = vmatpush1.xpose.msra.mxu0 0.0
  %682 = vmatprep.subr.mxu0 0.0
  %683 = vmatpush1.xpose.msra.mxu0 0.0
  %684 = vmatprep.subr.mxu0 0.0
  %685 = vmatpush1.xpose.msra.mxu0 0.0
  %686 = vmatprep.subr.mxu0 0.0
  %687 = vmatpush1.xpose.msra.mxu0 0.0
  %688 = vmatprep.subr.mxu0 0.0
  %689 = vmatpush1.xpose.msra.mxu0 0.0
  %690 = vmatprep.subr.mxu0 0.0
  %691 = vmatpush1.xpose.msra.mxu0 0.0
  %692 = vmatprep.subr.mxu0 0.0
  %693 = vmatpush1.xpose.msra.mxu0 0.0
  %694 = vmatprep.subr.mxu0 0.0
  %695 = vmatpush1.xpose.msra.mxu0 0.0
  %696 = vmatprep.subr.mxu0 0.0
  %697 = vmatpush1.xpose.msra.mxu0 0.0
  %698 = vmatprep.subr.mxu0 0.0
  %699 = vmatpush1.xpose.msra.mxu0 0.0
  %700 = vmatprep.subr.mxu0 0.0
  %701 = vmatpush1.xpose.msra.mxu0 0.0
  %702 = vmatprep.subr.mxu0 0.0
  %703 = vmatpush1.xpose.msra.mxu0 0.0
  %704 = vmatprep.subr.mxu0 0.0
  %705 = vmatpush1.xpose.msra.mxu0 0.0
  %706 = vmatprep.subr.mxu0 0.0
  %707 = vmatpush1.xpose.msra.mxu0 0.0
  %708 = vmatprep.subr.mxu0 0.0
  %709 = vmatpush1.xpose.msra.mxu0 0.0
  %710 = vmatprep.subr.mxu0 0.0
  %711 = vmatpush1.xpose.msra.mxu0 0.0
  %712 = vmatprep.subr.mxu0 0.0
  %713 = vmatpush1.xpose.msra.mxu0 0.0
  %714 = vmatprep.subr.mxu0 0.0
  %715 = vmatpush1.xpose.msra.mxu0 0.0
  %716 = vmatprep.subr.mxu0 0.0
  %717 = vmatpush1.xpose.msra.mxu0 0.0
  %718 = vmatprep.subr.mxu0 0.0
  %719 = vmatpush1.xpose.msra.mxu0 0.0
  %720 = vmatprep.subr.mxu0 0.0
  %721 = vmatpush1.xpose.msra.mxu0 0.0
  %722 = vmatprep.subr.mxu0 0.0
  %723 = vmatpush1.xpose.msra.mxu0 0.0
  %724 = vmatprep.subr.mxu0 0.0
  %725 = vmatpush1.xpose.msra.mxu0 0.0
  %726 = vmatprep.subr.mxu0 0.0
  %727 = vmatpush1.xpose.msra.mxu0 0.0
  %728 = vmatprep.mubr.f32.mxu0 0.0
  %729 = vmatmul.mubr.f32.gmra.mrb[0].mxu0 %v660
  %v730 = vpop.f32.mrb[0].mxu0
  %v731 = vadd.f32 0.0, %v730
  %v732 = vpop.f32.mrb[0].mxu0
  %733 = vdwg.mxu0
  %734 = vrot.lane.b32.xlu0 %v323, 124
  %v735 = vpop.permute.xlu0 %734
  %736 = vrot.lane.b32.xlu0 %v319, 92
  %v737 = vpop.permute.xlu0 %736
  %v738 = vsel %vm327, %v735, 0
  %v740 = vsel %vm327, %v737, 0
  %742 = vmatprep.subr.mxu0 0.0
  %743 = vmatpush1.xpose.msra.mxu0 %v740
  %744 = vmatprep.subr.mxu0 0.0
  %745 = vmatpush1.xpose.msra.mxu0 0.0
  %746 = vmatprep.subr.mxu0 0.0
  %747 = vmatpush1.xpose.msra.mxu0 0.0
  %748 = vmatprep.subr.mxu0 0.0
  %749 = vmatpush1.xpose.msra.mxu0 0.0
  %750 = vmatprep.subr.mxu0 0.0
  %751 = vmatpush1.xpose.msra.mxu0 0.0
  %752 = vmatprep.subr.mxu0 0.0
  %753 = vmatpush1.xpose.msra.mxu0 0.0
  %754 = vmatprep.subr.mxu0 0.0
  %755 = vmatpush1.xpose.msra.mxu0 0.0
  %756 = vmatprep.subr.mxu0 0.0
  %757 = vmatpush1.xpose.msra.mxu0 0.0
  %758 = vmatprep.subr.mxu0 0.0
  %759 = vmatpush1.xpose.msra.mxu0 0.0
  %760 = vmatprep.subr.mxu0 0.0
  %761 = vmatpush1.xpose.msra.mxu0 0.0
  %762 = vmatprep.subr.mxu0 0.0
  %763 = vmatpush1.xpose.msra.mxu0 0.0
  %764 = vmatprep.subr.mxu0 0.0
  %765 = vmatpush1.xpose.msra.mxu0 0.0
  %766 = vmatprep.subr.mxu0 0.0
  %767 = vmatpush1.xpose.msra.mxu0 0.0
  %768 = vmatprep.subr.mxu0 0.0
  %769 = vmatpush1.xpose.msra.mxu0 0.0
  %770 = vmatprep.subr.mxu0 0.0
  %771 = vmatpush1.xpose.msra.mxu0 0.0
  %772 = vmatprep.subr.mxu0 0.0
  %773 = vmatpush1.xpose.msra.mxu0 0.0
  %774 = vmatprep.subr.mxu0 0.0
  %775 = vmatpush1.xpose.msra.mxu0 0.0
  %776 = vmatprep.subr.mxu0 0.0
  %777 = vmatpush1.xpose.msra.mxu0 0.0
  %778 = vmatprep.subr.mxu0 0.0
  %779 = vmatpush1.xpose.msra.mxu0 0.0
  %780 = vmatprep.subr.mxu0 0.0
  %781 = vmatpush1.xpose.msra.mxu0 0.0
  %782 = vmatprep.subr.mxu0 0.0
  %783 = vmatpush1.xpose.msra.mxu0 0.0
  %784 = vmatprep.subr.mxu0 0.0
  %785 = vmatpush1.xpose.msra.mxu0 0.0
  %786 = vmatprep.subr.mxu0 0.0
  %787 = vmatpush1.xpose.msra.mxu0 0.0
  %788 = vmatprep.subr.mxu0 0.0
  %789 = vmatpush1.xpose.msra.mxu0 0.0
  %790 = vmatprep.subr.mxu0 0.0
  %791 = vmatpush1.xpose.msra.mxu0 0.0
  %792 = vmatprep.subr.mxu0 0.0
  %793 = vmatpush1.xpose.msra.mxu0 0.0
  %794 = vmatprep.subr.mxu0 0.0
  %795 = vmatpush1.xpose.msra.mxu0 0.0
  %796 = vmatprep.subr.mxu0 0.0
  %797 = vmatpush1.xpose.msra.mxu0 0.0
  %798 = vmatprep.subr.mxu0 0.0
  %799 = vmatpush1.xpose.msra.mxu0 0.0
  %800 = vmatprep.subr.mxu0 0.0
  %801 = vmatpush1.xpose.msra.mxu0 0.0
  %802 = vmatprep.subr.mxu0 0.0
  %803 = vmatpush1.xpose.msra.mxu0 0.0
  %804 = vmatprep.subr.mxu0 0.0
  %805 = vmatpush1.xpose.msra.mxu0 0.0
  %806 = vmatprep.mubr.f32.mxu0 0.0
  %807 = vmatmul.mubr.f32.gmra.mrb[0].mxu0 %v738
  %v808 = vpop.f32.mrb[0].mxu0
  %v809 = vadd.f32 0.0, %v808
  %v810 = vpop.f32.mrb[0].mxu0
  %811 = vdwg.mxu0
  %v812 = vsel %vm481, %v731, -inf
  %813 = vmax.xlane.f32.xlu0 %v812
  %v814 = vpop.xlane.xlu0 %813
  %v815 = vsel %vm481, %v809, -inf
  %816 = vmax.xlane.f32.xlu0 %v815
  %v817 = vpop.xlane.xlu0 %816
  %v818 = vsub.f32 %v731, %v814
  %v819 = vsub.f32 %v809, %v817
  %v820 = vmul.f32 %v818, 1.442695
  %v821 = vpow.pop %v820
  %v822 = vmul.f32 %v819, 1.442695
  %v823 = vpow.pop %v822
  %v824 = vsel %vm481, %v821, 0.0
  %825 = vadd.xlane.f32.xlu0 %v824
  %v826 = vpop.xlane.xlu0 %825
  %v827 = vsel %vm481, %v823, 0.0
  %828 = vadd.xlane.f32.xlu0 %v827
  %v829 = vpop.xlane.xlu0 %828
  %v830 = vrcp.pop %v826
  %v831 = vrcp.pop %v829
  %v832 = vmul.f32 %v821, %v830
  %v833 = vmul.f32 %v823, %v831
  %834 = vrot.lane.b32.xlu0 %v314, 60
  %v835 = vpop.permute.xlu0 %834
  %v838 = vsel %vm481, %v832, 0
  %840 = vmatprep.subr.mxu0 0.0
  %841 = vmatpush1.msra.mxu0 %v835
  %842 = vmatprep.subr.mxu0 0.0
  %843 = vmatpush1.msra.mxu0 0.0
  %844 = vmatprep.subr.mxu0 0.0
  %845 = vmatpush1.msra.mxu0 0.0
  %846 = vmatprep.subr.mxu0 0.0
  %847 = vmatpush1.msra.mxu0 0.0
  %848 = vmatprep.subr.mxu0 0.0
  %849 = vmatpush1.msra.mxu0 0.0
  %850 = vmatprep.subr.mxu0 0.0
  %851 = vmatpush1.msra.mxu0 0.0
  %852 = vmatprep.subr.mxu0 0.0
  %853 = vmatpush1.msra.mxu0 0.0
  %854 = vmatprep.subr.mxu0 0.0
  %855 = vmatpush1.msra.mxu0 0.0
  %856 = vmatprep.subr.mxu0 0.0
  %857 = vmatpush1.msra.mxu0 0.0
  %858 = vmatprep.subr.mxu0 0.0
  %859 = vmatpush1.msra.mxu0 0.0
  %860 = vmatprep.subr.mxu0 0.0
  %861 = vmatpush1.msra.mxu0 0.0
  %862 = vmatprep.subr.mxu0 0.0
  %863 = vmatpush1.msra.mxu0 0.0
  %864 = vmatprep.subr.mxu0 0.0
  %865 = vmatpush1.msra.mxu0 0.0
  %866 = vmatprep.subr.mxu0 0.0
  %867 = vmatpush1.msra.mxu0 0.0
  %868 = vmatprep.subr.mxu0 0.0
  %869 = vmatpush1.msra.mxu0 0.0
  %870 = vmatprep.subr.mxu0 0.0
  %871 = vmatpush1.msra.mxu0 0.0
  %872 = vmatprep.subr.mxu0 0.0
  %873 = vmatpush1.msra.mxu0 0.0
  %874 = vmatprep.subr.mxu0 0.0
  %875 = vmatpush1.msra.mxu0 0.0
  %876 = vmatprep.subr.mxu0 0.0
  %877 = vmatpush1.msra.mxu0 0.0
  %878 = vmatprep.subr.mxu0 0.0
  %879 = vmatpush1.msra.mxu0 0.0
  %880 = vmatprep.subr.mxu0 0.0
  %881 = vmatpush1.msra.mxu0 0.0
  %882 = vmatprep.subr.mxu0 0.0
  %883 = vmatpush1.msra.mxu0 0.0
  %884 = vmatprep.subr.mxu0 0.0
  %885 = vmatpush1.msra.mxu0 0.0
  %886 = vmatprep.subr.mxu0 0.0
  %887 = vmatpush1.msra.mxu0 0.0
  %888 = vmatprep.subr.mxu0 0.0
  %889 = vmatpush1.msra.mxu0 0.0
  %890 = vmatprep.subr.mxu0 0.0
  %891 = vmatpush1.msra.mxu0 0.0
  %892 = vmatprep.subr.mxu0 0.0
  %893 = vmatpush1.msra.mxu0 0.0
  %894 = vmatprep.subr.mxu0 0.0
  %895 = vmatpush1.msra.mxu0 0.0
  %896 = vmatprep.subr.mxu0 0.0
  %897 = vmatpush1.msra.mxu0 0.0
  %898 = vmatprep.subr.mxu0 0.0
  %899 = vmatpush1.msra.mxu0 0.0
  %900 = vmatprep.subr.mxu0 0.0
  %901 = vmatpush1.msra.mxu0 0.0
  %902 = vmatprep.subr.mxu0 0.0
  %903 = vmatpush1.msra.mxu0 0.0
  %904 = vmatprep.mubr.f32.mxu0 0.0
  %905 = vmatmul.mubr.f32.gmra.mrb[0].mxu0 %v838
  %v906 = vpop.f32.mrb[0].mxu0
  %v907 = vadd.f32 0.0, %v906
  %v908 = vpop.f32.mrb[0].mxu0
  %909 = vdwg.mxu0
  %910 = vrot.lane.b32.xlu0 %v319, 60
  %v911 = vpop.permute.xlu0 %910
  %v914 = vsel %vm481, %v833, 0
  %916 = vmatprep.subr.mxu0 0.0
  %917 = vmatpush1.msra.mxu0 %v911
  %918 = vmatprep.subr.mxu0 0.0
  %919 = vmatpush1.msra.mxu0 0.0
  %920 = vmatprep.subr.mxu0 0.0
  %921 = vmatpush1.msra.mxu0 0.0
  %922 = vmatprep.subr.mxu0 0.0
  %923 = vmatpush1.msra.mxu0 0.0
  %924 = vmatprep.subr.mxu0 0.0
  %925 = vmatpush1.msra.mxu0 0.0
  %926 = vmatprep.subr.mxu0 0.0
  %927 = vmatpush1.msra.mxu0 0.0
  %928 = vmatprep.subr.mxu0 0.0
  %929 = vmatpush1.msra.mxu0 0.0
  %930 = vmatprep.subr.mxu0 0.0
  %931 = vmatpush1.msra.mxu0 0.0
  %932 = vmatprep.subr.mxu0 0.0
  %933 = vmatpush1.msra.mxu0 0.0
  %934 = vmatprep.subr.mxu0 0.0
  %935 = vmatpush1.msra.mxu0 0.0
  %936 = vmatprep.subr.mxu0 0.0
  %937 = vmatpush1.msra.mxu0 0.0
  %938 = vmatprep.subr.mxu0 0.0
  %939 = vmatpush1.msra.mxu0 0.0
  %940 = vmatprep.subr.mxu0 0.0
  %941 = vmatpush1.msra.mxu0 0.0
  %942 = vmatprep.subr.mxu0 0.0
  %943 = vmatpush1.msra.mxu0 0.0
  %944 = vmatprep.subr.mxu0 0.0
  %945 = vmatpush1.msra.mxu0 0.0
  %946 = vmatprep.subr.mxu0 0.0
  %947 = vmatpush1.msra.mxu0 0.0
  %948 = vmatprep.subr.mxu0 0.0
  %949 = vmatpush1.msra.mxu0 0.0
  %950 = vmatprep.subr.mxu0 0.0
  %951 = vmatpush1.msra.mxu0 0.0
  %952 = vmatprep.subr.mxu0 0.0
  %953 = vmatpush1.msra.mxu0 0.0
  %954 = vmatprep.subr.mxu0 0.0
  %955 = vmatpush1.msra.mxu0 0.0
  %956 = vmatprep.subr.mxu0 0.0
  %957 = vmatpush1.msra.mxu0 0.0
  %958 = vmatprep.subr.mxu0 0.0
  %959 = vmatpush1.msra.mxu0 0.0
  %960 = vmatprep.subr.mxu0 0.0
  %961 = vmatpush1.msra.mxu0 0.0
  %962 = vmatprep.subr.mxu0 0.0
  %963 = vmatpush1.msra.mxu0 0.0
  %964 = vmatprep.subr.mxu0 0.0
  %965 = vmatpush1.msra.mxu0 0.0
  %966 = vmatprep.subr.mxu0 0.0
  %967 = vmatpush1.msra.mxu0 0.0
  %968 = vmatprep.subr.mxu0 0.0
  %969 = vmatpush1.msra.mxu0 0.0
  %970 = vmatprep.subr.mxu0 0.0
  %971 = vmatpush1.msra.mxu0 0.0
  %972 = vmatprep.subr.mxu0 0.0
  %973 = vmatpush1.msra.mxu0 0.0
  %974 = vmatprep.subr.mxu0 0.0
  %975 = vmatpush1.msra.mxu0 0.0
  %976 = vmatprep.subr.mxu0 0.0
  %977 = vmatpush1.msra.mxu0 0.0
  %978 = vmatprep.subr.mxu0 0.0
  %979 = vmatpush1.msra.mxu0 0.0
  %980 = vmatprep.mubr.f32.mxu0 0.0
  %981 = vmatmul.mubr.f32.gmra.mrb[0].mxu0 %v914
  %v982 = vpop.f32.mrb[0].mxu0
  %v983 = vadd.f32 0.0, %v982
  %v984 = vpop.f32.mrb[0].mxu0
  %985 = vdwg.mxu0
  %986 = vrot.lane.b32.xlu0 %v322, 120
  %v987 = vpop.permute.xlu0 %986
  %988 = vrot.lane.b32.xlu0 %v314, 88
  %v989 = vpop.permute.xlu0 %988
  %v990 = vsel %vm327, %v987, 0
  %v992 = vsel %vm327, %v989, 0
  %994 = vmatprep.subr.mxu0 0.0
  %995 = vmatpush1.xpose.msra.mxu0 %v992
  %996 = vmatprep.subr.mxu0 0.0
  %997 = vmatpush1.xpose.msra.mxu0 0.0
  %998 = vmatprep.subr.mxu0 0.0
  %999 = vmatpush1.xpose.msra.mxu0 0.0
  %1000 = vmatprep.subr.mxu0 0.0
  %1001 = vmatpush1.xpose.msra.mxu0 0.0
  %1002 = vmatprep.subr.mxu0 0.0
  %1003 = vmatpush1.xpose.msra.mxu0 0.0
  %1004 = vmatprep.subr.mxu0 0.0
  %1005 = vmatpush1.xpose.msra.mxu0 0.0
  %1006 = vmatprep.subr.mxu0 0.0
  %1007 = vmatpush1.xpose.msra.mxu0 0.0
  %1008 = vmatprep.subr.mxu0 0.0
  %1009 = vmatpush1.xpose.msra.mxu0 0.0
  %1010 = vmatprep.subr.mxu0 0.0
  %1011 = vmatpush1.xpose.msra.mxu0 0.0
  %1012 = vmatprep.subr.mxu0 0.0
  %1013 = vmatpush1.xpose.msra.mxu0 0.0
  %1014 = vmatprep.subr.mxu0 0.0
  %1015 = vmatpush1.xpose.msra.mxu0 0.0
  %1016 = vmatprep.subr.mxu0 0.0
  %1017 = vmatpush1.xpose.msra.mxu0 0.0
  %1018 = vmatprep.subr.mxu0 0.0
  %1019 = vmatpush1.xpose.msra.mxu0 0.0
  %1020 = vmatprep.subr.mxu0 0.0
  %1021 = vmatpush1.xpose.msra.mxu0 0.0
  %1022 = vmatprep.subr.mxu0 0.0
  %1023 = vmatpush1.xpose.msra.mxu0 0.0
  %1024 = vmatprep.subr.mxu0 0.0
  %1025 = vmatpush1.xpose.msra.mxu0 0.0
  %1026 = vmatprep.subr.mxu0 0.0
  %1027 = vmatpush1.xpose.msra.mxu0 0.0
  %1028 = vmatprep.subr.mxu0 0.0
  %1029 = vmatpush1.xpose.msra.mxu0 0.0
  %1030 = vmatprep.subr.mxu0 0.0
  %1031 = vmatpush1.xpose.msra.mxu0 0.0
  %1032 = vmatprep.subr.mxu0 0.0
  %1033 = vmatpush1.xpose.msra.mxu0 0.0
  %1034 = vmatprep.subr.mxu0 0.0
  %1035 = vmatpush1.xpose.msra.mxu0 0.0
  %1036 = vmatprep.subr.mxu0 0.0
  %1037 = vmatpush1.xpose.msra.mxu0 0.0
  %1038 = vmatprep.subr.mxu0 0.0
  %1039 = vmatpush1.xpose.msra.mxu0 0.0
  %1040 = vmatprep.subr.mxu0 0.0
  %1041 = vmatpush1.xpose.msra.mxu0 0.0
  %1042 = vmatprep.subr.mxu0 0.0
  %1043 = vmatpush1.xpose.msra.mxu0 0.0
  %1044 = vmatprep.subr.mxu0 0.0
  %1045 = vmatpush1.xpose.msra.mxu0 0.0
  %1046 = vmatprep.subr.mxu0 0.0
  %1047 = vmatpush1.xpose.msra.mxu0 0.0
  %1048 = vmatprep.subr.mxu0 0.0
  %1049 = vmatpush1.xpose.msra.mxu0 0.0
  %1050 = vmatprep.subr.mxu0 0.0
  %1051 = vmatpush1.xpose.msra.mxu0 0.0
  %1052 = vmatprep.subr.mxu0 0.0
  %1053 = vmatpush1.xpose.msra.mxu0 0.0
  %1054 = vmatprep.subr.mxu0 0.0
  %1055 = vmatpush1.xpose.msra.mxu0 0.0
  %1056 = vmatprep.subr.mxu0 0.0
  %1057 = vmatpush1.xpose.msra.mxu0 0.0
  %1058 = vmatprep.mubr.f32.mxu0 0.0
  %1059 = vmatmul.mubr.f32.gmra.mrb[0].mxu0 %v990
  %v1060 = vpop.f32.mrb[0].mxu0
  %v1061 = vadd.f32 0.0, %v1060
  %v1062 = vpop.f32.mrb[0].mxu0
  %1063 = vdwg.mxu0
  %1064 = vrot.lane.b32.xlu0 %v323, 120
  %v1065 = vpop.permute.xlu0 %1064
  %1066 = vrot.lane.b32.xlu0 %v319, 88
  %v1067 = vpop.permute.xlu0 %1066
  %v1068 = vsel %vm327, %v1065, 0
  %v1070 = vsel %vm327, %v1067, 0
  %1072 = vmatprep.subr.mxu0 0.0
  %1073 = vmatpush1.xpose.msra.mxu0 %v1070
  %1074 = vmatprep.subr.mxu0 0.0
  %1075 = vmatpush1.xpose.msra.mxu0 0.0
  %1076 = vmatprep.subr.mxu0 0.0
  %1077 = vmatpush1.xpose.msra.mxu0 0.0
  %1078 = vmatprep.subr.mxu0 0.0
  %1079 = vmatpush1.xpose.msra.mxu0 0.0
  %1080 = vmatprep.subr.mxu0 0.0
  %1081 = vmatpush1.xpose.msra.mxu0 0.0
  %1082 = vmatprep.subr.mxu0 0.0
  %1083 = vmatpush1.xpose.msra.mxu0 0.0
  %1084 = vmatprep.subr.mxu0 0.0
  %1085 = vmatpush1.xpose.msra.mxu0 0.0
  %1086 = vmatprep.subr.mxu0 0.0
  %1087 = vmatpush1.xpose.msra.mxu0 0.0
  %1088 = vmatprep.subr.mxu0 0.0
  %1089 = vmatpush1.xpose.msra.mxu0 0.0
  %1090 = vmatprep.subr.mxu0 0.0
  %1091 = vmatpush1.xpose.msra.mxu0 0.0
  %1092 = vmatprep.subr.mxu0 0.0
  %1093 = vmatpush1.xpose.msra.mxu0 0.0
  %1094 = vmatprep.subr.mxu0 0.0
  %1095 = vmatpush1.xpose.msra.mxu0 0.0
  %1096 = vmatprep.subr.mxu0 0.0
  %1097 = vmatpush1.xpose.msra.mxu0 0.0
  %1098 = vmatprep.subr.mxu0 0.0
  %1099 = vmatpush1.xpose.msra.mxu0 0.0
  %1100 = vmatprep.subr.mxu0 0.0
  %1101 = vmatpush1.xpose.msra.mxu0 0.0
  %1102 = vmatprep.subr.mxu0 0.0
  %1103 = vmatpush1.xpose.msra.mxu0 0.0
  %1104 = vmatprep.subr.mxu0 0.0
  %1105 = vmatpush1.xpose.msra.mxu0 0.0
  %1106 = vmatprep.subr.mxu0 0.0
  %1107 = vmatpush1.xpose.msra.mxu0 0.0
  %1108 = vmatprep.subr.mxu0 0.0
  %1109 = vmatpush1.xpose.msra.mxu0 0.0
  %1110 = vmatprep.subr.mxu0 0.0
  %1111 = vmatpush1.xpose.msra.mxu0 0.0
  %1112 = vmatprep.subr.mxu0 0.0
  %1113 = vmatpush1.xpose.msra.mxu0 0.0
  %1114 = vmatprep.subr.mxu0 0.0
  %1115 = vmatpush1.xpose.msra.mxu0 0.0
  %1116 = vmatprep.subr.mxu0 0.0
  %1117 = vmatpush1.xpose.msra.mxu0 0.0
  %1118 = vmatprep.subr.mxu0 0.0
  %1119 = vmatpush1.xpose.msra.mxu0 0.0
  %1120 = vmatprep.subr.mxu0 0.0
  %1121 = vmatpush1.xpose.msra.mxu0 0.0
  %1122 = vmatprep.subr.mxu0 0.0
  %1123 = vmatpush1.xpose.msra.mxu0 0.0
  %1124 = vmatprep.subr.mxu0 0.0
  %1125 = vmatpush1.xpose.msra.mxu0 0.0
  %1126 = vmatprep.subr.mxu0 0.0
  %1127 = vmatpush1.xpose.msra.mxu0 0.0
  %1128 = vmatprep.subr.mxu0 0.0
  %1129 = vmatpush1.xpose.msra.mxu0 0.0
  %1130 = vmatprep.subr.mxu0 0.0
  %1131 = vmatpush1.xpose.msra.mxu0 0.0
  %1132 = vmatprep.subr.mxu0 0.0
  %1133 = vmatpush1.xpose.msra.mxu0 0.0
  %1134 = vmatprep.subr.mxu0 0.0
  %1135 = vmatpush1.xpose.msra.mxu0 0.0
  %1136 = vmatprep.mubr.f32.mxu0 0.0
  %1137 = vmatmul.mubr.f32.gmra.mrb[0].mxu0 %v1068
  %v1138 = vpop.f32.mrb[0].mxu0
  %v1139 = vadd.f32 0.0, %v1138
  %v1140 = vpop.f32.mrb[0].mxu0
  %1141 = vdwg.mxu0
  %v1142 = vsel %vm481, %v1061, -inf
  %1143 = vmax.xlane.f32.xlu0 %v1142
  %v1144 = vpop.xlane.xlu0 %1143
  %v1145 = vsel %vm481, %v1139, -inf
  %1146 = vmax.xlane.f32.xlu0 %v1145
  %v1147 = vpop.xlane.xlu0 %1146
  %v1148 = vsub.f32 %v1061, %v1144
  %v1149 = vsub.f32 %v1139, %v1147
  %v1150 = vmul.f32 %v1148, 1.442695
  %v1151 = vpow.pop %v1150
  %v1152 = vmul.f32 %v1149, 1.442695
  %v1153 = vpow.pop %v1152
  %v1154 = vsel %vm481, %v1151, 0.0
  %1155 = vadd.xlane.f32.xlu0 %v1154
  %v1156 = vpop.xlane.xlu0 %1155
  %v1157 = vsel %vm481, %v1153, 0.0
  %1158 = vadd.xlane.f32.xlu0 %v1157
  %v1159 = vpop.xlane.xlu0 %1158
  %v1160 = vrcp.pop %v1156
  %v1161 = vrcp.pop %v1159
  %v1162 = vmul.f32 %v1151, %v1160
  %v1163 = vmul.f32 %v1153, %v1161
  %1164 = vrot.lane.b32.xlu0 %v314, 56
  %v1165 = vpop.permute.xlu0 %1164
  %v1168 = vsel %vm481, %v1162, 0
  %1170 = vmatprep.subr.mxu0 0.0
  %1171 = vmatpush1.msra.mxu0 %v1165
  %1172 = vmatprep.subr.mxu0 0.0
  %1173 = vmatpush1.msra.mxu0 0.0
  %1174 = vmatprep.subr.mxu0 0.0
  %1175 = vmatpush1.msra.mxu0 0.0
  %1176 = vmatprep.subr.mxu0 0.0
  %1177 = vmatpush1.msra.mxu0 0.0
  %1178 = vmatprep.subr.mxu0 0.0
  %1179 = vmatpush1.msra.mxu0 0.0
  %1180 = vmatprep.subr.mxu0 0.0
  %1181 = vmatpush1.msra.mxu0 0.0
  %1182 = vmatprep.subr.mxu0 0.0
  %1183 = vmatpush1.msra.mxu0 0.0
  %1184 = vmatprep.subr.mxu0 0.0
  %1185 = vmatpush1.msra.mxu0 0.0
  %1186 = vmatprep.subr.mxu0 0.0
  %1187 = vmatpush1.msra.mxu0 0.0
  %1188 = vmatprep.subr.mxu0 0.0
  %1189 = vmatpush1.msra.mxu0 0.0
  %1190 = vmatprep.subr.mxu0 0.0
  %1191 = vmatpush1.msra.mxu0 0.0
  %1192 = vmatprep.subr.mxu0 0.0
  %1193 = vmatpush1.msra.mxu0 0.0
  %1194 = vmatprep.subr.mxu0 0.0
  %1195 = vmatpush1.msra.mxu0 0.0
  %1196 = vmatprep.subr.mxu0 0.0
  %1197 = vmatpush1.msra.mxu0 0.0
  %1198 = vmatprep.subr.mxu0 0.0
  %1199 = vmatpush1.msra.mxu0 0.0
  %1200 = vmatprep.subr.mxu0 0.0
  %1201 = vmatpush1.msra.mxu0 0.0
  %1202 = vmatprep.subr.mxu0 0.0
  %1203 = vmatpush1.msra.mxu0 0.0
  %1204 = vmatprep.subr.mxu0 0.0
  %1205 = vmatpush1.msra.mxu0 0.0
  %1206 = vmatprep.subr.mxu0 0.0
  %1207 = vmatpush1.msra.mxu0 0.0
  %1208 = vmatprep.subr.mxu0 0.0
  %1209 = vmatpush1.msra.mxu0 0.0
  %1210 = vmatprep.subr.mxu0 0.0
  %1211 = vmatpush1.msra.mxu0 0.0
  %1212 = vmatprep.subr.mxu0 0.0
  %1213 = vmatpush1.msra.mxu0 0.0
  %1214 = vmatprep.subr.mxu0 0.0
  %1215 = vmatpush1.msra.mxu0 0.0
  %1216 = vmatprep.subr.mxu0 0.0
  %1217 = vmatpush1.msra.mxu0 0.0
  %1218 = vmatprep.subr.mxu0 0.0
  %1219 = vmatpush1.msra.mxu0 0.0
  %1220 = vmatprep.subr.mxu0 0.0
  %1221 = vmatpush1.msra.mxu0 0.0
  %1222 = vmatprep.subr.mxu0 0.0
  %1223 = vmatpush1.msra.mxu0 0.0
  %1224 = vmatprep.subr.mxu0 0.0
  %1225 = vmatpush1.msra.mxu0 0.0
  %1226 = vmatprep.subr.mxu0 0.0
  %1227 = vmatpush1.msra.mxu0 0.0
  %1228 = vmatprep.subr.mxu0 0.0
  %1229 = vmatpush1.msra.mxu0 0.0
  %1230 = vmatprep.subr.mxu0 0.0
  %1231 = vmatpush1.msra.mxu0 0.0
  %1232 = vmatprep.subr.mxu0 0.0
  %1233 = vmatpush1.msra.mxu0 0.0
  %1234 = vmatprep.mubr.f32.mxu0 0.0
  %1235 = vmatmul.mubr.f32.gmra.mrb[0].mxu0 %v1168
  %v1236 = vpop.f32.mrb[0].mxu0
  %v1237 = vadd.f32 0.0, %v1236
  %v1238 = vpop.f32.mrb[0].mxu0
  %1239 = vdwg.mxu0
  %1240 = vrot.lane.b32.xlu0 %v319, 56
  %v1241 = vpop.permute.xlu0 %1240
  %v1244 = vsel %vm481, %v1163, 0
  %1246 = vmatprep.subr.mxu0 0.0
  %1247 = vmatpush1.msra.mxu0 %v1241
  %1248 = vmatprep.subr.mxu0 0.0
  %1249 = vmatpush1.msra.mxu0 0.0
  %1250 = vmatprep.subr.mxu0 0.0
  %1251 = vmatpush1.msra.mxu0 0.0
  %1252 = vmatprep.subr.mxu0 0.0
  %1253 = vmatpush1.msra.mxu0 0.0
  %1254 = vmatprep.subr.mxu0 0.0
  %1255 = vmatpush1.msra.mxu0 0.0
  %1256 = vmatprep.subr.mxu0 0.0
  %1257 = vmatpush1.msra.mxu0 0.0
  %1258 = vmatprep.subr.mxu0 0.0
  %1259 = vmatpush1.msra.mxu0 0.0
  %1260 = vmatprep.subr.mxu0 0.0
  %1261 = vmatpush1.msra.mxu0 0.0
  %1262 = vmatprep.subr.mxu0 0.0
  %1263 = vmatpush1.msra.mxu0 0.0
  %1264 = vmatprep.subr.mxu0 0.0
  %1265 = vmatpush1.msra.mxu0 0.0
  %1266 = vmatprep.subr.mxu0 0.0
  %1267 = vmatpush1.msra.mxu0 0.0
  %1268 = vmatprep.subr.mxu0 0.0
  %1269 = vmatpush1.msra.mxu0 0.0
  %1270 = vmatprep.subr.mxu0 0.0
  %1271 = vmatpush1.msra.mxu0 0.0
  %1272 = vmatprep.subr.mxu0 0.0
  %1273 = vmatpush1.msra.mxu0 0.0
  %1274 = vmatprep.subr.mxu0 0.0
  %1275 = vmatpush1.msra.mxu0 0.0
  %1276 = vmatprep.subr.mxu0 0.0
  %1277 = vmatpush1.msra.mxu0 0.0
  %1278 = vmatprep.subr.mxu0 0.0
  %1279 = vmatpush1.msra.mxu0 0.0
  %1280 = vmatprep.subr.mxu0 0.0
  %1281 = vmatpush1.msra.mxu0 0.0
  %1282 = vmatprep.subr.mxu0 0.0
  %1283 = vmatpush1.msra.mxu0 0.0
  %1284 = vmatprep.subr.mxu0 0.0
  %1285 = vmatpush1.msra.mxu0 0.0
  %1286 = vmatprep.subr.mxu0 0.0
  %1287 = vmatpush1.msra.mxu0 0.0
  %1288 = vmatprep.subr.mxu0 0.0
  %1289 = vmatpush1.msra.mxu0 0.0
  %1290 = vmatprep.subr.mxu0 0.0
  %1291 = vmatpush1.msra.mxu0 0.0
  %1292 = vmatprep.subr.mxu0 0.0
  %1293 = vmatpush1.msra.mxu0 0.0
  %1294 = vmatprep.subr.mxu0 0.0
  %1295 = vmatpush1.msra.mxu0 0.0
  %1296 = vmatprep.subr.mxu0 0.0
  %1297 = vmatpush1.msra.mxu0 0.0
  %1298 = vmatprep.subr.mxu0 0.0
  %1299 = vmatpush1.msra.mxu0 0.0
  %1300 = vmatprep.subr.mxu0 0.0
  %1301 = vmatpush1.msra.mxu0 0.0
  %1302 = vmatprep.subr.mxu0 0.0
  %1303 = vmatpush1.msra.mxu0 0.0
  %1304 = vmatprep.subr.mxu0 0.0
  %1305 = vmatpush1.msra.mxu0 0.0
  %1306 = vmatprep.subr.mxu0 0.0
  %1307 = vmatpush1.msra.mxu0 0.0
  %1308 = vmatprep.subr.mxu0 0.0
  %1309 = vmatpush1.msra.mxu0 0.0
  %1310 = vmatprep.mubr.f32.mxu0 0.0
  %1311 = vmatmul.mubr.f32.gmra.mrb[0].mxu0 %v1244
  %v1312 = vpop.f32.mrb[0].mxu0
  %v1313 = vadd.f32 0.0, %v1312
  %v1314 = vpop.f32.mrb[0].mxu0
  %1315 = vdwg.mxu0
  %1316 = vrot.lane.b32.xlu0 %v322, 116
  %v1317 = vpop.permute.xlu0 %1316
  %1318 = vrot.lane.b32.xlu0 %v314, 84
  %v1319 = vpop.permute.xlu0 %1318
  %v1320 = vsel %vm327, %v1317, 0
  %v1322 = vsel %vm327, %v1319, 0
  %1324 = vmatprep.subr.mxu0 0.0
  %1325 = vmatpush1.xpose.msra.mxu0 %v1322
  %1326 = vmatprep.subr.mxu0 0.0
  %1327 = vmatpush1.xpose.msra.mxu0 0.0
  %1328 = vmatprep.subr.mxu0 0.0
  %1329 = vmatpush1.xpose.msra.mxu0 0.0
  %1330 = vmatprep.subr.mxu0 0.0
  %1331 = vmatpush1.xpose.msra.mxu0 0.0
  %1332 = vmatprep.subr.mxu0 0.0
  %1333 = vmatpush1.xpose.msra.mxu0 0.0
  %1334 = vmatprep.subr.mxu0 0.0
  %1335 = vmatpush1.xpose.msra.mxu0 0.0
  %1336 = vmatprep.subr.mxu0 0.0
  %1337 = vmatpush1.xpose.msra.mxu0 0.0
  %1338 = vmatprep.subr.mxu0 0.0
  %1339 = vmatpush1.xpose.msra.mxu0 0.0
  %1340 = vmatprep.subr.mxu0 0.0
  %1341 = vmatpush1.xpose.msra.mxu0 0.0
  %1342 = vmatprep.subr.mxu0 0.0
  %1343 = vmatpush1.xpose.msra.mxu0 0.0
  %1344 = vmatprep.subr.mxu0 0.0
  %1345 = vmatpush1.xpose.msra.mxu0 0.0
  %1346 = vmatprep.subr.mxu0 0.0
  %1347 = vmatpush1.xpose.msra.mxu0 0.0
  %1348 = vmatprep.subr.mxu0 0.0
  %1349 = vmatpush1.xpose.msra.mxu0 0.0
  %1350 = vmatprep.subr.mxu0 0.0
  %1351 = vmatpush1.xpose.msra.mxu0 0.0
  %1352 = vmatprep.subr.mxu0 0.0
  %1353 = vmatpush1.xpose.msra.mxu0 0.0
  %1354 = vmatprep.subr.mxu0 0.0
  %1355 = vmatpush1.xpose.msra.mxu0 0.0
  %1356 = vmatprep.subr.mxu0 0.0
  %1357 = vmatpush1.xpose.msra.mxu0 0.0
  %1358 = vmatprep.subr.mxu0 0.0
  %1359 = vmatpush1.xpose.msra.mxu0 0.0
  %1360 = vmatprep.subr.mxu0 0.0
  %1361 = vmatpush1.xpose.msra.mxu0 0.0
  %1362 = vmatprep.subr.mxu0 0.0
  %1363 = vmatpush1.xpose.msra.mxu0 0.0
  %1364 = vmatprep.subr.mxu0 0.0
  %1365 = vmatpush1.xpose.msra.mxu0 0.0
  %1366 = vmatprep.subr.mxu0 0.0
  %1367 = vmatpush1.xpose.msra.mxu0 0.0
  %1368 = vmatprep.subr.mxu0 0.0
  %1369 = vmatpush1.xpose.msra.mxu0 0.0
  %1370 = vmatprep.subr.mxu0 0.0
  %1371 = vmatpush1.xpose.msra.mxu0 0.0
  %1372 = vmatprep.subr.mxu0 0.0
  %1373 = vmatpush1.xpose.msra.mxu0 0.0
  %1374 = vmatprep.subr.mxu0 0.0
  %1375 = vmatpush1.xpose.msra.mxu0 0.0
  %1376 = vmatprep.subr.mxu0 0.0
  %1377 = vmatpush1.xpose.msra.mxu0 0.0
  %1378 = vmatprep.subr.mxu0 0.0
  %1379 = vmatpush1.xpose.msra.mxu0 0.0
  %1380 = vmatprep.subr.mxu0 0.0
  %1381 = vmatpush1.xpose.msra.mxu0 0.0
  %1382 = vmatprep.subr.mxu0 0.0
  %1383 = vmatpush1.xpose.msra.mxu0 0.0
  %1384 = vmatprep.subr.mxu0 0.0
  %1385 = vmatpush1.xpose.msra.mxu0 0.0
  %1386 = vmatprep.subr.mxu0 0.0
  %1387 = vmatpush1.xpose.msra.mxu0 0.0
  %1388 = vmatprep.mubr.f32.mxu0 0.0
  %1389 = vmatmul.mubr.f32.gmra.mrb[0].mxu0 %v1320
  %v1390 = vpop.f32.mrb[0].mxu0
  %v1391 = vadd.f32 0.0, %v1390
  %v1392 = vpop.f32.mrb[0].mxu0
  %1393 = vdwg.mxu0
  %1394 = vrot.lane.b32.xlu0 %v323, 116
  %v1395 = vpop.permute.xlu0 %1394
  %1396 = vrot.lane.b32.xlu0 %v319, 84
  %v1397 = vpop.permute.xlu0 %1396
  %v1398 = vsel %vm327, %v1395, 0
  %v1400 = vsel %vm327, %v1397, 0
  %1402 = vmatprep.subr.mxu0 0.0
  %1403 = vmatpush1.xpose.msra.mxu0 %v1400
  %1404 = vmatprep.subr.mxu0 0.0
  %1405 = vmatpush1.xpose.msra.mxu0 0.0
  %1406 = vmatprep.subr.mxu0 0.0
  %1407 = vmatpush1.xpose.msra.mxu0 0.0
  %1408 = vmatprep.subr.mxu0 0.0
  %1409 = vmatpush1.xpose.msra.mxu0 0.0
  %1410 = vmatprep.subr.mxu0 0.0
  %1411 = vmatpush1.xpose.msra.mxu0 0.0
  %1412 = vmatprep.subr.mxu0 0.0
  %1413 = vmatpush1.xpose.msra.mxu0 0.0
  %1414 = vmatprep.subr.mxu0 0.0
  %1415 = vmatpush1.xpose.msra.mxu0 0.0
  %1416 = vmatprep.subr.mxu0 0.0
  %1417 = vmatpush1.xpose.msra.mxu0 0.0
  %1418 = vmatprep.subr.mxu0 0.0
  %1419 = vmatpush1.xpose.msra.mxu0 0.0
  %1420 = vmatprep.subr.mxu0 0.0
  %1421 = vmatpush1.xpose.msra.mxu0 0.0
  %1422 = vmatprep.subr.mxu0 0.0
  %1423 = vmatpush1.xpose.msra.mxu0 0.0
  %1424 = vmatprep.subr.mxu0 0.0
  %1425 = vmatpush1.xpose.msra.mxu0 0.0
  %1426 = vmatprep.subr.mxu0 0.0
  %1427 = vmatpush1.xpose.msra.mxu0 0.0
  %1428 = vmatprep.subr.mxu0 0.0
  %1429 = vmatpush1.xpose.msra.mxu0 0.0
  %1430 = vmatprep.subr.mxu0 0.0
  %1431 = vmatpush1.xpose.msra.mxu0 0.0
  %1432 = vmatprep.subr.mxu0 0.0
  %1433 = vmatpush1.xpose.msra.mxu0 0.0
  %1434 = vmatprep.subr.mxu0 0.0
  %1435 = vmatpush1.xpose.msra.mxu0 0.0
  %1436 = vmatprep.subr.mxu0 0.0
  %1437 = vmatpush1.xpose.msra.mxu0 0.0
  %1438 = vmatprep.subr.mxu0 0.0
  %1439 = vmatpush1.xpose.msra.mxu0 0.0
  %1440 = vmatprep.subr.mxu0 0.0
  %1441 = vmatpush1.xpose.msra.mxu0 0.0
  %1442 = vmatprep.subr.mxu0 0.0
  %1443 = vmatpush1.xpose.msra.mxu0 0.0
  %1444 = vmatprep.subr.mxu0 0.0
  %1445 = vmatpush1.xpose.msra.mxu0 0.0
  %1446 = vmatprep.subr.mxu0 0.0
  %1447 = vmatpush1.xpose.msra.mxu0 0.0
  %1448 = vmatprep.subr.mxu0 0.0
  %1449 = vmatpush1.xpose.msra.mxu0 0.0
  %1450 = vmatprep.subr.mxu0 0.0
  %1451 = vmatpush1.xpose.msra.mxu0 0.0
  %1452 = vmatprep.subr.mxu0 0.0
  %1453 = vmatpush1.xpose.msra.mxu0 0.0
  %1454 = vmatprep.subr.mxu0 0.0
  %1455 = vmatpush1.xpose.msra.mxu0 0.0
  %1456 = vmatprep.subr.mxu0 0.0
  %1457 = vmatpush1.xpose.msra.mxu0 0.0
  %1458 = vmatprep.subr.mxu0 0.0
  %1459 = vmatpush1.xpose.msra.mxu0 0.0
  %1460 = vmatprep.subr.mxu0 0.0
  %1461 = vmatpush1.xpose.msra.mxu0 0.0
  %1462 = vmatprep.subr.mxu0 0.0
  %1463 = vmatpush1.xpose.msra.mxu0 0.0
  %1464 = vmatprep.subr.mxu0 0.0
  %1465 = vmatpush1.xpose.msra.mxu0 0.0
  %1466 = vmatprep.mubr.f32.mxu0 0.0
  %1467 = vmatmul.mubr.f32.gmra.mrb[0].mxu0 %v1398
  %v1468 = vpop.f32.mrb[0].mxu0
  %v1469 = vadd.f32 0.0, %v1468
  %v1470 = vpop.f32.mrb[0].mxu0
  %1471 = vdwg.mxu0
  %v1472 = vsel %vm481, %v1391, -inf
  %1473 = vmax.xlane.f32.xlu0 %v1472
  %v1474 = vpop.xlane.xlu0 %1473
  %v1475 = vsel %vm481, %v1469, -inf
  %1476 = vmax.xlane.f32.xlu0 %v1475
  %v1477 = vpop.xlane.xlu0 %1476
  %v1478 = vsub.f32 %v1391, %v1474
  %v1479 = vsub.f32 %v1469, %v1477
  %v1480 = vmul.f32 %v1478, 1.442695
  %v1481 = vpow.pop %v1480
  %v1482 = vmul.f32 %v1479, 1.442695
  %v1483 = vpow.pop %v1482
  %v1484 = vsel %vm481, %v1481, 0.0
  %1485 = vadd.xlane.f32.xlu0 %v1484
  %v1486 = vpop.xlane.xlu0 %1485
  %v1487 = vsel %vm481, %v1483, 0.0
  %1488 = vadd.xlane.f32.xlu0 %v1487
  %v1489 = vpop.xlane.xlu0 %1488
  %v1490 = vrcp.pop %v1486
  %v1491 = vrcp.pop %v1489
  %v1492 = vmul.f32 %v1481, %v1490
  %v1493 = vmul.f32 %v1483, %v1491
  %1494 = vrot.lane.b32.xlu0 %v314, 52
  %v1495 = vpop.permute.xlu0 %1494
  %v1498 = vsel %vm481, %v1492, 0
  %1500 = vmatprep.subr.mxu0 0.0
  %1501 = vmatpush1.msra.mxu0 %v1495
  %1502 = vmatprep.subr.mxu0 0.0
  %1503 = vmatpush1.msra.mxu0 0.0
  %1504 = vmatprep.subr.mxu0 0.0
  %1505 = vmatpush1.msra.mxu0 0.0
  %1506 = vmatprep.subr.mxu0 0.0
  %1507 = vmatpush1.msra.mxu0 0.0
  %1508 = vmatprep.subr.mxu0 0.0
  %1509 = vmatpush1.msra.mxu0 0.0
  %1510 = vmatprep.subr.mxu0 0.0
  %1511 = vmatpush1.msra.mxu0 0.0
  %1512 = vmatprep.subr.mxu0 0.0
  %1513 = vmatpush1.msra.mxu0 0.0
  %1514 = vmatprep.subr.mxu0 0.0
  %1515 = vmatpush1.msra.mxu0 0.0
  %1516 = vmatprep.subr.mxu0 0.0
  %1517 = vmatpush1.msra.mxu0 0.0
  %1518 = vmatprep.subr.mxu0 0.0
  %1519 = vmatpush1.msra.mxu0 0.0
  %1520 = vmatprep.subr.mxu0 0.0
  %1521 = vmatpush1.msra.mxu0 0.0
  %1522 = vmatprep.subr.mxu0 0.0
  %1523 = vmatpush1.msra.mxu0 0.0
  %1524 = vmatprep.subr.mxu0 0.0
  %1525 = vmatpush1.msra.mxu0 0.0
  %1526 = vmatprep.subr.mxu0 0.0
  %1527 = vmatpush1.msra.mxu0 0.0
  %1528 = vmatprep.subr.mxu0 0.0
  %1529 = vmatpush1.msra.mxu0 0.0
  %1530 = vmatprep.subr.mxu0 0.0
  %1531 = vmatpush1.msra.mxu0 0.0
  %1532 = vmatprep.subr.mxu0 0.0
  %1533 = vmatpush1.msra.mxu0 0.0
  %1534 = vmatprep.subr.mxu0 0.0
  %1535 = vmatpush1.msra.mxu0 0.0
  %1536 = vmatprep.subr.mxu0 0.0
  %1537 = vmatpush1.msra.mxu0 0.0
  %1538 = vmatprep.subr.mxu0 0.0
  %1539 = vmatpush1.msra.mxu0 0.0
  %1540 = vmatprep.subr.mxu0 0.0
  %1541 = vmatpush1.msra.mxu0 0.0
  %1542 = vmatprep.subr.mxu0 0.0
  %1543 = vmatpush1.msra.mxu0 0.0
  %1544 = vmatprep.subr.mxu0 0.0
  %1545 = vmatpush1.msra.mxu0 0.0
  %1546 = vmatprep.subr.mxu0 0.0
  %1547 = vmatpush1.msra.mxu0 0.0
  %1548 = vmatprep.subr.mxu0 0.0
  %1549 = vmatpush1.msra.mxu0 0.0
  %1550 = vmatprep.subr.mxu0 0.0
  %1551 = vmatpush1.msra.mxu0 0.0
  %1552 = vmatprep.subr.mxu0 0.0
  %1553 = vmatpush1.msra.mxu0 0.0
  %1554 = vmatprep.subr.mxu0 0.0
  %1555 = vmatpush1.msra.mxu0 0.0
  %1556 = vmatprep.subr.mxu0 0.0
  %1557 = vmatpush1.msra.mxu0 0.0
  %1558 = vmatprep.subr.mxu0 0.0
  %1559 = vmatpush1.msra.mxu0 0.0
  %1560 = vmatprep.subr.mxu0 0.0
  %1561 = vmatpush1.msra.mxu0 0.0
  %1562 = vmatprep.subr.mxu0 0.0
  %1563 = vmatpush1.msra.mxu0 0.0
  %1564 = vmatprep.mubr.f32.mxu0 0.0
  %1565 = vmatmul.mubr.f32.gmra.mrb[0].mxu0 %v1498
  %v1566 = vpop.f32.mrb[0].mxu0
  %v1567 = vadd.f32 0.0, %v1566
  %v1568 = vpop.f32.mrb[0].mxu0
  %1569 = vdwg.mxu0
  %1570 = vrot.lane.b32.xlu0 %v319, 52
  %v1571 = vpop.permute.xlu0 %1570
  %v1574 = vsel %vm481, %v1493, 0
  %1576 = vmatprep.subr.mxu0 0.0
  %1577 = vmatpush1.msra.mxu0 %v1571
  %1578 = vmatprep.subr.mxu0 0.0
  %1579 = vmatpush1.msra.mxu0 0.0
  %1580 = vmatprep.subr.mxu0 0.0
  %1581 = vmatpush1.msra.mxu0 0.0
  %1582 = vmatprep.subr.mxu0 0.0
  %1583 = vmatpush1.msra.mxu0 0.0
  %1584 = vmatprep.subr.mxu0 0.0
  %1585 = vmatpush1.msra.mxu0 0.0
  %1586 = vmatprep.subr.mxu0 0.0
  %1587 = vmatpush1.msra.mxu0 0.0
  %1588 = vmatprep.subr.mxu0 0.0
  %1589 = vmatpush1.msra.mxu0 0.0
  %1590 = vmatprep.subr.mxu0 0.0
  %1591 = vmatpush1.msra.mxu0 0.0
  %1592 = vmatprep.subr.mxu0 0.0
  %1593 = vmatpush1.msra.mxu0 0.0
  %1594 = vmatprep.subr.mxu0 0.0
  %1595 = vmatpush1.msra.mxu0 0.0
  %1596 = vmatprep.subr.mxu0 0.0
  %1597 = vmatpush1.msra.mxu0 0.0
  %1598 = vmatprep.subr.mxu0 0.0
  %1599 = vmatpush1.msra.mxu0 0.0
  %1600 = vmatprep.subr.mxu0 0.0
  %1601 = vmatpush1.msra.mxu0 0.0
  %1602 = vmatprep.subr.mxu0 0.0
  %1603 = vmatpush1.msra.mxu0 0.0
  %1604 = vmatprep.subr.mxu0 0.0
  %1605 = vmatpush1.msra.mxu0 0.0
  %1606 = vmatprep.subr.mxu0 0.0
  %1607 = vmatpush1.msra.mxu0 0.0
  %1608 = vmatprep.subr.mxu0 0.0
  %1609 = vmatpush1.msra.mxu0 0.0
  %1610 = vmatprep.subr.mxu0 0.0
  %1611 = vmatpush1.msra.mxu0 0.0
  %1612 = vmatprep.subr.mxu0 0.0
  %1613 = vmatpush1.msra.mxu0 0.0
  %1614 = vmatprep.subr.mxu0 0.0
  %1615 = vmatpush1.msra.mxu0 0.0
  %1616 = vmatprep.subr.mxu0 0.0
  %1617 = vmatpush1.msra.mxu0 0.0
  %1618 = vmatprep.subr.mxu0 0.0
  %1619 = vmatpush1.msra.mxu0 0.0
  %1620 = vmatprep.subr.mxu0 0.0
  %1621 = vmatpush1.msra.mxu0 0.0
  %1622 = vmatprep.subr.mxu0 0.0
  %1623 = vmatpush1.msra.mxu0 0.0
  %1624 = vmatprep.subr.mxu0 0.0
  %1625 = vmatpush1.msra.mxu0 0.0
  %1626 = vmatprep.subr.mxu0 0.0
  %1627 = vmatpush1.msra.mxu0 0.0
  %1628 = vmatprep.subr.mxu0 0.0
  %1629 = vmatpush1.msra.mxu0 0.0
  %1630 = vmatprep.subr.mxu0 0.0
  %1631 = vmatpush1.msra.mxu0 0.0
  %1632 = vmatprep.subr.mxu0 0.0
  %1633 = vmatpush1.msra.mxu0 0.0
  %1634 = vmatprep.subr.mxu0 0.0
  %1635 = vmatpush1.msra.mxu0 0.0
  %1636 = vmatprep.subr.mxu0 0.0
  %1637 = vmatpush1.msra.mxu0 0.0
  %1638 = vmatprep.subr.mxu0 0.0
  %1639 = vmatpush1.msra.mxu0 0.0
  %1640 = vmatprep.mubr.f32.mxu0 0.0
  %1641 = vmatmul.mubr.f32.gmra.mrb[0].mxu0 %v1574
  %v1642 = vpop.f32.mrb[0].mxu0
  %v1643 = vadd.f32 0.0, %v1642
  %v1644 = vpop.f32.mrb[0].mxu0
  %1645 = vdwg.mxu0
  %1646 = vrot.lane.b32.xlu0 %v322, 112
  %v1647 = vpop.permute.xlu0 %1646
  %1648 = vrot.lane.b32.xlu0 %v314, 80
  %v1649 = vpop.permute.xlu0 %1648
  %v1650 = vsel %vm327, %v1647, 0
  %v1652 = vsel %vm327, %v1649, 0
  %1654 = vmatprep.subr.mxu0 0.0
  %1655 = vmatpush1.xpose.msra.mxu0 %v1652
  %1656 = vmatprep.subr.mxu0 0.0
  %1657 = vmatpush1.xpose.msra.mxu0 0.0
  %1658 = vmatprep.subr.mxu0 0.0
  %1659 = vmatpush1.xpose.msra.mxu0 0.0
  %1660 = vmatprep.subr.mxu0 0.0
  %1661 = vmatpush1.xpose.msra.mxu0 0.0
  %1662 = vmatprep.subr.mxu0 0.0
  %1663 = vmatpush1.xpose.msra.mxu0 0.0
  %1664 = vmatprep.subr.mxu0 0.0
  %1665 = vmatpush1.xpose.msra.mxu0 0.0
  %1666 = vmatprep.subr.mxu0 0.0
  %1667 = vmatpush1.xpose.msra.mxu0 0.0
  %1668 = vmatprep.subr.mxu0 0.0
  %1669 = vmatpush1.xpose.msra.mxu0 0.0
  %1670 = vmatprep.subr.mxu0 0.0
  %1671 = vmatpush1.xpose.msra.mxu0 0.0
  %1672 = vmatprep.subr.mxu0 0.0
  %1673 = vmatpush1.xpose.msra.mxu0 0.0
  %1674 = vmatprep.subr.mxu0 0.0
  %1675 = vmatpush1.xpose.msra.mxu0 0.0
  %1676 = vmatprep.subr.mxu0 0.0
  %1677 = vmatpush1.xpose.msra.mxu0 0.0
  %1678 = vmatprep.subr.mxu0 0.0
  %1679 = vmatpush1.xpose.msra.mxu0 0.0
  %1680 = vmatprep.subr.mxu0 0.0
  %1681 = vmatpush1.xpose.msra.mxu0 0.0
  %1682 = vmatprep.subr.mxu0 0.0
  %1683 = vmatpush1.xpose.msra.mxu0 0.0
  %1684 = vmatprep.subr.mxu0 0.0
  %1685 = vmatpush1.xpose.msra.mxu0 0.0
  %1686 = vmatprep.subr.mxu0 0.0
  %1687 = vmatpush1.xpose.msra.mxu0 0.0
  %1688 = vmatprep.subr.mxu0 0.0
  %1689 = vmatpush1.xpose.msra.mxu0 0.0
  %1690 = vmatprep.subr.mxu0 0.0
  %1691 = vmatpush1.xpose.msra.mxu0 0.0
  %1692 = vmatprep.subr.mxu0 0.0
  %1693 = vmatpush1.xpose.msra.mxu0 0.0
  %1694 = vmatprep.subr.mxu0 0.0
  %1695 = vmatpush1.xpose.msra.mxu0 0.0
  %1696 = vmatprep.subr.mxu0 0.0
  %1697 = vmatpush1.xpose.msra.mxu0 0.0
  %1698 = vmatprep.subr.mxu0 0.0
  %1699 = vmatpush1.xpose.msra.mxu0 0.0
  %1700 = vmatprep.subr.mxu0 0.0
  %1701 = vmatpush1.xpose.msra.mxu0 0.0
  %1702 = vmatprep.subr.mxu0 0.0
  %1703 = vmatpush1.xpose.msra.mxu0 0.0
  %1704 = vmatprep.subr.mxu0 0.0
  %1705 = vmatpush1.xpose.msra.mxu0 0.0
  %1706 = vmatprep.subr.mxu0 0.0
  %1707 = vmatpush1.xpose.msra.mxu0 0.0
  %1708 = vmatprep.subr.mxu0 0.0
  %1709 = vmatpush1.xpose.msra.mxu0 0.0
  %1710 = vmatprep.subr.mxu0 0.0
  %1711 = vmatpush1.xpose.msra.mxu0 0.0
  %1712 = vmatprep.subr.mxu0 0.0
  %1713 = vmatpush1.xpose.msra.mxu0 0.0
  %1714 = vmatprep.subr.mxu0 0.0
  %1715 = vmatpush1.xpose.msra.mxu0 0.0
  %1716 = vmatprep.subr.mxu0 0.0
  %1717 = vmatpush1.xpose.msra.mxu0 0.0
  %1718 = vmatprep.mubr.f32.mxu0 0.0
  %1719 = vmatmul.mubr.f32.gmra.mrb[0].mxu0 %v1650
  %v1720 = vpop.f32.mrb[0].mxu0
  %v1721 = vadd.f32 0.0, %v1720
  %v1722 = vpop.f32.mrb[0].mxu0
  %1723 = vdwg.mxu0
  %1724 = vrot.lane.b32.xlu0 %v323, 112
  %v1725 = vpop.permute.xlu0 %1724
  %1726 = vrot.lane.b32.xlu0 %v319, 80
  %v1727 = vpop.permute.xlu0 %1726
  %v1728 = vsel %vm327, %v1725, 0
  %v1730 = vsel %vm327, %v1727, 0
  %1732 = vmatprep.subr.mxu0 0.0
  %1733 = vmatpush1.xpose.msra.mxu0 %v1730
  %1734 = vmatprep.subr.mxu0 0.0
  %1735 = vmatpush1.xpose.msra.mxu0 0.0
  %1736 = vmatprep.subr.mxu0 0.0
  %1737 = vmatpush1.xpose.msra.mxu0 0.0
  %1738 = vmatprep.subr.mxu0 0.0
  %1739 = vmatpush1.xpose.msra.mxu0 0.0
  %1740 = vmatprep.subr.mxu0 0.0
  %1741 = vmatpush1.xpose.msra.mxu0 0.0
  %1742 = vmatprep.subr.mxu0 0.0
  %1743 = vmatpush1.xpose.msra.mxu0 0.0
  %1744 = vmatprep.subr.mxu0 0.0
  %1745 = vmatpush1.xpose.msra.mxu0 0.0
  %1746 = vmatprep.subr.mxu0 0.0
  %1747 = vmatpush1.xpose.msra.mxu0 0.0
  %1748 = vmatprep.subr.mxu0 0.0
  %1749 = vmatpush1.xpose.msra.mxu0 0.0
  %1750 = vmatprep.subr.mxu0 0.0
  %1751 = vmatpush1.xpose.msra.mxu0 0.0
  %1752 = vmatprep.subr.mxu0 0.0
  %1753 = vmatpush1.xpose.msra.mxu0 0.0
  %1754 = vmatprep.subr.mxu0 0.0
  %1755 = vmatpush1.xpose.msra.mxu0 0.0
  %1756 = vmatprep.subr.mxu0 0.0
  %1757 = vmatpush1.xpose.msra.mxu0 0.0
  %1758 = vmatprep.subr.mxu0 0.0
  %1759 = vmatpush1.xpose.msra.mxu0 0.0
  %1760 = vmatprep.subr.mxu0 0.0
  %1761 = vmatpush1.xpose.msra.mxu0 0.0
  %1762 = vmatprep.subr.mxu0 0.0
  %1763 = vmatpush1.xpose.msra.mxu0 0.0
  %1764 = vmatprep.subr.mxu0 0.0
  %1765 = vmatpush1.xpose.msra.mxu0 0.0
  %1766 = vmatprep.subr.mxu0 0.0
  %1767 = vmatpush1.xpose.msra.mxu0 0.0
  %1768 = vmatprep.subr.mxu0 0.0
  %1769 = vmatpush1.xpose.msra.mxu0 0.0
  %1770 = vmatprep.subr.mxu0 0.0
  %1771 = vmatpush1.xpose.msra.mxu0 0.0
  %1772 = vmatprep.subr.mxu0 0.0
  %1773 = vmatpush1.xpose.msra.mxu0 0.0
  %1774 = vmatprep.subr.mxu0 0.0
  %1775 = vmatpush1.xpose.msra.mxu0 0.0
  %1776 = vmatprep.subr.mxu0 0.0
  %1777 = vmatpush1.xpose.msra.mxu0 0.0
  %1778 = vmatprep.subr.mxu0 0.0
  %1779 = vmatpush1.xpose.msra.mxu0 0.0
  %1780 = vmatprep.subr.mxu0 0.0
  %1781 = vmatpush1.xpose.msra.mxu0 0.0
  %1782 = vmatprep.subr.mxu0 0.0
  %1783 = vmatpush1.xpose.msra.mxu0 0.0
  %1784 = vmatprep.subr.mxu0 0.0
  %1785 = vmatpush1.xpose.msra.mxu0 0.0
  %1786 = vmatprep.subr.mxu0 0.0
  %1787 = vmatpush1.xpose.msra.mxu0 0.0
  %1788 = vmatprep.subr.mxu0 0.0
  %1789 = vmatpush1.xpose.msra.mxu0 0.0
  %1790 = vmatprep.subr.mxu0 0.0
  %1791 = vmatpush1.xpose.msra.mxu0 0.0
  %1792 = vmatprep.subr.mxu0 0.0
  %1793 = vmatpush1.xpose.msra.mxu0 0.0
  %1794 = vmatprep.subr.mxu0 0.0
  %1795 = vmatpush1.xpose.msra.mxu0 0.0
  %1796 = vmatprep.mubr.f32.mxu0 0.0
  %1797 = vmatmul.mubr.f32.gmra.mrb[0].mxu0 %v1728
  %v1798 = vpop.f32.mrb[0].mxu0
  %v1799 = vadd.f32 0.0, %v1798
  %v1800 = vpop.f32.mrb[0].mxu0
  %1801 = vdwg.mxu0
  %v1802 = vsel %vm481, %v1721, -inf
  %1803 = vmax.xlane.f32.xlu0 %v1802
  %v1804 = vpop.xlane.xlu0 %1803
  %v1805 = vsel %vm481, %v1799, -inf
  %1806 = vmax.xlane.f32.xlu0 %v1805
  %v1807 = vpop.xlane.xlu0 %1806
  %v1808 = vsub.f32 %v1721, %v1804
  %v1809 = vsub.f32 %v1799, %v1807
  %v1810 = vmul.f32 %v1808, 1.442695
  %v1811 = vpow.pop %v1810
  %v1812 = vmul.f32 %v1809, 1.442695
  %v1813 = vpow.pop %v1812
  %v1814 = vsel %vm481, %v1811, 0.0
  %1815 = vadd.xlane.f32.xlu0 %v1814
  %v1816 = vpop.xlane.xlu0 %1815
  %v1817 = vsel %vm481, %v1813, 0.0
  %1818 = vadd.xlane.f32.xlu0 %v1817
  %v1819 = vpop.xlane.xlu0 %1818
  %v1820 = vrcp.pop %v1816
  %v1821 = vrcp.pop %v1819
  %v1822 = vmul.f32 %v1811, %v1820
  %v1823 = vmul.f32 %v1813, %v1821
  %1824 = vrot.lane.b32.xlu0 %v314, 48
  %v1825 = vpop.permute.xlu0 %1824
  %v1828 = vsel %vm481, %v1822, 0
  %1830 = vmatprep.subr.mxu0 0.0
  %1831 = vmatpush1.msra.mxu0 %v1825
  %1832 = vmatprep.subr.mxu0 0.0
  %1833 = vmatpush1.msra.mxu0 0.0
  %1834 = vmatprep.subr.mxu0 0.0
  %1835 = vmatpush1.msra.mxu0 0.0
  %1836 = vmatprep.subr.mxu0 0.0
  %1837 = vmatpush1.msra.mxu0 0.0
  %1838 = vmatprep.subr.mxu0 0.0
  %1839 = vmatpush1.msra.mxu0 0.0
  %1840 = vmatprep.subr.mxu0 0.0
  %1841 = vmatpush1.msra.mxu0 0.0
  %1842 = vmatprep.subr.mxu0 0.0
  %1843 = vmatpush1.msra.mxu0 0.0
  %1844 = vmatprep.subr.mxu0 0.0
  %1845 = vmatpush1.msra.mxu0 0.0
  %1846 = vmatprep.subr.mxu0 0.0
  %1847 = vmatpush1.msra.mxu0 0.0
  %1848 = vmatprep.subr.mxu0 0.0
  %1849 = vmatpush1.msra.mxu0 0.0
  %1850 = vmatprep.subr.mxu0 0.0
  %1851 = vmatpush1.msra.mxu0 0.0
  %1852 = vmatprep.subr.mxu0 0.0
  %1853 = vmatpush1.msra.mxu0 0.0
  %1854 = vmatprep.subr.mxu0 0.0
  %1855 = vmatpush1.msra.mxu0 0.0
  %1856 = vmatprep.subr.mxu0 0.0
  %1857 = vmatpush1.msra.mxu0 0.0
  %1858 = vmatprep.subr.mxu0 0.0
  %1859 = vmatpush1.msra.mxu0 0.0
  %1860 = vmatprep.subr.mxu0 0.0
  %1861 = vmatpush1.msra.mxu0 0.0
  %1862 = vmatprep.subr.mxu0 0.0
  %1863 = vmatpush1.msra.mxu0 0.0
  %1864 = vmatprep.subr.mxu0 0.0
  %1865 = vmatpush1.msra.mxu0 0.0
  %1866 = vmatprep.subr.mxu0 0.0
  %1867 = vmatpush1.msra.mxu0 0.0
  %1868 = vmatprep.subr.mxu0 0.0
  %1869 = vmatpush1.msra.mxu0 0.0
  %1870 = vmatprep.subr.mxu0 0.0
  %1871 = vmatpush1.msra.mxu0 0.0
  %1872 = vmatprep.subr.mxu0 0.0
  %1873 = vmatpush1.msra.mxu0 0.0
  %1874 = vmatprep.subr.mxu0 0.0
  %1875 = vmatpush1.msra.mxu0 0.0
  %1876 = vmatprep.subr.mxu0 0.0
  %1877 = vmatpush1.msra.mxu0 0.0
  %1878 = vmatprep.subr.mxu0 0.0
  %1879 = vmatpush1.msra.mxu0 0.0
  %1880 = vmatprep.subr.mxu0 0.0
  %1881 = vmatpush1.msra.mxu0 0.0
  %1882 = vmatprep.subr.mxu0 0.0
  %1883 = vmatpush1.msra.mxu0 0.0
  %1884 = vmatprep.subr.mxu0 0.0
  %1885 = vmatpush1.msra.mxu0 0.0
  %1886 = vmatprep.subr.mxu0 0.0
  %1887 = vmatpush1.msra.mxu0 0.0
  %1888 = vmatprep.subr.mxu0 0.0
  %1889 = vmatpush1.msra.mxu0 0.0
  %1890 = vmatprep.subr.mxu0 0.0
  %1891 = vmatpush1.msra.mxu0 0.0
  %1892 = vmatprep.subr.mxu0 0.0
  %1893 = vmatpush1.msra.mxu0 0.0
  %1894 = vmatprep.mubr.f32.mxu0 0.0
  %1895 = vmatmul.mubr.f32.gmra.mrb[0].mxu0 %v1828
  %v1896 = vpop.f32.mrb[0].mxu0
  %v1897 = vadd.f32 0.0, %v1896
  %v1898 = vpop.f32.mrb[0].mxu0
  %1899 = vdwg.mxu0
  %1900 = vrot.lane.b32.xlu0 %v319, 48
  %v1901 = vpop.permute.xlu0 %1900
  %v1904 = vsel %vm481, %v1823, 0
  %1906 = vmatprep.subr.mxu0 0.0
  %1907 = vmatpush1.msra.mxu0 %v1901
  %1908 = vmatprep.subr.mxu0 0.0
  %1909 = vmatpush1.msra.mxu0 0.0
  %1910 = vmatprep.subr.mxu0 0.0
  %1911 = vmatpush1.msra.mxu0 0.0
  %1912 = vmatprep.subr.mxu0 0.0
  %1913 = vmatpush1.msra.mxu0 0.0
  %1914 = vmatprep.subr.mxu0 0.0
  %1915 = vmatpush1.msra.mxu0 0.0
  %1916 = vmatprep.subr.mxu0 0.0
  %1917 = vmatpush1.msra.mxu0 0.0
  %1918 = vmatprep.subr.mxu0 0.0
  %1919 = vmatpush1.msra.mxu0 0.0
  %1920 = vmatprep.subr.mxu0 0.0
  %1921 = vmatpush1.msra.mxu0 0.0
  %1922 = vmatprep.subr.mxu0 0.0
  %1923 = vmatpush1.msra.mxu0 0.0
  %1924 = vmatprep.subr.mxu0 0.0
  %1925 = vmatpush1.msra.mxu0 0.0
  %1926 = vmatprep.subr.mxu0 0.0
  %1927 = vmatpush1.msra.mxu0 0.0
  %1928 = vmatprep.subr.mxu0 0.0
  %1929 = vmatpush1.msra.mxu0 0.0
  %1930 = vmatprep.subr.mxu0 0.0
  %1931 = vmatpush1.msra.mxu0 0.0
  %1932 = vmatprep.subr.mxu0 0.0
  %1933 = vmatpush1.msra.mxu0 0.0
  %1934 = vmatprep.subr.mxu0 0.0
  %1935 = vmatpush1.msra.mxu0 0.0
  %1936 = vmatprep.subr.mxu0 0.0
  %1937 = vmatpush1.msra.mxu0 0.0
  %1938 = vmatprep.subr.mxu0 0.0
  %1939 = vmatpush1.msra.mxu0 0.0
  %1940 = vmatprep.subr.mxu0 0.0
  %1941 = vmatpush1.msra.mxu0 0.0
  %1942 = vmatprep.subr.mxu0 0.0
  %1943 = vmatpush1.msra.mxu0 0.0
  %1944 = vmatprep.subr.mxu0 0.0
  %1945 = vmatpush1.msra.mxu0 0.0
  %1946 = vmatprep.subr.mxu0 0.0
  %1947 = vmatpush1.msra.mxu0 0.0
  %1948 = vmatprep.subr.mxu0 0.0
  %1949 = vmatpush1.msra.mxu0 0.0
  %1950 = vmatprep.subr.mxu0 0.0
  %1951 = vmatpush1.msra.mxu0 0.0
  %1952 = vmatprep.subr.mxu0 0.0
  %1953 = vmatpush1.msra.mxu0 0.0
  %1954 = vmatprep.subr.mxu0 0.0
  %1955 = vmatpush1.msra.mxu0 0.0
  %1956 = vmatprep.subr.mxu0 0.0
  %1957 = vmatpush1.msra.mxu0 0.0
  %1958 = vmatprep.subr.mxu0 0.0
  %1959 = vmatpush1.msra.mxu0 0.0
  %1960 = vmatprep.subr.mxu0 0.0
  %1961 = vmatpush1.msra.mxu0 0.0
  %1962 = vmatprep.subr.mxu0 0.0
  %1963 = vmatpush1.msra.mxu0 0.0
  %1964 = vmatprep.subr.mxu0 0.0
  %1965 = vmatpush1.msra.mxu0 0.0
  %1966 = vmatprep.subr.mxu0 0.0
  %1967 = vmatpush1.msra.mxu0 0.0
  %1968 = vmatprep.subr.mxu0 0.0
  %1969 = vmatpush1.msra.mxu0 0.0
  %1970 = vmatprep.mubr.f32.mxu0 0.0
  %1971 = vmatmul.mubr.f32.gmra.mrb[0].mxu0 %v1904
  %v1972 = vpop.f32.mrb[0].mxu0
  %v1973 = vadd.f32 0.0, %v1972
  %v1974 = vpop.f32.mrb[0].mxu0
  %1975 = vdwg.mxu0
  %1976 = vrot.lane.b32.xlu0 %v322, 108
  %v1977 = vpop.permute.xlu0 %1976
  %1978 = vrot.lane.b32.xlu0 %v314, 76
  %v1979 = vpop.permute.xlu0 %1978
  %v1980 = vsel %vm327, %v1977, 0
  %v1982 = vsel %vm327, %v1979, 0
  %1984 = vmatprep.subr.mxu0 0.0
  %1985 = vmatpush1.xpose.msra.mxu0 %v1982
  %1986 = vmatprep.subr.mxu0 0.0
  %1987 = vmatpush1.xpose.msra.mxu0 0.0
  %1988 = vmatprep.subr.mxu0 0.0
  %1989 = vmatpush1.xpose.msra.mxu0 0.0
  %1990 = vmatprep.subr.mxu0 0.0
  %1991 = vmatpush1.xpose.msra.mxu0 0.0
  %1992 = vmatprep.subr.mxu0 0.0
  %1993 = vmatpush1.xpose.msra.mxu0 0.0
  %1994 = vmatprep.subr.mxu0 0.0
  %1995 = vmatpush1.xpose.msra.mxu0 0.0
  %1996 = vmatprep.subr.mxu0 0.0
  %1997 = vmatpush1.xpose.msra.mxu0 0.0
  %1998 = vmatprep.subr.mxu0 0.0
  %1999 = vmatpush1.xpose.msra.mxu0 0.0
  %2000 = vmatprep.subr.mxu0 0.0
  %2001 = vmatpush1.xpose.msra.mxu0 0.0
  %2002 = vmatprep.subr.mxu0 0.0
  %2003 = vmatpush1.xpose.msra.mxu0 0.0
  %2004 = vmatprep.subr.mxu0 0.0
  %2005 = vmatpush1.xpose.msra.mxu0 0.0
  %2006 = vmatprep.subr.mxu0 0.0
  %2007 = vmatpush1.xpose.msra.mxu0 0.0
  %2008 = vmatprep.subr.mxu0 0.0
  %2009 = vmatpush1.xpose.msra.mxu0 0.0
  %2010 = vmatprep.subr.mxu0 0.0
  %2011 = vmatpush1.xpose.msra.mxu0 0.0
  %2012 = vmatprep.subr.mxu0 0.0
  %2013 = vmatpush1.xpose.msra.mxu0 0.0
  %2014 = vmatprep.subr.mxu0 0.0
  %2015 = vmatpush1.xpose.msra.mxu0 0.0
  %2016 = vmatprep.subr.mxu0 0.0
  %2017 = vmatpush1.xpose.msra.mxu0 0.0
  %2018 = vmatprep.subr.mxu0 0.0
  %2019 = vmatpush1.xpose.msra.mxu0 0.0
  %2020 = vmatprep.subr.mxu0 0.0
  %2021 = vmatpush1.xpose.msra.mxu0 0.0
  %2022 = vmatprep.subr.mxu0 0.0
  %2023 = vmatpush1.xpose.msra.mxu0 0.0
  %2024 = vmatprep.subr.mxu0 0.0
  %2025 = vmatpush1.xpose.msra.mxu0 0.0
  %2026 = vmatprep.subr.mxu0 0.0
  %2027 = vmatpush1.xpose.msra.mxu0 0.0
  %2028 = vmatprep.subr.mxu0 0.0
  %2029 = vmatpush1.xpose.msra.mxu0 0.0
  %2030 = vmatprep.subr.mxu0 0.0
  %2031 = vmatpush1.xpose.msra.mxu0 0.0
  %2032 = vmatprep.subr.mxu0 0.0
  %2033 = vmatpush1.xpose.msra.mxu0 0.0
  %2034 = vmatprep.subr.mxu0 0.0
  %2035 = vmatpush1.xpose.msra.mxu0 0.0
  %2036 = vmatprep.subr.mxu0 0.0
  %2037 = vmatpush1.xpose.msra.mxu0 0.0
  %2038 = vmatprep.subr.mxu0 0.0
  %2039 = vmatpush1.xpose.msra.mxu0 0.0
  %2040 = vmatprep.subr.mxu0 0.0
  %2041 = vmatpush1.xpose.msra.mxu0 0.0
  %2042 = vmatprep.subr.mxu0 0.0
  %2043 = vmatpush1.xpose.msra.mxu0 0.0
  %2044 = vmatprep.subr.mxu0 0.0
  %2045 = vmatpush1.xpose.msra.mxu0 0.0
  %2046 = vmatprep.subr.mxu0 0.0
  %2047 = vmatpush1.xpose.msra.mxu0 0.0
  %2048 = vmatprep.mubr.f32.mxu0 0.0
  %2049 = vmatmul.mubr.f32.gmra.mrb[0].mxu0 %v1980
  %v2050 = vpop.f32.mrb[0].mxu0
  %v2051 = vadd.f32 0.0, %v2050
  %v2052 = vpop.f32.mrb[0].mxu0
  %2053 = vdwg.mxu0
  %2054 = vrot.lane.b32.xlu0 %v323, 108
  %v2055 = vpop.permute.xlu0 %2054
  %2056 = vrot.lane.b32.xlu0 %v319, 76
  %v2057 = vpop.permute.xlu0 %2056
  %v2058 = vsel %vm327, %v2055, 0
  %v2060 = vsel %vm327, %v2057, 0
  %2062 = vmatprep.subr.mxu0 0.0
  %2063 = vmatpush1.xpose.msra.mxu0 %v2060
  %2064 = vmatprep.subr.mxu0 0.0
  %2065 = vmatpush1.xpose.msra.mxu0 0.0
  %2066 = vmatprep.subr.mxu0 0.0
  %2067 = vmatpush1.xpose.msra.mxu0 0.0
  %2068 = vmatprep.subr.mxu0 0.0
  %2069 = vmatpush1.xpose.msra.mxu0 0.0
  %2070 = vmatprep.subr.mxu0 0.0
  %2071 = vmatpush1.xpose.msra.mxu0 0.0
  %2072 = vmatprep.subr.mxu0 0.0
  %2073 = vmatpush1.xpose.msra.mxu0 0.0
  %2074 = vmatprep.subr.mxu0 0.0
  %2075 = vmatpush1.xpose.msra.mxu0 0.0
  %2076 = vmatprep.subr.mxu0 0.0
  %2077 = vmatpush1.xpose.msra.mxu0 0.0
  %2078 = vmatprep.subr.mxu0 0.0
  %2079 = vmatpush1.xpose.msra.mxu0 0.0
  %2080 = vmatprep.subr.mxu0 0.0
  %2081 = vmatpush1.xpose.msra.mxu0 0.0
  %2082 = vmatprep.subr.mxu0 0.0
  %2083 = vmatpush1.xpose.msra.mxu0 0.0
  %2084 = vmatprep.subr.mxu0 0.0
  %2085 = vmatpush1.xpose.msra.mxu0 0.0
  %2086 = vmatprep.subr.mxu0 0.0
  %2087 = vmatpush1.xpose.msra.mxu0 0.0
  %2088 = vmatprep.subr.mxu0 0.0
  %2089 = vmatpush1.xpose.msra.mxu0 0.0
  %2090 = vmatprep.subr.mxu0 0.0
  %2091 = vmatpush1.xpose.msra.mxu0 0.0
  %2092 = vmatprep.subr.mxu0 0.0
  %2093 = vmatpush1.xpose.msra.mxu0 0.0
  %2094 = vmatprep.subr.mxu0 0.0
  %2095 = vmatpush1.xpose.msra.mxu0 0.0
  %2096 = vmatprep.subr.mxu0 0.0
  %2097 = vmatpush1.xpose.msra.mxu0 0.0
  %2098 = vmatprep.subr.mxu0 0.0
  %2099 = vmatpush1.xpose.msra.mxu0 0.0
  %2100 = vmatprep.subr.mxu0 0.0
  %2101 = vmatpush1.xpose.msra.mxu0 0.0
  %2102 = vmatprep.subr.mxu0 0.0
  %2103 = vmatpush1.xpose.msra.mxu0 0.0
  %2104 = vmatprep.subr.mxu0 0.0
  %2105 = vmatpush1.xpose.msra.mxu0 0.0
  %2106 = vmatprep.subr.mxu0 0.0
  %2107 = vmatpush1.xpose.msra.mxu0 0.0
  %2108 = vmatprep.subr.mxu0 0.0
  %2109 = vmatpush1.xpose.msra.mxu0 0.0
  %2110 = vmatprep.subr.mxu0 0.0
  %2111 = vmatpush1.xpose.msra.mxu0 0.0
  %2112 = vmatprep.subr.mxu0 0.0
  %2113 = vmatpush1.xpose.msra.mxu0 0.0
  %2114 = vmatprep.subr.mxu0 0.0
  %2115 = vmatpush1.xpose.msra.mxu0 0.0
  %2116 = vmatprep.subr.mxu0 0.0
  %2117 = vmatpush1.xpose.msra.mxu0 0.0
  %2118 = vmatprep.subr.mxu0 0.0
  %2119 = vmatpush1.xpose.msra.mxu0 0.0
  %2120 = vmatprep.subr.mxu0 0.0
  %2121 = vmatpush1.xpose.msra.mxu0 0.0
  %2122 = vmatprep.subr.mxu0 0.0
  %2123 = vmatpush1.xpose.msra.mxu0 0.0
  %2124 = vmatprep.subr.mxu0 0.0
  %2125 = vmatpush1.xpose.msra.mxu0 0.0
  %2126 = vmatprep.mubr.f32.mxu0 0.0
  %2127 = vmatmul.mubr.f32.gmra.mrb[0].mxu0 %v2058
  %v2128 = vpop.f32.mrb[0].mxu0
  %v2129 = vadd.f32 0.0, %v2128
  %v2130 = vpop.f32.mrb[0].mxu0
  %2131 = vdwg.mxu0
  %v2132 = vsel %vm481, %v2051, -inf
  %2133 = vmax.xlane.f32.xlu0 %v2132
  %v2134 = vpop.xlane.xlu0 %2133
  %v2135 = vsel %vm481, %v2129, -inf
  %2136 = vmax.xlane.f32.xlu0 %v2135
  %v2137 = vpop.xlane.xlu0 %2136
  %v2138 = vsub.f32 %v2051, %v2134
  %v2139 = vsub.f32 %v2129, %v2137
  %v2140 = vmul.f32 %v2138, 1.442695
  %v2141 = vpow.pop %v2140
  %v2142 = vmul.f32 %v2139, 1.442695
  %v2143 = vpow.pop %v2142
  %v2144 = vsel %vm481, %v2141, 0.0
  %2145 = vadd.xlane.f32.xlu0 %v2144
  %v2146 = vpop.xlane.xlu0 %2145
  %v2147 = vsel %vm481, %v2143, 0.0
  %2148 = vadd.xlane.f32.xlu0 %v2147
  %v2149 = vpop.xlane.xlu0 %2148
  %v2150 = vrcp.pop %v2146
  %v2151 = vrcp.pop %v2149
  %v2152 = vmul.f32 %v2141, %v2150
  %v2153 = vmul.f32 %v2143, %v2151
  %2154 = vrot.lane.b32.xlu0 %v314, 44
  %v2155 = vpop.permute.xlu0 %2154
  %v2158 = vsel %vm481, %v2152, 0
  %2160 = vmatprep.subr.mxu0 0.0
  %2161 = vmatpush1.msra.mxu0 %v2155
  %2162 = vmatprep.subr.mxu0 0.0
  %2163 = vmatpush1.msra.mxu0 0.0
  %2164 = vmatprep.subr.mxu0 0.0
  %2165 = vmatpush1.msra.mxu0 0.0
  %2166 = vmatprep.subr.mxu0 0.0
  %2167 = vmatpush1.msra.mxu0 0.0
  %2168 = vmatprep.subr.mxu0 0.0
  %2169 = vmatpush1.msra.mxu0 0.0
  %2170 = vmatprep.subr.mxu0 0.0
  %2171 = vmatpush1.msra.mxu0 0.0
  %2172 = vmatprep.subr.mxu0 0.0
  %2173 = vmatpush1.msra.mxu0 0.0
  %2174 = vmatprep.subr.mxu0 0.0
  %2175 = vmatpush1.msra.mxu0 0.0
  %2176 = vmatprep.subr.mxu0 0.0
  %2177 = vmatpush1.msra.mxu0 0.0
  %2178 = vmatprep.subr.mxu0 0.0
  %2179 = vmatpush1.msra.mxu0 0.0
  %2180 = vmatprep.subr.mxu0 0.0
  %2181 = vmatpush1.msra.mxu0 0.0
  %2182 = vmatprep.subr.mxu0 0.0
  %2183 = vmatpush1.msra.mxu0 0.0
  %2184 = vmatprep.subr.mxu0 0.0
  %2185 = vmatpush1.msra.mxu0 0.0
  %2186 = vmatprep.subr.mxu0 0.0
  %2187 = vmatpush1.msra.mxu0 0.0
  %2188 = vmatprep.subr.mxu0 0.0
  %2189 = vmatpush1.msra.mxu0 0.0
  %2190 = vmatprep.subr.mxu0 0.0
  %2191 = vmatpush1.msra.mxu0 0.0
  %2192 = vmatprep.subr.mxu0 0.0
  %2193 = vmatpush1.msra.mxu0 0.0
  %2194 = vmatprep.subr.mxu0 0.0
  %2195 = vmatpush1.msra.mxu0 0.0
  %2196 = vmatprep.subr.mxu0 0.0
  %2197 = vmatpush1.msra.mxu0 0.0
  %2198 = vmatprep.subr.mxu0 0.0
  %2199 = vmatpush1.msra.mxu0 0.0
  %2200 = vmatprep.subr.mxu0 0.0
  %2201 = vmatpush1.msra.mxu0 0.0
  %2202 = vmatprep.subr.mxu0 0.0
  %2203 = vmatpush1.msra.mxu0 0.0
  %2204 = vmatprep.subr.mxu0 0.0
  %2205 = vmatpush1.msra.mxu0 0.0
  %2206 = vmatprep.subr.mxu0 0.0
  %2207 = vmatpush1.msra.mxu0 0.0
  %2208 = vmatprep.subr.mxu0 0.0
  %2209 = vmatpush1.msra.mxu0 0.0
  %2210 = vmatprep.subr.mxu0 0.0
  %2211 = vmatpush1.msra.mxu0 0.0
  %2212 = vmatprep.subr.mxu0 0.0
  %2213 = vmatpush1.msra.mxu0 0.0
  %2214 = vmatprep.subr.mxu0 0.0
  %2215 = vmatpush1.msra.mxu0 0.0
  %2216 = vmatprep.subr.mxu0 0.0
  %2217 = vmatpush1.msra.mxu0 0.0
  %2218 = vmatprep.subr.mxu0 0.0
  %2219 = vmatpush1.msra.mxu0 0.0
  %2220 = vmatprep.subr.mxu0 0.0
  %2221 = vmatpush1.msra.mxu0 0.0
  %2222 = vmatprep.subr.mxu0 0.0
  %2223 = vmatpush1.msra.mxu0 0.0
  %2224 = vmatprep.mubr.f32.mxu0 0.0
  %2225 = vmatmul.mubr.f32.gmra.mrb[0].mxu0 %v2158
  %v2226 = vpop.f32.mrb[0].mxu0
  %v2227 = vadd.f32 0.0, %v2226
  %v2228 = vpop.f32.mrb[0].mxu0
  %2229 = vdwg.mxu0
  %2230 = vrot.lane.b32.xlu0 %v319, 44
  %v2231 = vpop.permute.xlu0 %2230
  %v2234 = vsel %vm481, %v2153, 0
  %2236 = vmatprep.subr.mxu0 0.0
  %2237 = vmatpush1.msra.mxu0 %v2231
  %2238 = vmatprep.subr.mxu0 0.0
  %2239 = vmatpush1.msra.mxu0 0.0
  %2240 = vmatprep.subr.mxu0 0.0
  %2241 = vmatpush1.msra.mxu0 0.0
  %2242 = vmatprep.subr.mxu0 0.0
  %2243 = vmatpush1.msra.mxu0 0.0
  %2244 = vmatprep.subr.mxu0 0.0
  %2245 = vmatpush1.msra.mxu0 0.0
  %2246 = vmatprep.subr.mxu0 0.0
  %2247 = vmatpush1.msra.mxu0 0.0
  %2248 = vmatprep.subr.mxu0 0.0
  %2249 = vmatpush1.msra.mxu0 0.0
  %2250 = vmatprep.subr.mxu0 0.0
  %2251 = vmatpush1.msra.mxu0 0.0
  %2252 = vmatprep.subr.mxu0 0.0
  %2253 = vmatpush1.msra.mxu0 0.0
  %2254 = vmatprep.subr.mxu0 0.0
  %2255 = vmatpush1.msra.mxu0 0.0
  %2256 = vmatprep.subr.mxu0 0.0
  %2257 = vmatpush1.msra.mxu0 0.0
  %2258 = vmatprep.subr.mxu0 0.0
  %2259 = vmatpush1.msra.mxu0 0.0
  %2260 = vmatprep.subr.mxu0 0.0
  %2261 = vmatpush1.msra.mxu0 0.0
  %2262 = vmatprep.subr.mxu0 0.0
  %2263 = vmatpush1.msra.mxu0 0.0
  %2264 = vmatprep.subr.mxu0 0.0
  %2265 = vmatpush1.msra.mxu0 0.0
  %2266 = vmatprep.subr.mxu0 0.0
  %2267 = vmatpush1.msra.mxu0 0.0
  %2268 = vmatprep.subr.mxu0 0.0
  %2269 = vmatpush1.msra.mxu0 0.0
  %2270 = vmatprep.subr.mxu0 0.0
  %2271 = vmatpush1.msra.mxu0 0.0
  %2272 = vmatprep.subr.mxu0 0.0
  %2273 = vmatpush1.msra.mxu0 0.0
  %2274 = vmatprep.subr.mxu0 0.0
  %2275 = vmatpush1.msra.mxu0 0.0
  %2276 = vmatprep.subr.mxu0 0.0
  %2277 = vmatpush1.msra.mxu0 0.0
  %2278 = vmatprep.subr.mxu0 0.0
  %2279 = vmatpush1.msra.mxu0 0.0
  %2280 = vmatprep.subr.mxu0 0.0
  %2281 = vmatpush1.msra.mxu0 0.0
  %2282 = vmatprep.subr.mxu0 0.0
  %2283 = vmatpush1.msra.mxu0 0.0
  %2284 = vmatprep.subr.mxu0 0.0
  %2285 = vmatpush1.msra.mxu0 0.0
  %2286 = vmatprep.subr.mxu0 0.0
  %2287 = vmatpush1.msra.mxu0 0.0
  %2288 = vmatprep.subr.mxu0 0.0
  %2289 = vmatpush1.msra.mxu0 0.0
  %2290 = vmatprep.subr.mxu0 0.0
  %2291 = vmatpush1.msra.mxu0 0.0
  %2292 = vmatprep.subr.mxu0 0.0
  %2293 = vmatpush1.msra.mxu0 0.0
  %2294 = vmatprep.subr.mxu0 0.0
  %2295 = vmatpush1.msra.mxu0 0.0
  %2296 = vmatprep.subr.mxu0 0.0
  %2297 = vmatpush1.msra.mxu0 0.0
  %2298 = vmatprep.subr.mxu0 0.0
  %2299 = vmatpush1.msra.mxu0 0.0
  %2300 = vmatprep.mubr.f32.mxu0 0.0
  %2301 = vmatmul.mubr.f32.gmra.mrb[0].mxu0 %v2234
  %v2302 = vpop.f32.mrb[0].mxu0
  %v2303 = vadd.f32 0.0, %v2302
  %v2304 = vpop.f32.mrb[0].mxu0
  %2305 = vdwg.mxu0
  %2306 = vrot.lane.b32.xlu0 %v322, 104
  %v2307 = vpop.permute.xlu0 %2306
  %2308 = vrot.lane.b32.xlu0 %v314, 72
  %v2309 = vpop.permute.xlu0 %2308
  %v2310 = vsel %vm327, %v2307, 0
  %v2312 = vsel %vm327, %v2309, 0
  %2314 = vmatprep.subr.mxu0 0.0
  %2315 = vmatpush1.xpose.msra.mxu0 %v2312
  %2316 = vmatprep.subr.mxu0 0.0
  %2317 = vmatpush1.xpose.msra.mxu0 0.0
  %2318 = vmatprep.subr.mxu0 0.0
  %2319 = vmatpush1.xpose.msra.mxu0 0.0
  %2320 = vmatprep.subr.mxu0 0.0
  %2321 = vmatpush1.xpose.msra.mxu0 0.0
  %2322 = vmatprep.subr.mxu0 0.0
  %2323 = vmatpush1.xpose.msra.mxu0 0.0
  %2324 = vmatprep.subr.mxu0 0.0
  %2325 = vmatpush1.xpose.msra.mxu0 0.0
  %2326 = vmatprep.subr.mxu0 0.0
  %2327 = vmatpush1.xpose.msra.mxu0 0.0
  %2328 = vmatprep.subr.mxu0 0.0
  %2329 = vmatpush1.xpose.msra.mxu0 0.0
  %2330 = vmatprep.subr.mxu0 0.0
  %2331 = vmatpush1.xpose.msra.mxu0 0.0
  %2332 = vmatprep.subr.mxu0 0.0
  %2333 = vmatpush1.xpose.msra.mxu0 0.0
  %2334 = vmatprep.subr.mxu0 0.0
  %2335 = vmatpush1.xpose.msra.mxu0 0.0
  %2336 = vmatprep.subr.mxu0 0.0
  %2337 = vmatpush1.xpose.msra.mxu0 0.0
  %2338 = vmatprep.subr.mxu0 0.0
  %2339 = vmatpush1.xpose.msra.mxu0 0.0
  %2340 = vmatprep.subr.mxu0 0.0
  %2341 = vmatpush1.xpose.msra.mxu0 0.0
  %2342 = vmatprep.subr.mxu0 0.0
  %2343 = vmatpush1.xpose.msra.mxu0 0.0
  %2344 = vmatprep.subr.mxu0 0.0
  %2345 = vmatpush1.xpose.msra.mxu0 0.0
  %2346 = vmatprep.subr.mxu0 0.0
  %2347 = vmatpush1.xpose.msra.mxu0 0.0
  %2348 = vmatprep.subr.mxu0 0.0
  %2349 = vmatpush1.xpose.msra.mxu0 0.0
  %2350 = vmatprep.subr.mxu0 0.0
  %2351 = vmatpush1.xpose.msra.mxu0 0.0
  %2352 = vmatprep.subr.mxu0 0.0
  %2353 = vmatpush1.xpose.msra.mxu0 0.0
  %2354 = vmatprep.subr.mxu0 0.0
  %2355 = vmatpush1.xpose.msra.mxu0 0.0
  %2356 = vmatprep.subr.mxu0 0.0
  %2357 = vmatpush1.xpose.msra.mxu0 0.0
  %2358 = vmatprep.subr.mxu0 0.0
  %2359 = vmatpush1.xpose.msra.mxu0 0.0
  %2360 = vmatprep.subr.mxu0 0.0
  %2361 = vmatpush1.xpose.msra.mxu0 0.0
  %2362 = vmatprep.subr.mxu0 0.0
  %2363 = vmatpush1.xpose.msra.mxu0 0.0
  %2364 = vmatprep.subr.mxu0 0.0
  %2365 = vmatpush1.xpose.msra.mxu0 0.0
  %2366 = vmatprep.subr.mxu0 0.0
  %2367 = vmatpush1.xpose.msra.mxu0 0.0
  %2368 = vmatprep.subr.mxu0 0.0
  %2369 = vmatpush1.xpose.msra.mxu0 0.0
  %2370 = vmatprep.subr.mxu0 0.0
  %2371 = vmatpush1.xpose.msra.mxu0 0.0
  %2372 = vmatprep.subr.mxu0 0.0
  %2373 = vmatpush1.xpose.msra.mxu0 0.0
  %2374 = vmatprep.subr.mxu0 0.0
  %2375 = vmatpush1.xpose.msra.mxu0 0.0
  %2376 = vmatprep.subr.mxu0 0.0
  %2377 = vmatpush1.xpose.msra.mxu0 0.0
  %2378 = vmatprep.mubr.f32.mxu0 0.0
  %2379 = vmatmul.mubr.f32.gmra.mrb[0].mxu0 %v2310
  %v2380 = vpop.f32.mrb[0].mxu0
  %v2381 = vadd.f32 0.0, %v2380
  %v2382 = vpop.f32.mrb[0].mxu0
  %2383 = vdwg.mxu0
  %2384 = vrot.lane.b32.xlu0 %v323, 104
  %v2385 = vpop.permute.xlu0 %2384
  %2386 = vrot.lane.b32.xlu0 %v319, 72
  %v2387 = vpop.permute.xlu0 %2386
  %v2388 = vsel %vm327, %v2385, 0
  %v2390 = vsel %vm327, %v2387, 0
  %2392 = vmatprep.subr.mxu0 0.0
  %2393 = vmatpush1.xpose.msra.mxu0 %v2390
  %2394 = vmatprep.subr.mxu0 0.0
  %2395 = vmatpush1.xpose.msra.mxu0 0.0
  %2396 = vmatprep.subr.mxu0 0.0
  %2397 = vmatpush1.xpose.msra.mxu0 0.0
  %2398 = vmatprep.subr.mxu0 0.0
  %2399 = vmatpush1.xpose.msra.mxu0 0.0
  %2400 = vmatprep.subr.mxu0 0.0
  %2401 = vmatpush1.xpose.msra.mxu0 0.0
  %2402 = vmatprep.subr.mxu0 0.0
  %2403 = vmatpush1.xpose.msra.mxu0 0.0
  %2404 = vmatprep.subr.mxu0 0.0
  %2405 = vmatpush1.xpose.msra.mxu0 0.0
  %2406 = vmatprep.subr.mxu0 0.0
  %2407 = vmatpush1.xpose.msra.mxu0 0.0
  %2408 = vmatprep.subr.mxu0 0.0
  %2409 = vmatpush1.xpose.msra.mxu0 0.0
  %2410 = vmatprep.subr.mxu0 0.0
  %2411 = vmatpush1.xpose.msra.mxu0 0.0
  %2412 = vmatprep.subr.mxu0 0.0
  %2413 = vmatpush1.xpose.msra.mxu0 0.0
  %2414 = vmatprep.subr.mxu0 0.0
  %2415 = vmatpush1.xpose.msra.mxu0 0.0
  %2416 = vmatprep.subr.mxu0 0.0
  %2417 = vmatpush1.xpose.msra.mxu0 0.0
  %2418 = vmatprep.subr.mxu0 0.0
  %2419 = vmatpush1.xpose.msra.mxu0 0.0
  %2420 = vmatprep.subr.mxu0 0.0
  %2421 = vmatpush1.xpose.msra.mxu0 0.0
  %2422 = vmatprep.subr.mxu0 0.0
  %2423 = vmatpush1.xpose.msra.mxu0 0.0
  %2424 = vmatprep.subr.mxu0 0.0
  %2425 = vmatpush1.xpose.msra.mxu0 0.0
  %2426 = vmatprep.subr.mxu0 0.0
  %2427 = vmatpush1.xpose.msra.mxu0 0.0
  %2428 = vmatprep.subr.mxu0 0.0
  %2429 = vmatpush1.xpose.msra.mxu0 0.0
  %2430 = vmatprep.subr.mxu0 0.0
  %2431 = vmatpush1.xpose.msra.mxu0 0.0
  %2432 = vmatprep.subr.mxu0 0.0
  %2433 = vmatpush1.xpose.msra.mxu0 0.0
  %2434 = vmatprep.subr.mxu0 0.0
  %2435 = vmatpush1.xpose.msra.mxu0 0.0
  %2436 = vmatprep.subr.mxu0 0.0
  %2437 = vmatpush1.xpose.msra.mxu0 0.0
  %2438 = vmatprep.subr.mxu0 0.0
  %2439 = vmatpush1.xpose.msra.mxu0 0.0
  %2440 = vmatprep.subr.mxu0 0.0
  %2441 = vmatpush1.xpose.msra.mxu0 0.0
  %2442 = vmatprep.subr.mxu0 0.0
  %2443 = vmatpush1.xpose.msra.mxu0 0.0
  %2444 = vmatprep.subr.mxu0 0.0
  %2445 = vmatpush1.xpose.msra.mxu0 0.0
  %2446 = vmatprep.subr.mxu0 0.0
  %2447 = vmatpush1.xpose.msra.mxu0 0.0
  %2448 = vmatprep.subr.mxu0 0.0
  %2449 = vmatpush1.xpose.msra.mxu0 0.0
  %2450 = vmatprep.subr.mxu0 0.0
  %2451 = vmatpush1.xpose.msra.mxu0 0.0
  %2452 = vmatprep.subr.mxu0 0.0
  %2453 = vmatpush1.xpose.msra.mxu0 0.0
  %2454 = vmatprep.subr.mxu0 0.0
  %2455 = vmatpush1.xpose.msra.mxu0 0.0
  %2456 = vmatprep.mubr.f32.mxu0 0.0
  %2457 = vmatmul.mubr.f32.gmra.mrb[0].mxu0 %v2388
  %v2458 = vpop.f32.mrb[0].mxu0
  %v2459 = vadd.f32 0.0, %v2458
  %v2460 = vpop.f32.mrb[0].mxu0
  %2461 = vdwg.mxu0
  %v2462 = vsel %vm481, %v2381, -inf
  %2463 = vmax.xlane.f32.xlu0 %v2462
  %v2464 = vpop.xlane.xlu0 %2463
  %v2465 = vsel %vm481, %v2459, -inf
  %2466 = vmax.xlane.f32.xlu0 %v2465
  %v2467 = vpop.xlane.xlu0 %2466
  %v2468 = vsub.f32 %v2381, %v2464
  %v2469 = vsub.f32 %v2459, %v2467
  %v2470 = vmul.f32 %v2468, 1.442695
  %v2471 = vpow.pop %v2470
  %v2472 = vmul.f32 %v2469, 1.442695
  %v2473 = vpow.pop %v2472
  %v2474 = vsel %vm481, %v2471, 0.0
  %2475 = vadd.xlane.f32.xlu0 %v2474
  %v2476 = vpop.xlane.xlu0 %2475
  %v2477 = vsel %vm481, %v2473, 0.0
  %2478 = vadd.xlane.f32.xlu0 %v2477
  %v2479 = vpop.xlane.xlu0 %2478
  %v2480 = vrcp.pop %v2476
  %v2481 = vrcp.pop %v2479
  %v2482 = vmul.f32 %v2471, %v2480
  %v2483 = vmul.f32 %v2473, %v2481
  %2484 = vrot.lane.b32.xlu0 %v314, 40
  %v2485 = vpop.permute.xlu0 %2484
  %v2488 = vsel %vm481, %v2482, 0
  %2490 = vmatprep.subr.mxu0 0.0
  %2491 = vmatpush1.msra.mxu0 %v2485
  %2492 = vmatprep.subr.mxu0 0.0
  %2493 = vmatpush1.msra.mxu0 0.0
  %2494 = vmatprep.subr.mxu0 0.0
  %2495 = vmatpush1.msra.mxu0 0.0
  %2496 = vmatprep.subr.mxu0 0.0
  %2497 = vmatpush1.msra.mxu0 0.0
  %2498 = vmatprep.subr.mxu0 0.0
  %2499 = vmatpush1.msra.mxu0 0.0
  %2500 = vmatprep.subr.mxu0 0.0
  %2501 = vmatpush1.msra.mxu0 0.0
  %2502 = vmatprep.subr.mxu0 0.0
  %2503 = vmatpush1.msra.mxu0 0.0
  %2504 = vmatprep.subr.mxu0 0.0
  %2505 = vmatpush1.msra.mxu0 0.0
  %2506 = vmatprep.subr.mxu0 0.0
  %2507 = vmatpush1.msra.mxu0 0.0
  %2508 = vmatprep.subr.mxu0 0.0
  %2509 = vmatpush1.msra.mxu0 0.0
  %2510 = vmatprep.subr.mxu0 0.0
  %2511 = vmatpush1.msra.mxu0 0.0
  %2512 = vmatprep.subr.mxu0 0.0
  %2513 = vmatpush1.msra.mxu0 0.0
  %2514 = vmatprep.subr.mxu0 0.0
  %2515 = vmatpush1.msra.mxu0 0.0
  %2516 = vmatprep.subr.mxu0 0.0
  %2517 = vmatpush1.msra.mxu0 0.0
  %2518 = vmatprep.subr.mxu0 0.0
  %2519 = vmatpush1.msra.mxu0 0.0
  %2520 = vmatprep.subr.mxu0 0.0
  %2521 = vmatpush1.msra.mxu0 0.0
  %2522 = vmatprep.subr.mxu0 0.0
  %2523 = vmatpush1.msra.mxu0 0.0
  %2524 = vmatprep.subr.mxu0 0.0
  %2525 = vmatpush1.msra.mxu0 0.0
  %2526 = vmatprep.subr.mxu0 0.0
  %2527 = vmatpush1.msra.mxu0 0.0
  %2528 = vmatprep.subr.mxu0 0.0
  %2529 = vmatpush1.msra.mxu0 0.0
  %2530 = vmatprep.subr.mxu0 0.0
  %2531 = vmatpush1.msra.mxu0 0.0
  %2532 = vmatprep.subr.mxu0 0.0
  %2533 = vmatpush1.msra.mxu0 0.0
  %2534 = vmatprep.subr.mxu0 0.0
  %2535 = vmatpush1.msra.mxu0 0.0
  %2536 = vmatprep.subr.mxu0 0.0
  %2537 = vmatpush1.msra.mxu0 0.0
  %2538 = vmatprep.subr.mxu0 0.0
  %2539 = vmatpush1.msra.mxu0 0.0
  %2540 = vmatprep.subr.mxu0 0.0
  %2541 = vmatpush1.msra.mxu0 0.0
  %2542 = vmatprep.subr.mxu0 0.0
  %2543 = vmatpush1.msra.mxu0 0.0
  %2544 = vmatprep.subr.mxu0 0.0
  %2545 = vmatpush1.msra.mxu0 0.0
  %2546 = vmatprep.subr.mxu0 0.0
  %2547 = vmatpush1.msra.mxu0 0.0
  %2548 = vmatprep.subr.mxu0 0.0
  %2549 = vmatpush1.msra.mxu0 0.0
  %2550 = vmatprep.subr.mxu0 0.0
  %2551 = vmatpush1.msra.mxu0 0.0
  %2552 = vmatprep.subr.mxu0 0.0
  %2553 = vmatpush1.msra.mxu0 0.0
  %2554 = vmatprep.mubr.f32.mxu0 0.0
  %2555 = vmatmul.mubr.f32.gmra.mrb[0].mxu0 %v2488
  %v2556 = vpop.f32.mrb[0].mxu0
  %v2557 = vadd.f32 0.0, %v2556
  %v2558 = vpop.f32.mrb[0].mxu0
  %2559 = vdwg.mxu0
  %2560 = vrot.lane.b32.xlu0 %v319, 40
  %v2561 = vpop.permute.xlu0 %2560
  %v2564 = vsel %vm481, %v2483, 0
  %2566 = vmatprep.subr.mxu0 0.0
  %2567 = vmatpush1.msra.mxu0 %v2561
  %2568 = vmatprep.subr.mxu0 0.0
  %2569 = vmatpush1.msra.mxu0 0.0
  %2570 = vmatprep.subr.mxu0 0.0
  %2571 = vmatpush1.msra.mxu0 0.0
  %2572 = vmatprep.subr.mxu0 0.0
  %2573 = vmatpush1.msra.mxu0 0.0
  %2574 = vmatprep.subr.mxu0 0.0
  %2575 = vmatpush1.msra.mxu0 0.0
  %2576 = vmatprep.subr.mxu0 0.0
  %2577 = vmatpush1.msra.mxu0 0.0
  %2578 = vmatprep.subr.mxu0 0.0
  %2579 = vmatpush1.msra.mxu0 0.0
  %2580 = vmatprep.subr.mxu0 0.0
  %2581 = vmatpush1.msra.mxu0 0.0
  %2582 = vmatprep.subr.mxu0 0.0
  %2583 = vmatpush1.msra.mxu0 0.0
  %2584 = vmatprep.subr.mxu0 0.0
  %2585 = vmatpush1.msra.mxu0 0.0
  %2586 = vmatprep.subr.mxu0 0.0
  %2587 = vmatpush1.msra.mxu0 0.0
  %2588 = vmatprep.subr.mxu0 0.0
  %2589 = vmatpush1.msra.mxu0 0.0
  %2590 = vmatprep.subr.mxu0 0.0
  %2591 = vmatpush1.msra.mxu0 0.0
  %2592 = vmatprep.subr.mxu0 0.0
  %2593 = vmatpush1.msra.mxu0 0.0
  %2594 = vmatprep.subr.mxu0 0.0
  %2595 = vmatpush1.msra.mxu0 0.0
  %2596 = vmatprep.subr.mxu0 0.0
  %2597 = vmatpush1.msra.mxu0 0.0
  %2598 = vmatprep.subr.mxu0 0.0
  %2599 = vmatpush1.msra.mxu0 0.0
  %2600 = vmatprep.subr.mxu0 0.0
  %2601 = vmatpush1.msra.mxu0 0.0
  %2602 = vmatprep.subr.mxu0 0.0
  %2603 = vmatpush1.msra.mxu0 0.0
  %2604 = vmatprep.subr.mxu0 0.0
  %2605 = vmatpush1.msra.mxu0 0.0
  %2606 = vmatprep.subr.mxu0 0.0
  %2607 = vmatpush1.msra.mxu0 0.0
  %2608 = vmatprep.subr.mxu0 0.0
  %2609 = vmatpush1.msra.mxu0 0.0
  %2610 = vmatprep.subr.mxu0 0.0
  %2611 = vmatpush1.msra.mxu0 0.0
  %2612 = vmatprep.subr.mxu0 0.0
  %2613 = vmatpush1.msra.mxu0 0.0
  %2614 = vmatprep.subr.mxu0 0.0
  %2615 = vmatpush1.msra.mxu0 0.0
  %2616 = vmatprep.subr.mxu0 0.0
  %2617 = vmatpush1.msra.mxu0 0.0
  %2618 = vmatprep.subr.mxu0 0.0
  %2619 = vmatpush1.msra.mxu0 0.0
  %2620 = vmatprep.subr.mxu0 0.0
  %2621 = vmatpush1.msra.mxu0 0.0
  %2622 = vmatprep.subr.mxu0 0.0
  %2623 = vmatpush1.msra.mxu0 0.0
  %2624 = vmatprep.subr.mxu0 0.0
  %2625 = vmatpush1.msra.mxu0 0.0
  %2626 = vmatprep.subr.mxu0 0.0
  %2627 = vmatpush1.msra.mxu0 0.0
  %2628 = vmatprep.subr.mxu0 0.0
  %2629 = vmatpush1.msra.mxu0 0.0
  %2630 = vmatprep.mubr.f32.mxu0 0.0
  %2631 = vmatmul.mubr.f32.gmra.mrb[0].mxu0 %v2564
  %v2632 = vpop.f32.mrb[0].mxu0
  %v2633 = vadd.f32 0.0, %v2632
  %v2634 = vpop.f32.mrb[0].mxu0
  %2635 = vdwg.mxu0
  %2636 = vrot.lane.b32.xlu0 %v322, 100
  %v2637 = vpop.permute.xlu0 %2636
  %2638 = vrot.lane.b32.xlu0 %v314, 68
  %v2639 = vpop.permute.xlu0 %2638
  %v2640 = vsel %vm327, %v2637, 0
  %v2642 = vsel %vm327, %v2639, 0
  %2644 = vmatprep.subr.mxu0 0.0
  %2645 = vmatpush1.xpose.msra.mxu0 %v2642
  %2646 = vmatprep.subr.mxu0 0.0
  %2647 = vmatpush1.xpose.msra.mxu0 0.0
  %2648 = vmatprep.subr.mxu0 0.0
  %2649 = vmatpush1.xpose.msra.mxu0 0.0
  %2650 = vmatprep.subr.mxu0 0.0
  %2651 = vmatpush1.xpose.msra.mxu0 0.0
  %2652 = vmatprep.subr.mxu0 0.0
  %2653 = vmatpush1.xpose.msra.mxu0 0.0
  %2654 = vmatprep.subr.mxu0 0.0
  %2655 = vmatpush1.xpose.msra.mxu0 0.0
  %2656 = vmatprep.subr.mxu0 0.0
  %2657 = vmatpush1.xpose.msra.mxu0 0.0
  %2658 = vmatprep.subr.mxu0 0.0
  %2659 = vmatpush1.xpose.msra.mxu0 0.0
  %2660 = vmatprep.subr.mxu0 0.0
  %2661 = vmatpush1.xpose.msra.mxu0 0.0
  %2662 = vmatprep.subr.mxu0 0.0
  %2663 = vmatpush1.xpose.msra.mxu0 0.0
  %2664 = vmatprep.subr.mxu0 0.0
  %2665 = vmatpush1.xpose.msra.mxu0 0.0
  %2666 = vmatprep.subr.mxu0 0.0
  %2667 = vmatpush1.xpose.msra.mxu0 0.0
  %2668 = vmatprep.subr.mxu0 0.0
  %2669 = vmatpush1.xpose.msra.mxu0 0.0
  %2670 = vmatprep.subr.mxu0 0.0
  %2671 = vmatpush1.xpose.msra.mxu0 0.0
  %2672 = vmatprep.subr.mxu0 0.0
  %2673 = vmatpush1.xpose.msra.mxu0 0.0
  %2674 = vmatprep.subr.mxu0 0.0
  %2675 = vmatpush1.xpose.msra.mxu0 0.0
  %2676 = vmatprep.subr.mxu0 0.0
  %2677 = vmatpush1.xpose.msra.mxu0 0.0
  %2678 = vmatprep.subr.mxu0 0.0
  %2679 = vmatpush1.xpose.msra.mxu0 0.0
  %2680 = vmatprep.subr.mxu0 0.0
  %2681 = vmatpush1.xpose.msra.mxu0 0.0
  %2682 = vmatprep.subr.mxu0 0.0
  %2683 = vmatpush1.xpose.msra.mxu0 0.0
  %2684 = vmatprep.subr.mxu0 0.0
  %2685 = vmatpush1.xpose.msra.mxu0 0.0
  %2686 = vmatprep.subr.mxu0 0.0
  %2687 = vmatpush1.xpose.msra.mxu0 0.0
  %2688 = vmatprep.subr.mxu0 0.0
  %2689 = vmatpush1.xpose.msra.mxu0 0.0
  %2690 = vmatprep.subr.mxu0 0.0
  %2691 = vmatpush1.xpose.msra.mxu0 0.0
  %2692 = vmatprep.subr.mxu0 0.0
  %2693 = vmatpush1.xpose.msra.mxu0 0.0
  %2694 = vmatprep.subr.mxu0 0.0
  %2695 = vmatpush1.xpose.msra.mxu0 0.0
  %2696 = vmatprep.subr.mxu0 0.0
  %2697 = vmatpush1.xpose.msra.mxu0 0.0
  %2698 = vmatprep.subr.mxu0 0.0
  %2699 = vmatpush1.xpose.msra.mxu0 0.0
  %2700 = vmatprep.subr.mxu0 0.0
  %2701 = vmatpush1.xpose.msra.mxu0 0.0
  %2702 = vmatprep.subr.mxu0 0.0
  %2703 = vmatpush1.xpose.msra.mxu0 0.0
  %2704 = vmatprep.subr.mxu0 0.0
  %2705 = vmatpush1.xpose.msra.mxu0 0.0
  %2706 = vmatprep.subr.mxu0 0.0
  %2707 = vmatpush1.xpose.msra.mxu0 0.0
  %2708 = vmatprep.mubr.f32.mxu0 0.0
  %2709 = vmatmul.mubr.f32.gmra.mrb[0].mxu0 %v2640
  %v2710 = vpop.f32.mrb[0].mxu0
  %v2711 = vadd.f32 0.0, %v2710
  %v2712 = vpop.f32.mrb[0].mxu0
  %2713 = vdwg.mxu0
  %2714 = vrot.lane.b32.xlu0 %v323, 100
  %v2715 = vpop.permute.xlu0 %2714
  %2716 = vrot.lane.b32.xlu0 %v319, 68
  %v2717 = vpop.permute.xlu0 %2716
  %v2718 = vsel %vm327, %v2715, 0
  %v2720 = vsel %vm327, %v2717, 0
  %2722 = vmatprep.subr.mxu0 0.0
  %2723 = vmatpush1.xpose.msra.mxu0 %v2720
  %2724 = vmatprep.subr.mxu0 0.0
  %2725 = vmatpush1.xpose.msra.mxu0 0.0
  %2726 = vmatprep.subr.mxu0 0.0
  %2727 = vmatpush1.xpose.msra.mxu0 0.0
  %2728 = vmatprep.subr.mxu0 0.0
  %2729 = vmatpush1.xpose.msra.mxu0 0.0
  %2730 = vmatprep.subr.mxu0 0.0
  %2731 = vmatpush1.xpose.msra.mxu0 0.0
  %2732 = vmatprep.subr.mxu0 0.0
  %2733 = vmatpush1.xpose.msra.mxu0 0.0
  %2734 = vmatprep.subr.mxu0 0.0
  %2735 = vmatpush1.xpose.msra.mxu0 0.0
  %2736 = vmatprep.subr.mxu0 0.0
  %2737 = vmatpush1.xpose.msra.mxu0 0.0
  %2738 = vmatprep.subr.mxu0 0.0
  %2739 = vmatpush1.xpose.msra.mxu0 0.0
  %2740 = vmatprep.subr.mxu0 0.0
  %2741 = vmatpush1.xpose.msra.mxu0 0.0
  %2742 = vmatprep.subr.mxu0 0.0
  %2743 = vmatpush1.xpose.msra.mxu0 0.0
  %2744 = vmatprep.subr.mxu0 0.0
  %2745 = vmatpush1.xpose.msra.mxu0 0.0
  %2746 = vmatprep.subr.mxu0 0.0
  %2747 = vmatpush1.xpose.msra.mxu0 0.0
  %2748 = vmatprep.subr.mxu0 0.0
  %2749 = vmatpush1.xpose.msra.mxu0 0.0
  %2750 = vmatprep.subr.mxu0 0.0
  %2751 = vmatpush1.xpose.msra.mxu0 0.0
  %2752 = vmatprep.subr.mxu0 0.0
  %2753 = vmatpush1.xpose.msra.mxu0 0.0
  %2754 = vmatprep.subr.mxu0 0.0
  %2755 = vmatpush1.xpose.msra.mxu0 0.0
  %2756 = vmatprep.subr.mxu0 0.0
  %2757 = vmatpush1.xpose.msra.mxu0 0.0
  %2758 = vmatprep.subr.mxu0 0.0
  %2759 = vmatpush1.xpose.msra.mxu0 0.0
  %2760 = vmatprep.subr.mxu0 0.0
  %2761 = vmatpush1.xpose.msra.mxu0 0.0
  %2762 = vmatprep.subr.mxu0 0.0
  %2763 = vmatpush1.xpose.msra.mxu0 0.0
  %2764 = vmatprep.subr.mxu0 0.0
  %2765 = vmatpush1.xpose.msra.mxu0 0.0
  %2766 = vmatprep.subr.mxu0 0.0
  %2767 = vmatpush1.xpose.msra.mxu0 0.0
  %2768 = vmatprep.subr.mxu0 0.0
  %2769 = vmatpush1.xpose.msra.mxu0 0.0
  %2770 = vmatprep.subr.mxu0 0.0
  %2771 = vmatpush1.xpose.msra.mxu0 0.0
  %2772 = vmatprep.subr.mxu0 0.0
  %2773 = vmatpush1.xpose.msra.mxu0 0.0
  %2774 = vmatprep.subr.mxu0 0.0
  %2775 = vmatpush1.xpose.msra.mxu0 0.0
  %2776 = vmatprep.subr.mxu0 0.0
  %2777 = vmatpush1.xpose.msra.mxu0 0.0
  %2778 = vmatprep.subr.mxu0 0.0
  %2779 = vmatpush1.xpose.msra.mxu0 0.0
  %2780 = vmatprep.subr.mxu0 0.0
  %2781 = vmatpush1.xpose.msra.mxu0 0.0
  %2782 = vmatprep.subr.mxu0 0.0
  %2783 = vmatpush1.xpose.msra.mxu0 0.0
  %2784 = vmatprep.subr.mxu0 0.0
  %2785 = vmatpush1.xpose.msra.mxu0 0.0
  %2786 = vmatprep.mubr.f32.mxu0 0.0
  %2787 = vmatmul.mubr.f32.gmra.mrb[0].mxu0 %v2718
  %v2788 = vpop.f32.mrb[0].mxu0
  %v2789 = vadd.f32 0.0, %v2788
  %v2790 = vpop.f32.mrb[0].mxu0
  %2791 = vdwg.mxu0
  %v2792 = vsel %vm481, %v2711, -inf
  %2793 = vmax.xlane.f32.xlu0 %v2792
  %v2794 = vpop.xlane.xlu0 %2793
  %v2795 = vsel %vm481, %v2789, -inf
  %2796 = vmax.xlane.f32.xlu0 %v2795
  %v2797 = vpop.xlane.xlu0 %2796
  %v2798 = vsub.f32 %v2711, %v2794
  %v2799 = vsub.f32 %v2789, %v2797
  %v2800 = vmul.f32 %v2798, 1.442695
  %v2801 = vpow.pop %v2800
  %v2802 = vmul.f32 %v2799, 1.442695
  %v2803 = vpow.pop %v2802
  %v2804 = vsel %vm481, %v2801, 0.0
  %2805 = vadd.xlane.f32.xlu0 %v2804
  %v2806 = vpop.xlane.xlu0 %2805
  %v2807 = vsel %vm481, %v2803, 0.0
  %2808 = vadd.xlane.f32.xlu0 %v2807
  %v2809 = vpop.xlane.xlu0 %2808
  %v2810 = vrcp.pop %v2806
  %v2811 = vrcp.pop %v2809
  %v2812 = vmul.f32 %v2801, %v2810
  %v2813 = vmul.f32 %v2803, %v2811
  %2814 = vrot.lane.b32.xlu0 %v314, 36
  %v2815 = vpop.permute.xlu0 %2814
  %v2818 = vsel %vm481, %v2812, 0
  %2820 = vmatprep.subr.mxu0 0.0
  %2821 = vmatpush1.msra.mxu0 %v2815
  %2822 = vmatprep.subr.mxu0 0.0
  %2823 = vmatpush1.msra.mxu0 0.0
  %2824 = vmatprep.subr.mxu0 0.0
  %2825 = vmatpush1.msra.mxu0 0.0
  %2826 = vmatprep.subr.mxu0 0.0
  %2827 = vmatpush1.msra.mxu0 0.0
  %2828 = vmatprep.subr.mxu0 0.0
  %2829 = vmatpush1.msra.mxu0 0.0
  %2830 = vmatprep.subr.mxu0 0.0
  %2831 = vmatpush1.msra.mxu0 0.0
  %2832 = vmatprep.subr.mxu0 0.0
  %2833 = vmatpush1.msra.mxu0 0.0
  %2834 = vmatprep.subr.mxu0 0.0
  %2835 = vmatpush1.msra.mxu0 0.0
  %2836 = vmatprep.subr.mxu0 0.0
  %2837 = vmatpush1.msra.mxu0 0.0
  %2838 = vmatprep.subr.mxu0 0.0
  %2839 = vmatpush1.msra.mxu0 0.0
  %2840 = vmatprep.subr.mxu0 0.0
  %2841 = vmatpush1.msra.mxu0 0.0
  %2842 = vmatprep.subr.mxu0 0.0
  %2843 = vmatpush1.msra.mxu0 0.0
  %2844 = vmatprep.subr.mxu0 0.0
  %2845 = vmatpush1.msra.mxu0 0.0
  %2846 = vmatprep.subr.mxu0 0.0
  %2847 = vmatpush1.msra.mxu0 0.0
  %2848 = vmatprep.subr.mxu0 0.0
  %2849 = vmatpush1.msra.mxu0 0.0
  %2850 = vmatprep.subr.mxu0 0.0
  %2851 = vmatpush1.msra.mxu0 0.0
  %2852 = vmatprep.subr.mxu0 0.0
  %2853 = vmatpush1.msra.mxu0 0.0
  %2854 = vmatprep.subr.mxu0 0.0
  %2855 = vmatpush1.msra.mxu0 0.0
  %2856 = vmatprep.subr.mxu0 0.0
  %2857 = vmatpush1.msra.mxu0 0.0
  %2858 = vmatprep.subr.mxu0 0.0
  %2859 = vmatpush1.msra.mxu0 0.0
  %2860 = vmatprep.subr.mxu0 0.0
  %2861 = vmatpush1.msra.mxu0 0.0
  %2862 = vmatprep.subr.mxu0 0.0
  %2863 = vmatpush1.msra.mxu0 0.0
  %2864 = vmatprep.subr.mxu0 0.0
  %2865 = vmatpush1.msra.mxu0 0.0
  %2866 = vmatprep.subr.mxu0 0.0
  %2867 = vmatpush1.msra.mxu0 0.0
  %2868 = vmatprep.subr.mxu0 0.0
  %2869 = vmatpush1.msra.mxu0 0.0
  %2870 = vmatprep.subr.mxu0 0.0
  %2871 = vmatpush1.msra.mxu0 0.0
  %2872 = vmatprep.subr.mxu0 0.0
  %2873 = vmatpush1.msra.mxu0 0.0
  %2874 = vmatprep.subr.mxu0 0.0
  %2875 = vmatpush1.msra.mxu0 0.0
  %2876 = vmatprep.subr.mxu0 0.0
  %2877 = vmatpush1.msra.mxu0 0.0
  %2878 = vmatprep.subr.mxu0 0.0
  %2879 = vmatpush1.msra.mxu0 0.0
  %2880 = vmatprep.subr.mxu0 0.0
  %2881 = vmatpush1.msra.mxu0 0.0
  %2882 = vmatprep.subr.mxu0 0.0
  %2883 = vmatpush1.msra.mxu0 0.0
  %2884 = vmatprep.mubr.f32.mxu0 0.0
  %2885 = vmatmul.mubr.f32.gmra.mrb[0].mxu0 %v2818
  %v2886 = vpop.f32.mrb[0].mxu0
  %v2887 = vadd.f32 0.0, %v2886
  %v2888 = vpop.f32.mrb[0].mxu0
  %2889 = vdwg.mxu0
  %2890 = vrot.lane.b32.xlu0 %v319, 36
  %v2891 = vpop.permute.xlu0 %2890
  %v2894 = vsel %vm481, %v2813, 0
  %2896 = vmatprep.subr.mxu0 0.0
  %2897 = vmatpush1.msra.mxu0 %v2891
  %2898 = vmatprep.subr.mxu0 0.0
  %2899 = vmatpush1.msra.mxu0 0.0
  %2900 = vmatprep.subr.mxu0 0.0
  %2901 = vmatpush1.msra.mxu0 0.0
  %2902 = vmatprep.subr.mxu0 0.0
  %2903 = vmatpush1.msra.mxu0 0.0
  %2904 = vmatprep.subr.mxu0 0.0
  %2905 = vmatpush1.msra.mxu0 0.0
  %2906 = vmatprep.subr.mxu0 0.0
  %2907 = vmatpush1.msra.mxu0 0.0
  %2908 = vmatprep.subr.mxu0 0.0
  %2909 = vmatpush1.msra.mxu0 0.0
  %2910 = vmatprep.subr.mxu0 0.0
  %2911 = vmatpush1.msra.mxu0 0.0
  %2912 = vmatprep.subr.mxu0 0.0
  %2913 = vmatpush1.msra.mxu0 0.0
  %2914 = vmatprep.subr.mxu0 0.0
  %2915 = vmatpush1.msra.mxu0 0.0
  %2916 = vmatprep.subr.mxu0 0.0
  %2917 = vmatpush1.msra.mxu0 0.0
  %2918 = vmatprep.subr.mxu0 0.0
  %2919 = vmatpush1.msra.mxu0 0.0
  %2920 = vmatprep.subr.mxu0 0.0
  %2921 = vmatpush1.msra.mxu0 0.0
  %2922 = vmatprep.subr.mxu0 0.0
  %2923 = vmatpush1.msra.mxu0 0.0
  %2924 = vmatprep.subr.mxu0 0.0
  %2925 = vmatpush1.msra.mxu0 0.0
  %2926 = vmatprep.subr.mxu0 0.0
  %2927 = vmatpush1.msra.mxu0 0.0
  %2928 = vmatprep.subr.mxu0 0.0
  %2929 = vmatpush1.msra.mxu0 0.0
  %2930 = vmatprep.subr.mxu0 0.0
  %2931 = vmatpush1.msra.mxu0 0.0
  %2932 = vmatprep.subr.mxu0 0.0
  %2933 = vmatpush1.msra.mxu0 0.0
  %2934 = vmatprep.subr.mxu0 0.0
  %2935 = vmatpush1.msra.mxu0 0.0
  %2936 = vmatprep.subr.mxu0 0.0
  %2937 = vmatpush1.msra.mxu0 0.0
  %2938 = vmatprep.subr.mxu0 0.0
  %2939 = vmatpush1.msra.mxu0 0.0
  %2940 = vmatprep.subr.mxu0 0.0
  %2941 = vmatpush1.msra.mxu0 0.0
  %2942 = vmatprep.subr.mxu0 0.0
  %2943 = vmatpush1.msra.mxu0 0.0
  %2944 = vmatprep.subr.mxu0 0.0
  %2945 = vmatpush1.msra.mxu0 0.0
  %2946 = vmatprep.subr.mxu0 0.0
  %2947 = vmatpush1.msra.mxu0 0.0
  %2948 = vmatprep.subr.mxu0 0.0
  %2949 = vmatpush1.msra.mxu0 0.0
  %2950 = vmatprep.subr.mxu0 0.0
  %2951 = vmatpush1.msra.mxu0 0.0
  %2952 = vmatprep.subr.mxu0 0.0
  %2953 = vmatpush1.msra.mxu0 0.0
  %2954 = vmatprep.subr.mxu0 0.0
  %2955 = vmatpush1.msra.mxu0 0.0
  %2956 = vmatprep.subr.mxu0 0.0
  %2957 = vmatpush1.msra.mxu0 0.0
  %2958 = vmatprep.subr.mxu0 0.0
  %2959 = vmatpush1.msra.mxu0 0.0
  %2960 = vmatprep.mubr.f32.mxu0 0.0
  %2961 = vmatmul.mubr.f32.gmra.mrb[0].mxu0 %v2894
  %v2962 = vpop.f32.mrb[0].mxu0
  %v2963 = vadd.f32 0.0, %v2962
  %v2964 = vpop.f32.mrb[0].mxu0
  %2965 = vdwg.mxu0
  %2968 = vrot.lane.b32.xlu0 %v907, 4
  %v2969 = vpop.permute.xlu0 %2968
  %2970 = vrot.lane.b32.xlu0 %v983, 4
  %v2971 = vpop.permute.xlu0 %2970
  %2976 = vrot.lane.b32.xlu0 %v1237, 8
  %v2977 = vpop.permute.xlu0 %2976
  %2978 = vrot.lane.b32.xlu0 %v1313, 8
  %v2979 = vpop.permute.xlu0 %2978
  %2984 = vrot.lane.b32.xlu0 %v1567, 12
  %v2985 = vpop.permute.xlu0 %2984
  %2986 = vrot.lane.b32.xlu0 %v1643, 12
  %v2987 = vpop.permute.xlu0 %2986
  %2992 = vrot.lane.b32.xlu0 %v1897, 16
  %v2993 = vpop.permute.xlu0 %2992
  %2994 = vrot.lane.b32.xlu0 %v1973, 16
  %v2995 = vpop.permute.xlu0 %2994
  %3000 = vrot.lane.b32.xlu0 %v2227, 20
  %v3001 = vpop.permute.xlu0 %3000
  %3002 = vrot.lane.b32.xlu0 %v2303, 20
  %v3003 = vpop.permute.xlu0 %3002
  %3008 = vrot.lane.b32.xlu0 %v2557, 24
  %v3009 = vpop.permute.xlu0 %3008
  %3010 = vrot.lane.b32.xlu0 %v2633, 24
  %v3011 = vpop.permute.xlu0 %3010
  %3016 = vrot.lane.b32.xlu0 %v2887, 28
  %v3017 = vpop.permute.xlu0 %3016
  %3018 = vrot.lane.b32.xlu0 %v2963, 28
  %v3019 = vpop.permute.xlu0 %3018
  %v3022 = vsel %vm327, %v577, %v2969
  %v3023 = vsel %vm327, %v653, %v2971
  %v3024 = vsel %vm481, %v3022, %v2977
  %v3025 = vsel %vm481, %v3023, %v2979
  %vm3026 = vcmask 97280
  %v3027 = vsel %vm3026, %v3024, %v2985
  %v3028 = vsel %vm3026, %v3025, %v2987
  %v3029 = vsel %vm98, %v3027, %v2993
  %v3030 = vsel %vm98, %v3028, %v2995
  %vm3031 = vcmask 162816
  %v3032 = vsel %vm3031, %v3029, %v3001
  %v3033 = vsel %vm3031, %v3030, %v3003
  %vm3034 = vcmask 195584
  %v3035 = vsel %vm3034, %v3032, %v3009
  %v3036 = vsel %vm3034, %v3033, %v3011
  %vm3037 = vcmask 228352
  %v3038 = vsel %vm3037, %v3035, %v3017
  %v3039 = vsel %vm3037, %v3036, %v3019
  %v3040 = vld [vmem:[%s8] sm:$0xff]
  %v3041 = vld [vmem:[%s8 + $0x8] sm:$0xff]
  %v3042 = vld [vmem:[%s8 + $0x10] sm:$0xff]
  %v3043 = vld [vmem:[%s8 + $0x18] sm:$0xff]
  %v3044 = vld [vmem:[%s9] sm:$0x1]
  %v3046 = vlaneseq
  %v3047 = vshrl.u32 %v3046, 7
  %v3048 = vsub.s32 0, %v3047
  %v3049 = vrot.slane %v3044, %v3048
  %v3052 = vsel %vm186, %v3038, 0
  %v3055 = vsel %vm186, %v3039, 0
  %3057 = vmatprep.subr.mxu0 0.0
  %3058 = vmatpush1.msra.mxu0 %v3040
  %3059 = vmatprep.subr.mxu0 0.0
  %3060 = vmatpush1.msra.mxu0 %v3041
  %3061 = vmatprep.subr.mxu0 0.0
  %3062 = vmatpush1.msra.mxu0 %v3042
  %3063 = vmatprep.subr.mxu0 0.0
  %3064 = vmatpush1.msra.mxu0 %v3043
  %3065 = vmatprep.subr.mxu0 0.0
  %3066 = vmatpush1.msra.mxu0 0.0
  %3067 = vmatprep.subr.mxu0 0.0
  %3068 = vmatpush1.msra.mxu0 0.0
  %3069 = vmatprep.subr.mxu0 0.0
  %3070 = vmatpush1.msra.mxu0 0.0
  %3071 = vmatprep.subr.mxu0 0.0
  %3072 = vmatpush1.msra.mxu0 0.0
  %3073 = vmatprep.subr.mxu0 0.0
  %3074 = vmatpush1.msra.mxu0 0.0
  %3075 = vmatprep.subr.mxu0 0.0
  %3076 = vmatpush1.msra.mxu0 0.0
  %3077 = vmatprep.subr.mxu0 0.0
  %3078 = vmatpush1.msra.mxu0 0.0
  %3079 = vmatprep.subr.mxu0 0.0
  %3080 = vmatpush1.msra.mxu0 0.0
  %3081 = vmatprep.subr.mxu0 0.0
  %3082 = vmatpush1.msra.mxu0 0.0
  %3083 = vmatprep.subr.mxu0 0.0
  %3084 = vmatpush1.msra.mxu0 0.0
  %3085 = vmatprep.subr.mxu0 0.0
  %3086 = vmatpush1.msra.mxu0 0.0
  %3087 = vmatprep.subr.mxu0 0.0
  %3088 = vmatpush1.msra.mxu0 0.0
  %3089 = vmatprep.subr.mxu0 0.0
  %3090 = vmatpush1.msra.mxu0 0.0
  %3091 = vmatprep.subr.mxu0 0.0
  %3092 = vmatpush1.msra.mxu0 0.0
  %3093 = vmatprep.subr.mxu0 0.0
  %3094 = vmatpush1.msra.mxu0 0.0
  %3095 = vmatprep.subr.mxu0 0.0
  %3096 = vmatpush1.msra.mxu0 0.0
  %3097 = vmatprep.subr.mxu0 0.0
  %3098 = vmatpush1.msra.mxu0 0.0
  %3099 = vmatprep.subr.mxu0 0.0
  %3100 = vmatpush1.msra.mxu0 0.0
  %3101 = vmatprep.subr.mxu0 0.0
  %3102 = vmatpush1.msra.mxu0 0.0
  %3103 = vmatprep.subr.mxu0 0.0
  %3104 = vmatpush1.msra.mxu0 0.0
  %3105 = vmatprep.subr.mxu0 0.0
  %3106 = vmatpush1.msra.mxu0 0.0
  %3107 = vmatprep.subr.mxu0 0.0
  %3108 = vmatpush1.msra.mxu0 0.0
  %3109 = vmatprep.subr.mxu0 0.0
  %3110 = vmatpush1.msra.mxu0 0.0
  %3111 = vmatprep.subr.mxu0 0.0
  %3112 = vmatpush1.msra.mxu0 0.0
  %3113 = vmatprep.subr.mxu0 0.0
  %3114 = vmatpush1.msra.mxu0 0.0
  %3115 = vmatprep.subr.mxu0 0.0
  %3116 = vmatpush1.msra.mxu0 0.0
  %3117 = vmatprep.subr.mxu0 0.0
  %3118 = vmatpush1.msra.mxu0 0.0
  %3119 = vmatprep.subr.mxu0 0.0
  %3120 = vmatpush1.msra.mxu0 0.0
  %3121 = vmatprep.mubr.f32.mxu0 0.0
  %3122 = vmatmul.mubr.f32.gmra.mrb[0].mxu0 %v3052
  %v3123 = vpop.f32.mrb[0].mxu0
  %v3124 = vadd.f32 %v3049, %v3123
  %v3125 = vpop.f32.mrb[0].mxu0
  %3126 = vmatprep.mubr.f32.mxu0 0.0
  %3127 = vmatmul.mubr.f32.gmra.mrb[0].mxu0 %v3055
  %v3128 = vpop.f32.mrb[0].mxu0
  %v3129 = vadd.f32 %v3049, %v3128
  %v3130 = vpop.f32.mrb[0].mxu0
  %3131 = vdwg.mxu0
  %v3132 = vadd.f32 %v228, %v3124
  %v3133 = vadd.f32 %v229, %v3129
  %v3134 = vld [vmem:[%s10] sm:$0x1]
  %v3135 = vld [vmem:[%s11] sm:$0x1]
  %v3136 = vsel %vm186, %v3132, 0.0
  %3137 = vadd.xlane.f32.xlu0 %v3136
  %v3138 = vpop.xlane.xlu0 %3137
  %v3139 = vsel %vm186, %v3133, 0.0
  %3140 = vadd.xlane.f32.xlu0 %v3139
  %v3141 = vpop.xlane.xlu0 %3140
  %v3142 = vmul.f32 %v3138, %v193
  %v3143 = vmul.f32 %v3141, %v193
  %v3144 = vsub.f32 %v3132, %v3142
  %v3145 = vsub.f32 %v3133, %v3143
  %v3146 = vmul.f32 %v3144, %v3144
  %v3147 = vmul.f32 %v3145, %v3145
  %v3148 = vsel %vm186, %v3146, 0.0
  %3149 = vadd.xlane.f32.xlu0 %v3148
  %v3150 = vpop.xlane.xlu0 %3149
  %v3151 = vsel %vm186, %v3147, 0.0
  %3152 = vadd.xlane.f32.xlu0 %v3151
  %v3153 = vpop.xlane.xlu0 %3152
  %v3154 = vmul.f32 %v3150, %v193
  %v3155 = vmul.f32 %v3153, %v193
  %v3156 = vadd.f32 %v3154, 1e-05
  %v3157 = vadd.f32 %v3155, 1e-05
  %v3158 = vrsqrt.pop %v3156
  %v3159 = vrsqrt.pop %v3157
  %v3160 = vmul.f32 %v3144, %v3158
  %v3161 = vmul.f32 %v3145, %v3159
  %v3163 = vlaneseq
  %v3164 = vshrl.u32 %v3163, 7
  %v3165 = vsub.s32 0, %v3164
  %v3166 = vrot.slane %v3134, %v3165
  %v3168 = vmul.f32 %v3160, %v3166
  %v3169 = vmul.f32 %v3161, %v3166
  %v3171 = vlaneseq
  %v3172 = vshrl.u32 %v3171, 7
  %v3173 = vsub.s32 0, %v3172
  %v3174 = vrot.slane %v3135, %v3173
  %v3176 = vadd.f32 %v3168, %v3174
  %v3177 = vadd.f32 %v3169, %v3174
  %v3178 = vld [vmem:[%s12] sm:$0xff]
  %v3179 = vld [vmem:[%s12 + $0x8] sm:$0xff]
  %v3180 = vld [vmem:[%s12 + $0x10] sm:$0xff]
  %v3181 = vld [vmem:[%s12 + $0x18] sm:$0xff]
  %v3182 = vld [vmem:[%s13] sm:$0x1]
  %v3184 = vlaneseq
  %v3185 = vshrl.u32 %v3184, 7
  %v3186 = vsub.s32 0, %v3185
  %v3187 = vrot.slane %v3182, %v3186
  %v3190 = vsel %vm186, %v3176, 0
  %v3193 = vsel %vm186, %v3177, 0
  %3195 = vmatprep.subr.mxu0 0.0
  %3196 = vmatpush1.msra.mxu0 %v3178
  %3197 = vmatprep.subr.mxu0 0.0
  %3198 = vmatpush1.msra.mxu0 %v3179
  %3199 = vmatprep.subr.mxu0 0.0
  %3200 = vmatpush1.msra.mxu0 %v3180
  %3201 = vmatprep.subr.mxu0 0.0
  %3202 = vmatpush1.msra.mxu0 %v3181
  %3203 = vmatprep.subr.mxu0 0.0
  %3204 = vmatpush1.msra.mxu0 0.0
  %3205 = vmatprep.subr.mxu0 0.0
  %3206 = vmatpush1.msra.mxu0 0.0
  %3207 = vmatprep.subr.mxu0 0.0
  %3208 = vmatpush1.msra.mxu0 0.0
  %3209 = vmatprep.subr.mxu0 0.0
  %3210 = vmatpush1.msra.mxu0 0.0
  %3211 = vmatprep.subr.mxu0 0.0
  %3212 = vmatpush1.msra.mxu0 0.0
  %3213 = vmatprep.subr.mxu0 0.0
  %3214 = vmatpush1.msra.mxu0 0.0
  %3215 = vmatprep.subr.mxu0 0.0
  %3216 = vmatpush1.msra.mxu0 0.0
  %3217 = vmatprep.subr.mxu0 0.0
  %3218 = vmatpush1.msra.mxu0 0.0
  %3219 = vmatprep.subr.mxu0 0.0
  %3220 = vmatpush1.msra.mxu0 0.0
  %3221 = vmatprep.subr.mxu0 0.0
  %3222 = vmatpush1.msra.mxu0 0.0
  %3223 = vmatprep.subr.mxu0 0.0
  %3224 = vmatpush1.msra.mxu0 0.0
  %3225 = vmatprep.subr.mxu0 0.0
  %3226 = vmatpush1.msra.mxu0 0.0
  %3227 = vmatprep.subr.mxu0 0.0
  %3228 = vmatpush1.msra.mxu0 0.0
  %3229 = vmatprep.subr.mxu0 0.0
  %3230 = vmatpush1.msra.mxu0 0.0
  %3231 = vmatprep.subr.mxu0 0.0
  %3232 = vmatpush1.msra.mxu0 0.0
  %3233 = vmatprep.subr.mxu0 0.0
  %3234 = vmatpush1.msra.mxu0 0.0
  %3235 = vmatprep.subr.mxu0 0.0
  %3236 = vmatpush1.msra.mxu0 0.0
  %3237 = vmatprep.subr.mxu0 0.0
  %3238 = vmatpush1.msra.mxu0 0.0
  %3239 = vmatprep.subr.mxu0 0.0
  %3240 = vmatpush1.msra.mxu0 0.0
  %3241 = vmatprep.subr.mxu0 0.0
  %3242 = vmatpush1.msra.mxu0 0.0
  %3243 = vmatprep.subr.mxu0 0.0
  %3244 = vmatpush1.msra.mxu0 0.0
  %3245 = vmatprep.subr.mxu0 0.0
  %3246 = vmatpush1.msra.mxu0 0.0
  %3247 = vmatprep.subr.mxu0 0.0
  %3248 = vmatpush1.msra.mxu0 0.0
  %3249 = vmatprep.subr.mxu0 0.0
  %3250 = vmatpush1.msra.mxu0 0.0
  %3251 = vmatprep.subr.mxu0 0.0
  %3252 = vmatpush1.msra.mxu0 0.0
  %3253 = vmatprep.subr.mxu0 0.0
  %3254 = vmatpush1.msra.mxu0 0.0
  %3255 = vmatprep.subr.mxu0 0.0
  %3256 = vmatpush1.msra.mxu0 0.0
  %3257 = vmatprep.subr.mxu0 0.0
  %3258 = vmatpush1.msra.mxu0 0.0
  %3259 = vmatprep.mubr.f32.mxu0 0.0
  %3260 = vmatmul.mubr.f32.gmra.mrb[0].mxu0 %v3190
  %v3261 = vpop.f32.mrb[0].mxu0
  %v3262 = vadd.f32 %v3187, %v3261
  %v3263 = vpop.f32.mrb[0].mxu0
  %3264 = vmatprep.mubr.f32.mxu0 0.0
  %3265 = vmatmul.mubr.f32.gmra.mrb[0].mxu0 %v3193
  %v3266 = vpop.f32.mrb[0].mxu0
  %v3267 = vadd.f32 %v3187, %v3266
  %v3268 = vpop.f32.mrb[0].mxu0
  %3269 = vdwg.mxu0
  %v3270 = vmax.f32 %v3262, 0.0
  %v3271 = vmax.f32 %v3267, 0.0
  %v3272 = vld [vmem:[%s14] sm:$0xff]
  %v3273 = vld [vmem:[%s14 + $0x8] sm:$0xff]
  %v3274 = vld [vmem:[%s14 + $0x10] sm:$0xff]
  %v3275 = vld [vmem:[%s14 + $0x18] sm:$0xff]
  %v3276 = vld [vmem:[%s14 + $0x20] sm:$0xff]
  %v3277 = vld [vmem:[%s14 + $0x28] sm:$0xff]
  %v3278 = vld [vmem:[%s14 + $0x30] sm:$0xff]
  %v3279 = vld [vmem:[%s14 + $0x38] sm:$0xff]
  %v3280 = vld [vmem:[%s14 + $0x40] sm:$0xff]
  %v3281 = vld [vmem:[%s14 + $0x48] sm:$0xff]
  %v3282 = vld [vmem:[%s14 + $0x50] sm:$0xff]
  %v3283 = vld [vmem:[%s14 + $0x58] sm:$0xff]
  %v3284 = vld [vmem:[%s14 + $0x60] sm:$0xff]
  %v3285 = vld [vmem:[%s14 + $0x68] sm:$0xff]
  %v3286 = vld [vmem:[%s14 + $0x70] sm:$0xff]
  %v3287 = vld [vmem:[%s14 + $0x78] sm:$0xff]
  %v3288 = vld [vmem:[%s15] sm:$0x1]
  %v3290 = vlaneseq
  %v3291 = vshrl.u32 %v3290, 7
  %v3292 = vsub.s32 0, %v3291
  %v3293 = vrot.slane %v3288, %v3292
  %3295 = vmatprep.subr.mxu0 0.0
  %3296 = vmatpush1.msra.mxu0 %v3272
  %3297 = vmatprep.subr.mxu0 0.0
  %3298 = vmatpush1.msra.mxu0 %v3273
  %3299 = vmatprep.subr.mxu0 0.0
  %3300 = vmatpush1.msra.mxu0 %v3274
  %3301 = vmatprep.subr.mxu0 0.0
  %3302 = vmatpush1.msra.mxu0 %v3275
  %3303 = vmatprep.subr.mxu0 0.0
  %3304 = vmatpush1.msra.mxu0 %v3276
  %3305 = vmatprep.subr.mxu0 0.0
  %3306 = vmatpush1.msra.mxu0 %v3277
  %3307 = vmatprep.subr.mxu0 0.0
  %3308 = vmatpush1.msra.mxu0 %v3278
  %3309 = vmatprep.subr.mxu0 0.0
  %3310 = vmatpush1.msra.mxu0 %v3279
  %3311 = vmatprep.subr.mxu0 0.0
  %3312 = vmatpush1.msra.mxu0 %v3280
  %3313 = vmatprep.subr.mxu0 0.0
  %3314 = vmatpush1.msra.mxu0 %v3281
  %3315 = vmatprep.subr.mxu0 0.0
  %3316 = vmatpush1.msra.mxu0 %v3282
  %3317 = vmatprep.subr.mxu0 0.0
  %3318 = vmatpush1.msra.mxu0 %v3283
  %3319 = vmatprep.subr.mxu0 0.0
  %3320 = vmatpush1.msra.mxu0 %v3284
  %3321 = vmatprep.subr.mxu0 0.0
  %3322 = vmatpush1.msra.mxu0 %v3285
  %3323 = vmatprep.subr.mxu0 0.0
  %3324 = vmatpush1.msra.mxu0 %v3286
  %3325 = vmatprep.subr.mxu0 0.0
  %3326 = vmatpush1.msra.mxu0 %v3287
  %3327 = vmatprep.subr.mxu0 0.0
  %3328 = vmatpush1.msra.mxu0 0.0
  %3329 = vmatprep.subr.mxu0 0.0
  %3330 = vmatpush1.msra.mxu0 0.0
  %3331 = vmatprep.subr.mxu0 0.0
  %3332 = vmatpush1.msra.mxu0 0.0
  %3333 = vmatprep.subr.mxu0 0.0
  %3334 = vmatpush1.msra.mxu0 0.0
  %3335 = vmatprep.subr.mxu0 0.0
  %3336 = vmatpush1.msra.mxu0 0.0
  %3337 = vmatprep.subr.mxu0 0.0
  %3338 = vmatpush1.msra.mxu0 0.0
  %3339 = vmatprep.subr.mxu0 0.0
  %3340 = vmatpush1.msra.mxu0 0.0
  %3341 = vmatprep.subr.mxu0 0.0
  %3342 = vmatpush1.msra.mxu0 0.0
  %3343 = vmatprep.subr.mxu0 0.0
  %3344 = vmatpush1.msra.mxu0 0.0
  %3345 = vmatprep.subr.mxu0 0.0
  %3346 = vmatpush1.msra.mxu0 0.0
  %3347 = vmatprep.subr.mxu0 0.0
  %3348 = vmatpush1.msra.mxu0 0.0
  %3349 = vmatprep.subr.mxu0 0.0
  %3350 = vmatpush1.msra.mxu0 0.0
  %3351 = vmatprep.subr.mxu0 0.0
  %3352 = vmatpush1.msra.mxu0 0.0
  %3353 = vmatprep.subr.mxu0 0.0
  %3354 = vmatpush1.msra.mxu0 0.0
  %3355 = vmatprep.subr.mxu0 0.0
  %3356 = vmatpush1.msra.mxu0 0.0
  %3357 = vmatprep.subr.mxu0 0.0
  %3358 = vmatpush1.msra.mxu0 0.0
  %3359 = vmatprep.mubr.f32.mxu0 0.0
  %3360 = vmatmul.mubr.f32.gmra.mrb[0].mxu0 %v3270
  %v3361 = vpop.f32.mrb[0].mxu0
  %v3362 = vadd.f32 %v3293, %v3361
  %v3363 = vpop.f32.mrb[0].mxu0
  %3364 = vmatprep.mubr.f32.mxu0 0.0
  %3365 = vmatmul.mubr.f32.gmra.mrb[0].mxu0 %v3271
  %v3366 = vpop.f32.mrb[0].mxu0
  %v3367 = vadd.f32 %v3293, %v3366
  %v3368 = vpop.f32.mrb[0].mxu0
  %3369 = vdwg.mxu0
  %v3370 = vadd.f32 %v3176, %v3362
  %v3371 = vadd.f32 %v3177, %v3367
  %v3372 = vld [vmem:[%s16] sm:$0x1]
  %v3373 = vld [vmem:[%s17] sm:$0x1]
  %v3374 = vsel %vm186, %v3370, 0.0
  %3375 = vadd.xlane.f32.xlu0 %v3374
  %v3376 = vpop.xlane.xlu0 %3375
  %v3377 = vsel %vm186, %v3371, 0.0
  %3378 = vadd.xlane.f32.xlu0 %v3377
  %v3379 = vpop.xlane.xlu0 %3378
  %v3380 = vmul.f32 %v3376, %v193
  %v3381 = vmul.f32 %v3379, %v193
  %v3382 = vsub.f32 %v3370, %v3380
  %v3383 = vsub.f32 %v3371, %v3381
  %v3384 = vmul.f32 %v3382, %v3382
  %v3385 = vmul.f32 %v3383, %v3383
  %v3386 = vsel %vm186, %v3384, 0.0
  %3387 = vadd.xlane.f32.xlu0 %v3386
  %v3388 = vpop.xlane.xlu0 %3387
  %v3389 = vsel %vm186, %v3385, 0.0
  %3390 = vadd.xlane.f32.xlu0 %v3389
  %v3391 = vpop.xlane.xlu0 %3390
  %v3392 = vmul.f32 %v3388, %v193
  %v3393 = vmul.f32 %v3391, %v193
  %v3394 = vadd.f32 %v3392, 1e-05
  %v3395 = vadd.f32 %v3393, 1e-05
  %v3396 = vrsqrt.pop %v3394
  %v3397 = vrsqrt.pop %v3395
  %v3398 = vmul.f32 %v3382, %v3396
  %v3399 = vmul.f32 %v3383, %v3397
  %v3401 = vlaneseq
  %v3402 = vshrl.u32 %v3401, 7
  %v3403 = vsub.s32 0, %v3402
  %v3404 = vrot.slane %v3372, %v3403
  %v3406 = vmul.f32 %v3398, %v3404
  %v3407 = vmul.f32 %v3399, %v3404
  %v3409 = vlaneseq
  %v3410 = vshrl.u32 %v3409, 7
  %v3411 = vsub.s32 0, %v3410
  %v3412 = vrot.slane %v3373, %v3411
  %v3414 = vadd.f32 %v3406, %v3412
  %v3415 = vadd.f32 %v3407, %v3412
  %s3416 = scalar_lea.vmem %s6, 32
  %v3417 = vld [vmem:[%s3416] sm:$0xff]
  %v3418 = vld [vmem:[%s3416 + $0x8] sm:$0xff]
  %v3419 = vld [vmem:[%s3416 + $0x10] sm:$0xff]
  %v3420 = vld [vmem:[%s3416 + $0x18] sm:$0xff]
  %s3421 = scalar_lea.vmem %s7, 1
  %v3422 = vld [vmem:[%s3421] sm:$0x1]
  %v3424 = vlaneseq
  %v3425 = vshrl.u32 %v3424, 7
  %v3426 = vsub.s32 0, %v3425
  %v3427 = vrot.slane %v3422, %v3426
  %v3430 = vsel %vm186, %v3414, 0
  %v3433 = vsel %vm186, %v3415, 0
  %3435 = vmatprep.subr.mxu0 0.0
  %3436 = vmatpush1.msra.mxu0 %v3417
  %3437 = vmatprep.subr.mxu0 0.0
  %3438 = vmatpush1.msra.mxu0 %v3418
  %3439 = vmatprep.subr.mxu0 0.0
  %3440 = vmatpush1.msra.mxu0 %v3419
  %3441 = vmatprep.subr.mxu0 0.0
  %3442 = vmatpush1.msra.mxu0 %v3420
  %3443 = vmatprep.subr.mxu0 0.0
  %3444 = vmatpush1.msra.mxu0 0.0
  %3445 = vmatprep.subr.mxu0 0.0
  %3446 = vmatpush1.msra.mxu0 0.0
  %3447 = vmatprep.subr.mxu0 0.0
  %3448 = vmatpush1.msra.mxu0 0.0
  %3449 = vmatprep.subr.mxu0 0.0
  %3450 = vmatpush1.msra.mxu0 0.0
  %3451 = vmatprep.subr.mxu0 0.0
  %3452 = vmatpush1.msra.mxu0 0.0
  %3453 = vmatprep.subr.mxu0 0.0
  %3454 = vmatpush1.msra.mxu0 0.0
  %3455 = vmatprep.subr.mxu0 0.0
  %3456 = vmatpush1.msra.mxu0 0.0
  %3457 = vmatprep.subr.mxu0 0.0
  %3458 = vmatpush1.msra.mxu0 0.0
  %3459 = vmatprep.subr.mxu0 0.0
  %3460 = vmatpush1.msra.mxu0 0.0
  %3461 = vmatprep.subr.mxu0 0.0
  %3462 = vmatpush1.msra.mxu0 0.0
  %3463 = vmatprep.subr.mxu0 0.0
  %3464 = vmatpush1.msra.mxu0 0.0
  %3465 = vmatprep.subr.mxu0 0.0
  %3466 = vmatpush1.msra.mxu0 0.0
  %3467 = vmatprep.subr.mxu0 0.0
  %3468 = vmatpush1.msra.mxu0 0.0
  %3469 = vmatprep.subr.mxu0 0.0
  %3470 = vmatpush1.msra.mxu0 0.0
  %3471 = vmatprep.subr.mxu0 0.0
  %3472 = vmatpush1.msra.mxu0 0.0
  %3473 = vmatprep.subr.mxu0 0.0
  %3474 = vmatpush1.msra.mxu0 0.0
  %3475 = vmatprep.subr.mxu0 0.0
  %3476 = vmatpush1.msra.mxu0 0.0
  %3477 = vmatprep.subr.mxu0 0.0
  %3478 = vmatpush1.msra.mxu0 0.0
  %3479 = vmatprep.subr.mxu0 0.0
  %3480 = vmatpush1.msra.mxu0 0.0
  %3481 = vmatprep.subr.mxu0 0.0
  %3482 = vmatpush1.msra.mxu0 0.0
  %3483 = vmatprep.subr.mxu0 0.0
  %3484 = vmatpush1.msra.mxu0 0.0
  %3485 = vmatprep.subr.mxu0 0.0
  %3486 = vmatpush1.msra.mxu0 0.0
  %3487 = vmatprep.subr.mxu0 0.0
  %3488 = vmatpush1.msra.mxu0 0.0
  %3489 = vmatprep.subr.mxu0 0.0
  %3490 = vmatpush1.msra.mxu0 0.0
  %3491 = vmatprep.subr.mxu0 0.0
  %3492 = vmatpush1.msra.mxu0 0.0
  %3493 = vmatprep.subr.mxu0 0.0
  %3494 = vmatpush1.msra.mxu0 0.0
  %3495 = vmatprep.subr.mxu0 0.0
  %3496 = vmatpush1.msra.mxu0 0.0
  %3497 = vmatprep.subr.mxu0 0.0
  %3498 = vmatpush1.msra.mxu0 0.0
  %3499 = vmatprep.mubr.f32.mxu0 0.0
  %3500 = vmatmul.mubr.f32.gmra.mrb[0].mxu0 %v3430
  %v3501 = vpop.f32.mrb[0].mxu0
  %v3502 = vadd.f32 %v3427, %v3501
  %v3503 = vpop.f32.mrb[0].mxu0
  %3504 = vmatprep.mubr.f32.mxu0 0.0
  %3505 = vmatmul.mubr.f32.gmra.mrb[0].mxu0 %v3433
  %v3506 = vpop.f32.mrb[0].mxu0
  %v3507 = vadd.f32 %v3427, %v3506
  %v3508 = vpop.f32.mrb[0].mxu0
  %3509 = vdwg.mxu0
  %v3510 = vmul.f32 %v3502, 0.5
  %v3511 = vmul.f32 %v3507, 0.5
  %3513 = vrot.lane.b32.xlu0 %v3502, 96
  %v3514 = vpop.permute.xlu0 %3513
  %v3516 = vsel %vm327, %v3510, 0
  %v3518 = vsel %vm327, %v3514, 0
  %3520 = vmatprep.subr.mxu0 0.0
  %3521 = vmatpush1.xpose.msra.mxu0 %v3518
  %3522 = vmatprep.subr.mxu0 0.0
  %3523 = vmatpush1.xpose.msra.mxu0 0.0
  %3524 = vmatprep.subr.mxu0 0.0
  %3525 = vmatpush1.xpose.msra.mxu0 0.0
  %3526 = vmatprep.subr.mxu0 0.0
  %3527 = vmatpush1.xpose.msra.mxu0 0.0
  %3528 = vmatprep.subr.mxu0 0.0
  %3529 = vmatpush1.xpose.msra.mxu0 0.0
  %3530 = vmatprep.subr.mxu0 0.0
  %3531 = vmatpush1.xpose.msra.mxu0 0.0
  %3532 = vmatprep.subr.mxu0 0.0
  %3533 = vmatpush1.xpose.msra.mxu0 0.0
  %3534 = vmatprep.subr.mxu0 0.0
  %3535 = vmatpush1.xpose.msra.mxu0 0.0
  %3536 = vmatprep.subr.mxu0 0.0
  %3537 = vmatpush1.xpose.msra.mxu0 0.0
  %3538 = vmatprep.subr.mxu0 0.0
  %3539 = vmatpush1.xpose.msra.mxu0 0.0
  %3540 = vmatprep.subr.mxu0 0.0
  %3541 = vmatpush1.xpose.msra.mxu0 0.0
  %3542 = vmatprep.subr.mxu0 0.0
  %3543 = vmatpush1.xpose.msra.mxu0 0.0
  %3544 = vmatprep.subr.mxu0 0.0
  %3545 = vmatpush1.xpose.msra.mxu0 0.0
  %3546 = vmatprep.subr.mxu0 0.0
  %3547 = vmatpush1.xpose.msra.mxu0 0.0
  %3548 = vmatprep.subr.mxu0 0.0
  %3549 = vmatpush1.xpose.msra.mxu0 0.0
  %3550 = vmatprep.subr.mxu0 0.0
  %3551 = vmatpush1.xpose.msra.mxu0 0.0
  %3552 = vmatprep.subr.mxu0 0.0
  %3553 = vmatpush1.xpose.msra.mxu0 0.0
  %3554 = vmatprep.subr.mxu0 0.0
  %3555 = vmatpush1.xpose.msra.mxu0 0.0
  %3556 = vmatprep.subr.mxu0 0.0
  %3557 = vmatpush1.xpose.msra.mxu0 0.0
  %3558 = vmatprep.subr.mxu0 0.0
  %3559 = vmatpush1.xpose.msra.mxu0 0.0
  %3560 = vmatprep.subr.mxu0 0.0
  %3561 = vmatpush1.xpose.msra.mxu0 0.0
  %3562 = vmatprep.subr.mxu0 0.0
  %3563 = vmatpush1.xpose.msra.mxu0 0.0
  %3564 = vmatprep.subr.mxu0 0.0
  %3565 = vmatpush1.xpose.msra.mxu0 0.0
  %3566 = vmatprep.subr.mxu0 0.0
  %3567 = vmatpush1.xpose.msra.mxu0 0.0
  %3568 = vmatprep.subr.mxu0 0.0
  %3569 = vmatpush1.xpose.msra.mxu0 0.0
  %3570 = vmatprep.subr.mxu0 0.0
  %3571 = vmatpush1.xpose.msra.mxu0 0.0
  %3572 = vmatprep.subr.mxu0 0.0
  %3573 = vmatpush1.xpose.msra.mxu0 0.0
  %3574 = vmatprep.subr.mxu0 0.0
  %3575 = vmatpush1.xpose.msra.mxu0 0.0
  %3576 = vmatprep.subr.mxu0 0.0
  %3577 = vmatpush1.xpose.msra.mxu0 0.0
  %3578 = vmatprep.subr.mxu0 0.0
  %3579 = vmatpush1.xpose.msra.mxu0 0.0
  %3580 = vmatprep.subr.mxu0 0.0
  %3581 = vmatpush1.xpose.msra.mxu0 0.0
  %3582 = vmatprep.subr.mxu0 0.0
  %3583 = vmatpush1.xpose.msra.mxu0 0.0
  %3584 = vmatprep.mubr.f32.mxu0 0.0
  %3585 = vmatmul.mubr.f32.gmra.mrb[0].mxu0 %v3516
  %v3586 = vpop.f32.mrb[0].mxu0
  %v3587 = vadd.f32 0.0, %v3586
  %v3588 = vpop.f32.mrb[0].mxu0
  %3589 = vdwg.mxu0
  %3591 = vrot.lane.b32.xlu0 %v3507, 96
  %v3592 = vpop.permute.xlu0 %3591
  %v3594 = vsel %vm327, %v3511, 0
  %v3596 = vsel %vm327, %v3592, 0
  %3598 = vmatprep.subr.mxu0 0.0
  %3599 = vmatpush1.xpose.msra.mxu0 %v3596
  %3600 = vmatprep.subr.mxu0 0.0
  %3601 = vmatpush1.xpose.msra.mxu0 0.0
  %3602 = vmatprep.subr.mxu0 0.0
  %3603 = vmatpush1.xpose.msra.mxu0 0.0
  %3604 = vmatprep.subr.mxu0 0.0
  %3605 = vmatpush1.xpose.msra.mxu0 0.0
  %3606 = vmatprep.subr.mxu0 0.0
  %3607 = vmatpush1.xpose.msra.mxu0 0.0
  %3608 = vmatprep.subr.mxu0 0.0
  %3609 = vmatpush1.xpose.msra.mxu0 0.0
  %3610 = vmatprep.subr.mxu0 0.0
  %3611 = vmatpush1.xpose.msra.mxu0 0.0
  %3612 = vmatprep.subr.mxu0 0.0
  %3613 = vmatpush1.xpose.msra.mxu0 0.0
  %3614 = vmatprep.subr.mxu0 0.0
  %3615 = vmatpush1.xpose.msra.mxu0 0.0
  %3616 = vmatprep.subr.mxu0 0.0
  %3617 = vmatpush1.xpose.msra.mxu0 0.0
  %3618 = vmatprep.subr.mxu0 0.0
  %3619 = vmatpush1.xpose.msra.mxu0 0.0
  %3620 = vmatprep.subr.mxu0 0.0
  %3621 = vmatpush1.xpose.msra.mxu0 0.0
  %3622 = vmatprep.subr.mxu0 0.0
  %3623 = vmatpush1.xpose.msra.mxu0 0.0
  %3624 = vmatprep.subr.mxu0 0.0
  %3625 = vmatpush1.xpose.msra.mxu0 0.0
  %3626 = vmatprep.subr.mxu0 0.0
  %3627 = vmatpush1.xpose.msra.mxu0 0.0
  %3628 = vmatprep.subr.mxu0 0.0
  %3629 = vmatpush1.xpose.msra.mxu0 0.0
  %3630 = vmatprep.subr.mxu0 0.0
  %3631 = vmatpush1.xpose.msra.mxu0 0.0
  %3632 = vmatprep.subr.mxu0 0.0
  %3633 = vmatpush1.xpose.msra.mxu0 0.0
  %3634 = vmatprep.subr.mxu0 0.0
  %3635 = vmatpush1.xpose.msra.mxu0 0.0
  %3636 = vmatprep.subr.mxu0 0.0
  %3637 = vmatpush1.xpose.msra.mxu0 0.0
  %3638 = vmatprep.subr.mxu0 0.0
  %3639 = vmatpush1.xpose.msra.mxu0 0.0
  %3640 = vmatprep.subr.mxu0 0.0
  %3641 = vmatpush1.xpose.msra.mxu0 0.0
  %3642 = vmatprep.subr.mxu0 0.0
  %3643 = vmatpush1.xpose.msra.mxu0 0.0
  %3644 = vmatprep.subr.mxu0 0.0
  %3645 = vmatpush1.xpose.msra.mxu0 0.0
  %3646 = vmatprep.subr.mxu0 0.0
  %3647 = vmatpush1.xpose.msra.mxu0 0.0
  %3648 = vmatprep.subr.mxu0 0.0
  %3649 = vmatpush1.xpose.msra.mxu0 0.0
  %3650 = vmatprep.subr.mxu0 0.0
  %3651 = vmatpush1.xpose.msra.mxu0 0.0
  %3652 = vmatprep.subr.mxu0 0.0
  %3653 = vmatpush1.xpose.msra.mxu0 0.0
  %3654 = vmatprep.subr.mxu0 0.0
  %3655 = vmatpush1.xpose.msra.mxu0 0.0
  %3656 = vmatprep.subr.mxu0 0.0
  %3657 = vmatpush1.xpose.msra.mxu0 0.0
  %3658 = vmatprep.subr.mxu0 0.0
  %3659 = vmatpush1.xpose.msra.mxu0 0.0
  %3660 = vmatprep.subr.mxu0 0.0
  %3661 = vmatpush1.xpose.msra.mxu0 0.0
  %3662 = vmatprep.mubr.f32.mxu0 0.0
  %3663 = vmatmul.mubr.f32.gmra.mrb[0].mxu0 %v3594
  %v3664 = vpop.f32.mrb[0].mxu0
  %v3665 = vadd.f32 0.0, %v3664
  %v3666 = vpop.f32.mrb[0].mxu0
  %3667 = vdwg.mxu0
  %v3668 = vsel %vm481, %v3587, -inf
  %3669 = vmax.xlane.f32.xlu0 %v3668
  %v3670 = vpop.xlane.xlu0 %3669
  %v3671 = vsel %vm481, %v3665, -inf
  %3672 = vmax.xlane.f32.xlu0 %v3671
  %v3673 = vpop.xlane.xlu0 %3672
  %v3674 = vsub.f32 %v3587, %v3670
  %v3675 = vsub.f32 %v3665, %v3673
  %v3676 = vmul.f32 %v3674, 1.442695
  %v3677 = vpow.pop %v3676
  %v3678 = vmul.f32 %v3675, 1.442695
  %v3679 = vpow.pop %v3678
  %v3680 = vsel %vm481, %v3677, 0.0
  %3681 = vadd.xlane.f32.xlu0 %v3680
  %v3682 = vpop.xlane.xlu0 %3681
  %v3683 = vsel %vm481, %v3679, 0.0
  %3684 = vadd.xlane.f32.xlu0 %v3683
  %v3685 = vpop.xlane.xlu0 %3684
  %v3686 = vrcp.pop %v3682
  %v3687 = vrcp.pop %v3685
  %v3688 = vmul.f32 %v3677, %v3686
  %v3689 = vmul.f32 %v3679, %v3687
  %3690 = vrot.lane.b32.xlu0 %v3502, 64
  %v3691 = vpop.permute.xlu0 %3690
  %v3694 = vsel %vm481, %v3688, 0
  %3696 = vmatprep.subr.mxu0 0.0
  %3697 = vmatpush1.msra.mxu0 %v3691
  %3698 = vmatprep.subr.mxu0 0.0
  %3699 = vmatpush1.msra.mxu0 0.0
  %3700 = vmatprep.subr.mxu0 0.0
  %3701 = vmatpush1.msra.mxu0 0.0
  %3702 = vmatprep.subr.mxu0 0.0
  %3703 = vmatpush1.msra.mxu0 0.0
  %3704 = vmatprep.subr.mxu0 0.0
  %3705 = vmatpush1.msra.mxu0 0.0
  %3706 = vmatprep.subr.mxu0 0.0
  %3707 = vmatpush1.msra.mxu0 0.0
  %3708 = vmatprep.subr.mxu0 0.0
  %3709 = vmatpush1.msra.mxu0 0.0
  %3710 = vmatprep.subr.mxu0 0.0
  %3711 = vmatpush1.msra.mxu0 0.0
  %3712 = vmatprep.subr.mxu0 0.0
  %3713 = vmatpush1.msra.mxu0 0.0
  %3714 = vmatprep.subr.mxu0 0.0
  %3715 = vmatpush1.msra.mxu0 0.0
  %3716 = vmatprep.subr.mxu0 0.0
  %3717 = vmatpush1.msra.mxu0 0.0
  %3718 = vmatprep.subr.mxu0 0.0
  %3719 = vmatpush1.msra.mxu0 0.0
  %3720 = vmatprep.subr.mxu0 0.0
  %3721 = vmatpush1.msra.mxu0 0.0
  %3722 = vmatprep.subr.mxu0 0.0
  %3723 = vmatpush1.msra.mxu0 0.0
  %3724 = vmatprep.subr.mxu0 0.0
  %3725 = vmatpush1.msra.mxu0 0.0
  %3726 = vmatprep.subr.mxu0 0.0
  %3727 = vmatpush1.msra.mxu0 0.0
  %3728 = vmatprep.subr.mxu0 0.0
  %3729 = vmatpush1.msra.mxu0 0.0
  %3730 = vmatprep.subr.mxu0 0.0
  %3731 = vmatpush1.msra.mxu0 0.0
  %3732 = vmatprep.subr.mxu0 0.0
  %3733 = vmatpush1.msra.mxu0 0.0
  %3734 = vmatprep.subr.mxu0 0.0
  %3735 = vmatpush1.msra.mxu0 0.0
  %3736 = vmatprep.subr.mxu0 0.0
  %3737 = vmatpush1.msra.mxu0 0.0
  %3738 = vmatprep.subr.mxu0 0.0
  %3739 = vmatpush1.msra.mxu0 0.0
  %3740 = vmatprep.subr.mxu0 0.0
  %3741 = vmatpush1.msra.mxu0 0.0
  %3742 = vmatprep.subr.mxu0 0.0
  %3743 = vmatpush1.msra.mxu0 0.0
  %3744 = vmatprep.subr.mxu0 0.0
  %3745 = vmatpush1.msra.mxu0 0.0
  %3746 = vmatprep.subr.mxu0 0.0
  %3747 = vmatpush1.msra.mxu0 0.0
  %3748 = vmatprep.subr.mxu0 0.0
  %3749 = vmatpush1.msra.mxu0 0.0
  %3750 = vmatprep.subr.mxu0 0.0
  %3751 = vmatpush1.msra.mxu0 0.0
  %3752 = vmatprep.subr.mxu0 0.0
  %3753 = vmatpush1.msra.mxu0 0.0
  %3754 = vmatprep.subr.mxu0 0.0
  %3755 = vmatpush1.msra.mxu0 0.0
  %3756 = vmatprep.subr.mxu0 0.0
  %3757 = vmatpush1.msra.mxu0 0.0
  %3758 = vmatprep.subr.mxu0 0.0
  %3759 = vmatpush1.msra.mxu0 0.0
  %3760 = vmatprep.mubr.f32.mxu0 0.0
  %3761 = vmatmul.mubr.f32.gmra.mrb[0].mxu0 %v3694
  %v3762 = vpop.f32.mrb[0].mxu0
  %v3763 = vadd.f32 0.0, %v3762
  %v3764 = vpop.f32.mrb[0].mxu0
  %3765 = vdwg.mxu0
  %3766 = vrot.lane.b32.xlu0 %v3507, 64
  %v3767 = vpop.permute.xlu0 %3766
  %v3770 = vsel %vm481, %v3689, 0
  %3772 = vmatprep.subr.mxu0 0.0
  %3773 = vmatpush1.msra.mxu0 %v3767
  %3774 = vmatprep.subr.mxu0 0.0
  %3775 = vmatpush1.msra.mxu0 0.0
  %3776 = vmatprep.subr.mxu0 0.0
  %3777 = vmatpush1.msra.mxu0 0.0
  %3778 = vmatprep.subr.mxu0 0.0
  %3779 = vmatpush1.msra.mxu0 0.0
  %3780 = vmatprep.subr.mxu0 0.0
  %3781 = vmatpush1.msra.mxu0 0.0
  %3782 = vmatprep.subr.mxu0 0.0
  %3783 = vmatpush1.msra.mxu0 0.0
  %3784 = vmatprep.subr.mxu0 0.0
  %3785 = vmatpush1.msra.mxu0 0.0
  %3786 = vmatprep.subr.mxu0 0.0
  %3787 = vmatpush1.msra.mxu0 0.0
  %3788 = vmatprep.subr.mxu0 0.0
  %3789 = vmatpush1.msra.mxu0 0.0
  %3790 = vmatprep.subr.mxu0 0.0
  %3791 = vmatpush1.msra.mxu0 0.0
  %3792 = vmatprep.subr.mxu0 0.0
  %3793 = vmatpush1.msra.mxu0 0.0
  %3794 = vmatprep.subr.mxu0 0.0
  %3795 = vmatpush1.msra.mxu0 0.0
  %3796 = vmatprep.subr.mxu0 0.0
  %3797 = vmatpush1.msra.mxu0 0.0
  %3798 = vmatprep.subr.mxu0 0.0
  %3799 = vmatpush1.msra.mxu0 0.0
  %3800 = vmatprep.subr.mxu0 0.0
  %3801 = vmatpush1.msra.mxu0 0.0
  %3802 = vmatprep.subr.mxu0 0.0
  %3803 = vmatpush1.msra.mxu0 0.0
  %3804 = vmatprep.subr.mxu0 0.0
  %3805 = vmatpush1.msra.mxu0 0.0
  %3806 = vmatprep.subr.mxu0 0.0
  %3807 = vmatpush1.msra.mxu0 0.0
  %3808 = vmatprep.subr.mxu0 0.0
  %3809 = vmatpush1.msra.mxu0 0.0
  %3810 = vmatprep.subr.mxu0 0.0
  %3811 = vmatpush1.msra.mxu0 0.0
  %3812 = vmatprep.subr.mxu0 0.0
  %3813 = vmatpush1.msra.mxu0 0.0
  %3814 = vmatprep.subr.mxu0 0.0
  %3815 = vmatpush1.msra.mxu0 0.0
  %3816 = vmatprep.subr.mxu0 0.0
  %3817 = vmatpush1.msra.mxu0 0.0
  %3818 = vmatprep.subr.mxu0 0.0
  %3819 = vmatpush1.msra.mxu0 0.0
  %3820 = vmatprep.subr.mxu0 0.0
  %3821 = vmatpush1.msra.mxu0 0.0
  %3822 = vmatprep.subr.mxu0 0.0
  %3823 = vmatpush1.msra.mxu0 0.0
  %3824 = vmatprep.subr.mxu0 0.0
  %3825 = vmatpush1.msra.mxu0 0.0
  %3826 = vmatprep.subr.mxu0 0.0
  %3827 = vmatpush1.msra.mxu0 0.0
  %3828 = vmatprep.subr.mxu0 0.0
  %3829 = vmatpush1.msra.mxu0 0.0
  %3830 = vmatprep.subr.mxu0 0.0
  %3831 = vmatpush1.msra.mxu0 0.0
  %3832 = vmatprep.subr.mxu0 0.0
  %3833 = vmatpush1.msra.mxu0 0.0
  %3834 = vmatprep.subr.mxu0 0.0
  %3835 = vmatpush1.msra.mxu0 0.0
  %3836 = vmatprep.mubr.f32.mxu0 0.0
  %3837 = vmatmul.mubr.f32.gmra.mrb[0].mxu0 %v3770
  %v3838 = vpop.f32.mrb[0].mxu0
  %v3839 = vadd.f32 0.0, %v3838
  %v3840 = vpop.f32.mrb[0].mxu0
  %3841 = vdwg.mxu0
  %3842 = vrot.lane.b32.xlu0 %v3510, 124
  %v3843 = vpop.permute.xlu0 %3842
  %3844 = vrot.lane.b32.xlu0 %v3502, 92
  %v3845 = vpop.permute.xlu0 %3844
  %v3846 = vsel %vm327, %v3843, 0
  %v3848 = vsel %vm327, %v3845, 0
  %3850 = vmatprep.subr.mxu0 0.0
  %3851 = vmatpush1.xpose.msra.mxu0 %v3848
  %3852 = vmatprep.subr.mxu0 0.0
  %3853 = vmatpush1.xpose.msra.mxu0 0.0
  %3854 = vmatprep.subr.mxu0 0.0
  %3855 = vmatpush1.xpose.msra.mxu0 0.0
  %3856 = vmatprep.subr.mxu0 0.0
  %3857 = vmatpush1.xpose.msra.mxu0 0.0
  %3858 = vmatprep.subr.mxu0 0.0
  %3859 = vmatpush1.xpose.msra.mxu0 0.0
  %3860 = vmatprep.subr.mxu0 0.0
  %3861 = vmatpush1.xpose.msra.mxu0 0.0
  %3862 = vmatprep.subr.mxu0 0.0
  %3863 = vmatpush1.xpose.msra.mxu0 0.0
  %3864 = vmatprep.subr.mxu0 0.0
  %3865 = vmatpush1.xpose.msra.mxu0 0.0
  %3866 = vmatprep.subr.mxu0 0.0
  %3867 = vmatpush1.xpose.msra.mxu0 0.0
  %3868 = vmatprep.subr.mxu0 0.0
  %3869 = vmatpush1.xpose.msra.mxu0 0.0
  %3870 = vmatprep.subr.mxu0 0.0
  %3871 = vmatpush1.xpose.msra.mxu0 0.0
  %3872 = vmatprep.subr.mxu0 0.0
  %3873 = vmatpush1.xpose.msra.mxu0 0.0
  %3874 = vmatprep.subr.mxu0 0.0
  %3875 = vmatpush1.xpose.msra.mxu0 0.0
  %3876 = vmatprep.subr.mxu0 0.0
  %3877 = vmatpush1.xpose.msra.mxu0 0.0
  %3878 = vmatprep.subr.mxu0 0.0
  %3879 = vmatpush1.xpose.msra.mxu0 0.0
  %3880 = vmatprep.subr.mxu0 0.0
  %3881 = vmatpush1.xpose.msra.mxu0 0.0
  %3882 = vmatprep.subr.mxu0 0.0
  %3883 = vmatpush1.xpose.msra.mxu0 0.0
  %3884 = vmatprep.subr.mxu0 0.0
  %3885 = vmatpush1.xpose.msra.mxu0 0.0
  %3886 = vmatprep.subr.mxu0 0.0
  %3887 = vmatpush1.xpose.msra.mxu0 0.0
  %3888 = vmatprep.subr.mxu0 0.0
  %3889 = vmatpush1.xpose.msra.mxu0 0.0
  %3890 = vmatprep.subr.mxu0 0.0
  %3891 = vmatpush1.xpose.msra.mxu0 0.0
  %3892 = vmatprep.subr.mxu0 0.0
  %3893 = vmatpush1.xpose.msra.mxu0 0.0
  %3894 = vmatprep.subr.mxu0 0.0
  %3895 = vmatpush1.xpose.msra.mxu0 0.0
  %3896 = vmatprep.subr.mxu0 0.0
  %3897 = vmatpush1.xpose.msra.mxu0 0.0
  %3898 = vmatprep.subr.mxu0 0.0
  %3899 = vmatpush1.xpose.msra.mxu0 0.0
  %3900 = vmatprep.subr.mxu0 0.0
  %3901 = vmatpush1.xpose.msra.mxu0 0.0
  %3902 = vmatprep.subr.mxu0 0.0
  %3903 = vmatpush1.xpose.msra.mxu0 0.0
  %3904 = vmatprep.subr.mxu0 0.0
  %3905 = vmatpush1.xpose.msra.mxu0 0.0
  %3906 = vmatprep.subr.mxu0 0.0
  %3907 = vmatpush1.xpose.msra.mxu0 0.0
  %3908 = vmatprep.subr.mxu0 0.0
  %3909 = vmatpush1.xpose.msra.mxu0 0.0
  %3910 = vmatprep.subr.mxu0 0.0
  %3911 = vmatpush1.xpose.msra.mxu0 0.0
  %3912 = vmatprep.subr.mxu0 0.0
  %3913 = vmatpush1.xpose.msra.mxu0 0.0
  %3914 = vmatprep.mubr.f32.mxu0 0.0
  %3915 = vmatmul.mubr.f32.gmra.mrb[0].mxu0 %v3846
  %v3916 = vpop.f32.mrb[0].mxu0
  %v3917 = vadd.f32 0.0, %v3916
  %v3918 = vpop.f32.mrb[0].mxu0
  %3919 = vdwg.mxu0
  %3920 = vrot.lane.b32.xlu0 %v3511, 124
  %v3921 = vpop.permute.xlu0 %3920
  %3922 = vrot.lane.b32.xlu0 %v3507, 92
  %v3923 = vpop.permute.xlu0 %3922
  %v3924 = vsel %vm327, %v3921, 0
  %v3926 = vsel %vm327, %v3923, 0
  %3928 = vmatprep.subr.mxu0 0.0
  %3929 = vmatpush1.xpose.msra.mxu0 %v3926
  %3930 = vmatprep.subr.mxu0 0.0
  %3931 = vmatpush1.xpose.msra.mxu0 0.0
  %3932 = vmatprep.subr.mxu0 0.0
  %3933 = vmatpush1.xpose.msra.mxu0 0.0
  %3934 = vmatprep.subr.mxu0 0.0
  %3935 = vmatpush1.xpose.msra.mxu0 0.0
  %3936 = vmatprep.subr.mxu0 0.0
  %3937 = vmatpush1.xpose.msra.mxu0 0.0
  %3938 = vmatprep.subr.mxu0 0.0
  %3939 = vmatpush1.xpose.msra.mxu0 0.0
  %3940 = vmatprep.subr.mxu0 0.0
  %3941 = vmatpush1.xpose.msra.mxu0 0.0
  %3942 = vmatprep.subr.mxu0 0.0
  %3943 = vmatpush1.xpose.msra.mxu0 0.0
  %3944 = vmatprep.subr.mxu0 0.0
  %3945 = vmatpush1.xpose.msra.mxu0 0.0
  %3946 = vmatprep.subr.mxu0 0.0
  %3947 = vmatpush1.xpose.msra.mxu0 0.0
  %3948 = vmatprep.subr.mxu0 0.0
  %3949 = vmatpush1.xpose.msra.mxu0 0.0
  %3950 = vmatprep.subr.mxu0 0.0
  %3951 = vmatpush1.xpose.msra.mxu0 0.0
  %3952 = vmatprep.subr.mxu0 0.0
  %3953 = vmatpush1.xpose.msra.mxu0 0.0
  %3954 = vmatprep.subr.mxu0 0.0
  %3955 = vmatpush1.xpose.msra.mxu0 0.0
  %3956 = vmatprep.subr.mxu0 0.0
  %3957 = vmatpush1.xpose.msra.mxu0 0.0
  %3958 = vmatprep.subr.mxu0 0.0
  %3959 = vmatpush1.xpose.msra.mxu0 0.0
  %3960 = vmatprep.subr.mxu0 0.0
  %3961 = vmatpush1.xpose.msra.mxu0 0.0
  %3962 = vmatprep.subr.mxu0 0.0
  %3963 = vmatpush1.xpose.msra.mxu0 0.0
  %3964 = vmatprep.subr.mxu0 0.0
  %3965 = vmatpush1.xpose.msra.mxu0 0.0
  %3966 = vmatprep.subr.mxu0 0.0
  %3967 = vmatpush1.xpose.msra.mxu0 0.0
  %3968 = vmatprep.subr.mxu0 0.0
  %3969 = vmatpush1.xpose.msra.mxu0 0.0
  %3970 = vmatprep.subr.mxu0 0.0
  %3971 = vmatpush1.xpose.msra.mxu0 0.0
  %3972 = vmatprep.subr.mxu0 0.0
  %3973 = vmatpush1.xpose.msra.mxu0 0.0
  %3974 = vmatprep.subr.mxu0 0.0
  %3975 = vmatpush1.xpose.msra.mxu0 0.0
  %3976 = vmatprep.subr.mxu0 0.0
  %3977 = vmatpush1.xpose.msra.mxu0 0.0
  %3978 = vmatprep.subr.mxu0 0.0
  %3979 = vmatpush1.xpose.msra.mxu0 0.0
  %3980 = vmatprep.subr.mxu0 0.0
  %3981 = vmatpush1.xpose.msra.mxu0 0.0
  %3982 = vmatprep.subr.mxu0 0.0
  %3983 = vmatpush1.xpose.msra.mxu0 0.0
  %3984 = vmatprep.subr.mxu0 0.0
  %3985 = vmatpush1.xpose.msra.mxu0 0.0
  %3986 = vmatprep.subr.mxu0 0.0
  %3987 = vmatpush1.xpose.msra.mxu0 0.0
  %3988 = vmatprep.subr.mxu0 0.0
  %3989 = vmatpush1.xpose.msra.mxu0 0.0
  %3990 = vmatprep.subr.mxu0 0.0
  %3991 = vmatpush1.xpose.msra.mxu0 0.0
  %3992 = vmatprep.mubr.f32.mxu0 0.0
  %3993 = vmatmul.mubr.f32.gmra.mrb[0].mxu0 %v3924
  %v3994 = vpop.f32.mrb[0].mxu0
  %v3995 = vadd.f32 0.0, %v3994
  %v3996 = vpop.f32.mrb[0].mxu0
  %3997 = vdwg.mxu0
  %v3998 = vsel %vm481, %v3917, -inf
  %3999 = vmax.xlane.f32.xlu0 %v3998
  %v4000 = vpop.xlane.xlu0 %3999
  %v4001 = vsel %vm481, %v3995, -inf
  %4002 = vmax.xlane.f32.xlu0 %v4001
  %v4003 = vpop.xlane.xlu0 %4002
  %v4004 = vsub.f32 %v3917, %v4000
  %v4005 = vsub.f32 %v3995, %v4003
  %v4006 = vmul.f32 %v4004, 1.442695
  %v4007 = vpow.pop %v4006
  %v4008 = vmul.f32 %v4005, 1.442695
  %v4009 = vpow.pop %v4008
  %v4010 = vsel %vm481, %v4007, 0.0
  %4011 = vadd.xlane.f32.xlu0 %v4010
  %v4012 = vpop.xlane.xlu0 %4011
  %v4013 = vsel %vm481, %v4009, 0.0
  %4014 = vadd.xlane.f32.xlu0 %v4013
  %v4015 = vpop.xlane.xlu0 %4014
  %v4016 = vrcp.pop %v4012
  %v4017 = vrcp.pop %v4015
  %v4018 = vmul.f32 %v4007, %v4016
  %v4019 = vmul.f32 %v4009, %v4017
  %4020 = vrot.lane.b32.xlu0 %v3502, 60
  %v4021 = vpop.permute.xlu0 %4020
  %v4024 = vsel %vm481, %v4018, 0
  %4026 = vmatprep.subr.mxu0 0.0
  %4027 = vmatpush1.msra.mxu0 %v4021
  %4028 = vmatprep.subr.mxu0 0.0
  %4029 = vmatpush1.msra.mxu0 0.0
  %4030 = vmatprep.subr.mxu0 0.0
  %4031 = vmatpush1.msra.mxu0 0.0
  %4032 = vmatprep.subr.mxu0 0.0
  %4033 = vmatpush1.msra.mxu0 0.0
  %4034 = vmatprep.subr.mxu0 0.0
  %4035 = vmatpush1.msra.mxu0 0.0
  %4036 = vmatprep.subr.mxu0 0.0
  %4037 = vmatpush1.msra.mxu0 0.0
  %4038 = vmatprep.subr.mxu0 0.0
  %4039 = vmatpush1.msra.mxu0 0.0
  %4040 = vmatprep.subr.mxu0 0.0
  %4041 = vmatpush1.msra.mxu0 0.0
  %4042 = vmatprep.subr.mxu0 0.0
  %4043 = vmatpush1.msra.mxu0 0.0
  %4044 = vmatprep.subr.mxu0 0.0
  %4045 = vmatpush1.msra.mxu0 0.0
  %4046 = vmatprep.subr.mxu0 0.0
  %4047 = vmatpush1.msra.mxu0 0.0
  %4048 = vmatprep.subr.mxu0 0.0
  %4049 = vmatpush1.msra.mxu0 0.0
  %4050 = vmatprep.subr.mxu0 0.0
  %4051 = vmatpush1.msra.mxu0 0.0
  %4052 = vmatprep.subr.mxu0 0.0
  %4053 = vmatpush1.msra.mxu0 0.0
  %4054 = vmatprep.subr.mxu0 0.0
  %4055 = vmatpush1.msra.mxu0 0.0
  %4056 = vmatprep.subr.mxu0 0.0
  %4057 = vmatpush1.msra.mxu0 0.0
  %4058 = vmatprep.subr.mxu0 0.0
  %4059 = vmatpush1.msra.mxu0 0.0
  %4060 = vmatprep.subr.mxu0 0.0
  %4061 = vmatpush1.msra.mxu0 0.0
  %4062 = vmatprep.subr.mxu0 0.0
  %4063 = vmatpush1.msra.mxu0 0.0
  %4064 = vmatprep.subr.mxu0 0.0
  %4065 = vmatpush1.msra.mxu0 0.0
  %4066 = vmatprep.subr.mxu0 0.0
  %4067 = vmatpush1.msra.mxu0 0.0
  %4068 = vmatprep.subr.mxu0 0.0
  %4069 = vmatpush1.msra.mxu0 0.0
  %4070 = vmatprep.subr.mxu0 0.0
  %4071 = vmatpush1.msra.mxu0 0.0
  %4072 = vmatprep.subr.mxu0 0.0
  %4073 = vmatpush1.msra.mxu0 0.0
  %4074 = vmatprep.subr.mxu0 0.0
  %4075 = vmatpush1.msra.mxu0 0.0
  %4076 = vmatprep.subr.mxu0 0.0
  %4077 = vmatpush1.msra.mxu0 0.0
  %4078 = vmatprep.subr.mxu0 0.0
  %4079 = vmatpush1.msra.mxu0 0.0
  %4080 = vmatprep.subr.mxu0 0.0
  %4081 = vmatpush1.msra.mxu0 0.0
  %4082 = vmatprep.subr.mxu0 0.0
  %4083 = vmatpush1.msra.mxu0 0.0
  %4084 = vmatprep.subr.mxu0 0.0
  %4085 = vmatpush1.msra.mxu0 0.0
  %4086 = vmatprep.subr.mxu0 0.0
  %4087 = vmatpush1.msra.mxu0 0.0
  %4088 = vmatprep.subr.mxu0 0.0
  %4089 = vmatpush1.msra.mxu0 0.0
  %4090 = vmatprep.mubr.f32.mxu0 0.0
  %4091 = vmatmul.mubr.f32.gmra.mrb[0].mxu0 %v4024
  %v4092 = vpop.f32.mrb[0].mxu0
  %v4093 = vadd.f32 0.0, %v4092
  %v4094 = vpop.f32.mrb[0].mxu0
  %4095 = vdwg.mxu0
  %4096 = vrot.lane.b32.xlu0 %v3507, 60
  %v4097 = vpop.permute.xlu0 %4096
  %v4100 = vsel %vm481, %v4019, 0
  %4102 = vmatprep.subr.mxu0 0.0
  %4103 = vmatpush1.msra.mxu0 %v4097
  %4104 = vmatprep.subr.mxu0 0.0
  %4105 = vmatpush1.msra.mxu0 0.0
  %4106 = vmatprep.subr.mxu0 0.0
  %4107 = vmatpush1.msra.mxu0 0.0
  %4108 = vmatprep.subr.mxu0 0.0
  %4109 = vmatpush1.msra.mxu0 0.0
  %4110 = vmatprep.subr.mxu0 0.0
  %4111 = vmatpush1.msra.mxu0 0.0
  %4112 = vmatprep.subr.mxu0 0.0
  %4113 = vmatpush1.msra.mxu0 0.0
  %4114 = vmatprep.subr.mxu0 0.0
  %4115 = vmatpush1.msra.mxu0 0.0
  %4116 = vmatprep.subr.mxu0 0.0
  %4117 = vmatpush1.msra.mxu0 0.0
  %4118 = vmatprep.subr.mxu0 0.0
  %4119 = vmatpush1.msra.mxu0 0.0
  %4120 = vmatprep.subr.mxu0 0.0
  %4121 = vmatpush1.msra.mxu0 0.0
  %4122 = vmatprep.subr.mxu0 0.0
  %4123 = vmatpush1.msra.mxu0 0.0
  %4124 = vmatprep.subr.mxu0 0.0
  %4125 = vmatpush1.msra.mxu0 0.0
  %4126 = vmatprep.subr.mxu0 0.0
  %4127 = vmatpush1.msra.mxu0 0.0
  %4128 = vmatprep.subr.mxu0 0.0
  %4129 = vmatpush1.msra.mxu0 0.0
  %4130 = vmatprep.subr.mxu0 0.0
  %4131 = vmatpush1.msra.mxu0 0.0
  %4132 = vmatprep.subr.mxu0 0.0
  %4133 = vmatpush1.msra.mxu0 0.0
  %4134 = vmatprep.subr.mxu0 0.0
  %4135 = vmatpush1.msra.mxu0 0.0
  %4136 = vmatprep.subr.mxu0 0.0
  %4137 = vmatpush1.msra.mxu0 0.0
  %4138 = vmatprep.subr.mxu0 0.0
  %4139 = vmatpush1.msra.mxu0 0.0
  %4140 = vmatprep.subr.mxu0 0.0
  %4141 = vmatpush1.msra.mxu0 0.0
  %4142 = vmatprep.subr.mxu0 0.0
  %4143 = vmatpush1.msra.mxu0 0.0
  %4144 = vmatprep.subr.mxu0 0.0
  %4145 = vmatpush1.msra.mxu0 0.0
  %4146 = vmatprep.subr.mxu0 0.0
  %4147 = vmatpush1.msra.mxu0 0.0
  %4148 = vmatprep.subr.mxu0 0.0
  %4149 = vmatpush1.msra.mxu0 0.0
  %4150 = vmatprep.subr.mxu0 0.0
  %4151 = vmatpush1.msra.mxu0 0.0
  %4152 = vmatprep.subr.mxu0 0.0
  %4153 = vmatpush1.msra.mxu0 0.0
  %4154 = vmatprep.subr.mxu0 0.0
  %4155 = vmatpush1.msra.mxu0 0.0
  %4156 = vmatprep.subr.mxu0 0.0
  %4157 = vmatpush1.msra.mxu0 0.0
  %4158 = vmatprep.subr.mxu0 0.0
  %4159 = vmatpush1.msra.mxu0 0.0
  %4160 = vmatprep.subr.mxu0 0.0
  %4161 = vmatpush1.msra.mxu0 0.0
  %4162 = vmatprep.subr.mxu0 0.0
  %4163 = vmatpush1.msra.mxu0 0.0
  %4164 = vmatprep.subr.mxu0 0.0
  %4165 = vmatpush1.msra.mxu0 0.0
  %4166 = vmatprep.mubr.f32.mxu0 0.0
  %4167 = vmatmul.mubr.f32.gmra.mrb[0].mxu0 %v4100
  %v4168 = vpop.f32.mrb[0].mxu0
  %v4169 = vadd.f32 0.0, %v4168
  %v4170 = vpop.f32.mrb[0].mxu0
  %4171 = vdwg.mxu0
  %4172 = vrot.lane.b32.xlu0 %v3510, 120
  %v4173 = vpop.permute.xlu0 %4172
  %4174 = vrot.lane.b32.xlu0 %v3502, 88
  %v4175 = vpop.permute.xlu0 %4174
  %v4176 = vsel %vm327, %v4173, 0
  %v4178 = vsel %vm327, %v4175, 0
  %4180 = vmatprep.subr.mxu0 0.0
  %4181 = vmatpush1.xpose.msra.mxu0 %v4178
  %4182 = vmatprep.subr.mxu0 0.0
  %4183 = vmatpush1.xpose.msra.mxu0 0.0
  %4184 = vmatprep.subr.mxu0 0.0
  %4185 = vmatpush1.xpose.msra.mxu0 0.0
  %4186 = vmatprep.subr.mxu0 0.0
  %4187 = vmatpush1.xpose.msra.mxu0 0.0
  %4188 = vmatprep.subr.mxu0 0.0
  %4189 = vmatpush1.xpose.msra.mxu0 0.0
  %4190 = vmatprep.subr.mxu0 0.0
  %4191 = vmatpush1.xpose.msra.mxu0 0.0
  %4192 = vmatprep.subr.mxu0 0.0
  %4193 = vmatpush1.xpose.msra.mxu0 0.0
  %4194 = vmatprep.subr.mxu0 0.0
  %4195 = vmatpush1.xpose.msra.mxu0 0.0
  %4196 = vmatprep.subr.mxu0 0.0
  %4197 = vmatpush1.xpose.msra.mxu0 0.0
  %4198 = vmatprep.subr.mxu0 0.0
  %4199 = vmatpush1.xpose.msra.mxu0 0.0
  %4200 = vmatprep.subr.mxu0 0.0
  %4201 = vmatpush1.xpose.msra.mxu0 0.0
  %4202 = vmatprep.subr.mxu0 0.0
  %4203 = vmatpush1.xpose.msra.mxu0 0.0
  %4204 = vmatprep.subr.mxu0 0.0
  %4205 = vmatpush1.xpose.msra.mxu0 0.0
  %4206 = vmatprep.subr.mxu0 0.0
  %4207 = vmatpush1.xpose.msra.mxu0 0.0
  %4208 = vmatprep.subr.mxu0 0.0
  %4209 = vmatpush1.xpose.msra.mxu0 0.0
  %4210 = vmatprep.subr.mxu0 0.0
  %4211 = vmatpush1.xpose.msra.mxu0 0.0
  %4212 = vmatprep.subr.mxu0 0.0
  %4213 = vmatpush1.xpose.msra.mxu0 0.0
  %4214 = vmatprep.subr.mxu0 0.0
  %4215 = vmatpush1.xpose.msra.mxu0 0.0
  %4216 = vmatprep.subr.mxu0 0.0
  %4217 = vmatpush1.xpose.msra.mxu0 0.0
  %4218 = vmatprep.subr.mxu0 0.0
  %4219 = vmatpush1.xpose.msra.mxu0 0.0
  %4220 = vmatprep.subr.mxu0 0.0
  %4221 = vmatpush1.xpose.msra.mxu0 0.0
  %4222 = vmatprep.subr.mxu0 0.0
  %4223 = vmatpush1.xpose.msra.mxu0 0.0
  %4224 = vmatprep.subr.mxu0 0.0
  %4225 = vmatpush1.xpose.msra.mxu0 0.0
  %4226 = vmatprep.subr.mxu0 0.0
  %4227 = vmatpush1.xpose.msra.mxu0 0.0
  %4228 = vmatprep.subr.mxu0 0.0
  %4229 = vmatpush1.xpose.msra.mxu0 0.0
  %4230 = vmatprep.subr.mxu0 0.0
  %4231 = vmatpush1.xpose.msra.mxu0 0.0
  %4232 = vmatprep.subr.mxu0 0.0
  %4233 = vmatpush1.xpose.msra.mxu0 0.0
  %4234 = vmatprep.subr.mxu0 0.0
  %4235 = vmatpush1.xpose.msra.mxu0 0.0
  %4236 = vmatprep.subr.mxu0 0.0
  %4237 = vmatpush1.xpose.msra.mxu0 0.0
  %4238 = vmatprep.subr.mxu0 0.0
  %4239 = vmatpush1.xpose.msra.mxu0 0.0
  %4240 = vmatprep.subr.mxu0 0.0
  %4241 = vmatpush1.xpose.msra.mxu0 0.0
  %4242 = vmatprep.subr.mxu0 0.0
  %4243 = vmatpush1.xpose.msra.mxu0 0.0
  %4244 = vmatprep.mubr.f32.mxu0 0.0
  %4245 = vmatmul.mubr.f32.gmra.mrb[0].mxu0 %v4176
  %v4246 = vpop.f32.mrb[0].mxu0
  %v4247 = vadd.f32 0.0, %v4246
  %v4248 = vpop.f32.mrb[0].mxu0
  %4249 = vdwg.mxu0
  %4250 = vrot.lane.b32.xlu0 %v3511, 120
  %v4251 = vpop.permute.xlu0 %4250
  %4252 = vrot.lane.b32.xlu0 %v3507, 88
  %v4253 = vpop.permute.xlu0 %4252
  %v4254 = vsel %vm327, %v4251, 0
  %v4256 = vsel %vm327, %v4253, 0
  %4258 = vmatprep.subr.mxu0 0.0
  %4259 = vmatpush1.xpose.msra.mxu0 %v4256
  %4260 = vmatprep.subr.mxu0 0.0
  %4261 = vmatpush1.xpose.msra.mxu0 0.0
  %4262 = vmatprep.subr.mxu0 0.0
  %4263 = vmatpush1.xpose.msra.mxu0 0.0
  %4264 = vmatprep.subr.mxu0 0.0
  %4265 = vmatpush1.xpose.msra.mxu0 0.0
  %4266 = vmatprep.subr.mxu0 0.0
  %4267 = vmatpush1.xpose.msra.mxu0 0.0
  %4268 = vmatprep.subr.mxu0 0.0
  %4269 = vmatpush1.xpose.msra.mxu0 0.0
  %4270 = vmatprep.subr.mxu0 0.0
  %4271 = vmatpush1.xpose.msra.mxu0 0.0
  %4272 = vmatprep.subr.mxu0 0.0
  %4273 = vmatpush1.xpose.msra.mxu0 0.0
  %4274 = vmatprep.subr.mxu0 0.0
  %4275 = vmatpush1.xpose.msra.mxu0 0.0
  %4276 = vmatprep.subr.mxu0 0.0
  %4277 = vmatpush1.xpose.msra.mxu0 0.0
  %4278 = vmatprep.subr.mxu0 0.0
  %4279 = vmatpush1.xpose.msra.mxu0 0.0
  %4280 = vmatprep.subr.mxu0 0.0
  %4281 = vmatpush1.xpose.msra.mxu0 0.0
  %4282 = vmatprep.subr.mxu0 0.0
  %4283 = vmatpush1.xpose.msra.mxu0 0.0
  %4284 = vmatprep.subr.mxu0 0.0
  %4285 = vmatpush1.xpose.msra.mxu0 0.0
  %4286 = vmatprep.subr.mxu0 0.0
  %4287 = vmatpush1.xpose.msra.mxu0 0.0
  %4288 = vmatprep.subr.mxu0 0.0
  %4289 = vmatpush1.xpose.msra.mxu0 0.0
  %4290 = vmatprep.subr.mxu0 0.0
  %4291 = vmatpush1.xpose.msra.mxu0 0.0
  %4292 = vmatprep.subr.mxu0 0.0
  %4293 = vmatpush1.xpose.msra.mxu0 0.0
  %4294 = vmatprep.subr.mxu0 0.0
  %4295 = vmatpush1.xpose.msra.mxu0 0.0
  %4296 = vmatprep.subr.mxu0 0.0
  %4297 = vmatpush1.xpose.msra.mxu0 0.0
  %4298 = vmatprep.subr.mxu0 0.0
  %4299 = vmatpush1.xpose.msra.mxu0 0.0
  %4300 = vmatprep.subr.mxu0 0.0
  %4301 = vmatpush1.xpose.msra.mxu0 0.0
  %4302 = vmatprep.subr.mxu0 0.0
  %4303 = vmatpush1.xpose.msra.mxu0 0.0
  %4304 = vmatprep.subr.mxu0 0.0
  %4305 = vmatpush1.xpose.msra.mxu0 0.0
  %4306 = vmatprep.subr.mxu0 0.0
  %4307 = vmatpush1.xpose.msra.mxu0 0.0
  %4308 = vmatprep.subr.mxu0 0.0
  %4309 = vmatpush1.xpose.msra.mxu0 0.0
  %4310 = vmatprep.subr.mxu0 0.0
  %4311 = vmatpush1.xpose.msra.mxu0 0.0
  %4312 = vmatprep.subr.mxu0 0.0
  %4313 = vmatpush1.xpose.msra.mxu0 0.0
  %4314 = vmatprep.subr.mxu0 0.0
  %4315 = vmatpush1.xpose.msra.mxu0 0.0
  %4316 = vmatprep.subr.mxu0 0.0
  %4317 = vmatpush1.xpose.msra.mxu0 0.0
  %4318 = vmatprep.subr.mxu0 0.0
  %4319 = vmatpush1.xpose.msra.mxu0 0.0
  %4320 = vmatprep.subr.mxu0 0.0
  %4321 = vmatpush1.xpose.msra.mxu0 0.0
  %4322 = vmatprep.mubr.f32.mxu0 0.0
  %4323 = vmatmul.mubr.f32.gmra.mrb[0].mxu0 %v4254
  %v4324 = vpop.f32.mrb[0].mxu0
  %v4325 = vadd.f32 0.0, %v4324
  %v4326 = vpop.f32.mrb[0].mxu0
  %4327 = vdwg.mxu0
  %v4328 = vsel %vm481, %v4247, -inf
  %4329 = vmax.xlane.f32.xlu0 %v4328
  %v4330 = vpop.xlane.xlu0 %4329
  %v4331 = vsel %vm481, %v4325, -inf
  %4332 = vmax.xlane.f32.xlu0 %v4331
  %v4333 = vpop.xlane.xlu0 %4332
  %v4334 = vsub.f32 %v4247, %v4330
  %v4335 = vsub.f32 %v4325, %v4333
  %v4336 = vmul.f32 %v4334, 1.442695
  %v4337 = vpow.pop %v4336
  %v4338 = vmul.f32 %v4335, 1.442695
  %v4339 = vpow.pop %v4338
  %v4340 = vsel %vm481, %v4337, 0.0
  %4341 = vadd.xlane.f32.xlu0 %v4340
  %v4342 = vpop.xlane.xlu0 %4341
  %v4343 = vsel %vm481, %v4339, 0.0
  %4344 = vadd.xlane.f32.xlu0 %v4343
  %v4345 = vpop.xlane.xlu0 %4344
  %v4346 = vrcp.pop %v4342
  %v4347 = vrcp.pop %v4345
  %v4348 = vmul.f32 %v4337, %v4346
  %v4349 = vmul.f32 %v4339, %v4347
  %4350 = vrot.lane.b32.xlu0 %v3502, 56
  %v4351 = vpop.permute.xlu0 %4350
  %v4354 = vsel %vm481, %v4348, 0
  %4356 = vmatprep.subr.mxu0 0.0
  %4357 = vmatpush1.msra.mxu0 %v4351
  %4358 = vmatprep.subr.mxu0 0.0
  %4359 = vmatpush1.msra.mxu0 0.0
  %4360 = vmatprep.subr.mxu0 0.0
  %4361 = vmatpush1.msra.mxu0 0.0
  %4362 = vmatprep.subr.mxu0 0.0
  %4363 = vmatpush1.msra.mxu0 0.0
  %4364 = vmatprep.subr.mxu0 0.0
  %4365 = vmatpush1.msra.mxu0 0.0
  %4366 = vmatprep.subr.mxu0 0.0
  %4367 = vmatpush1.msra.mxu0 0.0
  %4368 = vmatprep.subr.mxu0 0.0
  %4369 = vmatpush1.msra.mxu0 0.0
  %4370 = vmatprep.subr.mxu0 0.0
  %4371 = vmatpush1.msra.mxu0 0.0
  %4372 = vmatprep.subr.mxu0 0.0
  %4373 = vmatpush1.msra.mxu0 0.0
  %4374 = vmatprep.subr.mxu0 0.0
  %4375 = vmatpush1.msra.mxu0 0.0
  %4376 = vmatprep.subr.mxu0 0.0
  %4377 = vmatpush1.msra.mxu0 0.0
  %4378 = vmatprep.subr.mxu0 0.0
  %4379 = vmatpush1.msra.mxu0 0.0
  %4380 = vmatprep.subr.mxu0 0.0
  %4381 = vmatpush1.msra.mxu0 0.0
  %4382 = vmatprep.subr.mxu0 0.0
  %4383 = vmatpush1.msra.mxu0 0.0
  %4384 = vmatprep.subr.mxu0 0.0
  %4385 = vmatpush1.msra.mxu0 0.0
  %4386 = vmatprep.subr.mxu0 0.0
  %4387 = vmatpush1.msra.mxu0 0.0
  %4388 = vmatprep.subr.mxu0 0.0
  %4389 = vmatpush1.msra.mxu0 0.0
  %4390 = vmatprep.subr.mxu0 0.0
  %4391 = vmatpush1.msra.mxu0 0.0
  %4392 = vmatprep.subr.mxu0 0.0
  %4393 = vmatpush1.msra.mxu0 0.0
  %4394 = vmatprep.subr.mxu0 0.0
  %4395 = vmatpush1.msra.mxu0 0.0
  %4396 = vmatprep.subr.mxu0 0.0
  %4397 = vmatpush1.msra.mxu0 0.0
  %4398 = vmatprep.subr.mxu0 0.0
  %4399 = vmatpush1.msra.mxu0 0.0
  %4400 = vmatprep.subr.mxu0 0.0
  %4401 = vmatpush1.msra.mxu0 0.0
  %4402 = vmatprep.subr.mxu0 0.0
  %4403 = vmatpush1.msra.mxu0 0.0
  %4404 = vmatprep.subr.mxu0 0.0
  %4405 = vmatpush1.msra.mxu0 0.0
  %4406 = vmatprep.subr.mxu0 0.0
  %4407 = vmatpush1.msra.mxu0 0.0
  %4408 = vmatprep.subr.mxu0 0.0
  %4409 = vmatpush1.msra.mxu0 0.0
  %4410 = vmatprep.subr.mxu0 0.0
  %4411 = vmatpush1.msra.mxu0 0.0
  %4412 = vmatprep.subr.mxu0 0.0
  %4413 = vmatpush1.msra.mxu0 0.0
  %4414 = vmatprep.subr.mxu0 0.0
  %4415 = vmatpush1.msra.mxu0 0.0
  %4416 = vmatprep.subr.mxu0 0.0
  %4417 = vmatpush1.msra.mxu0 0.0
  %4418 = vmatprep.subr.mxu0 0.0
  %4419 = vmatpush1.msra.mxu0 0.0
  %4420 = vmatprep.mubr.f32.mxu0 0.0
  %4421 = vmatmul.mubr.f32.gmra.mrb[0].mxu0 %v4354
  %v4422 = vpop.f32.mrb[0].mxu0
  %v4423 = vadd.f32 0.0, %v4422
  %v4424 = vpop.f32.mrb[0].mxu0
  %4425 = vdwg.mxu0
  %4426 = vrot.lane.b32.xlu0 %v3507, 56
  %v4427 = vpop.permute.xlu0 %4426
  %v4430 = vsel %vm481, %v4349, 0
  %4432 = vmatprep.subr.mxu0 0.0
  %4433 = vmatpush1.msra.mxu0 %v4427
  %4434 = vmatprep.subr.mxu0 0.0
  %4435 = vmatpush1.msra.mxu0 0.0
  %4436 = vmatprep.subr.mxu0 0.0
  %4437 = vmatpush1.msra.mxu0 0.0
  %4438 = vmatprep.subr.mxu0 0.0
  %4439 = vmatpush1.msra.mxu0 0.0
  %4440 = vmatprep.subr.mxu0 0.0
  %4441 = vmatpush1.msra.mxu0 0.0
  %4442 = vmatprep.subr.mxu0 0.0
  %4443 = vmatpush1.msra.mxu0 0.0
  %4444 = vmatprep.subr.mxu0 0.0
  %4445 = vmatpush1.msra.mxu0 0.0
  %4446 = vmatprep.subr.mxu0 0.0
  %4447 = vmatpush1.msra.mxu0 0.0
  %4448 = vmatprep.subr.mxu0 0.0
  %4449 = vmatpush1.msra.mxu0 0.0
  %4450 = vmatprep.subr.mxu0 0.0
  %4451 = vmatpush1.msra.mxu0 0.0
  %4452 = vmatprep.subr.mxu0 0.0
  %4453 = vmatpush1.msra.mxu0 0.0
  %4454 = vmatprep.subr.mxu0 0.0
  %4455 = vmatpush1.msra.mxu0 0.0
  %4456 = vmatprep.subr.mxu0 0.0
  %4457 = vmatpush1.msra.mxu0 0.0
  %4458 = vmatprep.subr.mxu0 0.0
  %4459 = vmatpush1.msra.mxu0 0.0
  %4460 = vmatprep.subr.mxu0 0.0
  %4461 = vmatpush1.msra.mxu0 0.0
  %4462 = vmatprep.subr.mxu0 0.0
  %4463 = vmatpush1.msra.mxu0 0.0
  %4464 = vmatprep.subr.mxu0 0.0
  %4465 = vmatpush1.msra.mxu0 0.0
  %4466 = vmatprep.subr.mxu0 0.0
  %4467 = vmatpush1.msra.mxu0 0.0
  %4468 = vmatprep.subr.mxu0 0.0
  %4469 = vmatpush1.msra.mxu0 0.0
  %4470 = vmatprep.subr.mxu0 0.0
  %4471 = vmatpush1.msra.mxu0 0.0
  %4472 = vmatprep.subr.mxu0 0.0
  %4473 = vmatpush1.msra.mxu0 0.0
  %4474 = vmatprep.subr.mxu0 0.0
  %4475 = vmatpush1.msra.mxu0 0.0
  %4476 = vmatprep.subr.mxu0 0.0
  %4477 = vmatpush1.msra.mxu0 0.0
  %4478 = vmatprep.subr.mxu0 0.0
  %4479 = vmatpush1.msra.mxu0 0.0
  %4480 = vmatprep.subr.mxu0 0.0
  %4481 = vmatpush1.msra.mxu0 0.0
  %4482 = vmatprep.subr.mxu0 0.0
  %4483 = vmatpush1.msra.mxu0 0.0
  %4484 = vmatprep.subr.mxu0 0.0
  %4485 = vmatpush1.msra.mxu0 0.0
  %4486 = vmatprep.subr.mxu0 0.0
  %4487 = vmatpush1.msra.mxu0 0.0
  %4488 = vmatprep.subr.mxu0 0.0
  %4489 = vmatpush1.msra.mxu0 0.0
  %4490 = vmatprep.subr.mxu0 0.0
  %4491 = vmatpush1.msra.mxu0 0.0
  %4492 = vmatprep.subr.mxu0 0.0
  %4493 = vmatpush1.msra.mxu0 0.0
  %4494 = vmatprep.subr.mxu0 0.0
  %4495 = vmatpush1.msra.mxu0 0.0
  %4496 = vmatprep.mubr.f32.mxu0 0.0
  %4497 = vmatmul.mubr.f32.gmra.mrb[0].mxu0 %v4430
  %v4498 = vpop.f32.mrb[0].mxu0
  %v4499 = vadd.f32 0.0, %v4498
  %v4500 = vpop.f32.mrb[0].mxu0
  %4501 = vdwg.mxu0
  %4502 = vrot.lane.b32.xlu0 %v3510, 116
  %v4503 = vpop.permute.xlu0 %4502
  %4504 = vrot.lane.b32.xlu0 %v3502, 84
  %v4505 = vpop.permute.xlu0 %4504
  %v4506 = vsel %vm327, %v4503, 0
  %v4508 = vsel %vm327, %v4505, 0
  %4510 = vmatprep.subr.mxu0 0.0
  %4511 = vmatpush1.xpose.msra.mxu0 %v4508
  %4512 = vmatprep.subr.mxu0 0.0
  %4513 = vmatpush1.xpose.msra.mxu0 0.0
  %4514 = vmatprep.subr.mxu0 0.0
  %4515 = vmatpush1.xpose.msra.mxu0 0.0
  %4516 = vmatprep.subr.mxu0 0.0
  %4517 = vmatpush1.xpose.msra.mxu0 0.0
  %4518 = vmatprep.subr.mxu0 0.0
  %4519 = vmatpush1.xpose.msra.mxu0 0.0
  %4520 = vmatprep.subr.mxu0 0.0
  %4521 = vmatpush1.xpose.msra.mxu0 0.0
  %4522 = vmatprep.subr.mxu0 0.0
  %4523 = vmatpush1.xpose.msra.mxu0 0.0
  %4524 = vmatprep.subr.mxu0 0.0
  %4525 = vmatpush1.xpose.msra.mxu0 0.0
  %4526 = vmatprep.subr.mxu0 0.0
  %4527 = vmatpush1.xpose.msra.mxu0 0.0
  %4528 = vmatprep.subr.mxu0 0.0
  %4529 = vmatpush1.xpose.msra.mxu0 0.0
  %4530 = vmatprep.subr.mxu0 0.0
  %4531 = vmatpush1.xpose.msra.mxu0 0.0
  %4532 = vmatprep.subr.mxu0 0.0
  %4533 = vmatpush1.xpose.msra.mxu0 0.0
  %4534 = vmatprep.subr.mxu0 0.0
  %4535 = vmatpush1.xpose.msra.mxu0 0.0
  %4536 = vmatprep.subr.mxu0 0.0
  %4537 = vmatpush1.xpose.msra.mxu0 0.0
  %4538 = vmatprep.subr.mxu0 0.0
  %4539 = vmatpush1.xpose.msra.mxu0 0.0
  %4540 = vmatprep.subr.mxu0 0.0
  %4541 = vmatpush1.xpose.msra.mxu0 0.0
  %4542 = vmatprep.subr.mxu0 0.0
  %4543 = vmatpush1.xpose.msra.mxu0 0.0
  %4544 = vmatprep.subr.mxu0 0.0
  %4545 = vmatpush1.xpose.msra.mxu0 0.0
  %4546 = vmatprep.subr.mxu0 0.0
  %4547 = vmatpush1.xpose.msra.mxu0 0.0
  %4548 = vmatprep.subr.mxu0 0.0
  %4549 = vmatpush1.xpose.msra.mxu0 0.0
  %4550 = vmatprep.subr.mxu0 0.0
  %4551 = vmatpush1.xpose.msra.mxu0 0.0
  %4552 = vmatprep.subr.mxu0 0.0
  %4553 = vmatpush1.xpose.msra.mxu0 0.0
  %4554 = vmatprep.subr.mxu0 0.0
  %4555 = vmatpush1.xpose.msra.mxu0 0.0
  %4556 = vmatprep.subr.mxu0 0.0
  %4557 = vmatpush1.xpose.msra.mxu0 0.0
  %4558 = vmatprep.subr.mxu0 0.0
  %4559 = vmatpush1.xpose.msra.mxu0 0.0
  %4560 = vmatprep.subr.mxu0 0.0
  %4561 = vmatpush1.xpose.msra.mxu0 0.0
  %4562 = vmatprep.subr.mxu0 0.0
  %4563 = vmatpush1.xpose.msra.mxu0 0.0
  %4564 = vmatprep.subr.mxu0 0.0
  %4565 = vmatpush1.xpose.msra.mxu0 0.0
  %4566 = vmatprep.subr.mxu0 0.0
  %4567 = vmatpush1.xpose.msra.mxu0 0.0
  %4568 = vmatprep.subr.mxu0 0.0
  %4569 = vmatpush1.xpose.msra.mxu0 0.0
  %4570 = vmatprep.subr.mxu0 0.0
  %4571 = vmatpush1.xpose.msra.mxu0 0.0
  %4572 = vmatprep.subr.mxu0 0.0
  %4573 = vmatpush1.xpose.msra.mxu0 0.0
  %4574 = vmatprep.mubr.f32.mxu0 0.0
  %4575 = vmatmul.mubr.f32.gmra.mrb[0].mxu0 %v4506
  %v4576 = vpop.f32.mrb[0].mxu0
  %v4577 = vadd.f32 0.0, %v4576
  %v4578 = vpop.f32.mrb[0].mxu0
  %4579 = vdwg.mxu0
  %4580 = vrot.lane.b32.xlu0 %v3511, 116
  %v4581 = vpop.permute.xlu0 %4580
  %4582 = vrot.lane.b32.xlu0 %v3507, 84
  %v4583 = vpop.permute.xlu0 %4582
  %v4584 = vsel %vm327, %v4581, 0
  %v4586 = vsel %vm327, %v4583, 0
  %4588 = vmatprep.subr.mxu0 0.0
  %4589 = vmatpush1.xpose.msra.mxu0 %v4586
  %4590 = vmatprep.subr.mxu0 0.0
  %4591 = vmatpush1.xpose.msra.mxu0 0.0
  %4592 = vmatprep.subr.mxu0 0.0
  %4593 = vmatpush1.xpose.msra.mxu0 0.0
  %4594 = vmatprep.subr.mxu0 0.0
  %4595 = vmatpush1.xpose.msra.mxu0 0.0
  %4596 = vmatprep.subr.mxu0 0.0
  %4597 = vmatpush1.xpose.msra.mxu0 0.0
  %4598 = vmatprep.subr.mxu0 0.0
  %4599 = vmatpush1.xpose.msra.mxu0 0.0
  %4600 = vmatprep.subr.mxu0 0.0
  %4601 = vmatpush1.xpose.msra.mxu0 0.0
  %4602 = vmatprep.subr.mxu0 0.0
  %4603 = vmatpush1.xpose.msra.mxu0 0.0
  %4604 = vmatprep.subr.mxu0 0.0
  %4605 = vmatpush1.xpose.msra.mxu0 0.0
  %4606 = vmatprep.subr.mxu0 0.0
  %4607 = vmatpush1.xpose.msra.mxu0 0.0
  %4608 = vmatprep.subr.mxu0 0.0
  %4609 = vmatpush1.xpose.msra.mxu0 0.0
  %4610 = vmatprep.subr.mxu0 0.0
  %4611 = vmatpush1.xpose.msra.mxu0 0.0
  %4612 = vmatprep.subr.mxu0 0.0
  %4613 = vmatpush1.xpose.msra.mxu0 0.0
  %4614 = vmatprep.subr.mxu0 0.0
  %4615 = vmatpush1.xpose.msra.mxu0 0.0
  %4616 = vmatprep.subr.mxu0 0.0
  %4617 = vmatpush1.xpose.msra.mxu0 0.0
  %4618 = vmatprep.subr.mxu0 0.0
  %4619 = vmatpush1.xpose.msra.mxu0 0.0
  %4620 = vmatprep.subr.mxu0 0.0
  %4621 = vmatpush1.xpose.msra.mxu0 0.0
  %4622 = vmatprep.subr.mxu0 0.0
  %4623 = vmatpush1.xpose.msra.mxu0 0.0
  %4624 = vmatprep.subr.mxu0 0.0
  %4625 = vmatpush1.xpose.msra.mxu0 0.0
  %4626 = vmatprep.subr.mxu0 0.0
  %4627 = vmatpush1.xpose.msra.mxu0 0.0
  %4628 = vmatprep.subr.mxu0 0.0
  %4629 = vmatpush1.xpose.msra.mxu0 0.0
  %4630 = vmatprep.subr.mxu0 0.0
  %4631 = vmatpush1.xpose.msra.mxu0 0.0
  %4632 = vmatprep.subr.mxu0 0.0
  %4633 = vmatpush1.xpose.msra.mxu0 0.0
  %4634 = vmatprep.subr.mxu0 0.0
  %4635 = vmatpush1.xpose.msra.mxu0 0.0
  %4636 = vmatprep.subr.mxu0 0.0
  %4637 = vmatpush1.xpose.msra.mxu0 0.0
  %4638 = vmatprep.subr.mxu0 0.0
  %4639 = vmatpush1.xpose.msra.mxu0 0.0
  %4640 = vmatprep.subr.mxu0 0.0
  %4641 = vmatpush1.xpose.msra.mxu0 0.0
  %4642 = vmatprep.subr.mxu0 0.0
  %4643 = vmatpush1.xpose.msra.mxu0 0.0
  %4644 = vmatprep.subr.mxu0 0.0
  %4645 = vmatpush1.xpose.msra.mxu0 0.0
  %4646 = vmatprep.subr.mxu0 0.0
  %4647 = vmatpush1.xpose.msra.mxu0 0.0
  %4648 = vmatprep.subr.mxu0 0.0
  %4649 = vmatpush1.xpose.msra.mxu0 0.0
  %4650 = vmatprep.subr.mxu0 0.0
  %4651 = vmatpush1.xpose.msra.mxu0 0.0
  %4652 = vmatprep.mubr.f32.mxu0 0.0
  %4653 = vmatmul.mubr.f32.gmra.mrb[0].mxu0 %v4584
  %v4654 = vpop.f32.mrb[0].mxu0
  %v4655 = vadd.f32 0.0, %v4654
  %v4656 = vpop.f32.mrb[0].mxu0
  %4657 = vdwg.mxu0
  %v4658 = vsel %vm481, %v4577, -inf
  %4659 = vmax.xlane.f32.xlu0 %v4658
  %v4660 = vpop.xlane.xlu0 %4659
  %v4661 = vsel %vm481, %v4655, -inf
  %4662 = vmax.xlane.f32.xlu0 %v4661
  %v4663 = vpop.xlane.xlu0 %4662
  %v4664 = vsub.f32 %v4577, %v4660
  %v4665 = vsub.f32 %v4655, %v4663
  %v4666 = vmul.f32 %v4664, 1.442695
  %v4667 = vpow.pop %v4666
  %v4668 = vmul.f32 %v4665, 1.442695
  %v4669 = vpow.pop %v4668
  %v4670 = vsel %vm481, %v4667, 0.0
  %4671 = vadd.xlane.f32.xlu0 %v4670
  %v4672 = vpop.xlane.xlu0 %4671
  %v4673 = vsel %vm481, %v4669, 0.0
  %4674 = vadd.xlane.f32.xlu0 %v4673
  %v4675 = vpop.xlane.xlu0 %4674
  %v4676 = vrcp.pop %v4672
  %v4677 = vrcp.pop %v4675
  %v4678 = vmul.f32 %v4667, %v4676
  %v4679 = vmul.f32 %v4669, %v4677
  %4680 = vrot.lane.b32.xlu0 %v3502, 52
  %v4681 = vpop.permute.xlu0 %4680
  %v4684 = vsel %vm481, %v4678, 0
  %4686 = vmatprep.subr.mxu0 0.0
  %4687 = vmatpush1.msra.mxu0 %v4681
  %4688 = vmatprep.subr.mxu0 0.0
  %4689 = vmatpush1.msra.mxu0 0.0
  %4690 = vmatprep.subr.mxu0 0.0
  %4691 = vmatpush1.msra.mxu0 0.0
  %4692 = vmatprep.subr.mxu0 0.0
  %4693 = vmatpush1.msra.mxu0 0.0
  %4694 = vmatprep.subr.mxu0 0.0
  %4695 = vmatpush1.msra.mxu0 0.0
  %4696 = vmatprep.subr.mxu0 0.0
  %4697 = vmatpush1.msra.mxu0 0.0
  %4698 = vmatprep.subr.mxu0 0.0
  %4699 = vmatpush1.msra.mxu0 0.0
  %4700 = vmatprep.subr.mxu0 0.0
  %4701 = vmatpush1.msra.mxu0 0.0
  %4702 = vmatprep.subr.mxu0 0.0
  %4703 = vmatpush1.msra.mxu0 0.0
  %4704 = vmatprep.subr.mxu0 0.0
  %4705 = vmatpush1.msra.mxu0 0.0
  %4706 = vmatprep.subr.mxu0 0.0
  %4707 = vmatpush1.msra.mxu0 0.0
  %4708 = vmatprep.subr.mxu0 0.0
  %4709 = vmatpush1.msra.mxu0 0.0
  %4710 = vmatprep.subr.mxu0 0.0
  %4711 = vmatpush1.msra.mxu0 0.0
  %4712 = vmatprep.subr.mxu0 0.0
  %4713 = vmatpush1.msra.mxu0 0.0
  %4714 = vmatprep.subr.mxu0 0.0
  %4715 = vmatpush1.msra.mxu0 0.0
  %4716 = vmatprep.subr.mxu0 0.0
  %4717 = vmatpush1.msra.mxu0 0.0
  %4718 = vmatprep.subr.mxu0 0.0
  %4719 = vmatpush1.msra.mxu0 0.0
  %4720 = vmatprep.subr.mxu0 0.0
  %4721 = vmatpush1.msra.mxu0 0.0
  %4722 = vmatprep.subr.mxu0 0.0
  %4723 = vmatpush1.msra.mxu0 0.0
  %4724 = vmatprep.subr.mxu0 0.0
  %4725 = vmatpush1.msra.mxu0 0.0
  %4726 = vmatprep.subr.mxu0 0.0
  %4727 = vmatpush1.msra.mxu0 0.0
  %4728 = vmatprep.subr.mxu0 0.0
  %4729 = vmatpush1.msra.mxu0 0.0
  %4730 = vmatprep.subr.mxu0 0.0
  %4731 = vmatpush1.msra.mxu0 0.0
  %4732 = vmatprep.subr.mxu0 0.0
  %4733 = vmatpush1.msra.mxu0 0.0
  %4734 = vmatprep.subr.mxu0 0.0
  %4735 = vmatpush1.msra.mxu0 0.0
  %4736 = vmatprep.subr.mxu0 0.0
  %4737 = vmatpush1.msra.mxu0 0.0
  %4738 = vmatprep.subr.mxu0 0.0
  %4739 = vmatpush1.msra.mxu0 0.0
  %4740 = vmatprep.subr.mxu0 0.0
  %4741 = vmatpush1.msra.mxu0 0.0
  %4742 = vmatprep.subr.mxu0 0.0
  %4743 = vmatpush1.msra.mxu0 0.0
  %4744 = vmatprep.subr.mxu0 0.0
  %4745 = vmatpush1.msra.mxu0 0.0
  %4746 = vmatprep.subr.mxu0 0.0
  %4747 = vmatpush1.msra.mxu0 0.0
  %4748 = vmatprep.subr.mxu0 0.0
  %4749 = vmatpush1.msra.mxu0 0.0
  %4750 = vmatprep.mubr.f32.mxu0 0.0
  %4751 = vmatmul.mubr.f32.gmra.mrb[0].mxu0 %v4684
  %v4752 = vpop.f32.mrb[0].mxu0
  %v4753 = vadd.f32 0.0, %v4752
  %v4754 = vpop.f32.mrb[0].mxu0
  %4755 = vdwg.mxu0
  %4756 = vrot.lane.b32.xlu0 %v3507, 52
  %v4757 = vpop.permute.xlu0 %4756
  %v4760 = vsel %vm481, %v4679, 0
  %4762 = vmatprep.subr.mxu0 0.0
  %4763 = vmatpush1.msra.mxu0 %v4757
  %4764 = vmatprep.subr.mxu0 0.0
  %4765 = vmatpush1.msra.mxu0 0.0
  %4766 = vmatprep.subr.mxu0 0.0
  %4767 = vmatpush1.msra.mxu0 0.0
  %4768 = vmatprep.subr.mxu0 0.0
  %4769 = vmatpush1.msra.mxu0 0.0
  %4770 = vmatprep.subr.mxu0 0.0
  %4771 = vmatpush1.msra.mxu0 0.0
  %4772 = vmatprep.subr.mxu0 0.0
  %4773 = vmatpush1.msra.mxu0 0.0
  %4774 = vmatprep.subr.mxu0 0.0
  %4775 = vmatpush1.msra.mxu0 0.0
  %4776 = vmatprep.subr.mxu0 0.0
  %4777 = vmatpush1.msra.mxu0 0.0
  %4778 = vmatprep.subr.mxu0 0.0
  %4779 = vmatpush1.msra.mxu0 0.0
  %4780 = vmatprep.subr.mxu0 0.0
  %4781 = vmatpush1.msra.mxu0 0.0
  %4782 = vmatprep.subr.mxu0 0.0
  %4783 = vmatpush1.msra.mxu0 0.0
  %4784 = vmatprep.subr.mxu0 0.0
  %4785 = vmatpush1.msra.mxu0 0.0
  %4786 = vmatprep.subr.mxu0 0.0
  %4787 = vmatpush1.msra.mxu0 0.0
  %4788 = vmatprep.subr.mxu0 0.0
  %4789 = vmatpush1.msra.mxu0 0.0
  %4790 = vmatprep.subr.mxu0 0.0
  %4791 = vmatpush1.msra.mxu0 0.0
  %4792 = vmatprep.subr.mxu0 0.0
  %4793 = vmatpush1.msra.mxu0 0.0
  %4794 = vmatprep.subr.mxu0 0.0
  %4795 = vmatpush1.msra.mxu0 0.0
  %4796 = vmatprep.subr.mxu0 0.0
  %4797 = vmatpush1.msra.mxu0 0.0
  %4798 = vmatprep.subr.mxu0 0.0
  %4799 = vmatpush1.msra.mxu0 0.0
  %4800 = vmatprep.subr.mxu0 0.0
  %4801 = vmatpush1.msra.mxu0 0.0
  %4802 = vmatprep.subr.mxu0 0.0
  %4803 = vmatpush1.msra.mxu0 0.0
  %4804 = vmatprep.subr.mxu0 0.0
  %4805 = vmatpush1.msra.mxu0 0.0
  %4806 = vmatprep.subr.mxu0 0.0
  %4807 = vmatpush1.msra.mxu0 0.0
  %4808 = vmatprep.subr.mxu0 0.0
  %4809 = vmatpush1.msra.mxu0 0.0
  %4810 = vmatprep.subr.mxu0 0.0
  %4811 = vmatpush1.msra.mxu0 0.0
  %4812 = vmatprep.subr.mxu0 0.0
  %4813 = vmatpush1.msra.mxu0 0.0
  %4814 = vmatprep.subr.mxu0 0.0
  %4815 = vmatpush1.msra.mxu0 0.0
  %4816 = vmatprep.subr.mxu0 0.0
  %4817 = vmatpush1.msra.mxu0 0.0
  %4818 = vmatprep.subr.mxu0 0.0
  %4819 = vmatpush1.msra.mxu0 0.0
  %4820 = vmatprep.subr.mxu0 0.0
  %4821 = vmatpush1.msra.mxu0 0.0
  %4822 = vmatprep.subr.mxu0 0.0
  %4823 = vmatpush1.msra.mxu0 0.0
  %4824 = vmatprep.subr.mxu0 0.0
  %4825 = vmatpush1.msra.mxu0 0.0
  %4826 = vmatprep.mubr.f32.mxu0 0.0
  %4827 = vmatmul.mubr.f32.gmra.mrb[0].mxu0 %v4760
  %v4828 = vpop.f32.mrb[0].mxu0
  %v4829 = vadd.f32 0.0, %v4828
  %v4830 = vpop.f32.mrb[0].mxu0
  %4831 = vdwg.mxu0
  %4832 = vrot.lane.b32.xlu0 %v3510, 112
  %v4833 = vpop.permute.xlu0 %4832
  %4834 = vrot.lane.b32.xlu0 %v3502, 80
  %v4835 = vpop.permute.xlu0 %4834
  %v4836 = vsel %vm327, %v4833, 0
  %v4838 = vsel %vm327, %v4835, 0
  %4840 = vmatprep.subr.mxu0 0.0
  %4841 = vmatpush1.xpose.msra.mxu0 %v4838
  %4842 = vmatprep.subr.mxu0 0.0
  %4843 = vmatpush1.xpose.msra.mxu0 0.0
  %4844 = vmatprep.subr.mxu0 0.0
  %4845 = vmatpush1.xpose.msra.mxu0 0.0
  %4846 = vmatprep.subr.mxu0 0.0
  %4847 = vmatpush1.xpose.msra.mxu0 0.0
  %4848 = vmatprep.subr.mxu0 0.0
  %4849 = vmatpush1.xpose.msra.mxu0 0.0
  %4850 = vmatprep.subr.mxu0 0.0
  %4851 = vmatpush1.xpose.msra.mxu0 0.0
  %4852 = vmatprep.subr.mxu0 0.0
  %4853 = vmatpush1.xpose.msra.mxu0 0.0
  %4854 = vmatprep.subr.mxu0 0.0
  %4855 = vmatpush1.xpose.msra.mxu0 0.0
  %4856 = vmatprep.subr.mxu0 0.0
  %4857 = vmatpush1.xpose.msra.mxu0 0.0
  %4858 = vmatprep.subr.mxu0 0.0
  %4859 = vmatpush1.xpose.msra.mxu0 0.0
  %4860 = vmatprep.subr.mxu0 0.0
  %4861 = vmatpush1.xpose.msra.mxu0 0.0
  %4862 = vmatprep.subr.mxu0 0.0
  %4863 = vmatpush1.xpose.msra.mxu0 0.0
  %4864 = vmatprep.subr.mxu0 0.0
  %4865 = vmatpush1.xpose.msra.mxu0 0.0
  %4866 = vmatprep.subr.mxu0 0.0
  %4867 = vmatpush1.xpose.msra.mxu0 0.0
  %4868 = vmatprep.subr.mxu0 0.0
  %4869 = vmatpush1.xpose.msra.mxu0 0.0
  %4870 = vmatprep.subr.mxu0 0.0
  %4871 = vmatpush1.xpose.msra.mxu0 0.0
  %4872 = vmatprep.subr.mxu0 0.0
  %4873 = vmatpush1.xpose.msra.mxu0 0.0
  %4874 = vmatprep.subr.mxu0 0.0
  %4875 = vmatpush1.xpose.msra.mxu0 0.0
  %4876 = vmatprep.subr.mxu0 0.0
  %4877 = vmatpush1.xpose.msra.mxu0 0.0
  %4878 = vmatprep.subr.mxu0 0.0
  %4879 = vmatpush1.xpose.msra.mxu0 0.0
  %4880 = vmatprep.subr.mxu0 0.0
  %4881 = vmatpush1.xpose.msra.mxu0 0.0
  %4882 = vmatprep.subr.mxu0 0.0
  %4883 = vmatpush1.xpose.msra.mxu0 0.0
  %4884 = vmatprep.subr.mxu0 0.0
  %4885 = vmatpush1.xpose.msra.mxu0 0.0
  %4886 = vmatprep.subr.mxu0 0.0
  %4887 = vmatpush1.xpose.msra.mxu0 0.0
  %4888 = vmatprep.subr.mxu0 0.0
  %4889 = vmatpush1.xpose.msra.mxu0 0.0
  %4890 = vmatprep.subr.mxu0 0.0
  %4891 = vmatpush1.xpose.msra.mxu0 0.0
  %4892 = vmatprep.subr.mxu0 0.0
  %4893 = vmatpush1.xpose.msra.mxu0 0.0
  %4894 = vmatprep.subr.mxu0 0.0
  %4895 = vmatpush1.xpose.msra.mxu0 0.0
  %4896 = vmatprep.subr.mxu0 0.0
  %4897 = vmatpush1.xpose.msra.mxu0 0.0
  %4898 = vmatprep.subr.mxu0 0.0
  %4899 = vmatpush1.xpose.msra.mxu0 0.0
  %4900 = vmatprep.subr.mxu0 0.0
  %4901 = vmatpush1.xpose.msra.mxu0 0.0
  %4902 = vmatprep.subr.mxu0 0.0
  %4903 = vmatpush1.xpose.msra.mxu0 0.0
  %4904 = vmatprep.mubr.f32.mxu0 0.0
  %4905 = vmatmul.mubr.f32.gmra.mrb[0].mxu0 %v4836
  %v4906 = vpop.f32.mrb[0].mxu0
  %v4907 = vadd.f32 0.0, %v4906
  %v4908 = vpop.f32.mrb[0].mxu0
  %4909 = vdwg.mxu0
  %4910 = vrot.lane.b32.xlu0 %v3511, 112
  %v4911 = vpop.permute.xlu0 %4910
  %4912 = vrot.lane.b32.xlu0 %v3507, 80
  %v4913 = vpop.permute.xlu0 %4912
  %v4914 = vsel %vm327, %v4911, 0
  %v4916 = vsel %vm327, %v4913, 0
  %4918 = vmatprep.subr.mxu0 0.0
  %4919 = vmatpush1.xpose.msra.mxu0 %v4916
  %4920 = vmatprep.subr.mxu0 0.0
  %4921 = vmatpush1.xpose.msra.mxu0 0.0
  %4922 = vmatprep.subr.mxu0 0.0
  %4923 = vmatpush1.xpose.msra.mxu0 0.0
  %4924 = vmatprep.subr.mxu0 0.0
  %4925 = vmatpush1.xpose.msra.mxu0 0.0
  %4926 = vmatprep.subr.mxu0 0.0
  %4927 = vmatpush1.xpose.msra.mxu0 0.0
  %4928 = vmatprep.subr.mxu0 0.0
  %4929 = vmatpush1.xpose.msra.mxu0 0.0
  %4930 = vmatprep.subr.mxu0 0.0
  %4931 = vmatpush1.xpose.msra.mxu0 0.0
  %4932 = vmatprep.subr.mxu0 0.0
  %4933 = vmatpush1.xpose.msra.mxu0 0.0
  %4934 = vmatprep.subr.mxu0 0.0
  %4935 = vmatpush1.xpose.msra.mxu0 0.0
  %4936 = vmatprep.subr.mxu0 0.0
  %4937 = vmatpush1.xpose.msra.mxu0 0.0
  %4938 = vmatprep.subr.mxu0 0.0
  %4939 = vmatpush1.xpose.msra.mxu0 0.0
  %4940 = vmatprep.subr.mxu0 0.0
  %4941 = vmatpush1.xpose.msra.mxu0 0.0
  %4942 = vmatprep.subr.mxu0 0.0
  %4943 = vmatpush1.xpose.msra.mxu0 0.0
  %4944 = vmatprep.subr.mxu0 0.0
  %4945 = vmatpush1.xpose.msra.mxu0 0.0
  %4946 = vmatprep.subr.mxu0 0.0
  %4947 = vmatpush1.xpose.msra.mxu0 0.0
  %4948 = vmatprep.subr.mxu0 0.0
  %4949 = vmatpush1.xpose.msra.mxu0 0.0
  %4950 = vmatprep.subr.mxu0 0.0
  %4951 = vmatpush1.xpose.msra.mxu0 0.0
  %4952 = vmatprep.subr.mxu0 0.0
  %4953 = vmatpush1.xpose.msra.mxu0 0.0
  %4954 = vmatprep.subr.mxu0 0.0
  %4955 = vmatpush1.xpose.msra.mxu0 0.0
  %4956 = vmatprep.subr.mxu0 0.0
  %4957 = vmatpush1.xpose.msra.mxu0 0.0
  %4958 = vmatprep.subr.mxu0 0.0
  %4959 = vmatpush1.xpose.msra.mxu0 0.0
  %4960 = vmatprep.subr.mxu0 0.0
  %4961 = vmatpush1.xpose.msra.mxu0 0.0
  %4962 = vmatprep.subr.mxu0 0.0
  %4963 = vmatpush1.xpose.msra.mxu0 0.0
  %4964 = vmatprep.subr.mxu0 0.0
  %4965 = vmatpush1.xpose.msra.mxu0 0.0
  %4966 = vmatprep.subr.mxu0 0.0
  %4967 = vmatpush1.xpose.msra.mxu0 0.0
  %4968 = vmatprep.subr.mxu0 0.0
  %4969 = vmatpush1.xpose.msra.mxu0 0.0
  %4970 = vmatprep.subr.mxu0 0.0
  %4971 = vmatpush1.xpose.msra.mxu0 0.0
  %4972 = vmatprep.subr.mxu0 0.0
  %4973 = vmatpush1.xpose.msra.mxu0 0.0
  %4974 = vmatprep.subr.mxu0 0.0
  %4975 = vmatpush1.xpose.msra.mxu0 0.0
  %4976 = vmatprep.subr.mxu0 0.0
  %4977 = vmatpush1.xpose.msra.mxu0 0.0
  %4978 = vmatprep.subr.mxu0 0.0
  %4979 = vmatpush1.xpose.msra.mxu0 0.0
  %4980 = vmatprep.subr.mxu0 0.0
  %4981 = vmatpush1.xpose.msra.mxu0 0.0
  %4982 = vmatprep.mubr.f32.mxu0 0.0
  %4983 = vmatmul.mubr.f32.gmra.mrb[0].mxu0 %v4914
  %v4984 = vpop.f32.mrb[0].mxu0
  %v4985 = vadd.f32 0.0, %v4984
  %v4986 = vpop.f32.mrb[0].mxu0
  %4987 = vdwg.mxu0
  %v4988 = vsel %vm481, %v4907, -inf
  %4989 = vmax.xlane.f32.xlu0 %v4988
  %v4990 = vpop.xlane.xlu0 %4989
  %v4991 = vsel %vm481, %v4985, -inf
  %4992 = vmax.xlane.f32.xlu0 %v4991
  %v4993 = vpop.xlane.xlu0 %4992
  %v4994 = vsub.f32 %v4907, %v4990
  %v4995 = vsub.f32 %v4985, %v4993
  %v4996 = vmul.f32 %v4994, 1.442695
  %v4997 = vpow.pop %v4996
  %v4998 = vmul.f32 %v4995, 1.442695
  %v4999 = vpow.pop %v4998
  %v5000 = vsel %vm481, %v4997, 0.0
  %5001 = vadd.xlane.f32.xlu0 %v5000
  %v5002 = vpop.xlane.xlu0 %5001
  %v5003 = vsel %vm481, %v4999, 0.0
  %5004 = vadd.xlane.f32.xlu0 %v5003
  %v5005 = vpop.xlane.xlu0 %5004
  %v5006 = vrcp.pop %v5002
  %v5007 = vrcp.pop %v5005
  %v5008 = vmul.f32 %v4997, %v5006
  %v5009 = vmul.f32 %v4999, %v5007
  %5010 = vrot.lane.b32.xlu0 %v3502, 48
  %v5011 = vpop.permute.xlu0 %5010
  %v5014 = vsel %vm481, %v5008, 0
  %5016 = vmatprep.subr.mxu0 0.0
  %5017 = vmatpush1.msra.mxu0 %v5011
  %5018 = vmatprep.subr.mxu0 0.0
  %5019 = vmatpush1.msra.mxu0 0.0
  %5020 = vmatprep.subr.mxu0 0.0
  %5021 = vmatpush1.msra.mxu0 0.0
  %5022 = vmatprep.subr.mxu0 0.0
  %5023 = vmatpush1.msra.mxu0 0.0
  %5024 = vmatprep.subr.mxu0 0.0
  %5025 = vmatpush1.msra.mxu0 0.0
  %5026 = vmatprep.subr.mxu0 0.0
  %5027 = vmatpush1.msra.mxu0 0.0
  %5028 = vmatprep.subr.mxu0 0.0
  %5029 = vmatpush1.msra.mxu0 0.0
  %5030 = vmatprep.subr.mxu0 0.0
  %5031 = vmatpush1.msra.mxu0 0.0
  %5032 = vmatprep.subr.mxu0 0.0
  %5033 = vmatpush1.msra.mxu0 0.0
  %5034 = vmatprep.subr.mxu0 0.0
  %5035 = vmatpush1.msra.mxu0 0.0
  %5036 = vmatprep.subr.mxu0 0.0
  %5037 = vmatpush1.msra.mxu0 0.0
  %5038 = vmatprep.subr.mxu0 0.0
  %5039 = vmatpush1.msra.mxu0 0.0
  %5040 = vmatprep.subr.mxu0 0.0
  %5041 = vmatpush1.msra.mxu0 0.0
  %5042 = vmatprep.subr.mxu0 0.0
  %5043 = vmatpush1.msra.mxu0 0.0
  %5044 = vmatprep.subr.mxu0 0.0
  %5045 = vmatpush1.msra.mxu0 0.0
  %5046 = vmatprep.subr.mxu0 0.0
  %5047 = vmatpush1.msra.mxu0 0.0
  %5048 = vmatprep.subr.mxu0 0.0
  %5049 = vmatpush1.msra.mxu0 0.0
  %5050 = vmatprep.subr.mxu0 0.0
  %5051 = vmatpush1.msra.mxu0 0.0
  %5052 = vmatprep.subr.mxu0 0.0
  %5053 = vmatpush1.msra.mxu0 0.0
  %5054 = vmatprep.subr.mxu0 0.0
  %5055 = vmatpush1.msra.mxu0 0.0
  %5056 = vmatprep.subr.mxu0 0.0
  %5057 = vmatpush1.msra.mxu0 0.0
  %5058 = vmatprep.subr.mxu0 0.0
  %5059 = vmatpush1.msra.mxu0 0.0
  %5060 = vmatprep.subr.mxu0 0.0
  %5061 = vmatpush1.msra.mxu0 0.0
  %5062 = vmatprep.subr.mxu0 0.0
  %5063 = vmatpush1.msra.mxu0 0.0
  %5064 = vmatprep.subr.mxu0 0.0
  %5065 = vmatpush1.msra.mxu0 0.0
  %5066 = vmatprep.subr.mxu0 0.0
  %5067 = vmatpush1.msra.mxu0 0.0
  %5068 = vmatprep.subr.mxu0 0.0
  %5069 = vmatpush1.msra.mxu0 0.0
  %5070 = vmatprep.subr.mxu0 0.0
  %5071 = vmatpush1.msra.mxu0 0.0
  %5072 = vmatprep.subr.mxu0 0.0
  %5073 = vmatpush1.msra.mxu0 0.0
  %5074 = vmatprep.subr.mxu0 0.0
  %5075 = vmatpush1.msra.mxu0 0.0
  %5076 = vmatprep.subr.mxu0 0.0
  %5077 = vmatpush1.msra.mxu0 0.0
  %5078 = vmatprep.subr.mxu0 0.0
  %5079 = vmatpush1.msra.mxu0 0.0
  %5080 = vmatprep.mubr.f32.mxu0 0.0
  %5081 = vmatmul.mubr.f32.gmra.mrb[0].mxu0 %v5014
  %v5082 = vpop.f32.mrb[0].mxu0
  %v5083 = vadd.f32 0.0, %v5082
  %v5084 = vpop.f32.mrb[0].mxu0
  %5085 = vdwg.mxu0
  %5086 = vrot.lane.b32.xlu0 %v3507, 48
  %v5087 = vpop.permute.xlu0 %5086
  %v5090 = vsel %vm481, %v5009, 0
  %5092 = vmatprep.subr.mxu0 0.0
  %5093 = vmatpush1.msra.mxu0 %v5087
  %5094 = vmatprep.subr.mxu0 0.0
  %5095 = vmatpush1.msra.mxu0 0.0
  %5096 = vmatprep.subr.mxu0 0.0
  %5097 = vmatpush1.msra.mxu0 0.0
  %5098 = vmatprep.subr.mxu0 0.0
  %5099 = vmatpush1.msra.mxu0 0.0
  %5100 = vmatprep.subr.mxu0 0.0
  %5101 = vmatpush1.msra.mxu0 0.0
  %5102 = vmatprep.subr.mxu0 0.0
  %5103 = vmatpush1.msra.mxu0 0.0
  %5104 = vmatprep.subr.mxu0 0.0
  %5105 = vmatpush1.msra.mxu0 0.0
  %5106 = vmatprep.subr.mxu0 0.0
  %5107 = vmatpush1.msra.mxu0 0.0
  %5108 = vmatprep.subr.mxu0 0.0
  %5109 = vmatpush1.msra.mxu0 0.0
  %5110 = vmatprep.subr.mxu0 0.0
  %5111 = vmatpush1.msra.mxu0 0.0
  %5112 = vmatprep.subr.mxu0 0.0
  %5113 = vmatpush1.msra.mxu0 0.0
  %5114 = vmatprep.subr.mxu0 0.0
  %5115 = vmatpush1.msra.mxu0 0.0
  %5116 = vmatprep.subr.mxu0 0.0
  %5117 = vmatpush1.msra.mxu0 0.0
  %5118 = vmatprep.subr.mxu0 0.0
  %5119 = vmatpush1.msra.mxu0 0.0
  %5120 = vmatprep.subr.mxu0 0.0
  %5121 = vmatpush1.msra.mxu0 0.0
  %5122 = vmatprep.subr.mxu0 0.0
  %5123 = vmatpush1.msra.mxu0 0.0
  %5124 = vmatprep.subr.mxu0 0.0
  %5125 = vmatpush1.msra.mxu0 0.0
  %5126 = vmatprep.subr.mxu0 0.0
  %5127 = vmatpush1.msra.mxu0 0.0
  %5128 = vmatprep.subr.mxu0 0.0
  %5129 = vmatpush1.msra.mxu0 0.0
  %5130 = vmatprep.subr.mxu0 0.0
  %5131 = vmatpush1.msra.mxu0 0.0
  %5132 = vmatprep.subr.mxu0 0.0
  %5133 = vmatpush1.msra.mxu0 0.0
  %5134 = vmatprep.subr.mxu0 0.0
  %5135 = vmatpush1.msra.mxu0 0.0
  %5136 = vmatprep.subr.mxu0 0.0
  %5137 = vmatpush1.msra.mxu0 0.0
  %5138 = vmatprep.subr.mxu0 0.0
  %5139 = vmatpush1.msra.mxu0 0.0
  %5140 = vmatprep.subr.mxu0 0.0
  %5141 = vmatpush1.msra.mxu0 0.0
  %5142 = vmatprep.subr.mxu0 0.0
  %5143 = vmatpush1.msra.mxu0 0.0
  %5144 = vmatprep.subr.mxu0 0.0
  %5145 = vmatpush1.msra.mxu0 0.0
  %5146 = vmatprep.subr.mxu0 0.0
  %5147 = vmatpush1.msra.mxu0 0.0
  %5148 = vmatprep.subr.mxu0 0.0
  %5149 = vmatpush1.msra.mxu0 0.0
  %5150 = vmatprep.subr.mxu0 0.0
  %5151 = vmatpush1.msra.mxu0 0.0
  %5152 = vmatprep.subr.mxu0 0.0
  %5153 = vmatpush1.msra.mxu0 0.0
  %5154 = vmatprep.subr.mxu0 0.0
  %5155 = vmatpush1.msra.mxu0 0.0
  %5156 = vmatprep.mubr.f32.mxu0 0.0
  %5157 = vmatmul.mubr.f32.gmra.mrb[0].mxu0 %v5090
  %v5158 = vpop.f32.mrb[0].mxu0
  %v5159 = vadd.f32 0.0, %v5158
  %v5160 = vpop.f32.mrb[0].mxu0
  %5161 = vdwg.mxu0
  %5162 = vrot.lane.b32.xlu0 %v3510, 108
  %v5163 = vpop.permute.xlu0 %5162
  %5164 = vrot.lane.b32.xlu0 %v3502, 76
  %v5165 = vpop.permute.xlu0 %5164
  %v5166 = vsel %vm327, %v5163, 0
  %v5168 = vsel %vm327, %v5165, 0
  %5170 = vmatprep.subr.mxu0 0.0
  %5171 = vmatpush1.xpose.msra.mxu0 %v5168
  %5172 = vmatprep.subr.mxu0 0.0
  %5173 = vmatpush1.xpose.msra.mxu0 0.0
  %5174 = vmatprep.subr.mxu0 0.0
  %5175 = vmatpush1.xpose.msra.mxu0 0.0
  %5176 = vmatprep.subr.mxu0 0.0
  %5177 = vmatpush1.xpose.msra.mxu0 0.0
  %5178 = vmatprep.subr.mxu0 0.0
  %5179 = vmatpush1.xpose.msra.mxu0 0.0
  %5180 = vmatprep.subr.mxu0 0.0
  %5181 = vmatpush1.xpose.msra.mxu0 0.0
  %5182 = vmatprep.subr.mxu0 0.0
  %5183 = vmatpush1.xpose.msra.mxu0 0.0
  %5184 = vmatprep.subr.mxu0 0.0
  %5185 = vmatpush1.xpose.msra.mxu0 0.0
  %5186 = vmatprep.subr.mxu0 0.0
  %5187 = vmatpush1.xpose.msra.mxu0 0.0
  %5188 = vmatprep.subr.mxu0 0.0
  %5189 = vmatpush1.xpose.msra.mxu0 0.0
  %5190 = vmatprep.subr.mxu0 0.0
  %5191 = vmatpush1.xpose.msra.mxu0 0.0
  %5192 = vmatprep.subr.mxu0 0.0
  %5193 = vmatpush1.xpose.msra.mxu0 0.0
  %5194 = vmatprep.subr.mxu0 0.0
  %5195 = vmatpush1.xpose.msra.mxu0 0.0
  %5196 = vmatprep.subr.mxu0 0.0
  %5197 = vmatpush1.xpose.msra.mxu0 0.0
  %5198 = vmatprep.subr.mxu0 0.0
  %5199 = vmatpush1.xpose.msra.mxu0 0.0
  %5200 = vmatprep.subr.mxu0 0.0
  %5201 = vmatpush1.xpose.msra.mxu0 0.0
  %5202 = vmatprep.subr.mxu0 0.0
  %5203 = vmatpush1.xpose.msra.mxu0 0.0
  %5204 = vmatprep.subr.mxu0 0.0
  %5205 = vmatpush1.xpose.msra.mxu0 0.0
  %5206 = vmatprep.subr.mxu0 0.0
  %5207 = vmatpush1.xpose.msra.mxu0 0.0
  %5208 = vmatprep.subr.mxu0 0.0
  %5209 = vmatpush1.xpose.msra.mxu0 0.0
  %5210 = vmatprep.subr.mxu0 0.0
  %5211 = vmatpush1.xpose.msra.mxu0 0.0
  %5212 = vmatprep.subr.mxu0 0.0
  %5213 = vmatpush1.xpose.msra.mxu0 0.0
  %5214 = vmatprep.subr.mxu0 0.0
  %5215 = vmatpush1.xpose.msra.mxu0 0.0
  %5216 = vmatprep.subr.mxu0 0.0
  %5217 = vmatpush1.xpose.msra.mxu0 0.0
  %5218 = vmatprep.subr.mxu0 0.0
  %5219 = vmatpush1.xpose.msra.mxu0 0.0
  %5220 = vmatprep.subr.mxu0 0.0
  %5221 = vmatpush1.xpose.msra.mxu0 0.0
  %5222 = vmatprep.subr.mxu0 0.0
  %5223 = vmatpush1.xpose.msra.mxu0 0.0
  %5224 = vmatprep.subr.mxu0 0.0
  %5225 = vmatpush1.xpose.msra.mxu0 0.0
  %5226 = vmatprep.subr.mxu0 0.0
  %5227 = vmatpush1.xpose.msra.mxu0 0.0
  %5228 = vmatprep.subr.mxu0 0.0
  %5229 = vmatpush1.xpose.msra.mxu0 0.0
  %5230 = vmatprep.subr.mxu0 0.0
  %5231 = vmatpush1.xpose.msra.mxu0 0.0
  %5232 = vmatprep.subr.mxu0 0.0
  %5233 = vmatpush1.xpose.msra.mxu0 0.0
  %5234 = vmatprep.mubr.f32.mxu0 0.0
  %5235 = vmatmul.mubr.f32.gmra.mrb[0].mxu0 %v5166
  %v5236 = vpop.f32.mrb[0].mxu0
  %v5237 = vadd.f32 0.0, %v5236
  %v5238 = vpop.f32.mrb[0].mxu0
  %5239 = vdwg.mxu0
  %5240 = vrot.lane.b32.xlu0 %v3511, 108
  %v5241 = vpop.permute.xlu0 %5240
  %5242 = vrot.lane.b32.xlu0 %v3507, 76
  %v5243 = vpop.permute.xlu0 %5242
  %v5244 = vsel %vm327, %v5241, 0
  %v5246 = vsel %vm327, %v5243, 0
  %5248 = vmatprep.subr.mxu0 0.0
  %5249 = vmatpush1.xpose.msra.mxu0 %v5246
  %5250 = vmatprep.subr.mxu0 0.0
  %5251 = vmatpush1.xpose.msra.mxu0 0.0
  %5252 = vmatprep.subr.mxu0 0.0
  %5253 = vmatpush1.xpose.msra.mxu0 0.0
  %5254 = vmatprep.subr.mxu0 0.0
  %5255 = vmatpush1.xpose.msra.mxu0 0.0
  %5256 = vmatprep.subr.mxu0 0.0
  %5257 = vmatpush1.xpose.msra.mxu0 0.0
  %5258 = vmatprep.subr.mxu0 0.0
  %5259 = vmatpush1.xpose.msra.mxu0 0.0
  %5260 = vmatprep.subr.mxu0 0.0
  %5261 = vmatpush1.xpose.msra.mxu0 0.0
  %5262 = vmatprep.subr.mxu0 0.0
  %5263 = vmatpush1.xpose.msra.mxu0 0.0
  %5264 = vmatprep.subr.mxu0 0.0
  %5265 = vmatpush1.xpose.msra.mxu0 0.0
  %5266 = vmatprep.subr.mxu0 0.0
  %5267 = vmatpush1.xpose.msra.mxu0 0.0
  %5268 = vmatprep.subr.mxu0 0.0
  %5269 = vmatpush1.xpose.msra.mxu0 0.0
  %5270 = vmatprep.subr.mxu0 0.0
  %5271 = vmatpush1.xpose.msra.mxu0 0.0
  %5272 = vmatprep.subr.mxu0 0.0
  %5273 = vmatpush1.xpose.msra.mxu0 0.0
  %5274 = vmatprep.subr.mxu0 0.0
  %5275 = vmatpush1.xpose.msra.mxu0 0.0
  %5276 = vmatprep.subr.mxu0 0.0
  %5277 = vmatpush1.xpose.msra.mxu0 0.0
  %5278 = vmatprep.subr.mxu0 0.0
  %5279 = vmatpush1.xpose.msra.mxu0 0.0
  %5280 = vmatprep.subr.mxu0 0.0
  %5281 = vmatpush1.xpose.msra.mxu0 0.0
  %5282 = vmatprep.subr.mxu0 0.0
  %5283 = vmatpush1.xpose.msra.mxu0 0.0
  %5284 = vmatprep.subr.mxu0 0.0
  %5285 = vmatpush1.xpose.msra.mxu0 0.0
  %5286 = vmatprep.subr.mxu0 0.0
  %5287 = vmatpush1.xpose.msra.mxu0 0.0
  %5288 = vmatprep.subr.mxu0 0.0
  %5289 = vmatpush1.xpose.msra.mxu0 0.0
  %5290 = vmatprep.subr.mxu0 0.0
  %5291 = vmatpush1.xpose.msra.mxu0 0.0
  %5292 = vmatprep.subr.mxu0 0.0
  %5293 = vmatpush1.xpose.msra.mxu0 0.0
  %5294 = vmatprep.subr.mxu0 0.0
  %5295 = vmatpush1.xpose.msra.mxu0 0.0
  %5296 = vmatprep.subr.mxu0 0.0
  %5297 = vmatpush1.xpose.msra.mxu0 0.0
  %5298 = vmatprep.subr.mxu0 0.0
  %5299 = vmatpush1.xpose.msra.mxu0 0.0
  %5300 = vmatprep.subr.mxu0 0.0
  %5301 = vmatpush1.xpose.msra.mxu0 0.0
  %5302 = vmatprep.subr.mxu0 0.0
  %5303 = vmatpush1.xpose.msra.mxu0 0.0
  %5304 = vmatprep.subr.mxu0 0.0
  %5305 = vmatpush1.xpose.msra.mxu0 0.0
  %5306 = vmatprep.subr.mxu0 0.0
  %5307 = vmatpush1.xpose.msra.mxu0 0.0
  %5308 = vmatprep.subr.mxu0 0.0
  %5309 = vmatpush1.xpose.msra.mxu0 0.0
  %5310 = vmatprep.subr.mxu0 0.0
  %5311 = vmatpush1.xpose.msra.mxu0 0.0
  %5312 = vmatprep.mubr.f32.mxu0 0.0
  %5313 = vmatmul.mubr.f32.gmra.mrb[0].mxu0 %v5244
  %v5314 = vpop.f32.mrb[0].mxu0
  %v5315 = vadd.f32 0.0, %v5314
  %v5316 = vpop.f32.mrb[0].mxu0
  %5317 = vdwg.mxu0
  %v5318 = vsel %vm481, %v5237, -inf
  %5319 = vmax.xlane.f32.xlu0 %v5318
  %v5320 = vpop.xlane.xlu0 %5319
  %v5321 = vsel %vm481, %v5315, -inf
  %5322 = vmax.xlane.f32.xlu0 %v5321
  %v5323 = vpop.xlane.xlu0 %5322
  %v5324 = vsub.f32 %v5237, %v5320
  %v5325 = vsub.f32 %v5315, %v5323
  %v5326 = vmul.f32 %v5324, 1.442695
  %v5327 = vpow.pop %v5326
  %v5328 = vmul.f32 %v5325, 1.442695
  %v5329 = vpow.pop %v5328
  %v5330 = vsel %vm481, %v5327, 0.0
  %5331 = vadd.xlane.f32.xlu0 %v5330
  %v5332 = vpop.xlane.xlu0 %5331
  %v5333 = vsel %vm481, %v5329, 0.0
  %5334 = vadd.xlane.f32.xlu0 %v5333
  %v5335 = vpop.xlane.xlu0 %5334
  %v5336 = vrcp.pop %v5332
  %v5337 = vrcp.pop %v5335
  %v5338 = vmul.f32 %v5327, %v5336
  %v5339 = vmul.f32 %v5329, %v5337
  %5340 = vrot.lane.b32.xlu0 %v3502, 44
  %v5341 = vpop.permute.xlu0 %5340
  %v5344 = vsel %vm481, %v5338, 0
  %5346 = vmatprep.subr.mxu0 0.0
  %5347 = vmatpush1.msra.mxu0 %v5341
  %5348 = vmatprep.subr.mxu0 0.0
  %5349 = vmatpush1.msra.mxu0 0.0
  %5350 = vmatprep.subr.mxu0 0.0
  %5351 = vmatpush1.msra.mxu0 0.0
  %5352 = vmatprep.subr.mxu0 0.0
  %5353 = vmatpush1.msra.mxu0 0.0
  %5354 = vmatprep.subr.mxu0 0.0
  %5355 = vmatpush1.msra.mxu0 0.0
  %5356 = vmatprep.subr.mxu0 0.0
  %5357 = vmatpush1.msra.mxu0 0.0
  %5358 = vmatprep.subr.mxu0 0.0
  %5359 = vmatpush1.msra.mxu0 0.0
  %5360 = vmatprep.subr.mxu0 0.0
  %5361 = vmatpush1.msra.mxu0 0.0
  %5362 = vmatprep.subr.mxu0 0.0
  %5363 = vmatpush1.msra.mxu0 0.0
  %5364 = vmatprep.subr.mxu0 0.0
  %5365 = vmatpush1.msra.mxu0 0.0
  %5366 = vmatprep.subr.mxu0 0.0
  %5367 = vmatpush1.msra.mxu0 0.0
  %5368 = vmatprep.subr.mxu0 0.0
  %5369 = vmatpush1.msra.mxu0 0.0
  %5370 = vmatprep.subr.mxu0 0.0
  %5371 = vmatpush1.msra.mxu0 0.0
  %5372 = vmatprep.subr.mxu0 0.0
  %5373 = vmatpush1.msra.mxu0 0.0
  %5374 = vmatprep.subr.mxu0 0.0
  %5375 = vmatpush1.msra.mxu0 0.0
  %5376 = vmatprep.subr.mxu0 0.0
  %5377 = vmatpush1.msra.mxu0 0.0
  %5378 = vmatprep.subr.mxu0 0.0
  %5379 = vmatpush1.msra.mxu0 0.0
  %5380 = vmatprep.subr.mxu0 0.0
  %5381 = vmatpush1.msra.mxu0 0.0
  %5382 = vmatprep.subr.mxu0 0.0
  %5383 = vmatpush1.msra.mxu0 0.0
  %5384 = vmatprep.subr.mxu0 0.0
  %5385 = vmatpush1.msra.mxu0 0.0
  %5386 = vmatprep.subr.mxu0 0.0
  %5387 = vmatpush1.msra.mxu0 0.0
  %5388 = vmatprep.subr.mxu0 0.0
  %5389 = vmatpush1.msra.mxu0 0.0
  %5390 = vmatprep.subr.mxu0 0.0
  %5391 = vmatpush1.msra.mxu0 0.0
  %5392 = vmatprep.subr.mxu0 0.0
  %5393 = vmatpush1.msra.mxu0 0.0
  %5394 = vmatprep.subr.mxu0 0.0
  %5395 = vmatpush1.msra.mxu0 0.0
  %5396 = vmatprep.subr.mxu0 0.0
  %5397 = vmatpush1.msra.mxu0 0.0
  %5398 = vmatprep.subr.mxu0 0.0
  %5399 = vmatpush1.msra.mxu0 0.0
  %5400 = vmatprep.subr.mxu0 0.0
  %5401 = vmatpush1.msra.mxu0 0.0
  %5402 = vmatprep.subr.mxu0 0.0
  %5403 = vmatpush1.msra.mxu0 0.0
  %5404 = vmatprep.subr.mxu0 0.0
  %5405 = vmatpush1.msra.mxu0 0.0
  %5406 = vmatprep.subr.mxu0 0.0
  %5407 = vmatpush1.msra.mxu0 0.0
  %5408 = vmatprep.subr.mxu0 0.0
  %5409 = vmatpush1.msra.mxu0 0.0
  %5410 = vmatprep.mubr.f32.mxu0 0.0
  %5411 = vmatmul.mubr.f32.gmra.mrb[0].mxu0 %v5344
  %v5412 = vpop.f32.mrb[0].mxu0
  %v5413 = vadd.f32 0.0, %v5412
  %v5414 = vpop.f32.mrb[0].mxu0
  %5415 = vdwg.mxu0
  %5416 = vrot.lane.b32.xlu0 %v3507, 44
  %v5417 = vpop.permute.xlu0 %5416
  %v5420 = vsel %vm481, %v5339, 0
  %5422 = vmatprep.subr.mxu0 0.0
  %5423 = vmatpush1.msra.mxu0 %v5417
  %5424 = vmatprep.subr.mxu0 0.0
  %5425 = vmatpush1.msra.mxu0 0.0
  %5426 = vmatprep.subr.mxu0 0.0
  %5427 = vmatpush1.msra.mxu0 0.0
  %5428 = vmatprep.subr.mxu0 0.0
  %5429 = vmatpush1.msra.mxu0 0.0
  %5430 = vmatprep.subr.mxu0 0.0
  %5431 = vmatpush1.msra.mxu0 0.0
  %5432 = vmatprep.subr.mxu0 0.0
  %5433 = vmatpush1.msra.mxu0 0.0
  %5434 = vmatprep.subr.mxu0 0.0
  %5435 = vmatpush1.msra.mxu0 0.0
  %5436 = vmatprep.subr.mxu0 0.0
  %5437 = vmatpush1.msra.mxu0 0.0
  %5438 = vmatprep.subr.mxu0 0.0
  %5439 = vmatpush1.msra.mxu0 0.0
  %5440 = vmatprep.subr.mxu0 0.0
  %5441 = vmatpush1.msra.mxu0 0.0
  %5442 = vmatprep.subr.mxu0 0.0
  %5443 = vmatpush1.msra.mxu0 0.0
  %5444 = vmatprep.subr.mxu0 0.0
  %5445 = vmatpush1.msra.mxu0 0.0
  %5446 = vmatprep.subr.mxu0 0.0
  %5447 = vmatpush1.msra.mxu0 0.0
  %5448 = vmatprep.subr.mxu0 0.0
  %5449 = vmatpush1.msra.mxu0 0.0
  %5450 = vmatprep.subr.mxu0 0.0
  %5451 = vmatpush1.msra.mxu0 0.0
  %5452 = vmatprep.subr.mxu0 0.0
  %5453 = vmatpush1.msra.mxu0 0.0
  %5454 = vmatprep.subr.mxu0 0.0
  %5455 = vmatpush1.msra.mxu0 0.0
  %5456 = vmatprep.subr.mxu0 0.0
  %5457 = vmatpush1.msra.mxu0 0.0
  %5458 = vmatprep.subr.mxu0 0.0
  %5459 = vmatpush1.msra.mxu0 0.0
  %5460 = vmatprep.subr.mxu0 0.0
  %5461 = vmatpush1.msra.mxu0 0.0
  %5462 = vmatprep.subr.mxu0 0.0
  %5463 = vmatpush1.msra.mxu0 0.0
  %5464 = vmatprep.subr.mxu0 0.0
  %5465 = vmatpush1.msra.mxu0 0.0
  %5466 = vmatprep.subr.mxu0 0.0
  %5467 = vmatpush1.msra.mxu0 0.0
  %5468 = vmatprep.subr.mxu0 0.0
  %5469 = vmatpush1.msra.mxu0 0.0
  %5470 = vmatprep.subr.mxu0 0.0
  %5471 = vmatpush1.msra.mxu0 0.0
  %5472 = vmatprep.subr.mxu0 0.0
  %5473 = vmatpush1.msra.mxu0 0.0
  %5474 = vmatprep.subr.mxu0 0.0
  %5475 = vmatpush1.msra.mxu0 0.0
  %5476 = vmatprep.subr.mxu0 0.0
  %5477 = vmatpush1.msra.mxu0 0.0
  %5478 = vmatprep.subr.mxu0 0.0
  %5479 = vmatpush1.msra.mxu0 0.0
  %5480 = vmatprep.subr.mxu0 0.0
  %5481 = vmatpush1.msra.mxu0 0.0
  %5482 = vmatprep.subr.mxu0 0.0
  %5483 = vmatpush1.msra.mxu0 0.0
  %5484 = vmatprep.subr.mxu0 0.0
  %5485 = vmatpush1.msra.mxu0 0.0
  %5486 = vmatprep.mubr.f32.mxu0 0.0
  %5487 = vmatmul.mubr.f32.gmra.mrb[0].mxu0 %v5420
  %v5488 = vpop.f32.mrb[0].mxu0
  %v5489 = vadd.f32 0.0, %v5488
  %v5490 = vpop.f32.mrb[0].mxu0
  %5491 = vdwg.mxu0
  %5492 = vrot.lane.b32.xlu0 %v3510, 104
  %v5493 = vpop.permute.xlu0 %5492
  %5494 = vrot.lane.b32.xlu0 %v3502, 72
  %v5495 = vpop.permute.xlu0 %5494
  %v5496 = vsel %vm327, %v5493, 0
  %v5498 = vsel %vm327, %v5495, 0
  %5500 = vmatprep.subr.mxu0 0.0
  %5501 = vmatpush1.xpose.msra.mxu0 %v5498
  %5502 = vmatprep.subr.mxu0 0.0
  %5503 = vmatpush1.xpose.msra.mxu0 0.0
  %5504 = vmatprep.subr.mxu0 0.0
  %5505 = vmatpush1.xpose.msra.mxu0 0.0
  %5506 = vmatprep.subr.mxu0 0.0
  %5507 = vmatpush1.xpose.msra.mxu0 0.0
  %5508 = vmatprep.subr.mxu0 0.0
  %5509 = vmatpush1.xpose.msra.mxu0 0.0
  %5510 = vmatprep.subr.mxu0 0.0
  %5511 = vmatpush1.xpose.msra.mxu0 0.0
  %5512 = vmatprep.subr.mxu0 0.0
  %5513 = vmatpush1.xpose.msra.mxu0 0.0
  %5514 = vmatprep.subr.mxu0 0.0
  %5515 = vmatpush1.xpose.msra.mxu0 0.0
  %5516 = vmatprep.subr.mxu0 0.0
  %5517 = vmatpush1.xpose.msra.mxu0 0.0
  %5518 = vmatprep.subr.mxu0 0.0
  %5519 = vmatpush1.xpose.msra.mxu0 0.0
  %5520 = vmatprep.subr.mxu0 0.0
  %5521 = vmatpush1.xpose.msra.mxu0 0.0
  %5522 = vmatprep.subr.mxu0 0.0
  %5523 = vmatpush1.xpose.msra.mxu0 0.0
  %5524 = vmatprep.subr.mxu0 0.0
  %5525 = vmatpush1.xpose.msra.mxu0 0.0
  %5526 = vmatprep.subr.mxu0 0.0
  %5527 = vmatpush1.xpose.msra.mxu0 0.0
  %5528 = vmatprep.subr.mxu0 0.0
  %5529 = vmatpush1.xpose.msra.mxu0 0.0
  %5530 = vmatprep.subr.mxu0 0.0
  %5531 = vmatpush1.xpose.msra.mxu0 0.0
  %5532 = vmatprep.subr.mxu0 0.0
  %5533 = vmatpush1.xpose.msra.mxu0 0.0
  %5534 = vmatprep.subr.mxu0 0.0
  %5535 = vmatpush1.xpose.msra.mxu0 0.0
  %5536 = vmatprep.subr.mxu0 0.0
  %5537 = vmatpush1.xpose.msra.mxu0 0.0
  %5538 = vmatprep.subr.mxu0 0.0
  %5539 = vmatpush1.xpose.msra.mxu0 0.0
  %5540 = vmatprep.subr.mxu0 0.0
  %5541 = vmatpush1.xpose.msra.mxu0 0.0
  %5542 = vmatprep.subr.mxu0 0.0
  %5543 = vmatpush1.xpose.msra.mxu0 0.0
  %5544 = vmatprep.subr.mxu0 0.0
  %5545 = vmatpush1.xpose.msra.mxu0 0.0
  %5546 = vmatprep.subr.mxu0 0.0
  %5547 = vmatpush1.xpose.msra.mxu0 0.0
  %5548 = vmatprep.subr.mxu0 0.0
  %5549 = vmatpush1.xpose.msra.mxu0 0.0
  %5550 = vmatprep.subr.mxu0 0.0
  %5551 = vmatpush1.xpose.msra.mxu0 0.0
  %5552 = vmatprep.subr.mxu0 0.0
  %5553 = vmatpush1.xpose.msra.mxu0 0.0
  %5554 = vmatprep.subr.mxu0 0.0
  %5555 = vmatpush1.xpose.msra.mxu0 0.0
  %5556 = vmatprep.subr.mxu0 0.0
  %5557 = vmatpush1.xpose.msra.mxu0 0.0
  %5558 = vmatprep.subr.mxu0 0.0
  %5559 = vmatpush1.xpose.msra.mxu0 0.0
  %5560 = vmatprep.subr.mxu0 0.0
  %5561 = vmatpush1.xpose.msra.mxu0 0.0
  %5562 = vmatprep.subr.mxu0 0.0
  %5563 = vmatpush1.xpose.msra.mxu0 0.0
  %5564 = vmatprep.mubr.f32.mxu0 0.0
  %5565 = vmatmul.mubr.f32.gmra.mrb[0].mxu0 %v5496
  %v5566 = vpop.f32.mrb[0].mxu0
  %v5567 = vadd.f32 0.0, %v5566
  %v5568 = vpop.f32.mrb[0].mxu0
  %5569 = vdwg.mxu0
  %5570 = vrot.lane.b32.xlu0 %v3511, 104
  %v5571 = vpop.permute.xlu0 %5570
  %5572 = vrot.lane.b32.xlu0 %v3507, 72
  %v5573 = vpop.permute.xlu0 %5572
  %v5574 = vsel %vm327, %v5571, 0
  %v5576 = vsel %vm327, %v5573, 0
  %5578 = vmatprep.subr.mxu0 0.0
  %5579 = vmatpush1.xpose.msra.mxu0 %v5576
  %5580 = vmatprep.subr.mxu0 0.0
  %5581 = vmatpush1.xpose.msra.mxu0 0.0
  %5582 = vmatprep.subr.mxu0 0.0
  %5583 = vmatpush1.xpose.msra.mxu0 0.0
  %5584 = vmatprep.subr.mxu0 0.0
  %5585 = vmatpush1.xpose.msra.mxu0 0.0
  %5586 = vmatprep.subr.mxu0 0.0
  %5587 = vmatpush1.xpose.msra.mxu0 0.0
  %5588 = vmatprep.subr.mxu0 0.0
  %5589 = vmatpush1.xpose.msra.mxu0 0.0
  %5590 = vmatprep.subr.mxu0 0.0
  %5591 = vmatpush1.xpose.msra.mxu0 0.0
  %5592 = vmatprep.subr.mxu0 0.0
  %5593 = vmatpush1.xpose.msra.mxu0 0.0
  %5594 = vmatprep.subr.mxu0 0.0
  %5595 = vmatpush1.xpose.msra.mxu0 0.0
  %5596 = vmatprep.subr.mxu0 0.0
  %5597 = vmatpush1.xpose.msra.mxu0 0.0
  %5598 = vmatprep.subr.mxu0 0.0
  %5599 = vmatpush1.xpose.msra.mxu0 0.0
  %5600 = vmatprep.subr.mxu0 0.0
  %5601 = vmatpush1.xpose.msra.mxu0 0.0
  %5602 = vmatprep.subr.mxu0 0.0
  %5603 = vmatpush1.xpose.msra.mxu0 0.0
  %5604 = vmatprep.subr.mxu0 0.0
  %5605 = vmatpush1.xpose.msra.mxu0 0.0
  %5606 = vmatprep.subr.mxu0 0.0
  %5607 = vmatpush1.xpose.msra.mxu0 0.0
  %5608 = vmatprep.subr.mxu0 0.0
  %5609 = vmatpush1.xpose.msra.mxu0 0.0
  %5610 = vmatprep.subr.mxu0 0.0
  %5611 = vmatpush1.xpose.msra.mxu0 0.0
  %5612 = vmatprep.subr.mxu0 0.0
  %5613 = vmatpush1.xpose.msra.mxu0 0.0
  %5614 = vmatprep.subr.mxu0 0.0
  %5615 = vmatpush1.xpose.msra.mxu0 0.0
  %5616 = vmatprep.subr.mxu0 0.0
  %5617 = vmatpush1.xpose.msra.mxu0 0.0
  %5618 = vmatprep.subr.mxu0 0.0
  %5619 = vmatpush1.xpose.msra.mxu0 0.0
  %5620 = vmatprep.subr.mxu0 0.0
  %5621 = vmatpush1.xpose.msra.mxu0 0.0
  %5622 = vmatprep.subr.mxu0 0.0
  %5623 = vmatpush1.xpose.msra.mxu0 0.0
  %5624 = vmatprep.subr.mxu0 0.0
  %5625 = vmatpush1.xpose.msra.mxu0 0.0
  %5626 = vmatprep.subr.mxu0 0.0
  %5627 = vmatpush1.xpose.msra.mxu0 0.0
  %5628 = vmatprep.subr.mxu0 0.0
  %5629 = vmatpush1.xpose.msra.mxu0 0.0
  %5630 = vmatprep.subr.mxu0 0.0
  %5631 = vmatpush1.xpose.msra.mxu0 0.0
  %5632 = vmatprep.subr.mxu0 0.0
  %5633 = vmatpush1.xpose.msra.mxu0 0.0
  %5634 = vmatprep.subr.mxu0 0.0
  %5635 = vmatpush1.xpose.msra.mxu0 0.0
  %5636 = vmatprep.subr.mxu0 0.0
  %5637 = vmatpush1.xpose.msra.mxu0 0.0
  %5638 = vmatprep.subr.mxu0 0.0
  %5639 = vmatpush1.xpose.msra.mxu0 0.0
  %5640 = vmatprep.subr.mxu0 0.0
  %5641 = vmatpush1.xpose.msra.mxu0 0.0
  %5642 = vmatprep.mubr.f32.mxu0 0.0
  %5643 = vmatmul.mubr.f32.gmra.mrb[0].mxu0 %v5574
  %v5644 = vpop.f32.mrb[0].mxu0
  %v5645 = vadd.f32 0.0, %v5644
  %v5646 = vpop.f32.mrb[0].mxu0
  %5647 = vdwg.mxu0
  %v5648 = vsel %vm481, %v5567, -inf
  %5649 = vmax.xlane.f32.xlu0 %v5648
  %v5650 = vpop.xlane.xlu0 %5649
  %v5651 = vsel %vm481, %v5645, -inf
  %5652 = vmax.xlane.f32.xlu0 %v5651
  %v5653 = vpop.xlane.xlu0 %5652
  %v5654 = vsub.f32 %v5567, %v5650
  %v5655 = vsub.f32 %v5645, %v5653
  %v5656 = vmul.f32 %v5654, 1.442695
  %v5657 = vpow.pop %v5656
  %v5658 = vmul.f32 %v5655, 1.442695
  %v5659 = vpow.pop %v5658
  %v5660 = vsel %vm481, %v5657, 0.0
  %5661 = vadd.xlane.f32.xlu0 %v5660
  %v5662 = vpop.xlane.xlu0 %5661
  %v5663 = vsel %vm481, %v5659, 0.0
  %5664 = vadd.xlane.f32.xlu0 %v5663
  %v5665 = vpop.xlane.xlu0 %5664
  %v5666 = vrcp.pop %v5662
  %v5667 = vrcp.pop %v5665
  %v5668 = vmul.f32 %v5657, %v5666
  %v5669 = vmul.f32 %v5659, %v5667
  %5670 = vrot.lane.b32.xlu0 %v3502, 40
  %v5671 = vpop.permute.xlu0 %5670
  %v5674 = vsel %vm481, %v5668, 0
  %5676 = vmatprep.subr.mxu0 0.0
  %5677 = vmatpush1.msra.mxu0 %v5671
  %5678 = vmatprep.subr.mxu0 0.0
  %5679 = vmatpush1.msra.mxu0 0.0
  %5680 = vmatprep.subr.mxu0 0.0
  %5681 = vmatpush1.msra.mxu0 0.0
  %5682 = vmatprep.subr.mxu0 0.0
  %5683 = vmatpush1.msra.mxu0 0.0
  %5684 = vmatprep.subr.mxu0 0.0
  %5685 = vmatpush1.msra.mxu0 0.0
  %5686 = vmatprep.subr.mxu0 0.0
  %5687 = vmatpush1.msra.mxu0 0.0
  %5688 = vmatprep.subr.mxu0 0.0
  %5689 = vmatpush1.msra.mxu0 0.0
  %5690 = vmatprep.subr.mxu0 0.0
  %5691 = vmatpush1.msra.mxu0 0.0
  %5692 = vmatprep.subr.mxu0 0.0
  %5693 = vmatpush1.msra.mxu0 0.0
  %5694 = vmatprep.subr.mxu0 0.0
  %5695 = vmatpush1.msra.mxu0 0.0
  %5696 = vmatprep.subr.mxu0 0.0
  %5697 = vmatpush1.msra.mxu0 0.0
  %5698 = vmatprep.subr.mxu0 0.0
  %5699 = vmatpush1.msra.mxu0 0.0
  %5700 = vmatprep.subr.mxu0 0.0
  %5701 = vmatpush1.msra.mxu0 0.0
  %5702 = vmatprep.subr.mxu0 0.0
  %5703 = vmatpush1.msra.mxu0 0.0
  %5704 = vmatprep.subr.mxu0 0.0
  %5705 = vmatpush1.msra.mxu0 0.0
  %5706 = vmatprep.subr.mxu0 0.0
  %5707 = vmatpush1.msra.mxu0 0.0
  %5708 = vmatprep.subr.mxu0 0.0
  %5709 = vmatpush1.msra.mxu0 0.0
  %5710 = vmatprep.subr.mxu0 0.0
  %5711 = vmatpush1.msra.mxu0 0.0
  %5712 = vmatprep.subr.mxu0 0.0
  %5713 = vmatpush1.msra.mxu0 0.0
  %5714 = vmatprep.subr.mxu0 0.0
  %5715 = vmatpush1.msra.mxu0 0.0
  %5716 = vmatprep.subr.mxu0 0.0
  %5717 = vmatpush1.msra.mxu0 0.0
  %5718 = vmatprep.subr.mxu0 0.0
  %5719 = vmatpush1.msra.mxu0 0.0
  %5720 = vmatprep.subr.mxu0 0.0
  %5721 = vmatpush1.msra.mxu0 0.0
  %5722 = vmatprep.subr.mxu0 0.0
  %5723 = vmatpush1.msra.mxu0 0.0
  %5724 = vmatprep.subr.mxu0 0.0
  %5725 = vmatpush1.msra.mxu0 0.0
  %5726 = vmatprep.subr.mxu0 0.0
  %5727 = vmatpush1.msra.mxu0 0.0
  %5728 = vmatprep.subr.mxu0 0.0
  %5729 = vmatpush1.msra.mxu0 0.0
  %5730 = vmatprep.subr.mxu0 0.0
  %5731 = vmatpush1.msra.mxu0 0.0
  %5732 = vmatprep.subr.mxu0 0.0
  %5733 = vmatpush1.msra.mxu0 0.0
  %5734 = vmatprep.subr.mxu0 0.0
  %5735 = vmatpush1.msra.mxu0 0.0
  %5736 = vmatprep.subr.mxu0 0.0
  %5737 = vmatpush1.msra.mxu0 0.0
  %5738 = vmatprep.subr.mxu0 0.0
  %5739 = vmatpush1.msra.mxu0 0.0
  %5740 = vmatprep.mubr.f32.mxu0 0.0
  %5741 = vmatmul.mubr.f32.gmra.mrb[0].mxu0 %v5674
  %v5742 = vpop.f32.mrb[0].mxu0
  %v5743 = vadd.f32 0.0, %v5742
  %v5744 = vpop.f32.mrb[0].mxu0
  %5745 = vdwg.mxu0
  %5746 = vrot.lane.b32.xlu0 %v3507, 40
  %v5747 = vpop.permute.xlu0 %5746
  %v5750 = vsel %vm481, %v5669, 0
  %5752 = vmatprep.subr.mxu0 0.0
  %5753 = vmatpush1.msra.mxu0 %v5747
  %5754 = vmatprep.subr.mxu0 0.0
  %5755 = vmatpush1.msra.mxu0 0.0
  %5756 = vmatprep.subr.mxu0 0.0
  %5757 = vmatpush1.msra.mxu0 0.0
  %5758 = vmatprep.subr.mxu0 0.0
  %5759 = vmatpush1.msra.mxu0 0.0
  %5760 = vmatprep.subr.mxu0 0.0
  %5761 = vmatpush1.msra.mxu0 0.0
  %5762 = vmatprep.subr.mxu0 0.0
  %5763 = vmatpush1.msra.mxu0 0.0
  %5764 = vmatprep.subr.mxu0 0.0
  %5765 = vmatpush1.msra.mxu0 0.0
  %5766 = vmatprep.subr.mxu0 0.0
  %5767 = vmatpush1.msra.mxu0 0.0
  %5768 = vmatprep.subr.mxu0 0.0
  %5769 = vmatpush1.msra.mxu0 0.0
  %5770 = vmatprep.subr.mxu0 0.0
  %5771 = vmatpush1.msra.mxu0 0.0
  %5772 = vmatprep.subr.mxu0 0.0
  %5773 = vmatpush1.msra.mxu0 0.0
  %5774 = vmatprep.subr.mxu0 0.0
  %5775 = vmatpush1.msra.mxu0 0.0
  %5776 = vmatprep.subr.mxu0 0.0
  %5777 = vmatpush1.msra.mxu0 0.0
  %5778 = vmatprep.subr.mxu0 0.0
  %5779 = vmatpush1.msra.mxu0 0.0
  %5780 = vmatprep.subr.mxu0 0.0
  %5781 = vmatpush1.msra.mxu0 0.0
  %5782 = vmatprep.subr.mxu0 0.0
  %5783 = vmatpush1.msra.mxu0 0.0
  %5784 = vmatprep.subr.mxu0 0.0
  %5785 = vmatpush1.msra.mxu0 0.0
  %5786 = vmatprep.subr.mxu0 0.0
  %5787 = vmatpush1.msra.mxu0 0.0
  %5788 = vmatprep.subr.mxu0 0.0
  %5789 = vmatpush1.msra.mxu0 0.0
  %5790 = vmatprep.subr.mxu0 0.0
  %5791 = vmatpush1.msra.mxu0 0.0
  %5792 = vmatprep.subr.mxu0 0.0
  %5793 = vmatpush1.msra.mxu0 0.0
  %5794 = vmatprep.subr.mxu0 0.0
  %5795 = vmatpush1.msra.mxu0 0.0
  %5796 = vmatprep.subr.mxu0 0.0
  %5797 = vmatpush1.msra.mxu0 0.0
  %5798 = vmatprep.subr.mxu0 0.0
  %5799 = vmatpush1.msra.mxu0 0.0
  %5800 = vmatprep.subr.mxu0 0.0
  %5801 = vmatpush1.msra.mxu0 0.0
  %5802 = vmatprep.subr.mxu0 0.0
  %5803 = vmatpush1.msra.mxu0 0.0
  %5804 = vmatprep.subr.mxu0 0.0
  %5805 = vmatpush1.msra.mxu0 0.0
  %5806 = vmatprep.subr.mxu0 0.0
  %5807 = vmatpush1.msra.mxu0 0.0
  %5808 = vmatprep.subr.mxu0 0.0
  %5809 = vmatpush1.msra.mxu0 0.0
  %5810 = vmatprep.subr.mxu0 0.0
  %5811 = vmatpush1.msra.mxu0 0.0
  %5812 = vmatprep.subr.mxu0 0.0
  %5813 = vmatpush1.msra.mxu0 0.0
  %5814 = vmatprep.subr.mxu0 0.0
  %5815 = vmatpush1.msra.mxu0 0.0
  %5816 = vmatprep.mubr.f32.mxu0 0.0
  %5817 = vmatmul.mubr.f32.gmra.mrb[0].mxu0 %v5750
  %v5818 = vpop.f32.mrb[0].mxu0
  %v5819 = vadd.f32 0.0, %v5818
  %v5820 = vpop.f32.mrb[0].mxu0
  %5821 = vdwg.mxu0
  %5822 = vrot.lane.b32.xlu0 %v3510, 100
  %v5823 = vpop.permute.xlu0 %5822
  %5824 = vrot.lane.b32.xlu0 %v3502, 68
  %v5825 = vpop.permute.xlu0 %5824
  %v5826 = vsel %vm327, %v5823, 0
  %v5828 = vsel %vm327, %v5825, 0
  %5830 = vmatprep.subr.mxu0 0.0
  %5831 = vmatpush1.xpose.msra.mxu0 %v5828
  %5832 = vmatprep.subr.mxu0 0.0
  %5833 = vmatpush1.xpose.msra.mxu0 0.0
  %5834 = vmatprep.subr.mxu0 0.0
  %5835 = vmatpush1.xpose.msra.mxu0 0.0
  %5836 = vmatprep.subr.mxu0 0.0
  %5837 = vmatpush1.xpose.msra.mxu0 0.0
  %5838 = vmatprep.subr.mxu0 0.0
  %5839 = vmatpush1.xpose.msra.mxu0 0.0
  %5840 = vmatprep.subr.mxu0 0.0
  %5841 = vmatpush1.xpose.msra.mxu0 0.0
  %5842 = vmatprep.subr.mxu0 0.0
  %5843 = vmatpush1.xpose.msra.mxu0 0.0
  %5844 = vmatprep.subr.mxu0 0.0
  %5845 = vmatpush1.xpose.msra.mxu0 0.0
  %5846 = vmatprep.subr.mxu0 0.0
  %5847 = vmatpush1.xpose.msra.mxu0 0.0
  %5848 = vmatprep.subr.mxu0 0.0
  %5849 = vmatpush1.xpose.msra.mxu0 0.0
  %5850 = vmatprep.subr.mxu0 0.0
  %5851 = vmatpush1.xpose.msra.mxu0 0.0
  %5852 = vmatprep.subr.mxu0 0.0
  %5853 = vmatpush1.xpose.msra.mxu0 0.0
  %5854 = vmatprep.subr.mxu0 0.0
  %5855 = vmatpush1.xpose.msra.mxu0 0.0
  %5856 = vmatprep.subr.mxu0 0.0
  %5857 = vmatpush1.xpose.msra.mxu0 0.0
  %5858 = vmatprep.subr.mxu0 0.0
  %5859 = vmatpush1.xpose.msra.mxu0 0.0
  %5860 = vmatprep.subr.mxu0 0.0
  %5861 = vmatpush1.xpose.msra.mxu0 0.0
  %5862 = vmatprep.subr.mxu0 0.0
  %5863 = vmatpush1.xpose.msra.mxu0 0.0
  %5864 = vmatprep.subr.mxu0 0.0
  %5865 = vmatpush1.xpose.msra.mxu0 0.0
  %5866 = vmatprep.subr.mxu0 0.0
  %5867 = vmatpush1.xpose.msra.mxu0 0.0
  %5868 = vmatprep.subr.mxu0 0.0
  %5869 = vmatpush1.xpose.msra.mxu0 0.0
  %5870 = vmatprep.subr.mxu0 0.0
  %5871 = vmatpush1.xpose.msra.mxu0 0.0
  %5872 = vmatprep.subr.mxu0 0.0
  %5873 = vmatpush1.xpose.msra.mxu0 0.0
  %5874 = vmatprep.subr.mxu0 0.0
  %5875 = vmatpush1.xpose.msra.mxu0 0.0
  %5876 = vmatprep.subr.mxu0 0.0
  %5877 = vmatpush1.xpose.msra.mxu0 0.0
  %5878 = vmatprep.subr.mxu0 0.0
  %5879 = vmatpush1.xpose.msra.mxu0 0.0
  %5880 = vmatprep.subr.mxu0 0.0
  %5881 = vmatpush1.xpose.msra.mxu0 0.0
  %5882 = vmatprep.subr.mxu0 0.0
  %5883 = vmatpush1.xpose.msra.mxu0 0.0
  %5884 = vmatprep.subr.mxu0 0.0
  %5885 = vmatpush1.xpose.msra.mxu0 0.0
  %5886 = vmatprep.subr.mxu0 0.0
  %5887 = vmatpush1.xpose.msra.mxu0 0.0
  %5888 = vmatprep.subr.mxu0 0.0
  %5889 = vmatpush1.xpose.msra.mxu0 0.0
  %5890 = vmatprep.subr.mxu0 0.0
  %5891 = vmatpush1.xpose.msra.mxu0 0.0
  %5892 = vmatprep.subr.mxu0 0.0
  %5893 = vmatpush1.xpose.msra.mxu0 0.0
  %5894 = vmatprep.mubr.f32.mxu0 0.0
  %5895 = vmatmul.mubr.f32.gmra.mrb[0].mxu0 %v5826
  %v5896 = vpop.f32.mrb[0].mxu0
  %v5897 = vadd.f32 0.0, %v5896
  %v5898 = vpop.f32.mrb[0].mxu0
  %5899 = vdwg.mxu0
  %5900 = vrot.lane.b32.xlu0 %v3511, 100
  %v5901 = vpop.permute.xlu0 %5900
  %5902 = vrot.lane.b32.xlu0 %v3507, 68
  %v5903 = vpop.permute.xlu0 %5902
  %v5904 = vsel %vm327, %v5901, 0
  %v5906 = vsel %vm327, %v5903, 0
  %5908 = vmatprep.subr.mxu0 0.0
  %5909 = vmatpush1.xpose.msra.mxu0 %v5906
  %5910 = vmatprep.subr.mxu0 0.0
  %5911 = vmatpush1.xpose.msra.mxu0 0.0
  %5912 = vmatprep.subr.mxu0 0.0
  %5913 = vmatpush1.xpose.msra.mxu0 0.0
  %5914 = vmatprep.subr.mxu0 0.0
  %5915 = vmatpush1.xpose.msra.mxu0 0.0
  %5916 = vmatprep.subr.mxu0 0.0
  %5917 = vmatpush1.xpose.msra.mxu0 0.0
  %5918 = vmatprep.subr.mxu0 0.0
  %5919 = vmatpush1.xpose.msra.mxu0 0.0
  %5920 = vmatprep.subr.mxu0 0.0
  %5921 = vmatpush1.xpose.msra.mxu0 0.0
  %5922 = vmatprep.subr.mxu0 0.0
  %5923 = vmatpush1.xpose.msra.mxu0 0.0
  %5924 = vmatprep.subr.mxu0 0.0
  %5925 = vmatpush1.xpose.msra.mxu0 0.0
  %5926 = vmatprep.subr.mxu0 0.0
  %5927 = vmatpush1.xpose.msra.mxu0 0.0
  %5928 = vmatprep.subr.mxu0 0.0
  %5929 = vmatpush1.xpose.msra.mxu0 0.0
  %5930 = vmatprep.subr.mxu0 0.0
  %5931 = vmatpush1.xpose.msra.mxu0 0.0
  %5932 = vmatprep.subr.mxu0 0.0
  %5933 = vmatpush1.xpose.msra.mxu0 0.0
  %5934 = vmatprep.subr.mxu0 0.0
  %5935 = vmatpush1.xpose.msra.mxu0 0.0
  %5936 = vmatprep.subr.mxu0 0.0
  %5937 = vmatpush1.xpose.msra.mxu0 0.0
  %5938 = vmatprep.subr.mxu0 0.0
  %5939 = vmatpush1.xpose.msra.mxu0 0.0
  %5940 = vmatprep.subr.mxu0 0.0
  %5941 = vmatpush1.xpose.msra.mxu0 0.0
  %5942 = vmatprep.subr.mxu0 0.0
  %5943 = vmatpush1.xpose.msra.mxu0 0.0
  %5944 = vmatprep.subr.mxu0 0.0
  %5945 = vmatpush1.xpose.msra.mxu0 0.0
  %5946 = vmatprep.subr.mxu0 0.0
  %5947 = vmatpush1.xpose.msra.mxu0 0.0
  %5948 = vmatprep.subr.mxu0 0.0
  %5949 = vmatpush1.xpose.msra.mxu0 0.0
  %5950 = vmatprep.subr.mxu0 0.0
  %5951 = vmatpush1.xpose.msra.mxu0 0.0
  %5952 = vmatprep.subr.mxu0 0.0
  %5953 = vmatpush1.xpose.msra.mxu0 0.0
  %5954 = vmatprep.subr.mxu0 0.0
  %5955 = vmatpush1.xpose.msra.mxu0 0.0
  %5956 = vmatprep.subr.mxu0 0.0
  %5957 = vmatpush1.xpose.msra.mxu0 0.0
  %5958 = vmatprep.subr.mxu0 0.0
  %5959 = vmatpush1.xpose.msra.mxu0 0.0
  %5960 = vmatprep.subr.mxu0 0.0
  %5961 = vmatpush1.xpose.msra.mxu0 0.0
  %5962 = vmatprep.subr.mxu0 0.0
  %5963 = vmatpush1.xpose.msra.mxu0 0.0
  %5964 = vmatprep.subr.mxu0 0.0
  %5965 = vmatpush1.xpose.msra.mxu0 0.0
  %5966 = vmatprep.subr.mxu0 0.0
  %5967 = vmatpush1.xpose.msra.mxu0 0.0
  %5968 = vmatprep.subr.mxu0 0.0
  %5969 = vmatpush1.xpose.msra.mxu0 0.0
  %5970 = vmatprep.subr.mxu0 0.0
  %5971 = vmatpush1.xpose.msra.mxu0 0.0
  %5972 = vmatprep.mubr.f32.mxu0 0.0
  %5973 = vmatmul.mubr.f32.gmra.mrb[0].mxu0 %v5904
  %v5974 = vpop.f32.mrb[0].mxu0
  %v5975 = vadd.f32 0.0, %v5974
  %v5976 = vpop.f32.mrb[0].mxu0
  %5977 = vdwg.mxu0
  %v5978 = vsel %vm481, %v5897, -inf
  %5979 = vmax.xlane.f32.xlu0 %v5978
  %v5980 = vpop.xlane.xlu0 %5979
  %v5981 = vsel %vm481, %v5975, -inf
  %5982 = vmax.xlane.f32.xlu0 %v5981
  %v5983 = vpop.xlane.xlu0 %5982
  %v5984 = vsub.f32 %v5897, %v5980
  %v5985 = vsub.f32 %v5975, %v5983
  %v5986 = vmul.f32 %v5984, 1.442695
  %v5987 = vpow.pop %v5986
  %v5988 = vmul.f32 %v5985, 1.442695
  %v5989 = vpow.pop %v5988
  %v5990 = vsel %vm481, %v5987, 0.0
  %5991 = vadd.xlane.f32.xlu0 %v5990
  %v5992 = vpop.xlane.xlu0 %5991
  %v5993 = vsel %vm481, %v5989, 0.0
  %5994 = vadd.xlane.f32.xlu0 %v5993
  %v5995 = vpop.xlane.xlu0 %5994
  %v5996 = vrcp.pop %v5992
  %v5997 = vrcp.pop %v5995
  %v5998 = vmul.f32 %v5987, %v5996
  %v5999 = vmul.f32 %v5989, %v5997
  %6000 = vrot.lane.b32.xlu0 %v3502, 36
  %v6001 = vpop.permute.xlu0 %6000
  %v6004 = vsel %vm481, %v5998, 0
  %6006 = vmatprep.subr.mxu0 0.0
  %6007 = vmatpush1.msra.mxu0 %v6001
  %6008 = vmatprep.subr.mxu0 0.0
  %6009 = vmatpush1.msra.mxu0 0.0
  %6010 = vmatprep.subr.mxu0 0.0
  %6011 = vmatpush1.msra.mxu0 0.0
  %6012 = vmatprep.subr.mxu0 0.0
  %6013 = vmatpush1.msra.mxu0 0.0
  %6014 = vmatprep.subr.mxu0 0.0
  %6015 = vmatpush1.msra.mxu0 0.0
  %6016 = vmatprep.subr.mxu0 0.0
  %6017 = vmatpush1.msra.mxu0 0.0
  %6018 = vmatprep.subr.mxu0 0.0
  %6019 = vmatpush1.msra.mxu0 0.0
  %6020 = vmatprep.subr.mxu0 0.0
  %6021 = vmatpush1.msra.mxu0 0.0
  %6022 = vmatprep.subr.mxu0 0.0
  %6023 = vmatpush1.msra.mxu0 0.0
  %6024 = vmatprep.subr.mxu0 0.0
  %6025 = vmatpush1.msra.mxu0 0.0
  %6026 = vmatprep.subr.mxu0 0.0
  %6027 = vmatpush1.msra.mxu0 0.0
  %6028 = vmatprep.subr.mxu0 0.0
  %6029 = vmatpush1.msra.mxu0 0.0
  %6030 = vmatprep.subr.mxu0 0.0
  %6031 = vmatpush1.msra.mxu0 0.0
  %6032 = vmatprep.subr.mxu0 0.0
  %6033 = vmatpush1.msra.mxu0 0.0
  %6034 = vmatprep.subr.mxu0 0.0
  %6035 = vmatpush1.msra.mxu0 0.0
  %6036 = vmatprep.subr.mxu0 0.0
  %6037 = vmatpush1.msra.mxu0 0.0
  %6038 = vmatprep.subr.mxu0 0.0
  %6039 = vmatpush1.msra.mxu0 0.0
  %6040 = vmatprep.subr.mxu0 0.0
  %6041 = vmatpush1.msra.mxu0 0.0
  %6042 = vmatprep.subr.mxu0 0.0
  %6043 = vmatpush1.msra.mxu0 0.0
  %6044 = vmatprep.subr.mxu0 0.0
  %6045 = vmatpush1.msra.mxu0 0.0
  %6046 = vmatprep.subr.mxu0 0.0
  %6047 = vmatpush1.msra.mxu0 0.0
  %6048 = vmatprep.subr.mxu0 0.0
  %6049 = vmatpush1.msra.mxu0 0.0
  %6050 = vmatprep.subr.mxu0 0.0
  %6051 = vmatpush1.msra.mxu0 0.0
  %6052 = vmatprep.subr.mxu0 0.0
  %6053 = vmatpush1.msra.mxu0 0.0
  %6054 = vmatprep.subr.mxu0 0.0
  %6055 = vmatpush1.msra.mxu0 0.0
  %6056 = vmatprep.subr.mxu0 0.0
  %6057 = vmatpush1.msra.mxu0 0.0
  %6058 = vmatprep.subr.mxu0 0.0
  %6059 = vmatpush1.msra.mxu0 0.0
  %6060 = vmatprep.subr.mxu0 0.0
  %6061 = vmatpush1.msra.mxu0 0.0
  %6062 = vmatprep.subr.mxu0 0.0
  %6063 = vmatpush1.msra.mxu0 0.0
  %6064 = vmatprep.subr.mxu0 0.0
  %6065 = vmatpush1.msra.mxu0 0.0
  %6066 = vmatprep.subr.mxu0 0.0
  %6067 = vmatpush1.msra.mxu0 0.0
  %6068 = vmatprep.subr.mxu0 0.0
  %6069 = vmatpush1.msra.mxu0 0.0
  %6070 = vmatprep.mubr.f32.mxu0 0.0
  %6071 = vmatmul.mubr.f32.gmra.mrb[0].mxu0 %v6004
  %v6072 = vpop.f32.mrb[0].mxu0
  %v6073 = vadd.f32 0.0, %v6072
  %v6074 = vpop.f32.mrb[0].mxu0
  %6075 = vdwg.mxu0
  %6076 = vrot.lane.b32.xlu0 %v3507, 36
  %v6077 = vpop.permute.xlu0 %6076
  %v6080 = vsel %vm481, %v5999, 0
  %6082 = vmatprep.subr.mxu0 0.0
  %6083 = vmatpush1.msra.mxu0 %v6077
  %6084 = vmatprep.subr.mxu0 0.0
  %6085 = vmatpush1.msra.mxu0 0.0
  %6086 = vmatprep.subr.mxu0 0.0
  %6087 = vmatpush1.msra.mxu0 0.0
  %6088 = vmatprep.subr.mxu0 0.0
  %6089 = vmatpush1.msra.mxu0 0.0
  %6090 = vmatprep.subr.mxu0 0.0
  %6091 = vmatpush1.msra.mxu0 0.0
  %6092 = vmatprep.subr.mxu0 0.0
  %6093 = vmatpush1.msra.mxu0 0.0
  %6094 = vmatprep.subr.mxu0 0.0
  %6095 = vmatpush1.msra.mxu0 0.0
  %6096 = vmatprep.subr.mxu0 0.0
  %6097 = vmatpush1.msra.mxu0 0.0
  %6098 = vmatprep.subr.mxu0 0.0
  %6099 = vmatpush1.msra.mxu0 0.0
  %6100 = vmatprep.subr.mxu0 0.0
  %6101 = vmatpush1.msra.mxu0 0.0
  %6102 = vmatprep.subr.mxu0 0.0
  %6103 = vmatpush1.msra.mxu0 0.0
  %6104 = vmatprep.subr.mxu0 0.0
  %6105 = vmatpush1.msra.mxu0 0.0
  %6106 = vmatprep.subr.mxu0 0.0
  %6107 = vmatpush1.msra.mxu0 0.0
  %6108 = vmatprep.subr.mxu0 0.0
  %6109 = vmatpush1.msra.mxu0 0.0
  %6110 = vmatprep.subr.mxu0 0.0
  %6111 = vmatpush1.msra.mxu0 0.0
  %6112 = vmatprep.subr.mxu0 0.0
  %6113 = vmatpush1.msra.mxu0 0.0
  %6114 = vmatprep.subr.mxu0 0.0
  %6115 = vmatpush1.msra.mxu0 0.0
  %6116 = vmatprep.subr.mxu0 0.0
  %6117 = vmatpush1.msra.mxu0 0.0
  %6118 = vmatprep.subr.mxu0 0.0
  %6119 = vmatpush1.msra.mxu0 0.0
  %6120 = vmatprep.subr.mxu0 0.0
  %6121 = vmatpush1.msra.mxu0 0.0
  %6122 = vmatprep.subr.mxu0 0.0
  %6123 = vmatpush1.msra.mxu0 0.0
  %6124 = vmatprep.subr.mxu0 0.0
  %6125 = vmatpush1.msra.mxu0 0.0
  %6126 = vmatprep.subr.mxu0 0.0
  %6127 = vmatpush1.msra.mxu0 0.0
  %6128 = vmatprep.subr.mxu0 0.0
  %6129 = vmatpush1.msra.mxu0 0.0
  %6130 = vmatprep.subr.mxu0 0.0
  %6131 = vmatpush1.msra.mxu0 0.0
  %6132 = vmatprep.subr.mxu0 0.0
  %6133 = vmatpush1.msra.mxu0 0.0
  %6134 = vmatprep.subr.mxu0 0.0
  %6135 = vmatpush1.msra.mxu0 0.0
  %6136 = vmatprep.subr.mxu0 0.0
  %6137 = vmatpush1.msra.mxu0 0.0
  %6138 = vmatprep.subr.mxu0 0.0
  %6139 = vmatpush1.msra.mxu0 0.0
  %6140 = vmatprep.subr.mxu0 0.0
  %6141 = vmatpush1.msra.mxu0 0.0
  %6142 = vmatprep.subr.mxu0 0.0
  %6143 = vmatpush1.msra.mxu0 0.0
  %6144 = vmatprep.subr.mxu0 0.0
  %6145 = vmatpush1.msra.mxu0 0.0
  %6146 = vmatprep.mubr.f32.mxu0 0.0
  %6147 = vmatmul.mubr.f32.gmra.mrb[0].mxu0 %v6080
  %v6148 = vpop.f32.mrb[0].mxu0
  %v6149 = vadd.f32 0.0, %v6148
  %v6150 = vpop.f32.mrb[0].mxu0
  %6151 = vdwg.mxu0
  %6154 = vrot.lane.b32.xlu0 %v4093, 4
  %v6155 = vpop.permute.xlu0 %6154
  %6156 = vrot.lane.b32.xlu0 %v4169, 4
  %v6157 = vpop.permute.xlu0 %6156
  %6162 = vrot.lane.b32.xlu0 %v4423, 8
  %v6163 = vpop.permute.xlu0 %6162
  %6164 = vrot.lane.b32.xlu0 %v4499, 8
  %v6165 = vpop.permute.xlu0 %6164
  %6170 = vrot.lane.b32.xlu0 %v4753, 12
  %v6171 = vpop.permute.xlu0 %6170
  %6172 = vrot.lane.b32.xlu0 %v4829, 12
  %v6173 = vpop.permute.xlu0 %6172
  %6178 = vrot.lane.b32.xlu0 %v5083, 16
  %v6179 = vpop.permute.xlu0 %6178
  %6180 = vrot.lane.b32.xlu0 %v5159, 16
  %v6181 = vpop.permute.xlu0 %6180
  %6186 = vrot.lane.b32.xlu0 %v5413, 20
  %v6187 = vpop.permute.xlu0 %6186
  %6188 = vrot.lane.b32.xlu0 %v5489, 20
  %v6189 = vpop.permute.xlu0 %6188
  %6194 = vrot.lane.b32.xlu0 %v5743, 24
  %v6195 = vpop.permute.xlu0 %6194
  %6196 = vrot.lane.b32.xlu0 %v5819, 24
  %v6197 = vpop.permute.xlu0 %6196
  %6202 = vrot.lane.b32.xlu0 %v6073, 28
  %v6203 = vpop.permute.xlu0 %6202
  %6204 = vrot.lane.b32.xlu0 %v6149, 28
  %v6205 = vpop.permute.xlu0 %6204
  %v6208 = vsel %vm327, %v3763, %v6155
  %v6209 = vsel %vm327, %v3839, %v6157
  %v6210 = vsel %vm481, %v6208, %v6163
  %v6211 = vsel %vm481, %v6209, %v6165
  %v6212 = vsel %vm3026, %v6210, %v6171
  %v6213 = vsel %vm3026, %v6211, %v6173
  %v6214 = vsel %vm98, %v6212, %v6179
  %v6215 = vsel %vm98, %v6213, %v6181
  %v6216 = vsel %vm3031, %v6214, %v6187
  %v6217 = vsel %vm3031, %v6215, %v6189
  %v6218 = vsel %vm3034, %v6216, %v6195
  %v6219 = vsel %vm3034, %v6217, %v6197
  %v6220 = vsel %vm3037, %v6218, %v6203
  %v6221 = vsel %vm3037, %v6219, %v6205
  %s6222 = scalar_lea.vmem %s8, 32
  %v6223 = vld [vmem:[%s6222] sm:$0xff]
  %v6224 = vld [vmem:[%s6222 + $0x8] sm:$0xff]
  %v6225 = vld [vmem:[%s6222 + $0x10] sm:$0xff]
  %v6226 = vld [vmem:[%s6222 + $0x18] sm:$0xff]
  %s6227 = scalar_lea.vmem %s9, 1
  %v6228 = vld [vmem:[%s6227] sm:$0x1]
  %v6230 = vlaneseq
  %v6231 = vshrl.u32 %v6230, 7
  %v6232 = vsub.s32 0, %v6231
  %v6233 = vrot.slane %v6228, %v6232
  %v6236 = vsel %vm186, %v6220, 0
  %v6239 = vsel %vm186, %v6221, 0
  %6241 = vmatprep.subr.mxu0 0.0
  %6242 = vmatpush1.msra.mxu0 %v6223
  %6243 = vmatprep.subr.mxu0 0.0
  %6244 = vmatpush1.msra.mxu0 %v6224
  %6245 = vmatprep.subr.mxu0 0.0
  %6246 = vmatpush1.msra.mxu0 %v6225
  %6247 = vmatprep.subr.mxu0 0.0
  %6248 = vmatpush1.msra.mxu0 %v6226
  %6249 = vmatprep.subr.mxu0 0.0
  %6250 = vmatpush1.msra.mxu0 0.0
  %6251 = vmatprep.subr.mxu0 0.0
  %6252 = vmatpush1.msra.mxu0 0.0
  %6253 = vmatprep.subr.mxu0 0.0
  %6254 = vmatpush1.msra.mxu0 0.0
  %6255 = vmatprep.subr.mxu0 0.0
  %6256 = vmatpush1.msra.mxu0 0.0
  %6257 = vmatprep.subr.mxu0 0.0
  %6258 = vmatpush1.msra.mxu0 0.0
  %6259 = vmatprep.subr.mxu0 0.0
  %6260 = vmatpush1.msra.mxu0 0.0
  %6261 = vmatprep.subr.mxu0 0.0
  %6262 = vmatpush1.msra.mxu0 0.0
  %6263 = vmatprep.subr.mxu0 0.0
  %6264 = vmatpush1.msra.mxu0 0.0
  %6265 = vmatprep.subr.mxu0 0.0
  %6266 = vmatpush1.msra.mxu0 0.0
  %6267 = vmatprep.subr.mxu0 0.0
  %6268 = vmatpush1.msra.mxu0 0.0
  %6269 = vmatprep.subr.mxu0 0.0
  %6270 = vmatpush1.msra.mxu0 0.0
  %6271 = vmatprep.subr.mxu0 0.0
  %6272 = vmatpush1.msra.mxu0 0.0
  %6273 = vmatprep.subr.mxu0 0.0
  %6274 = vmatpush1.msra.mxu0 0.0
  %6275 = vmatprep.subr.mxu0 0.0
  %6276 = vmatpush1.msra.mxu0 0.0
  %6277 = vmatprep.subr.mxu0 0.0
  %6278 = vmatpush1.msra.mxu0 0.0
  %6279 = vmatprep.subr.mxu0 0.0
  %6280 = vmatpush1.msra.mxu0 0.0
  %6281 = vmatprep.subr.mxu0 0.0
  %6282 = vmatpush1.msra.mxu0 0.0
  %6283 = vmatprep.subr.mxu0 0.0
  %6284 = vmatpush1.msra.mxu0 0.0
  %6285 = vmatprep.subr.mxu0 0.0
  %6286 = vmatpush1.msra.mxu0 0.0
  %6287 = vmatprep.subr.mxu0 0.0
  %6288 = vmatpush1.msra.mxu0 0.0
  %6289 = vmatprep.subr.mxu0 0.0
  %6290 = vmatpush1.msra.mxu0 0.0
  %6291 = vmatprep.subr.mxu0 0.0
  %6292 = vmatpush1.msra.mxu0 0.0
  %6293 = vmatprep.subr.mxu0 0.0
  %6294 = vmatpush1.msra.mxu0 0.0
  %6295 = vmatprep.subr.mxu0 0.0
  %6296 = vmatpush1.msra.mxu0 0.0
  %6297 = vmatprep.subr.mxu0 0.0
  %6298 = vmatpush1.msra.mxu0 0.0
  %6299 = vmatprep.subr.mxu0 0.0
  %6300 = vmatpush1.msra.mxu0 0.0
  %6301 = vmatprep.subr.mxu0 0.0
  %6302 = vmatpush1.msra.mxu0 0.0
  %6303 = vmatprep.subr.mxu0 0.0
  %6304 = vmatpush1.msra.mxu0 0.0
  %6305 = vmatprep.mubr.f32.mxu0 0.0
  %6306 = vmatmul.mubr.f32.gmra.mrb[0].mxu0 %v6236
  %v6307 = vpop.f32.mrb[0].mxu0
  %v6308 = vadd.f32 %v6233, %v6307
  %v6309 = vpop.f32.mrb[0].mxu0
  %6310 = vmatprep.mubr.f32.mxu0 0.0
  %6311 = vmatmul.mubr.f32.gmra.mrb[0].mxu0 %v6239
  %v6312 = vpop.f32.mrb[0].mxu0
  %v6313 = vadd.f32 %v6233, %v6312
  %v6314 = vpop.f32.mrb[0].mxu0
  %6315 = vdwg.mxu0
  %v6316 = vadd.f32 %v3414, %v6308
  %v6317 = vadd.f32 %v3415, %v6313
  %s6318 = scalar_lea.vmem %s10, 1
  %v6319 = vld [vmem:[%s6318] sm:$0x1]
  %s6320 = scalar_lea.vmem %s11, 1
  %v6321 = vld [vmem:[%s6320] sm:$0x1]
  %v6322 = vsel %vm186, %v6316, 0.0
  %6323 = vadd.xlane.f32.xlu0 %v6322
  %v6324 = vpop.xlane.xlu0 %6323
  %v6325 = vsel %vm186, %v6317, 0.0
  %6326 = vadd.xlane.f32.xlu0 %v6325
  %v6327 = vpop.xlane.xlu0 %6326
  %v6328 = vmul.f32 %v6324, %v193
  %v6329 = vmul.f32 %v6327, %v193
  %v6330 = vsub.f32 %v6316, %v6328
  %v6331 = vsub.f32 %v6317, %v6329
  %v6332 = vmul.f32 %v6330, %v6330
  %v6333 = vmul.f32 %v6331, %v6331
  %v6334 = vsel %vm186, %v6332, 0.0
  %6335 = vadd.xlane.f32.xlu0 %v6334
  %v6336 = vpop.xlane.xlu0 %6335
  %v6337 = vsel %vm186, %v6333, 0.0
  %6338 = vadd.xlane.f32.xlu0 %v6337
  %v6339 = vpop.xlane.xlu0 %6338
  %v6340 = vmul.f32 %v6336, %v193
  %v6341 = vmul.f32 %v6339, %v193
  %v6342 = vadd.f32 %v6340, 1e-05
  %v6343 = vadd.f32 %v6341, 1e-05
  %v6344 = vrsqrt.pop %v6342
  %v6345 = vrsqrt.pop %v6343
  %v6346 = vmul.f32 %v6330, %v6344
  %v6347 = vmul.f32 %v6331, %v6345
  %v6349 = vlaneseq
  %v6350 = vshrl.u32 %v6349, 7
  %v6351 = vsub.s32 0, %v6350
  %v6352 = vrot.slane %v6319, %v6351
  %v6354 = vmul.f32 %v6346, %v6352
  %v6355 = vmul.f32 %v6347, %v6352
  %v6357 = vlaneseq
  %v6358 = vshrl.u32 %v6357, 7
  %v6359 = vsub.s32 0, %v6358
  %v6360 = vrot.slane %v6321, %v6359
  %v6362 = vadd.f32 %v6354, %v6360
  %v6363 = vadd.f32 %v6355, %v6360
  %s6364 = scalar_lea.vmem %s12, 32
  %v6365 = vld [vmem:[%s6364] sm:$0xff]
  %v6366 = vld [vmem:[%s6364 + $0x8] sm:$0xff]
  %v6367 = vld [vmem:[%s6364 + $0x10] sm:$0xff]
  %v6368 = vld [vmem:[%s6364 + $0x18] sm:$0xff]
  %s6369 = scalar_lea.vmem %s13, 1
  %v6370 = vld [vmem:[%s6369] sm:$0x1]
  %v6372 = vlaneseq
  %v6373 = vshrl.u32 %v6372, 7
  %v6374 = vsub.s32 0, %v6373
  %v6375 = vrot.slane %v6370, %v6374
  %v6378 = vsel %vm186, %v6362, 0
  %v6381 = vsel %vm186, %v6363, 0
  %6383 = vmatprep.subr.mxu0 0.0
  %6384 = vmatpush1.msra.mxu0 %v6365
  %6385 = vmatprep.subr.mxu0 0.0
  %6386 = vmatpush1.msra.mxu0 %v6366
  %6387 = vmatprep.subr.mxu0 0.0
  %6388 = vmatpush1.msra.mxu0 %v6367
  %6389 = vmatprep.subr.mxu0 0.0
  %6390 = vmatpush1.msra.mxu0 %v6368
  %6391 = vmatprep.subr.mxu0 0.0
  %6392 = vmatpush1.msra.mxu0 0.0
  %6393 = vmatprep.subr.mxu0 0.0
  %6394 = vmatpush1.msra.mxu0 0.0
  %6395 = vmatprep.subr.mxu0 0.0
  %6396 = vmatpush1.msra.mxu0 0.0
  %6397 = vmatprep.subr.mxu0 0.0
  %6398 = vmatpush1.msra.mxu0 0.0
  %6399 = vmatprep.subr.mxu0 0.0
  %6400 = vmatpush1.msra.mxu0 0.0
  %6401 = vmatprep.subr.mxu0 0.0
  %6402 = vmatpush1.msra.mxu0 0.0
  %6403 = vmatprep.subr.mxu0 0.0
  %6404 = vmatpush1.msra.mxu0 0.0
  %6405 = vmatprep.subr.mxu0 0.0
  %6406 = vmatpush1.msra.mxu0 0.0
  %6407 = vmatprep.subr.mxu0 0.0
  %6408 = vmatpush1.msra.mxu0 0.0
  %6409 = vmatprep.subr.mxu0 0.0
  %6410 = vmatpush1.msra.mxu0 0.0
  %6411 = vmatprep.subr.mxu0 0.0
  %6412 = vmatpush1.msra.mxu0 0.0
  %6413 = vmatprep.subr.mxu0 0.0
  %6414 = vmatpush1.msra.mxu0 0.0
  %6415 = vmatprep.subr.mxu0 0.0
  %6416 = vmatpush1.msra.mxu0 0.0
  %6417 = vmatprep.subr.mxu0 0.0
  %6418 = vmatpush1.msra.mxu0 0.0
  %6419 = vmatprep.subr.mxu0 0.0
  %6420 = vmatpush1.msra.mxu0 0.0
  %6421 = vmatprep.subr.mxu0 0.0
  %6422 = vmatpush1.msra.mxu0 0.0
  %6423 = vmatprep.subr.mxu0 0.0
  %6424 = vmatpush1.msra.mxu0 0.0
  %6425 = vmatprep.subr.mxu0 0.0
  %6426 = vmatpush1.msra.mxu0 0.0
  %6427 = vmatprep.subr.mxu0 0.0
  %6428 = vmatpush1.msra.mxu0 0.0
  %6429 = vmatprep.subr.mxu0 0.0
  %6430 = vmatpush1.msra.mxu0 0.0
  %6431 = vmatprep.subr.mxu0 0.0
  %6432 = vmatpush1.msra.mxu0 0.0
  %6433 = vmatprep.subr.mxu0 0.0
  %6434 = vmatpush1.msra.mxu0 0.0
  %6435 = vmatprep.subr.mxu0 0.0
  %6436 = vmatpush1.msra.mxu0 0.0
  %6437 = vmatprep.subr.mxu0 0.0
  %6438 = vmatpush1.msra.mxu0 0.0
  %6439 = vmatprep.subr.mxu0 0.0
  %6440 = vmatpush1.msra.mxu0 0.0
  %6441 = vmatprep.subr.mxu0 0.0
  %6442 = vmatpush1.msra.mxu0 0.0
  %6443 = vmatprep.subr.mxu0 0.0
  %6444 = vmatpush1.msra.mxu0 0.0
  %6445 = vmatprep.subr.mxu0 0.0
  %6446 = vmatpush1.msra.mxu0 0.0
  %6447 = vmatprep.mubr.f32.mxu0 0.0
  %6448 = vmatmul.mubr.f32.gmra.mrb[0].mxu0 %v6378
  %v6449 = vpop.f32.mrb[0].mxu0
  %v6450 = vadd.f32 %v6375, %v6449
  %v6451 = vpop.f32.mrb[0].mxu0
  %6452 = vmatprep.mubr.f32.mxu0 0.0
  %6453 = vmatmul.mubr.f32.gmra.mrb[0].mxu0 %v6381
  %v6454 = vpop.f32.mrb[0].mxu0
  %v6455 = vadd.f32 %v6375, %v6454
  %v6456 = vpop.f32.mrb[0].mxu0
  %6457 = vdwg.mxu0
  %v6458 = vmax.f32 %v6450, 0.0
  %v6459 = vmax.f32 %v6455, 0.0
  %s6460 = scalar_lea.vmem %s14, 128
  %v6461 = vld [vmem:[%s6460] sm:$0xff]
  %v6462 = vld [vmem:[%s6460 + $0x8] sm:$0xff]
  %v6463 = vld [vmem:[%s6460 + $0x10] sm:$0xff]
  %v6464 = vld [vmem:[%s6460 + $0x18] sm:$0xff]
  %v6465 = vld [vmem:[%s6460 + $0x20] sm:$0xff]
  %v6466 = vld [vmem:[%s6460 + $0x28] sm:$0xff]
  %v6467 = vld [vmem:[%s6460 + $0x30] sm:$0xff]
  %v6468 = vld [vmem:[%s6460 + $0x38] sm:$0xff]
  %v6469 = vld [vmem:[%s6460 + $0x40] sm:$0xff]
  %v6470 = vld [vmem:[%s6460 + $0x48] sm:$0xff]
  %v6471 = vld [vmem:[%s6460 + $0x50] sm:$0xff]
  %v6472 = vld [vmem:[%s6460 + $0x58] sm:$0xff]
  %v6473 = vld [vmem:[%s6460 + $0x60] sm:$0xff]
  %v6474 = vld [vmem:[%s6460 + $0x68] sm:$0xff]
  %v6475 = vld [vmem:[%s6460 + $0x70] sm:$0xff]
  %v6476 = vld [vmem:[%s6460 + $0x78] sm:$0xff]
  %s6477 = scalar_lea.vmem %s15, 1
  %v6478 = vld [vmem:[%s6477] sm:$0x1]
  %v6480 = vlaneseq
  %v6481 = vshrl.u32 %v6480, 7
  %v6482 = vsub.s32 0, %v6481
  %v6483 = vrot.slane %v6478, %v6482
  %6485 = vmatprep.subr.mxu0 0.0
  %6486 = vmatpush1.msra.mxu0 %v6461
  %6487 = vmatprep.subr.mxu0 0.0
  %6488 = vmatpush1.msra.mxu0 %v6462
  %6489 = vmatprep.subr.mxu0 0.0
  %6490 = vmatpush1.msra.mxu0 %v6463
  %6491 = vmatprep.subr.mxu0 0.0
  %6492 = vmatpush1.msra.mxu0 %v6464
  %6493 = vmatprep.subr.mxu0 0.0
  %6494 = vmatpush1.msra.mxu0 %v6465
  %6495 = vmatprep.subr.mxu0 0.0
  %6496 = vmatpush1.msra.mxu0 %v6466
  %6497 = vmatprep.subr.mxu0 0.0
  %6498 = vmatpush1.msra.mxu0 %v6467
  %6499 = vmatprep.subr.mxu0 0.0
  %6500 = vmatpush1.msra.mxu0 %v6468
  %6501 = vmatprep.subr.mxu0 0.0
  %6502 = vmatpush1.msra.mxu0 %v6469
  %6503 = vmatprep.subr.mxu0 0.0
  %6504 = vmatpush1.msra.mxu0 %v6470
  %6505 = vmatprep.subr.mxu0 0.0
  %6506 = vmatpush1.msra.mxu0 %v6471
  %6507 = vmatprep.subr.mxu0 0.0
  %6508 = vmatpush1.msra.mxu0 %v6472
  %6509 = vmatprep.subr.mxu0 0.0
  %6510 = vmatpush1.msra.mxu0 %v6473
  %6511 = vmatprep.subr.mxu0 0.0
  %6512 = vmatpush1.msra.mxu0 %v6474
  %6513 = vmatprep.subr.mxu0 0.0
  %6514 = vmatpush1.msra.mxu0 %v6475
  %6515 = vmatprep.subr.mxu0 0.0
  %6516 = vmatpush1.msra.mxu0 %v6476
  %6517 = vmatprep.subr.mxu0 0.0
  %6518 = vmatpush1.msra.mxu0 0.0
  %6519 = vmatprep.subr.mxu0 0.0
  %6520 = vmatpush1.msra.mxu0 0.0
  %6521 = vmatprep.subr.mxu0 0.0
  %6522 = vmatpush1.msra.mxu0 0.0
  %6523 = vmatprep.subr.mxu0 0.0
  %6524 = vmatpush1.msra.mxu0 0.0
  %6525 = vmatprep.subr.mxu0 0.0
  %6526 = vmatpush1.msra.mxu0 0.0
  %6527 = vmatprep.subr.mxu0 0.0
  %6528 = vmatpush1.msra.mxu0 0.0
  %6529 = vmatprep.subr.mxu0 0.0
  %6530 = vmatpush1.msra.mxu0 0.0
  %6531 = vmatprep.subr.mxu0 0.0
  %6532 = vmatpush1.msra.mxu0 0.0
  %6533 = vmatprep.subr.mxu0 0.0
  %6534 = vmatpush1.msra.mxu0 0.0
  %6535 = vmatprep.subr.mxu0 0.0
  %6536 = vmatpush1.msra.mxu0 0.0
  %6537 = vmatprep.subr.mxu0 0.0
  %6538 = vmatpush1.msra.mxu0 0.0
  %6539 = vmatprep.subr.mxu0 0.0
  %6540 = vmatpush1.msra.mxu0 0.0
  %6541 = vmatprep.subr.mxu0 0.0
  %6542 = vmatpush1.msra.mxu0 0.0
  %6543 = vmatprep.subr.mxu0 0.0
  %6544 = vmatpush1.msra.mxu0 0.0
  %6545 = vmatprep.subr.mxu0 0.0
  %6546 = vmatpush1.msra.mxu0 0.0
  %6547 = vmatprep.subr.mxu0 0.0
  %6548 = vmatpush1.msra.mxu0 0.0
  %6549 = vmatprep.mubr.f32.mxu0 0.0
  %6550 = vmatmul.mubr.f32.gmra.mrb[0].mxu0 %v6458
  %v6551 = vpop.f32.mrb[0].mxu0
  %v6552 = vadd.f32 %v6483, %v6551
  %v6553 = vpop.f32.mrb[0].mxu0
  %6554 = vmatprep.mubr.f32.mxu0 0.0
  %6555 = vmatmul.mubr.f32.gmra.mrb[0].mxu0 %v6459
  %v6556 = vpop.f32.mrb[0].mxu0
  %v6557 = vadd.f32 %v6483, %v6556
  %v6558 = vpop.f32.mrb[0].mxu0
  %6559 = vdwg.mxu0
  %v6560 = vadd.f32 %v6362, %v6552
  %v6561 = vadd.f32 %v6363, %v6557
  %s6562 = scalar_lea.vmem %s16, 1
  %v6563 = vld [vmem:[%s6562] sm:$0x1]
  %s6564 = scalar_lea.vmem %s17, 1
  %v6565 = vld [vmem:[%s6564] sm:$0x1]
  %v6566 = vsel %vm186, %v6560, 0.0
  %6567 = vadd.xlane.f32.xlu0 %v6566
  %v6568 = vpop.xlane.xlu0 %6567
  %v6569 = vsel %vm186, %v6561, 0.0
  %6570 = vadd.xlane.f32.xlu0 %v6569
  %v6571 = vpop.xlane.xlu0 %6570
  %v6572 = vmul.f32 %v6568, %v193
  %v6573 = vmul.f32 %v6571, %v193
  %v6574 = vsub.f32 %v6560, %v6572
  %v6575 = vsub.f32 %v6561, %v6573
  %v6576 = vmul.f32 %v6574, %v6574
  %v6577 = vmul.f32 %v6575, %v6575
  %v6578 = vsel %vm186, %v6576, 0.0
  %6579 = vadd.xlane.f32.xlu0 %v6578
  %v6580 = vpop.xlane.xlu0 %6579
  %v6581 = vsel %vm186, %v6577, 0.0
  %6582 = vadd.xlane.f32.xlu0 %v6581
  %v6583 = vpop.xlane.xlu0 %6582
  %v6584 = vmul.f32 %v6580, %v193
  %v6585 = vmul.f32 %v6583, %v193
  %v6586 = vadd.f32 %v6584, 1e-05
  %v6587 = vadd.f32 %v6585, 1e-05
  %v6588 = vrsqrt.pop %v6586
  %v6589 = vrsqrt.pop %v6587
  %v6590 = vmul.f32 %v6574, %v6588
  %v6591 = vmul.f32 %v6575, %v6589
  %v6593 = vlaneseq
  %v6594 = vshrl.u32 %v6593, 7
  %v6595 = vsub.s32 0, %v6594
  %v6596 = vrot.slane %v6563, %v6595
  %v6598 = vmul.f32 %v6590, %v6596
  %v6599 = vmul.f32 %v6591, %v6596
  %v6601 = vlaneseq
  %v6602 = vshrl.u32 %v6601, 7
  %v6603 = vsub.s32 0, %v6602
  %v6604 = vrot.slane %v6565, %v6603
  %v6606 = vadd.f32 %v6598, %v6604
  %v6607 = vadd.f32 %v6599, %v6604
  %v6608 = vld [vmem:[%s18] sm:$0x1]
  %v6609 = vld [vmem:[%s19] sm:$0x1]
  %v6610 = vsel %vm186, %v6606, 0.0
  %6611 = vadd.xlane.f32.xlu0 %v6610
  %v6612 = vpop.xlane.xlu0 %6611
  %v6613 = vsel %vm186, %v6607, 0.0
  %6614 = vadd.xlane.f32.xlu0 %v6613
  %v6615 = vpop.xlane.xlu0 %6614
  %v6616 = vmul.f32 %v6612, %v193
  %v6617 = vmul.f32 %v6615, %v193
  %v6618 = vsub.f32 %v6606, %v6616
  %v6619 = vsub.f32 %v6607, %v6617
  %v6620 = vmul.f32 %v6618, %v6618
  %v6621 = vmul.f32 %v6619, %v6619
  %v6622 = vsel %vm186, %v6620, 0.0
  %6623 = vadd.xlane.f32.xlu0 %v6622
  %v6624 = vpop.xlane.xlu0 %6623
  %v6625 = vsel %vm186, %v6621, 0.0
  %6626 = vadd.xlane.f32.xlu0 %v6625
  %v6627 = vpop.xlane.xlu0 %6626
  %v6628 = vmul.f32 %v6624, %v193
  %v6629 = vmul.f32 %v6627, %v193
  %v6630 = vadd.f32 %v6628, 1e-05
  %v6631 = vadd.f32 %v6629, 1e-05
  %v6632 = vrsqrt.pop %v6630
  %v6633 = vrsqrt.pop %v6631
  %v6634 = vmul.f32 %v6618, %v6632
  %v6635 = vmul.f32 %v6619, %v6633
  %v6637 = vlaneseq
  %v6638 = vshrl.u32 %v6637, 7
  %v6639 = vsub.s32 0, %v6638
  %v6640 = vrot.slane %v6608, %v6639
  %v6642 = vmul.f32 %v6634, %v6640
  %v6643 = vmul.f32 %v6635, %v6640
  %v6645 = vlaneseq
  %v6646 = vshrl.u32 %v6645, 7
  %v6647 = vsub.s32 0, %v6646
  %v6648 = vrot.slane %v6609, %v6647
  %v6650 = vadd.f32 %v6642, %v6648
  %v6651 = vadd.f32 %v6643, %v6648
  %v6652 = vld [vmem:[%s20] sm:$0x1]
  %v6654 = vlaneseq
  %v6655 = vshrl.u32 %v6654, 7
  %v6656 = vsub.s32 0, %v6655
  %v6657 = vrot.slane %v6652, %v6656
  %v6659 = vmul.f32 %v6650, %v6657
  %v6660 = vmul.f32 %v6651, %v6657
  %v6661 = vsel %vm186, %v6659, 0.0
  %6662 = vadd.xlane.f32.xlu0 %v6661
  %v6663 = vpop.xlane.xlu0 %6662
  %v6664 = vsel %vm186, %v6660, 0.0
  %6665 = vadd.xlane.f32.xlu0 %v6664
  %v6666 = vpop.xlane.xlu0 %6665
  %v6667 = vld [vmem:[#allocation2] sm:$0x1]
  %v6669 = vlaneseq
  %v6670 = vshrl.u32 %v6669, 7
  %v6671 = vsub.s32 0, %v6670
  %v6672 = vrot.slane %v6667, %v6671
  %6673 = vset.pattern.permute.xlu0 0
  %6674 = vperm.xlu0 %6673, %v6672
  %v6675 = vpop.permute.xlu0 %6674
  %v6677 = vadd.f32 %v6663, %v6675
  %v6678 = vadd.f32 %v6666, %v6675
  %v6679 = vld [vmem:[%s22] sm:$0x1]
  %v6680 = vld [vmem:[%s23] sm:$0x1]
  %v6683 = vlaneseq
  %v6684 = vand.u32 %v6683, 127
  %v6685 = vlaneseq
  %v6686 = vshrl.u32 %v6685, 7
  %v6687 = vsub.s32 %v6684, %v6686
  %v6688 = vrot.slane %v6677, %v6687
  %v6689 = vlaneseq
  %v6690 = vshrl.u32 %v6689, 7
  %v6691 = vsub.s32 %v6684, %v6690
  %v6692 = vrot.slane %v6678, %v6691
  %vm6693 = vcmask 1041409
  %v6694 = vsel %vm6693, %v6692, %v6688
  %vm6696 = vcmask 58368
  %v6697 = vsel %vm6696, %v6694, 0.0
  %6698 = vadd.xlane.f32.xlu0 %v6697
  %v6699 = vpop.xlane.xlu0 %6698
  %v6700 = vrcp.pop 8.0
  %v6701 = vmul.f32 %v6699, %v6700
  %v6703 = vlaneseq
  %v6704 = vshrl.u32 %v6703, 7
  %v6705 = vsub.s32 0, %v6704
  %v6706 = vrot.slane %v6701, %v6705
  %v6707 = vlaneseq
  %v6708 = vshrl.u32 %v6707, 7
  %v6709 = vsub.s32 1, %v6708
  %v6710 = vrot.slane %v6701, %v6709
  %v6713 = vsub.f32 %v6677, %v6706
  %v6714 = vsub.f32 %v6678, %v6710
  %v6715 = vmul.f32 %v6713, %v6713
  %v6716 = vmul.f32 %v6714, %v6714
  %6719 = vset.pattern.permute.xlu0 0
  %6720 = vperm.xlu0 %6719, %v6715
  %v6721 = vpop.permute.xlu0 %6720
  %6722 = vset.pattern.permute.xlu0 0
  %6723 = vperm.xlu0 %6722, %v6716
  %v6724 = vpop.permute.xlu0 %6723
  %v6725 = vlaneseq
  %v6726 = vshrl.u32 %v6725, 7
  %v6727 = vsub.s32 %v6684, %v6726
  %v6728 = vrot.slane %v6721, %v6727
  %v6729 = vlaneseq
  %v6730 = vshrl.u32 %v6729, 7
  %v6731 = vsub.s32 %v6684, %v6730
  %v6732 = vrot.slane %v6724, %v6731
  %v6733 = vsel %vm6693, %v6732, %v6728
  %v6735 = vsel %vm6696, %v6733, 0.0
  %6736 = vadd.xlane.f32.xlu0 %v6735
  %v6737 = vpop.xlane.xlu0 %6736
  %v6738 = vmul.f32 %v6737, %v6700
  %v6739 = vadd.f32 %v6738, 1e-05
  %v6740 = vrsqrt.pop %v6739
  %v6742 = vlaneseq
  %v6743 = vshrl.u32 %v6742, 7
  %v6744 = vsub.s32 0, %v6743
  %v6745 = vrot.slane %v6740, %v6744
  %v6746 = vlaneseq
  %v6747 = vshrl.u32 %v6746, 7
  %v6748 = vsub.s32 1, %v6747
  %v6749 = vrot.slane %v6740, %v6748
  %v6752 = vmul.f32 %v6713, %v6745
  %v6753 = vmul.f32 %v6714, %v6749
  %v6755 = vlaneseq
  %v6756 = vshrl.u32 %v6755, 7
  %v6757 = vsub.s32 0, %v6756
  %v6758 = vrot.slane %v6679, %v6757
  %6760 = vbcast.lane.b32.xlu0 %v6758, 256
  %v6761 = vpop.permute.xlu0 %6760
  %v6763 = vmul.f32 %v6752, %v6761
  %v6764 = vmul.f32 %v6753, %v6761
  %v6766 = vlaneseq
  %v6767 = vshrl.u32 %v6766, 7
  %v6768 = vsub.s32 0, %v6767
  %v6769 = vrot.slane %v6680, %v6768
  %6771 = vbcast.lane.b32.xlu0 %v6769, 256
  %v6772 = vpop.permute.xlu0 %6771
  %v6774 = vadd.f32 %v6763, %v6772
  %v6775 = vadd.f32 %v6764, %v6772
  %v6776 = vld [vmem:[%s24] sm:$0x1]
  %v6778 = vlaneseq
  %v6779 = vshrl.u32 %v6778, 7
  %v6780 = vsub.s32 0, %v6779
  %v6781 = vrot.slane %v6776, %v6780
  %6783 = vbcast.lane.b32.xlu0 %v6781, 256
  %v6784 = vpop.permute.xlu0 %6783
  %v6786 = vmul.f32 %v6774, %v6784
  %v6787 = vmul.f32 %v6775, %v6784
  %6790 = vset.pattern.permute.xlu0 0
  %6791 = vperm.xlu0 %6790, %v6786
  %v6792 = vpop.permute.xlu0 %6791
  %6793 = vset.pattern.permute.xlu0 0
  %6794 = vperm.xlu0 %6793, %v6787
  %v6795 = vpop.permute.xlu0 %6794
  %v6796 = vlaneseq
  %v6797 = vshrl.u32 %v6796, 7
  %v6798 = vsub.s32 %v6684, %v6797
  %v6799 = vrot.slane %v6792, %v6798
  %v6800 = vlaneseq
  %v6801 = vshrl.u32 %v6800, 7
  %v6802 = vsub.s32 %v6684, %v6801
  %v6803 = vrot.slane %v6795, %v6802
  %v6804 = vsel %vm6693, %v6803, %v6799
  %v6806 = vsel %vm6696, %v6804, 0.0
  %6807 = vadd.xlane.f32.xlu0 %v6806
  %v6808 = vpop.xlane.xlu0 %6807
  %v6809 = vld [vmem:[#allocation3] sm:$0x1]
  %v6811 = vlaneseq
  %v6812 = vshrl.u32 %v6811, 7
  %v6813 = vsub.s32 0, %v6812
  %v6814 = vrot.slane %v6809, %v6813
  %v6816 = vadd.f32 %v6808, %v6814
  %v6817 = vsub.f32 0.0, %v6816
  %v6818 = vmul.f32 %v6817, 1.442695
  %v6819 = vpow.pop %v6818
  %v6820 = vadd.f32 %v6819, 1.0
  %v6821 = vrcp.pop %v6820
  %v6822 = vmul.f32 1.0, %v6821
  %vm6823 = vcmask 1024
  %6824 = vst.msk [vmem:[%s26] sm:$0x3] %vm6823, %v6822
  // Predicated region
  $region106: #{tpu_custom_call.1} parent=0 // pred_check
    _
  $region107: #{tpu_custom_call.1} parent=0 // pred_check_branch
    %6826 = sbr.rel (0) target = $region109
  $region108: #{tpu_custom_call.1} parent=0 // pred_region
    _
  $region109: #{tpu_custom_call.1} parent=0 // pred_fallthru
    _
  // Predicated region
  $region110: #{tpu_custom_call.1} parent=0 // pred_check
    _
  $region111: #{tpu_custom_call.1} parent=0 // pred_check_branch
    %6828 = sbr.rel (0) target = $region113
  $region112: #{tpu_custom_call.1} parent=0 // pred_region
    _
  $region113: #{tpu_custom_call.1} parent=0 // pred_fallthru
    _

</llo_original>
